<compile_context>
chip_gen: v7x
topology: tpu7x:2x2x1
jax: 0.10.0
libtpu: 0.0.40
codegen_flags: <defaults>
</compile_context>

<pallas_src>
import functools
import math

import jax
import jax.numpy as jnp
from jax import lax
from jax.experimental import pallas as pl
from jax.experimental.pallas import tpu as pltpu


# ----------------------------------------------------------------------------
# Fused bidirectional LSTM-layer kernel.  One grid step = one time chunk.
#
# Ref order (n_streams = 1 for layer 0, 2 for later layers):
#   for s in streams:  x_s @ fwd-chunk g,  x_s @ bwd-chunk G-1-g      (bf16)
#   for s in streams:  W_ih_fwd[s] (Ws, 4H),  W_ih_bwd[s] (Ws, 4H)    (bf16)
#   whh_f (H, 4H) bf16, whh_b (H, 4H) bf16, b_f (1, 4H) f32, b_b (1, 4H) f32
#   out_f (tc, B, H) bf16 @ chunk g,  out_b (tc, B, H) bf16 @ chunk G-1-g
#   scratch: h_f, c_f, h_b, c_b (B, H) f32; gx_f, gx_b (tc, B, 4H) f32
#
# Gate order along the 4H axis matches PyTorch: [i, f, g, o].
# `pad` = number of zero-padded timesteps appended at the end of the sequence;
# the backward chain (which visits them first) masks its state updates there.
# ----------------------------------------------------------------------------
def _make_bilstm_kernel(tc: int, n_streams: int, H: int, pad: int):
    G4 = 4 * H

    def kernel(*refs):
        k = 0
        xf_refs = [refs[k + 2 * s] for s in range(n_streams)]
        xb_refs = [refs[k + 2 * s + 1] for s in range(n_streams)]
        k += 2 * n_streams
        wf_refs = [refs[k + 2 * s] for s in range(n_streams)]
        wb_refs = [refs[k + 2 * s + 1] for s in range(n_streams)]
        k += 2 * n_streams
        whh_f_ref, whh_b_ref, bf_ref, bb_ref = refs[k:k + 4]
        k += 4
        outf_ref, outb_ref = refs[k:k + 2]
        k += 2
        hf_ref, cf_ref, hb_ref, cb_ref, gxf_ref, gxb_ref = refs[k:k + 6]

        g = pl.program_id(0)
        B = outf_ref.shape[1]

        # Zero-init both recurrent chains at the first time chunk.
        @pl.when(g == 0)
        def _init():
            hf_ref[...] = jnp.zeros_like(hf_ref)
            cf_ref[...] = jnp.zeros_like(cf_ref)
            hb_ref[...] = jnp.zeros_like(hb_ref)
            cb_ref[...] = jnp.zeros_like(cb_ref)

        # Hoisted chunk-level input projection: one big-M bf16 matmul per
        # stream per direction (f32 MXU accumulation), summed over streams
        # (this replaces the inter-layer concatenation).
        gf = bf_ref[...]                       # (1, 4H) f32, broadcasts below
        gb = bb_ref[...]
        for s in range(n_streams):
            xf = xf_refs[s][...].reshape(tc * B, -1).astype(jnp.bfloat16)
            xb = xb_refs[s][...].reshape(tc * B, -1).astype(jnp.bfloat16)
            gf = gf + jnp.dot(xf, wf_refs[s][...],
                              preferred_element_type=jnp.float32)
            gb = gb + jnp.dot(xb, wb_refs[s][...],
                              preferred_element_type=jnp.float32)
        gxf_ref[...] = gf.reshape(tc, B, G4)
        gxb_ref[...] = gb.reshape(tc, B, G4)

        whh_f = whh_f_ref[...]                 # (H, 4H) bf16, compact RHS
        whh_b = whh_b_ref[...]

        # Lane mask selecting the cell gate 'g' (lanes [2H, 3H)) so the
        # nonlinearity is one full-vreg tanh + one full-vreg sigmoid + select.
        lane = lax.broadcasted_iota(jnp.int32, (B, G4), 1)
        cell_mask = jnp.logical_and(lane >= 2 * H, lane < 3 * H)

        def step(i, carry):
            hf, cf, hb, cb = carry
            j = tc - 1 - i  # backward chain walks its chunk in reverse

            # Two small independent recurrent matmuls per step; the scheduler
            # interleaves them while the other's MXU result is in flight.
            gate_f = gxf_ref[i] + jnp.dot(hf.astype(jnp.bfloat16), whh_f,
                                          preferred_element_type=jnp.float32)
            gate_b = gxb_ref[j] + jnp.dot(hb.astype(jnp.bfloat16), whh_b,
                                          preferred_element_type=jnp.float32)

            act_f = jnp.where(cell_mask, jnp.tanh(gate_f),
                              jax.nn.sigmoid(gate_f))
            act_b = jnp.where(cell_mask, jnp.tanh(gate_b),
                              jax.nn.sigmoid(gate_b))

            # [i | f | g | o] blocks of width H (f32, compact).
            cf_n = act_f[:, H:2 * H] * cf + act_f[:, 0:H] * act_f[:, 2 * H:3 * H]
            hf_n = act_f[:, 3 * H:4 * H] * jnp.tanh(cf_n)
            cb_n = act_b[:, H:2 * H] * cb + act_b[:, 0:H] * act_b[:, 2 * H:3 * H]
            hb_n = act_b[:, 3 * H:4 * H] * jnp.tanh(cb_n)

            if pad > 0:
                # Padded timesteps live at the END of the padded timeline; the
                # backward chain visits them FIRST (grid step 0, steps i<pad),
                # so hold its state at the zero init until real data starts.
                valid_b = jnp.logical_or(g > 0, i >= pad)
                cb_n = jnp.where(valid_b, cb_n, cb)
                hb_n = jnp.where(valid_b, hb_n, hb)

            outf_ref[i] = hf_n.astype(jnp.bfloat16)   # bf16 layer outputs
            outb_ref[j] = hb_n.astype(jnp.bfloat16)   # in-kernel time reversal
            return hf_n, cf_n, hb_n, cb_n

        carry0 = (hf_ref[...], cf_ref[...], hb_ref[...], cb_ref[...])
        hf, cf, hb, cb = lax.fori_loop(0, tc, step, carry0, unroll=True)

        # Persist recurrent state for the next time chunk.
        hf_ref[...] = hf
        cf_ref[...] = cf
        hb_ref[...] = hb
        cb_ref[...] = cb

    return kernel


def _round_up(n: int, m: int) -> int:
    return ((n + m - 1) // m) * m


def bilstm_layer(streams, lw, *, seq_len: int, tc: int):
    """One fused bidirectional LSTM layer.

    streams : list of (Tp, B, W_s) bf16 arrays (layer 0: [x]; later layers:
              [prev_forward, prev_backward]).  Tp is a multiple of tc.
    Returns (out_f, out_b), each (Tp, B, H) bf16.
    """
    Tp, B, _ = streams[0].shape
    H = lw["whh_f"].shape[0]
    G4 = 4 * H
    assert Tp % tc == 0
    G = Tp // tc
    pad = Tp - seq_len
    n_streams = len(streams)
    assert len(lw["wih_f"]) == n_streams and len(lw["wih_b"]) == n_streams

    kernel = _make_bilstm_kernel(tc, n_streams, H, pad)

    def full_spec(arr):  # whole-array block, resident across all grid steps
        return pl.BlockSpec(arr.shape, lambda g, _nd=arr.ndim: (0,) * _nd)

    in_specs = []
    inputs = []
    for s in streams:
        w = s.shape[2]
        in_specs.append(pl.BlockSpec((tc, B, w), lambda g: (g, 0, 0)))
        in_specs.append(pl.BlockSpec((tc, B, w), lambda g: (G - 1 - g, 0, 0)))
        inputs.extend([s, s])
    for wf, wb in zip(lw["wih_f"], lw["wih_b"]):
        in_specs.extend([full_spec(wf), full_spec(wb)])
        inputs.extend([wf, wb])
    for name in ("whh_f", "whh_b", "b_f", "b_b"):
        in_specs.append(full_spec(lw[name]))
        inputs.append(lw[name])

    out_specs = (
        pl.BlockSpec((tc, B, H), lambda g: (g, 0, 0)),
        pl.BlockSpec((tc, B, H), lambda g: (G - 1 - g, 0, 0)),
    )
    out_shape = (
        jax.ShapeDtypeStruct((Tp, B, H), jnp.bfloat16),
        jax.ShapeDtypeStruct((Tp, B, H), jnp.bfloat16),
    )
    scratch_shapes = [
        pltpu.VMEM((B, H), jnp.float32),        # h, forward chain
        pltpu.VMEM((B, H), jnp.float32),        # c, forward chain
        pltpu.VMEM((B, H), jnp.float32),        # h, backward chain
        pltpu.VMEM((B, H), jnp.float32),        # c, backward chain
        pltpu.VMEM((tc, B, G4), jnp.float32),   # chunk input-projection, fwd
        pltpu.VMEM((tc, B, G4), jnp.float32),   # chunk input-projection, bwd
    ]

    din_total = sum(int(s.shape[2]) for s in streams)
    flops = 4 * Tp * B * G4 * (din_total + H)          # both directions, MXU
    transcendentals = 2 * Tp * B * (2 * G4 + H)        # sigmoid+tanh per dir
    bytes_accessed = (2 * 2 * Tp * B * din_total * 2   # streams read 2x, bf16
                      + 2 * Tp * B * H * 2             # two bf16 outputs
                      + 2 * 2 * (din_total + H) * G4   # bf16 weights
                      + 2 * 4 * G4)                    # f32 biases

    out_f, out_b = pl.pallas_call(
        kernel,
        grid=(G,),
        in_specs=in_specs,
        out_specs=out_specs,
        out_shape=out_shape,
        scratch_shapes=scratch_shapes,
        compiler_params=pltpu.CompilerParams(
            # Sequential recurrence over time chunks -> "arbitrary".
            dimension_semantics=("arbitrary",),
            # Tiny footprint (<1 MiB/layer); explicit budget keeps it inside
            # v7x's 64 MiB physical / 32 MiB default-scoped VMEM.
            vmem_limit_bytes=32 * 1024 * 1024,
        ),
        cost_estimate=pl.CostEstimate(
            flops=flops, transcendentals=transcendentals,
            bytes_accessed=bytes_accessed),
    )(*inputs)
    return out_f, out_b


# ----------------------------------------------------------------------------
# Weight preparation (done ONCE, outside the jitted forward): transpose,
# combine biases, split layer>0 W_ih by source stream, cast matmul weights to
# bfloat16.  No gate / lane padding — the compact [i|f|g|o] 4H layout is used.
# ----------------------------------------------------------------------------
def _prepare_direction(p, H, first_layer):
    w_ih = jnp.asarray(p["w_ih"], jnp.float32)               # (4H, Din)
    w_hh = jnp.asarray(p["w_hh"], jnp.float32)               # (4H, H)
    bias = jnp.asarray(p["b_ih"] + p["b_hh"], jnp.float32)   # (4H,)

    wih_t = w_ih.T.astype(jnp.bfloat16)                      # (Din, 4H)
    if first_layer:
        wih_list = [wih_t]
    else:
        # Layer input = [prev_forward (H), prev_backward (H)] streams.
        wih_list = [wih_t[:H], wih_t[H:]]
    whh_t = w_hh.T.astype(jnp.bfloat16)                      # (H, 4H)
    b = bias.reshape(1, 4 * H)                               # (1, 4H) f32
    return wih_list, whh_t, b


def init_vocalnet_params(key, input_size, hidden_size, num_layers):
    """Deterministic raw params mirroring nn.LSTM / nn.Linear shapes & init."""
    raw = {"lstm": [], "linear": {}}
    stdv = 1.0 / math.sqrt(hidden_size)
    for layer in range(num_layers):
        layer_in = input_size if layer == 0 else 2 * hidden_size
        dirs = []
        for _d in range(2):  # forward, backward
            key, k1, k2, k3, k4 = jax.random.split(key, 5)
            dirs.append(dict(
                w_ih=jax.random.uniform(k1, (4 * hidden_size, layer_in),
                                        jnp.float32, -stdv, stdv),
                w_hh=jax.random.uniform(k2, (4 * hidden_size, hidden_size),
                                        jnp.float32, -stdv, stdv),
                b_ih=jax.random.uniform(k3, (4 * hidden_size,),
                                        jnp.float32, -stdv, stdv),
                b_hh=jax.random.uniform(k4, (4 * hidden_size,),
                                        jnp.float32, -stdv, stdv),
            ))
        raw["lstm"].append(dirs)
    # nn.Linear(hidden_size, 6) exists in __init__ but is unused in forward().
    key, k1, k2 = jax.random.split(key, 3)
    bound = 1.0 / math.sqrt(hidden_size)
    raw["linear"]["w"] = jax.random.uniform(k1, (6, hidden_size),
                                            jnp.float32, -bound, bound)
    raw["linear"]["b"] = jax.random.uniform(k2, (6,), jnp.float32,
                                            -bound, bound)
    return raw


def prepare_vocalnet_params(raw, hidden_size):
    H = hidden_size
    layers = []
    for idx, dirs in enumerate(raw["lstm"]):
        wih_f, whh_f, b_f = _prepare_direction(dirs[0], H, idx == 0)
        wih_b, whh_b, b_b = _prepare_direction(dirs[1], H, idx == 0)
        layers.append(dict(wih_f=wih_f, wih_b=wih_b, whh_f=whh_f, whh_b=whh_b,
                           b_f=b_f, b_b=b_b))
    return {"layers": layers}


# ----------------------------------------------------------------------------
# VocalNet.forward equivalent.
# ----------------------------------------------------------------------------
@functools.partial(jax.jit, static_argnames=("time_chunk",))
def vocalnet_forward(prepared, x, *, time_chunk=32):
    """x: (batch, seq, input_size) -> (seq, 2*hidden) when batch == 1."""
    xT = jnp.transpose(x, (1, 0, 2))            # torch.transpose(x, 0, 1)
    T, B, _ = xT.shape
    tc = max(1, min(time_chunk, T))
    Tp = _round_up(T, tc)                       # zero-pad T up to a multiple
    x_pad = jnp.pad(xT, ((0, Tp - T), (0, 0), (0, 0))).astype(jnp.bfloat16)

    streams = [x_pad]
    for lw in prepared["layers"]:
        out_f, out_b = bilstm_layer(streams, lw, seq_len=T, tc=tc)
        # No inter-layer concat: the two bf16 hidden sequences feed the next
        # layer as separate streams (its W_ih is pre-split accordingly).
        streams = [out_f, out_b]

    # Final nn.LSTM-ordered output [forward | backward], real timesteps only.
    h = jnp.concatenate([streams[0][:T], streams[1][:T]],
                        axis=-1).astype(jnp.float32)
    if h.shape[1] == 1:                         # hiddens.squeeze(1)
        h = jnp.squeeze(h, axis=1)
    return h


# ----------------------------------------------------------------------------
# Pure-JAX reference (no Pallas).  emulate_bf16=True mirrors the kernel's
# numerics (bf16 matmul inputs with f32 accumulation, bf16 layer outputs) so a
# tight tolerance checks the kernel itself rather than quantization error.
# ----------------------------------------------------------------------------
def _lstm_dir_ref(x_seq, p, reverse, emulate_bf16):
    H = p["w_hh"].shape[1]
    B = x_seq.shape[1]

    def q(v):
        return v.astype(jnp.bfloat16).astype(jnp.float32) if emulate_bf16 else v

    wih_t = q(p["w_ih"].T)
    whh_t = q(p["w_hh"].T)
    bias = (p["b_ih"] + p["b_hh"]).reshape(1, 4 * H)
    if reverse:
        x_seq = x_seq[::-1]

    def step(carry, x_t):
        h, c = carry
        gates = (q(x_t) @ wih_t + bias) + q(h) @ whh_t
        i_g = jax.nn.sigmoid(gates[:, 0 * H:1 * H])
        f_g = jax.nn.sigmoid(gates[:, 1 * H:2 * H])
        g_g = jnp.tanh(gates[:, 2 * H:3 * H])
        o_g = jax.nn.sigmoid(gates[:, 3 * H:4 * H])
        c_n = f_g * c + i_g * g_g
        h_n = o_g * jnp.tanh(c_n)
        return (h_n, c_n), h_n

    init = (jnp.zeros((B, H), jnp.float32), jnp.zeros((B, H), jnp.float32))
    _, hs = lax.scan(step, init, x_seq)
    if reverse:
        hs = hs[::-1]
    return hs


def vocalnet_ref(raw, x, emulate_bf16=True):
    h = jnp.transpose(x, (1, 0, 2)).astype(jnp.float32)
    for dirs in raw["lstm"]:
        fwd = _lstm_dir_ref(h, dirs[0], reverse=False, emulate_bf16=emulate_bf16)
        bwd = _lstm_dir_ref(h, dirs[1], reverse=True, emulate_bf16=emulate_bf16)
        h = jnp.concatenate([fwd, bwd], axis=-1)
        if emulate_bf16:
            # Mirror the kernel's bfloat16 layer outputs (inter-layer storage
            # and the final returned hidden states are bf16).
            h = h.astype(jnp.bfloat16).astype(jnp.float32)
    if h.shape[1] == 1:
        h = jnp.squeeze(h, axis=1)
    return h


if __name__ == "__main__":
    INPUT_SIZE = 16
    HIDDEN_SIZE = 32
    NUM_LAYERS = 2
    BATCH = 1   # batch must be 1 so .squeeze(1) removes the batch dim
    SEQ = 8

    key = jax.random.PRNGKey(0)
    pkey, xkey, xkey2 = jax.random.split(key, 3)
    raw = init_vocalnet_params(pkey, INPUT_SIZE, HIDDEN_SIZE, NUM_LAYERS)
    prepared = prepare_vocalnet_params(raw, HIDDEN_SIZE)

    # Check 1: seq divisible by the chunk (no padding, single grid step).
    x = jax.random.normal(xkey, (BATCH, SEQ, INPUT_SIZE), jnp.float32)
    out = jax.block_until_ready(vocalnet_forward(prepared, x, time_chunk=32))
    assert out.shape == (SEQ, 2 * HIDDEN_SIZE), out.shape
    ref = jax.block_until_ready(vocalnet_ref(raw, x, emulate_bf16=True))
    err = float(jnp.max(jnp.abs(out - ref)))
    assert jnp.allclose(out, ref, atol=5e-3, rtol=5e-3), err

    # Check 2: awkward (prime) seq length with a smaller chunk -> exercises the
    # zero-padded tail, the masked backward-chain start, and G > 1 grid steps.
    SEQ2 = 19
    x2 = jax.random.normal(xkey2, (BATCH, SEQ2, INPUT_SIZE), jnp.float32)
    out2 = jax.block_until_ready(vocalnet_forward(prepared, x2, time_chunk=8))
    assert out2.shape == (SEQ2, 2 * HIDDEN_SIZE), out2.shape
    ref2 = jax.block_until_ready(vocalnet_ref(raw, x2, emulate_bf16=True))
    err2 = float(jnp.max(jnp.abs(out2 - ref2)))
    assert jnp.allclose(out2, ref2, atol=5e-3, rtol=5e-3), err2

    print("KERNEL_OK")
</pallas_src>

<mosaic_0001>
module attributes {stable_mosaic.version = 11 : i64} {
  func.func @kernel(%arg0: i32, %arg1: memref<8x1x32xbf16, #tpu.memory_space<vmem>>, %arg2: memref<8x1x32xbf16, #tpu.memory_space<vmem>>, %arg3: memref<8x1x32xbf16, #tpu.memory_space<vmem>>, %arg4: memref<8x1x32xbf16, #tpu.memory_space<vmem>>, %arg5: memref<32x128xbf16, #tpu.memory_space<vmem>>, %arg6: memref<32x128xbf16, #tpu.memory_space<vmem>>, %arg7: memref<32x128xbf16, #tpu.memory_space<vmem>>, %arg8: memref<32x128xbf16, #tpu.memory_space<vmem>>, %arg9: memref<32x128xbf16, #tpu.memory_space<vmem>>, %arg10: memref<32x128xbf16, #tpu.memory_space<vmem>>, %arg11: memref<1x128xf32, #tpu.memory_space<vmem>>, %arg12: memref<1x128xf32, #tpu.memory_space<vmem>>, %arg13: memref<8x1x32xbf16, #tpu.memory_space<vmem>>, %arg14: memref<8x1x32xbf16, #tpu.memory_space<vmem>>, %arg15: memref<1x32xf32, #tpu.memory_space<vmem>>, %arg16: memref<1x32xf32, #tpu.memory_space<vmem>>, %arg17: memref<1x32xf32, #tpu.memory_space<vmem>>, %arg18: memref<1x32xf32, #tpu.memory_space<vmem>>, %arg19: memref<8x1x128xf32, #tpu.memory_space<vmem>>, %arg20: memref<8x1x128xf32, #tpu.memory_space<vmem>>) attributes {dimension_semantics = [#tpu.dimension_semantics<arbitrary>], iteration_bounds = array<i64: 1>, scalar_prefetch = 0 : i64, scratch_operands = 6 : i64, tpu.core_type = #tpu.core_type<tc>, window_params = [{transform_indices = @transform_0, window_bounds = array<i64: 8, 1, 32>}, {transform_indices = @transform_1, window_bounds = array<i64: 8, 1, 32>}, {transform_indices = @transform_2, window_bounds = array<i64: 8, 1, 32>}, {transform_indices = @transform_3, window_bounds = array<i64: 8, 1, 32>}, {pipeline_mode = #tpu.pipeline_mode<synchronous>, transform_indices = @transform_4, window_bounds = array<i64: 32, 128>}, {pipeline_mode = #tpu.pipeline_mode<synchronous>, transform_indices = @transform_5, window_bounds = array<i64: 32, 128>}, {pipeline_mode = #tpu.pipeline_mode<synchronous>, transform_indices = @transform_6, window_bounds = array<i64: 32, 128>}, {pipeline_mode = #tpu.pipeline_mode<synchronous>, transform_indices = @transform_7, window_bounds = array<i64: 32, 128>}, {pipeline_mode = #tpu.pipeline_mode<synchronous>, transform_indices = @transform_8, window_bounds = array<i64: 32, 128>}, {pipeline_mode = #tpu.pipeline_mode<synchronous>, transform_indices = @transform_9, window_bounds = array<i64: 32, 128>}, {pipeline_mode = #tpu.pipeline_mode<synchronous>, transform_indices = @transform_10, window_bounds = array<i64: 1, 128>}, {pipeline_mode = #tpu.pipeline_mode<synchronous>, transform_indices = @transform_11, window_bounds = array<i64: 1, 128>}, {transform_indices = @transform_12, window_bounds = array<i64: 8, 1, 32>}, {transform_indices = @transform_13, window_bounds = array<i64: 8, 1, 32>}]} {
    %c0_i32 = arith.constant 0 : i32
    %0 = arith.cmpi eq, %arg0, %c0_i32 : i32
    %1 = arith.extui %0 : i1 to i32
    %c0_i32_0 = arith.constant 0 : i32
    %2 = arith.cmpi ne, %1, %c0_i32_0 : i32
    scf.if %2 {
      %cst_158 = arith.constant 0.000000e+00 : f32
      %487 = vector.broadcast %cst_158 : f32 to vector<1x32xf32>
      %c0_159 = arith.constant 0 : index
      %c0_160 = arith.constant 0 : index
      %488 = vector.load %arg15[%c0_159, %c0_160] : memref<1x32xf32, #tpu.memory_space<vmem>>, vector<1x32xf32>
      tpu.vector_store %arg15[%c0_159, %c0_160], %487 {strides = array<i32>} : memref<1x32xf32, #tpu.memory_space<vmem>>, vector<1x32xf32>,
      %cst_161 = arith.constant 0.000000e+00 : f32
      %489 = vector.broadcast %cst_161 : f32 to vector<1x32xf32>
      %c0_162 = arith.constant 0 : index
      %c0_163 = arith.constant 0 : index
      %490 = vector.load %arg16[%c0_162, %c0_163] : memref<1x32xf32, #tpu.memory_space<vmem>>, vector<1x32xf32>
      tpu.vector_store %arg16[%c0_162, %c0_163], %489 {strides = array<i32>} : memref<1x32xf32, #tpu.memory_space<vmem>>, vector<1x32xf32>,
      %cst_164 = arith.constant 0.000000e+00 : f32
      %491 = vector.broadcast %cst_164 : f32 to vector<1x32xf32>
      %c0_165 = arith.constant 0 : index
      %c0_166 = arith.constant 0 : index
      %492 = vector.load %arg17[%c0_165, %c0_166] : memref<1x32xf32, #tpu.memory_space<vmem>>, vector<1x32xf32>
      tpu.vector_store %arg17[%c0_165, %c0_166], %491 {strides = array<i32>} : memref<1x32xf32, #tpu.memory_space<vmem>>, vector<1x32xf32>,
      %cst_167 = arith.constant 0.000000e+00 : f32
      %493 = vector.broadcast %cst_167 : f32 to vector<1x32xf32>
      %c0_168 = arith.constant 0 : index
      %c0_169 = arith.constant 0 : index
      %494 = vector.load %arg18[%c0_168, %c0_169] : memref<1x32xf32, #tpu.memory_space<vmem>>, vector<1x32xf32>
      tpu.vector_store %arg18[%c0_168, %c0_169], %493 {strides = array<i32>} : memref<1x32xf32, #tpu.memory_space<vmem>>, vector<1x32xf32>,
    } else {
    }
    %c0 = arith.constant 0 : index
    %c0_1 = arith.constant 0 : index
    %3 = vector.load %arg11[%c0, %c0_1] : memref<1x128xf32, #tpu.memory_space<vmem>>, vector<1x128xf32>
    %c0_2 = arith.constant 0 : index
    %c0_3 = arith.constant 0 : index
    %4 = vector.load %arg12[%c0_2, %c0_3] : memref<1x128xf32, #tpu.memory_space<vmem>>, vector<1x128xf32>
    %c0_4 = arith.constant 0 : index
    %c0_5 = arith.constant 0 : index
    %c0_6 = arith.constant 0 : index
    %5 = vector.load %arg1[%c0_4, %c0_5, %c0_6] : memref<8x1x32xbf16, #tpu.memory_space<vmem>>, vector<8x1x32xbf16>
    %6 = vector.shape_cast %5 : vector<8x1x32xbf16> to vector<8x32xbf16>
    %c0_7 = arith.constant 0 : index
    %c0_8 = arith.constant 0 : index
    %c0_9 = arith.constant 0 : index
    %7 = vector.load %arg2[%c0_7, %c0_8, %c0_9] : memref<8x1x32xbf16, #tpu.memory_space<vmem>>, vector<8x1x32xbf16>
    %8 = vector.shape_cast %7 : vector<8x1x32xbf16> to vector<8x32xbf16>
    %c0_10 = arith.constant 0 : index
    %c0_11 = arith.constant 0 : index
    %9 = vector.load %arg5[%c0_10, %c0_11] : memref<32x128xbf16, #tpu.memory_space<vmem>>, vector<32x128xbf16>
    %cst = arith.constant dense<0.000000e+00> : vector<8x128xf32>
    %10 = tpu.matmul %6, %9, %cst {dimension_numbers = #tpu.dot_dimension_numbers<[1], [0], [0], [1], [0, 0, 1, 1], [], []>} : vector<8x32xbf16>, vector<32x128xbf16>, vector<8x128xf32> -> vector<8x128xf32>
    %11 = vector.broadcast %3 : vector<1x128xf32> to vector<8x128xf32>
    %12 = arith.addf %11, %10 : vector<8x128xf32>
    %c0_12 = arith.constant 0 : index
    %c0_13 = arith.constant 0 : index
    %13 = vector.load %arg6[%c0_12, %c0_13] : memref<32x128xbf16, #tpu.memory_space<vmem>>, vector<32x128xbf16>
    %cst_14 = arith.constant dense<0.000000e+00> : vector<8x128xf32>
    %14 = tpu.matmul %8, %13, %cst_14 {dimension_numbers = #tpu.dot_dimension_numbers<[1], [0], [0], [1], [0, 0, 1, 1], [], []>} : vector<8x32xbf16>, vector<32x128xbf16>, vector<8x128xf32> -> vector<8x128xf32>
    %15 = vector.broadcast %4 : vector<1x128xf32> to vector<8x128xf32>
    %16 = arith.addf %15, %14 : vector<8x128xf32>
    %c0_15 = arith.constant 0 : index
    %c0_16 = arith.constant 0 : index
    %c0_17 = arith.constant 0 : index
    %17 = vector.load %arg3[%c0_15, %c0_16, %c0_17] : memref<8x1x32xbf16, #tpu.memory_space<vmem>>, vector<8x1x32xbf16>
    %18 = vector.shape_cast %17 : vector<8x1x32xbf16> to vector<8x32xbf16>
    %c0_18 = arith.constant 0 : index
    %c0_19 = arith.constant 0 : index
    %c0_20 = arith.constant 0 : index
    %19 = vector.load %arg4[%c0_18, %c0_19, %c0_20] : memref<8x1x32xbf16, #tpu.memory_space<vmem>>, vector<8x1x32xbf16>
    %20 = vector.shape_cast %19 : vector<8x1x32xbf16> to vector<8x32xbf16>
    %c0_21 = arith.constant 0 : index
    %c0_22 = arith.constant 0 : index
    %21 = vector.load %arg7[%c0_21, %c0_22] : memref<32x128xbf16, #tpu.memory_space<vmem>>, vector<32x128xbf16>
    %cst_23 = arith.constant dense<0.000000e+00> : vector<8x128xf32>
    %22 = tpu.matmul %18, %21, %cst_23 {dimension_numbers = #tpu.dot_dimension_numbers<[1], [0], [0], [1], [0, 0, 1, 1], [], []>} : vector<8x32xbf16>, vector<32x128xbf16>, vector<8x128xf32> -> vector<8x128xf32>
    %23 = arith.addf %12, %22 : vector<8x128xf32>
    %c0_24 = arith.constant 0 : index
    %c0_25 = arith.constant 0 : index
    %24 = vector.load %arg8[%c0_24, %c0_25] : memref<32x128xbf16, #tpu.memory_space<vmem>>, vector<32x128xbf16>
    %cst_26 = arith.constant dense<0.000000e+00> : vector<8x128xf32>
    %25 = tpu.matmul %20, %24, %cst_26 {dimension_numbers = #tpu.dot_dimension_numbers<[1], [0], [0], [1], [0, 0, 1, 1], [], []>} : vector<8x32xbf16>, vector<32x128xbf16>, vector<8x128xf32> -> vector<8x128xf32>
    %26 = arith.addf %16, %25 : vector<8x128xf32>
    %27 = vector.shape_cast %23 : vector<8x128xf32> to vector<8x1x128xf32>
    %c0_27 = arith.constant 0 : index
    %c0_28 = arith.constant 0 : index
    %c0_29 = arith.constant 0 : index
    %28 = vector.load %arg19[%c0_27, %c0_28, %c0_29] : memref<8x1x128xf32, #tpu.memory_space<vmem>>, vector<8x1x128xf32>
    tpu.vector_store %arg19[%c0_27, %c0_28, %c0_29], %27 {strides = array<i32>} : memref<8x1x128xf32, #tpu.memory_space<vmem>>, vector<8x1x128xf32>,
    %29 = vector.shape_cast %26 : vector<8x128xf32> to vector<8x1x128xf32>
    %c0_30 = arith.constant 0 : index
    %c0_31 = arith.constant 0 : index
    %c0_32 = arith.constant 0 : index
    %30 = vector.load %arg20[%c0_30, %c0_31, %c0_32] : memref<8x1x128xf32, #tpu.memory_space<vmem>>, vector<8x1x128xf32>
    tpu.vector_store %arg20[%c0_30, %c0_31, %c0_32], %29 {strides = array<i32>} : memref<8x1x128xf32, #tpu.memory_space<vmem>>, vector<8x1x128xf32>,
    %c0_33 = arith.constant 0 : index
    %c0_34 = arith.constant 0 : index
    %31 = vector.load %arg9[%c0_33, %c0_34] : memref<32x128xbf16, #tpu.memory_space<vmem>>, vector<32x128xbf16>
    %c0_35 = arith.constant 0 : index
    %c0_36 = arith.constant 0 : index
    %32 = vector.load %arg10[%c0_35, %c0_36] : memref<32x128xbf16, #tpu.memory_space<vmem>>, vector<32x128xbf16>
    %33 = tpu.iota {dimensions = array<i32: 1>} : vector<1x128xi32>
    %c64_i32 = arith.constant 64 : i32
    %34 = vector.broadcast %c64_i32 : i32 to vector<1x128xi32>
    %35 = arith.cmpi sge, %33, %34 : vector<1x128xi32>
    %c96_i32 = arith.constant 96 : i32
    %36 = vector.broadcast %c96_i32 : i32 to vector<1x128xi32>
    %37 = arith.cmpi slt, %33, %36 : vector<1x128xi32>
    %38 = arith.andi %35, %37 : vector<1x128xi1>
    %c0_37 = arith.constant 0 : index
    %c0_38 = arith.constant 0 : index
    %39 = vector.load %arg15[%c0_37, %c0_38] : memref<1x32xf32, #tpu.memory_space<vmem>>, vector<1x32xf32>
    %c0_39 = arith.constant 0 : index
    %c0_40 = arith.constant 0 : index
    %40 = vector.load %arg16[%c0_39, %c0_40] : memref<1x32xf32, #tpu.memory_space<vmem>>, vector<1x32xf32>
    %c0_41 = arith.constant 0 : index
    %c0_42 = arith.constant 0 : index
    %41 = vector.load %arg17[%c0_41, %c0_42] : memref<1x32xf32, #tpu.memory_space<vmem>>, vector<1x32xf32>
    %c0_43 = arith.constant 0 : index
    %c0_44 = arith.constant 0 : index
    %42 = vector.load %arg18[%c0_43, %c0_44] : memref<1x32xf32, #tpu.memory_space<vmem>>, vector<1x32xf32>
    %c0_i32_45 = arith.constant 0 : i32
    %c7_i32 = arith.constant 7 : i32
    %43 = arith.subi %c7_i32, %c0_i32_45 : i32
    %44 = arith.index_cast %c0_i32_45 : i32 to index
    %c0_46 = arith.constant 0 : index
    %c0_47 = arith.constant 0 : index
    %45 = vector.load %arg19[%44, %c0_46, %c0_47] : memref<8x1x128xf32, #tpu.memory_space<vmem>>, vector<1x1x128xf32>
    %46 = vector.shape_cast %45 : vector<1x1x128xf32> to vector<1x128xf32>
    %47 = arith.truncf %39 : vector<1x32xf32> to vector<1x32xbf16>
    %cst_48 = arith.constant dense<0.000000e+00> : vector<1x128xf32>
    %48 = tpu.matmul %47, %31, %cst_48 {dimension_numbers = #tpu.dot_dimension_numbers<[1], [0], [0], [1], [0, 0, 1, 1], [], []>} : vector<1x32xbf16>, vector<32x128xbf16>, vector<1x128xf32> -> vector<1x128xf32>
    %49 = arith.addf %46, %48 : vector<1x128xf32>
    %50 = arith.index_cast %43 : i32 to index
    %c0_49 = arith.constant 0 : index
    %c0_50 = arith.constant 0 : index
    %51 = vector.load %arg20[%50, %c0_49, %c0_50] : memref<8x1x128xf32, #tpu.memory_space<vmem>>, vector<1x1x128xf32>
    %52 = vector.shape_cast %51 : vector<1x1x128xf32> to vector<1x128xf32>
    %53 = arith.truncf %41 : vector<1x32xf32> to vector<1x32xbf16>
    %cst_51 = arith.constant dense<0.000000e+00> : vector<1x128xf32>
    %54 = tpu.matmul %53, %32, %cst_51 {dimension_numbers = #tpu.dot_dimension_numbers<[1], [0], [0], [1], [0, 0, 1, 1], [], []>} : vector<1x32xbf16>, vector<32x128xbf16>, vector<1x128xf32> -> vector<1x128xf32>
    %55 = arith.addf %52, %54 : vector<1x128xf32>
    %56 = math.tanh %49 : vector<1x128xf32>
    %57 = arith.negf %49 : vector<1x128xf32>
    %58 = math.exp %57 : vector<1x128xf32>
    %cst_52 = arith.constant 1.000000e+00 : f32
    %59 = vector.broadcast %cst_52 : f32 to vector<1x128xf32>
    %60 = arith.addf %59, %58 : vector<1x128xf32>
    %61 = arith.divf %59, %60 : vector<1x128xf32>
    %62 = arith.select %38, %56, %61 : vector<1x128xi1>, vector<1x128xf32>
    %63 = math.tanh %55 : vector<1x128xf32>
    %64 = arith.negf %55 : vector<1x128xf32>
    %65 = math.exp %64 : vector<1x128xf32>
    %cst_53 = arith.constant 1.000000e+00 : f32
    %66 = vector.broadcast %cst_53 : f32 to vector<1x128xf32>
    %67 = arith.addf %66, %65 : vector<1x128xf32>
    %68 = arith.divf %66, %67 : vector<1x128xf32>
    %69 = arith.select %38, %63, %68 : vector<1x128xi1>, vector<1x128xf32>
    %70 = vector.extract_strided_slice %62 {offsets = [0, 32], sizes = [1, 32], strides = [1, 1]} : vector<1x128xf32> to vector<1x32xf32>
    %71 = arith.mulf %70, %40 : vector<1x32xf32>
    %72 = vector.extract_strided_slice %62 {offsets = [0, 0], sizes = [1, 32], strides = [1, 1]} : vector<1x128xf32> to vector<1x32xf32>
    %73 = vector.extract_strided_slice %62 {offsets = [0, 64], sizes = [1, 32], strides = [1, 1]} : vector<1x128xf32> to vector<1x32xf32>
    %74 = arith.mulf %72, %73 : vector<1x32xf32>
    %75 = arith.addf %71, %74 : vector<1x32xf32>
    %76 = vector.extract_strided_slice %62 {offsets = [0, 96], sizes = [1, 32], strides = [1, 1]} : vector<1x128xf32> to vector<1x32xf32>
    %77 = math.tanh %75 : vector<1x32xf32>
    %78 = arith.mulf %76, %77 : vector<1x32xf32>
    %79 = vector.extract_strided_slice %69 {offsets = [0, 32], sizes = [1, 32], strides = [1, 1]} : vector<1x128xf32> to vector<1x32xf32>
    %80 = arith.mulf %79, %42 : vector<1x32xf32>
    %81 = vector.extract_strided_slice %69 {offsets = [0, 0], sizes = [1, 32], strides = [1, 1]} : vector<1x128xf32> to vector<1x32xf32>
    %82 = vector.extract_strided_slice %69 {offsets = [0, 64], sizes = [1, 32], strides = [1, 1]} : vector<1x128xf32> to vector<1x32xf32>
    %83 = arith.mulf %81, %82 : vector<1x32xf32>
    %84 = arith.addf %80, %83 : vector<1x32xf32>
    %85 = vector.extract_strided_slice %69 {offsets = [0, 96], sizes = [1, 32], strides = [1, 1]} : vector<1x128xf32> to vector<1x32xf32>
    %86 = math.tanh %84 : vector<1x32xf32>
    %87 = arith.mulf %85, %86 : vector<1x32xf32>
    %88 = arith.truncf %78 : vector<1x32xf32> to vector<1x32xbf16>
    %89 = arith.index_cast %c0_i32_45 : i32 to index
    %c0_54 = arith.constant 0 : index
    %c0_55 = arith.constant 0 : index
    %90 = vector.load %arg13[%89, %c0_54, %c0_55] : memref<8x1x32xbf16, #tpu.memory_space<vmem>>, vector<1x1x32xbf16>
    %91 = vector.shape_cast %90 : vector<1x1x32xbf16> to vector<1x32xbf16>
    %92 = vector.shape_cast %88 : vector<1x32xbf16> to vector<1x1x32xbf16>
    tpu.vector_store %arg13[%89, %c0_54, %c0_55], %92 {strides = array<i32>} : memref<8x1x32xbf16, #tpu.memory_space<vmem>>, vector<1x1x32xbf16>,
    %93 = arith.truncf %87 : vector<1x32xf32> to vector<1x32xbf16>
    %94 = arith.index_cast %43 : i32 to index
    %c0_56 = arith.constant 0 : index
    %c0_57 = arith.constant 0 : index
    %95 = vector.load %arg14[%94, %c0_56, %c0_57] : memref<8x1x32xbf16, #tpu.memory_space<vmem>>, vector<1x1x32xbf16>
    %96 = vector.shape_cast %95 : vector<1x1x32xbf16> to vector<1x32xbf16>
    %97 = vector.shape_cast %93 : vector<1x32xbf16> to vector<1x1x32xbf16>
    tpu.vector_store %arg14[%94, %c0_56, %c0_57], %97 {strides = array<i32>} : memref<8x1x32xbf16, #tpu.memory_space<vmem>>, vector<1x1x32xbf16>,
    %c1_i32 = arith.constant 1 : i32
    %c7_i32_58 = arith.constant 7 : i32
    %98 = arith.subi %c7_i32_58, %c1_i32 : i32
    %99 = arith.index_cast %c1_i32 : i32 to index
    %c0_59 = arith.constant 0 : index
    %c0_60 = arith.constant 0 : index
    %100 = vector.load %arg19[%99, %c0_59, %c0_60] : memref<8x1x128xf32, #tpu.memory_space<vmem>>, vector<1x1x128xf32>
    %101 = vector.shape_cast %100 : vector<1x1x128xf32> to vector<1x128xf32>
    %102 = arith.truncf %78 : vector<1x32xf32> to vector<1x32xbf16>
    %cst_61 = arith.constant dense<0.000000e+00> : vector<1x128xf32>
    %103 = tpu.matmul %102, %31, %cst_61 {dimension_numbers = #tpu.dot_dimension_numbers<[1], [0], [0], [1], [0, 0, 1, 1], [], []>} : vector<1x32xbf16>, vector<32x128xbf16>, vector<1x128xf32> -> vector<1x128xf32>
    %104 = arith.addf %101, %103 : vector<1x128xf32>
    %105 = arith.index_cast %98 : i32 to index
    %c0_62 = arith.constant 0 : index
    %c0_63 = arith.constant 0 : index
    %106 = vector.load %arg20[%105, %c0_62, %c0_63] : memref<8x1x128xf32, #tpu.memory_space<vmem>>, vector<1x1x128xf32>
    %107 = vector.shape_cast %106 : vector<1x1x128xf32> to vector<1x128xf32>
    %108 = arith.truncf %87 : vector<1x32xf32> to vector<1x32xbf16>
    %cst_64 = arith.constant dense<0.000000e+00> : vector<1x128xf32>
    %109 = tpu.matmul %108, %32, %cst_64 {dimension_numbers = #tpu.dot_dimension_numbers<[1], [0], [0], [1], [0, 0, 1, 1], [], []>} : vector<1x32xbf16>, vector<32x128xbf16>, vector<1x128xf32> -> vector<1x128xf32>
    %110 = arith.addf %107, %109 : vector<1x128xf32>
    %111 = math.tanh %104 : vector<1x128xf32>
    %112 = arith.negf %104 : vector<1x128xf32>
    %113 = math.exp %112 : vector<1x128xf32>
    %cst_65 = arith.constant 1.000000e+00 : f32
    %114 = vector.broadcast %cst_65 : f32 to vector<1x128xf32>
    %115 = arith.addf %114, %113 : vector<1x128xf32>
    %116 = arith.divf %114, %115 : vector<1x128xf32>
    %117 = arith.select %38, %111, %116 : vector<1x128xi1>, vector<1x128xf32>
    %118 = math.tanh %110 : vector<1x128xf32>
    %119 = arith.negf %110 : vector<1x128xf32>
    %120 = math.exp %119 : vector<1x128xf32>
    %cst_66 = arith.constant 1.000000e+00 : f32
    %121 = vector.broadcast %cst_66 : f32 to vector<1x128xf32>
    %122 = arith.addf %121, %120 : vector<1x128xf32>
    %123 = arith.divf %121, %122 : vector<1x128xf32>
    %124 = arith.select %38, %118, %123 : vector<1x128xi1>, vector<1x128xf32>
    %125 = vector.extract_strided_slice %117 {offsets = [0, 32], sizes = [1, 32], strides = [1, 1]} : vector<1x128xf32> to vector<1x32xf32>
    %126 = arith.mulf %125, %75 : vector<1x32xf32>
    %127 = vector.extract_strided_slice %117 {offsets = [0, 0], sizes = [1, 32], strides = [1, 1]} : vector<1x128xf32> to vector<1x32xf32>
    %128 = vector.extract_strided_slice %117 {offsets = [0, 64], sizes = [1, 32], strides = [1, 1]} : vector<1x128xf32> to vector<1x32xf32>
    %129 = arith.mulf %127, %128 : vector<1x32xf32>
    %130 = arith.addf %126, %129 : vector<1x32xf32>
    %131 = vector.extract_strided_slice %117 {offsets = [0, 96], sizes = [1, 32], strides = [1, 1]} : vector<1x128xf32> to vector<1x32xf32>
    %132 = math.tanh %130 : vector<1x32xf32>
    %133 = arith.mulf %131, %132 : vector<1x32xf32>
    %134 = vector.extract_strided_slice %124 {offsets = [0, 32], sizes = [1, 32], strides = [1, 1]} : vector<1x128xf32> to vector<1x32xf32>
    %135 = arith.mulf %134, %84 : vector<1x32xf32>
    %136 = vector.extract_strided_slice %124 {offsets = [0, 0], sizes = [1, 32], strides = [1, 1]} : vector<1x128xf32> to vector<1x32xf32>
    %137 = vector.extract_strided_slice %124 {offsets = [0, 64], sizes = [1, 32], strides = [1, 1]} : vector<1x128xf32> to vector<1x32xf32>
    %138 = arith.mulf %136, %137 : vector<1x32xf32>
    %139 = arith.addf %135, %138 : vector<1x32xf32>
    %140 = vector.extract_strided_slice %124 {offsets = [0, 96], sizes = [1, 32], strides = [1, 1]} : vector<1x128xf32> to vector<1x32xf32>
    %141 = math.tanh %139 : vector<1x32xf32>
    %142 = arith.mulf %140, %141 : vector<1x32xf32>
    %143 = arith.truncf %133 : vector<1x32xf32> to vector<1x32xbf16>
    %144 = arith.index_cast %c1_i32 : i32 to index
    %c0_67 = arith.constant 0 : index
    %c0_68 = arith.constant 0 : index
    %145 = vector.load %arg13[%144, %c0_67, %c0_68] : memref<8x1x32xbf16, #tpu.memory_space<vmem>>, vector<1x1x32xbf16>
    %146 = vector.shape_cast %145 : vector<1x1x32xbf16> to vector<1x32xbf16>
    %147 = vector.shape_cast %143 : vector<1x32xbf16> to vector<1x1x32xbf16>
    tpu.vector_store %arg13[%144, %c0_67, %c0_68], %147 {strides = array<i32>} : memref<8x1x32xbf16, #tpu.memory_space<vmem>>, vector<1x1x32xbf16>,
    %148 = arith.truncf %142 : vector<1x32xf32> to vector<1x32xbf16>
    %149 = arith.index_cast %98 : i32 to index
    %c0_69 = arith.constant 0 : index
    %c0_70 = arith.constant 0 : index
    %150 = vector.load %arg14[%149, %c0_69, %c0_70] : memref<8x1x32xbf16, #tpu.memory_space<vmem>>, vector<1x1x32xbf16>
    %151 = vector.shape_cast %150 : vector<1x1x32xbf16> to vector<1x32xbf16>
    %152 = vector.shape_cast %148 : vector<1x32xbf16> to vector<1x1x32xbf16>
    tpu.vector_store %arg14[%149, %c0_69, %c0_70], %152 {strides = array<i32>} : memref<8x1x32xbf16, #tpu.memory_space<vmem>>, vector<1x1x32xbf16>,
    %c2_i32 = arith.constant 2 : i32
    %c7_i32_71 = arith.constant 7 : i32
    %153 = arith.subi %c7_i32_71, %c2_i32 : i32
    %154 = arith.index_cast %c2_i32 : i32 to index
    %c0_72 = arith.constant 0 : index
    %c0_73 = arith.constant 0 : index
    %155 = vector.load %arg19[%154, %c0_72, %c0_73] : memref<8x1x128xf32, #tpu.memory_space<vmem>>, vector<1x1x128xf32>
    %156 = vector.shape_cast %155 : vector<1x1x128xf32> to vector<1x128xf32>
    %157 = arith.truncf %133 : vector<1x32xf32> to vector<1x32xbf16>
    %cst_74 = arith.constant dense<0.000000e+00> : vector<1x128xf32>
    %158 = tpu.matmul %157, %31, %cst_74 {dimension_numbers = #tpu.dot_dimension_numbers<[1], [0], [0], [1], [0, 0, 1, 1], [], []>} : vector<1x32xbf16>, vector<32x128xbf16>, vector<1x128xf32> -> vector<1x128xf32>
    %159 = arith.addf %156, %158 : vector<1x128xf32>
    %160 = arith.index_cast %153 : i32 to index
    %c0_75 = arith.constant 0 : index
    %c0_76 = arith.constant 0 : index
    %161 = vector.load %arg20[%160, %c0_75, %c0_76] : memref<8x1x128xf32, #tpu.memory_space<vmem>>, vector<1x1x128xf32>
    %162 = vector.shape_cast %161 : vector<1x1x128xf32> to vector<1x128xf32>
    %163 = arith.truncf %142 : vector<1x32xf32> to vector<1x32xbf16>
    %cst_77 = arith.constant dense<0.000000e+00> : vector<1x128xf32>
    %164 = tpu.matmul %163, %32, %cst_77 {dimension_numbers = #tpu.dot_dimension_numbers<[1], [0], [0], [1], [0, 0, 1, 1], [], []>} : vector<1x32xbf16>, vector<32x128xbf16>, vector<1x128xf32> -> vector<1x128xf32>
    %165 = arith.addf %162, %164 : vector<1x128xf32>
    %166 = math.tanh %159 : vector<1x128xf32>
    %167 = arith.negf %159 : vector<1x128xf32>
    %168 = math.exp %167 : vector<1x128xf32>
    %cst_78 = arith.constant 1.000000e+00 : f32
    %169 = vector.broadcast %cst_78 : f32 to vector<1x128xf32>
    %170 = arith.addf %169, %168 : vector<1x128xf32>
    %171 = arith.divf %169, %170 : vector<1x128xf32>
    %172 = arith.select %38, %166, %171 : vector<1x128xi1>, vector<1x128xf32>
    %173 = math.tanh %165 : vector<1x128xf32>
    %174 = arith.negf %165 : vector<1x128xf32>
    %175 = math.exp %174 : vector<1x128xf32>
    %cst_79 = arith.constant 1.000000e+00 : f32
    %176 = vector.broadcast %cst_79 : f32 to vector<1x128xf32>
    %177 = arith.addf %176, %175 : vector<1x128xf32>
    %178 = arith.divf %176, %177 : vector<1x128xf32>
    %179 = arith.select %38, %173, %178 : vector<1x128xi1>, vector<1x128xf32>
    %180 = vector.extract_strided_slice %172 {offsets = [0, 32], sizes = [1, 32], strides = [1, 1]} : vector<1x128xf32> to vector<1x32xf32>
    %181 = arith.mulf %180, %130 : vector<1x32xf32>
    %182 = vector.extract_strided_slice %172 {offsets = [0, 0], sizes = [1, 32], strides = [1, 1]} : vector<1x128xf32> to vector<1x32xf32>
    %183 = vector.extract_strided_slice %172 {offsets = [0, 64], sizes = [1, 32], strides = [1, 1]} : vector<1x128xf32> to vector<1x32xf32>
    %184 = arith.mulf %182, %183 : vector<1x32xf32>
    %185 = arith.addf %181, %184 : vector<1x32xf32>
    %186 = vector.extract_strided_slice %172 {offsets = [0, 96], sizes = [1, 32], strides = [1, 1]} : vector<1x128xf32> to vector<1x32xf32>
    %187 = math.tanh %185 : vector<1x32xf32>
    %188 = arith.mulf %186, %187 : vector<1x32xf32>
    %189 = vector.extract_strided_slice %179 {offsets = [0, 32], sizes = [1, 32], strides = [1, 1]} : vector<1x128xf32> to vector<1x32xf32>
    %190 = arith.mulf %189, %139 : vector<1x32xf32>
    %191 = vector.extract_strided_slice %179 {offsets = [0, 0], sizes = [1, 32], strides = [1, 1]} : vector<1x128xf32> to vector<1x32xf32>
    %192 = vector.extract_strided_slice %179 {offsets = [0, 64], sizes = [1, 32], strides = [1, 1]} : vector<1x128xf32> to vector<1x32xf32>
    %193 = arith.mulf %191, %192 : vector<1x32xf32>
    %194 = arith.addf %190, %193 : vector<1x32xf32>
    %195 = vector.extract_strided_slice %179 {offsets = [0, 96], sizes = [1, 32], strides = [1, 1]} : vector<1x128xf32> to vector<1x32xf32>
    %196 = math.tanh %194 : vector<1x32xf32>
    %197 = arith.mulf %195, %196 : vector<1x32xf32>
    %198 = arith.truncf %188 : vector<1x32xf32> to vector<1x32xbf16>
    %199 = arith.index_cast %c2_i32 : i32 to index
    %c0_80 = arith.constant 0 : index
    %c0_81 = arith.constant 0 : index
    %200 = vector.load %arg13[%199, %c0_80, %c0_81] : memref<8x1x32xbf16, #tpu.memory_space<vmem>>, vector<1x1x32xbf16>
    %201 = vector.shape_cast %200 : vector<1x1x32xbf16> to vector<1x32xbf16>
    %202 = vector.shape_cast %198 : vector<1x32xbf16> to vector<1x1x32xbf16>
    tpu.vector_store %arg13[%199, %c0_80, %c0_81], %202 {strides = array<i32>} : memref<8x1x32xbf16, #tpu.memory_space<vmem>>, vector<1x1x32xbf16>,
    %203 = arith.truncf %197 : vector<1x32xf32> to vector<1x32xbf16>
    %204 = arith.index_cast %153 : i32 to index
    %c0_82 = arith.constant 0 : index
    %c0_83 = arith.constant 0 : index
    %205 = vector.load %arg14[%204, %c0_82, %c0_83] : memref<8x1x32xbf16, #tpu.memory_space<vmem>>, vector<1x1x32xbf16>
    %206 = vector.shape_cast %205 : vector<1x1x32xbf16> to vector<1x32xbf16>
    %207 = vector.shape_cast %203 : vector<1x32xbf16> to vector<1x1x32xbf16>
    tpu.vector_store %arg14[%204, %c0_82, %c0_83], %207 {strides = array<i32>} : memref<8x1x32xbf16, #tpu.memory_space<vmem>>, vector<1x1x32xbf16>,
    %c3_i32 = arith.constant 3 : i32
    %c7_i32_84 = arith.constant 7 : i32
    %208 = arith.subi %c7_i32_84, %c3_i32 : i32
    %209 = arith.index_cast %c3_i32 : i32 to index
    %c0_85 = arith.constant 0 : index
    %c0_86 = arith.constant 0 : index
    %210 = vector.load %arg19[%209, %c0_85, %c0_86] : memref<8x1x128xf32, #tpu.memory_space<vmem>>, vector<1x1x128xf32>
    %211 = vector.shape_cast %210 : vector<1x1x128xf32> to vector<1x128xf32>
    %212 = arith.truncf %188 : vector<1x32xf32> to vector<1x32xbf16>
    %cst_87 = arith.constant dense<0.000000e+00> : vector<1x128xf32>
    %213 = tpu.matmul %212, %31, %cst_87 {dimension_numbers = #tpu.dot_dimension_numbers<[1], [0], [0], [1], [0, 0, 1, 1], [], []>} : vector<1x32xbf16>, vector<32x128xbf16>, vector<1x128xf32> -> vector<1x128xf32>
    %214 = arith.addf %211, %213 : vector<1x128xf32>
    %215 = arith.index_cast %208 : i32 to index
    %c0_88 = arith.constant 0 : index
    %c0_89 = arith.constant 0 : index
    %216 = vector.load %arg20[%215, %c0_88, %c0_89] : memref<8x1x128xf32, #tpu.memory_space<vmem>>, vector<1x1x128xf32>
    %217 = vector.shape_cast %216 : vector<1x1x128xf32> to vector<1x128xf32>
    %218 = arith.truncf %197 : vector<1x32xf32> to vector<1x32xbf16>
    %cst_90 = arith.constant dense<0.000000e+00> : vector<1x128xf32>
    %219 = tpu.matmul %218, %32, %cst_90 {dimension_numbers = #tpu.dot_dimension_numbers<[1], [0], [0], [1], [0, 0, 1, 1], [], []>} : vector<1x32xbf16>, vector<32x128xbf16>, vector<1x128xf32> -> vector<1x128xf32>
    %220 = arith.addf %217, %219 : vector<1x128xf32>
    %221 = math.tanh %214 : vector<1x128xf32>
    %222 = arith.negf %214 : vector<1x128xf32>
    %223 = math.exp %222 : vector<1x128xf32>
    %cst_91 = arith.constant 1.000000e+00 : f32
    %224 = vector.broadcast %cst_91 : f32 to vector<1x128xf32>
    %225 = arith.addf %224, %223 : vector<1x128xf32>
    %226 = arith.divf %224, %225 : vector<1x128xf32>
    %227 = arith.select %38, %221, %226 : vector<1x128xi1>, vector<1x128xf32>
    %228 = math.tanh %220 : vector<1x128xf32>
    %229 = arith.negf %220 : vector<1x128xf32>
    %230 = math.exp %229 : vector<1x128xf32>
    %cst_92 = arith.constant 1.000000e+00 : f32
    %231 = vector.broadcast %cst_92 : f32 to vector<1x128xf32>
    %232 = arith.addf %231, %230 : vector<1x128xf32>
    %233 = arith.divf %231, %232 : vector<1x128xf32>
    %234 = arith.select %38, %228, %233 : vector<1x128xi1>, vector<1x128xf32>
    %235 = vector.extract_strided_slice %227 {offsets = [0, 32], sizes = [1, 32], strides = [1, 1]} : vector<1x128xf32> to vector<1x32xf32>
    %236 = arith.mulf %235, %185 : vector<1x32xf32>
    %237 = vector.extract_strided_slice %227 {offsets = [0, 0], sizes = [1, 32], strides = [1, 1]} : vector<1x128xf32> to vector<1x32xf32>
    %238 = vector.extract_strided_slice %227 {offsets = [0, 64], sizes = [1, 32], strides = [1, 1]} : vector<1x128xf32> to vector<1x32xf32>
    %239 = arith.mulf %237, %238 : vector<1x32xf32>
    %240 = arith.addf %236, %239 : vector<1x32xf32>
    %241 = vector.extract_strided_slice %227 {offsets = [0, 96], sizes = [1, 32], strides = [1, 1]} : vector<1x128xf32> to vector<1x32xf32>
    %242 = math.tanh %240 : vector<1x32xf32>
    %243 = arith.mulf %241, %242 : vector<1x32xf32>
    %244 = vector.extract_strided_slice %234 {offsets = [0, 32], sizes = [1, 32], strides = [1, 1]} : vector<1x128xf32> to vector<1x32xf32>
    %245 = arith.mulf %244, %194 : vector<1x32xf32>
    %246 = vector.extract_strided_slice %234 {offsets = [0, 0], sizes = [1, 32], strides = [1, 1]} : vector<1x128xf32> to vector<1x32xf32>
    %247 = vector.extract_strided_slice %234 {offsets = [0, 64], sizes = [1, 32], strides = [1, 1]} : vector<1x128xf32> to vector<1x32xf32>
    %248 = arith.mulf %246, %247 : vector<1x32xf32>
    %249 = arith.addf %245, %248 : vector<1x32xf32>
    %250 = vector.extract_strided_slice %234 {offsets = [0, 96], sizes = [1, 32], strides = [1, 1]} : vector<1x128xf32> to vector<1x32xf32>
    %251 = math.tanh %249 : vector<1x32xf32>
    %252 = arith.mulf %250, %251 : vector<1x32xf32>
    %253 = arith.truncf %243 : vector<1x32xf32> to vector<1x32xbf16>
    %254 = arith.index_cast %c3_i32 : i32 to index
    %c0_93 = arith.constant 0 : index
    %c0_94 = arith.constant 0 : index
    %255 = vector.load %arg13[%254, %c0_93, %c0_94] : memref<8x1x32xbf16, #tpu.memory_space<vmem>>, vector<1x1x32xbf16>
    %256 = vector.shape_cast %255 : vector<1x1x32xbf16> to vector<1x32xbf16>
    %257 = vector.shape_cast %253 : vector<1x32xbf16> to vector<1x1x32xbf16>
    tpu.vector_store %arg13[%254, %c0_93, %c0_94], %257 {strides = array<i32>} : memref<8x1x32xbf16, #tpu.memory_space<vmem>>, vector<1x1x32xbf16>,
    %258 = arith.truncf %252 : vector<1x32xf32> to vector<1x32xbf16>
    %259 = arith.index_cast %208 : i32 to index
    %c0_95 = arith.constant 0 : index
    %c0_96 = arith.constant 0 : index
    %260 = vector.load %arg14[%259, %c0_95, %c0_96] : memref<8x1x32xbf16, #tpu.memory_space<vmem>>, vector<1x1x32xbf16>
    %261 = vector.shape_cast %260 : vector<1x1x32xbf16> to vector<1x32xbf16>
    %262 = vector.shape_cast %258 : vector<1x32xbf16> to vector<1x1x32xbf16>
    tpu.vector_store %arg14[%259, %c0_95, %c0_96], %262 {strides = array<i32>} : memref<8x1x32xbf16, #tpu.memory_space<vmem>>, vector<1x1x32xbf16>,
    %c4_i32 = arith.constant 4 : i32
    %c7_i32_97 = arith.constant 7 : i32
    %263 = arith.subi %c7_i32_97, %c4_i32 : i32
    %264 = arith.index_cast %c4_i32 : i32 to index
    %c0_98 = arith.constant 0 : index
    %c0_99 = arith.constant 0 : index
    %265 = vector.load %arg19[%264, %c0_98, %c0_99] : memref<8x1x128xf32, #tpu.memory_space<vmem>>, vector<1x1x128xf32>
    %266 = vector.shape_cast %265 : vector<1x1x128xf32> to vector<1x128xf32>
    %267 = arith.truncf %243 : vector<1x32xf32> to vector<1x32xbf16>
    %cst_100 = arith.constant dense<0.000000e+00> : vector<1x128xf32>
    %268 = tpu.matmul %267, %31, %cst_100 {dimension_numbers = #tpu.dot_dimension_numbers<[1], [0], [0], [1], [0, 0, 1, 1], [], []>} : vector<1x32xbf16>, vector<32x128xbf16>, vector<1x128xf32> -> vector<1x128xf32>
    %269 = arith.addf %266, %268 : vector<1x128xf32>
    %270 = arith.index_cast %263 : i32 to index
    %c0_101 = arith.constant 0 : index
    %c0_102 = arith.constant 0 : index
    %271 = vector.load %arg20[%270, %c0_101, %c0_102] : memref<8x1x128xf32, #tpu.memory_space<vmem>>, vector<1x1x128xf32>
    %272 = vector.shape_cast %271 : vector<1x1x128xf32> to vector<1x128xf32>
    %273 = arith.truncf %252 : vector<1x32xf32> to vector<1x32xbf16>
    %cst_103 = arith.constant dense<0.000000e+00> : vector<1x128xf32>
    %274 = tpu.matmul %273, %32, %cst_103 {dimension_numbers = #tpu.dot_dimension_numbers<[1], [0], [0], [1], [0, 0, 1, 1], [], []>} : vector<1x32xbf16>, vector<32x128xbf16>, vector<1x128xf32> -> vector<1x128xf32>
    %275 = arith.addf %272, %274 : vector<1x128xf32>
    %276 = math.tanh %269 : vector<1x128xf32>
    %277 = arith.negf %269 : vector<1x128xf32>
    %278 = math.exp %277 : vector<1x128xf32>
    %cst_104 = arith.constant 1.000000e+00 : f32
    %279 = vector.broadcast %cst_104 : f32 to vector<1x128xf32>
    %280 = arith.addf %279, %278 : vector<1x128xf32>
    %281 = arith.divf %279, %280 : vector<1x128xf32>
    %282 = arith.select %38, %276, %281 : vector<1x128xi1>, vector<1x128xf32>
    %283 = math.tanh %275 : vector<1x128xf32>
    %284 = arith.negf %275 : vector<1x128xf32>
    %285 = math.exp %284 : vector<1x128xf32>
    %cst_105 = arith.constant 1.000000e+00 : f32
    %286 = vector.broadcast %cst_105 : f32 to vector<1x128xf32>
    %287 = arith.addf %286, %285 : vector<1x128xf32>
    %288 = arith.divf %286, %287 : vector<1x128xf32>
    %289 = arith.select %38, %283, %288 : vector<1x128xi1>, vector<1x128xf32>
    %290 = vector.extract_strided_slice %282 {offsets = [0, 32], sizes = [1, 32], strides = [1, 1]} : vector<1x128xf32> to vector<1x32xf32>
    %291 = arith.mulf %290, %240 : vector<1x32xf32>
    %292 = vector.extract_strided_slice %282 {offsets = [0, 0], sizes = [1, 32], strides = [1, 1]} : vector<1x128xf32> to vector<1x32xf32>
    %293 = vector.extract_strided_slice %282 {offsets = [0, 64], sizes = [1, 32], strides = [1, 1]} : vector<1x128xf32> to vector<1x32xf32>
    %294 = arith.mulf %292, %293 : vector<1x32xf32>
    %295 = arith.addf %291, %294 : vector<1x32xf32>
    %296 = vector.extract_strided_slice %282 {offsets = [0, 96], sizes = [1, 32], strides = [1, 1]} : vector<1x128xf32> to vector<1x32xf32>
    %297 = math.tanh %295 : vector<1x32xf32>
    %298 = arith.mulf %296, %297 : vector<1x32xf32>
    %299 = vector.extract_strided_slice %289 {offsets = [0, 32], sizes = [1, 32], strides = [1, 1]} : vector<1x128xf32> to vector<1x32xf32>
    %300 = arith.mulf %299, %249 : vector<1x32xf32>
    %301 = vector.extract_strided_slice %289 {offsets = [0, 0], sizes = [1, 32], strides = [1, 1]} : vector<1x128xf32> to vector<1x32xf32>
    %302 = vector.extract_strided_slice %289 {offsets = [0, 64], sizes = [1, 32], strides = [1, 1]} : vector<1x128xf32> to vector<1x32xf32>
    %303 = arith.mulf %301, %302 : vector<1x32xf32>
    %304 = arith.addf %300, %303 : vector<1x32xf32>
    %305 = vector.extract_strided_slice %289 {offsets = [0, 96], sizes = [1, 32], strides = [1, 1]} : vector<1x128xf32> to vector<1x32xf32>
    %306 = math.tanh %304 : vector<1x32xf32>
    %307 = arith.mulf %305, %306 : vector<1x32xf32>
    %308 = arith.truncf %298 : vector<1x32xf32> to vector<1x32xbf16>
    %309 = arith.index_cast %c4_i32 : i32 to index
    %c0_106 = arith.constant 0 : index
    %c0_107 = arith.constant 0 : index
    %310 = vector.load %arg13[%309, %c0_106, %c0_107] : memref<8x1x32xbf16, #tpu.memory_space<vmem>>, vector<1x1x32xbf16>
    %311 = vector.shape_cast %310 : vector<1x1x32xbf16> to vector<1x32xbf16>
    %312 = vector.shape_cast %308 : vector<1x32xbf16> to vector<1x1x32xbf16>
    tpu.vector_store %arg13[%309, %c0_106, %c0_107], %312 {strides = array<i32>} : memref<8x1x32xbf16, #tpu.memory_space<vmem>>, vector<1x1x32xbf16>,
    %313 = arith.truncf %307 : vector<1x32xf32> to vector<1x32xbf16>
    %314 = arith.index_cast %263 : i32 to index
    %c0_108 = arith.constant 0 : index
    %c0_109 = arith.constant 0 : index
    %315 = vector.load %arg14[%314, %c0_108, %c0_109] : memref<8x1x32xbf16, #tpu.memory_space<vmem>>, vector<1x1x32xbf16>
    %316 = vector.shape_cast %315 : vector<1x1x32xbf16> to vector<1x32xbf16>
    %317 = vector.shape_cast %313 : vector<1x32xbf16> to vector<1x1x32xbf16>
    tpu.vector_store %arg14[%314, %c0_108, %c0_109], %317 {strides = array<i32>} : memref<8x1x32xbf16, #tpu.memory_space<vmem>>, vector<1x1x32xbf16>,
    %c5_i32 = arith.constant 5 : i32
    %c7_i32_110 = arith.constant 7 : i32
    %318 = arith.subi %c7_i32_110, %c5_i32 : i32
    %319 = arith.index_cast %c5_i32 : i32 to index
    %c0_111 = arith.constant 0 : index
    %c0_112 = arith.constant 0 : index
    %320 = vector.load %arg19[%319, %c0_111, %c0_112] : memref<8x1x128xf32, #tpu.memory_space<vmem>>, vector<1x1x128xf32>
    %321 = vector.shape_cast %320 : vector<1x1x128xf32> to vector<1x128xf32>
    %322 = arith.truncf %298 : vector<1x32xf32> to vector<1x32xbf16>
    %cst_113 = arith.constant dense<0.000000e+00> : vector<1x128xf32>
    %323 = tpu.matmul %322, %31, %cst_113 {dimension_numbers = #tpu.dot_dimension_numbers<[1], [0], [0], [1], [0, 0, 1, 1], [], []>} : vector<1x32xbf16>, vector<32x128xbf16>, vector<1x128xf32> -> vector<1x128xf32>
    %324 = arith.addf %321, %323 : vector<1x128xf32>
    %325 = arith.index_cast %318 : i32 to index
    %c0_114 = arith.constant 0 : index
    %c0_115 = arith.constant 0 : index
    %326 = vector.load %arg20[%325, %c0_114, %c0_115] : memref<8x1x128xf32, #tpu.memory_space<vmem>>, vector<1x1x128xf32>
    %327 = vector.shape_cast %326 : vector<1x1x128xf32> to vector<1x128xf32>
    %328 = arith.truncf %307 : vector<1x32xf32> to vector<1x32xbf16>
    %cst_116 = arith.constant dense<0.000000e+00> : vector<1x128xf32>
    %329 = tpu.matmul %328, %32, %cst_116 {dimension_numbers = #tpu.dot_dimension_numbers<[1], [0], [0], [1], [0, 0, 1, 1], [], []>} : vector<1x32xbf16>, vector<32x128xbf16>, vector<1x128xf32> -> vector<1x128xf32>
    %330 = arith.addf %327, %329 : vector<1x128xf32>
    %331 = math.tanh %324 : vector<1x128xf32>
    %332 = arith.negf %324 : vector<1x128xf32>
    %333 = math.exp %332 : vector<1x128xf32>
    %cst_117 = arith.constant 1.000000e+00 : f32
    %334 = vector.broadcast %cst_117 : f32 to vector<1x128xf32>
    %335 = arith.addf %334, %333 : vector<1x128xf32>
    %336 = arith.divf %334, %335 : vector<1x128xf32>
    %337 = arith.select %38, %331, %336 : vector<1x128xi1>, vector<1x128xf32>
    %338 = math.tanh %330 : vector<1x128xf32>
    %339 = arith.negf %330 : vector<1x128xf32>
    %340 = math.exp %339 : vector<1x128xf32>
    %cst_118 = arith.constant 1.000000e+00 : f32
    %341 = vector.broadcast %cst_118 : f32 to vector<1x128xf32>
    %342 = arith.addf %341, %340 : vector<1x128xf32>
    %343 = arith.divf %341, %342 : vector<1x128xf32>
    %344 = arith.select %38, %338, %343 : vector<1x128xi1>, vector<1x128xf32>
    %345 = vector.extract_strided_slice %337 {offsets = [0, 32], sizes = [1, 32], strides = [1, 1]} : vector<1x128xf32> to vector<1x32xf32>
    %346 = arith.mulf %345, %295 : vector<1x32xf32>
    %347 = vector.extract_strided_slice %337 {offsets = [0, 0], sizes = [1, 32], strides = [1, 1]} : vector<1x128xf32> to vector<1x32xf32>
    %348 = vector.extract_strided_slice %337 {offsets = [0, 64], sizes = [1, 32], strides = [1, 1]} : vector<1x128xf32> to vector<1x32xf32>
    %349 = arith.mulf %347, %348 : vector<1x32xf32>
    %350 = arith.addf %346, %349 : vector<1x32xf32>
    %351 = vector.extract_strided_slice %337 {offsets = [0, 96], sizes = [1, 32], strides = [1, 1]} : vector<1x128xf32> to vector<1x32xf32>
    %352 = math.tanh %350 : vector<1x32xf32>
    %353 = arith.mulf %351, %352 : vector<1x32xf32>
    %354 = vector.extract_strided_slice %344 {offsets = [0, 32], sizes = [1, 32], strides = [1, 1]} : vector<1x128xf32> to vector<1x32xf32>
    %355 = arith.mulf %354, %304 : vector<1x32xf32>
    %356 = vector.extract_strided_slice %344 {offsets = [0, 0], sizes = [1, 32], strides = [1, 1]} : vector<1x128xf32> to vector<1x32xf32>
    %357 = vector.extract_strided_slice %344 {offsets = [0, 64], sizes = [1, 32], strides = [1, 1]} : vector<1x128xf32> to vector<1x32xf32>
    %358 = arith.mulf %356, %357 : vector<1x32xf32>
    %359 = arith.addf %355, %358 : vector<1x32xf32>
    %360 = vector.extract_strided_slice %344 {offsets = [0, 96], sizes = [1, 32], strides = [1, 1]} : vector<1x128xf32> to vector<1x32xf32>
    %361 = math.tanh %359 : vector<1x32xf32>
    %362 = arith.mulf %360, %361 : vector<1x32xf32>
    %363 = arith.truncf %353 : vector<1x32xf32> to vector<1x32xbf16>
    %364 = arith.index_cast %c5_i32 : i32 to index
    %c0_119 = arith.constant 0 : index
    %c0_120 = arith.constant 0 : index
    %365 = vector.load %arg13[%364, %c0_119, %c0_120] : memref<8x1x32xbf16, #tpu.memory_space<vmem>>, vector<1x1x32xbf16>
    %366 = vector.shape_cast %365 : vector<1x1x32xbf16> to vector<1x32xbf16>
    %367 = vector.shape_cast %363 : vector<1x32xbf16> to vector<1x1x32xbf16>
    tpu.vector_store %arg13[%364, %c0_119, %c0_120], %367 {strides = array<i32>} : memref<8x1x32xbf16, #tpu.memory_space<vmem>>, vector<1x1x32xbf16>,
    %368 = arith.truncf %362 : vector<1x32xf32> to vector<1x32xbf16>
    %369 = arith.index_cast %318 : i32 to index
    %c0_121 = arith.constant 0 : index
    %c0_122 = arith.constant 0 : index
    %370 = vector.load %arg14[%369, %c0_121, %c0_122] : memref<8x1x32xbf16, #tpu.memory_space<vmem>>, vector<1x1x32xbf16>
    %371 = vector.shape_cast %370 : vector<1x1x32xbf16> to vector<1x32xbf16>
    %372 = vector.shape_cast %368 : vector<1x32xbf16> to vector<1x1x32xbf16>
    tpu.vector_store %arg14[%369, %c0_121, %c0_122], %372 {strides = array<i32>} : memref<8x1x32xbf16, #tpu.memory_space<vmem>>, vector<1x1x32xbf16>,
    %c6_i32 = arith.constant 6 : i32
    %c7_i32_123 = arith.constant 7 : i32
    %373 = arith.subi %c7_i32_123, %c6_i32 : i32
    %374 = arith.index_cast %c6_i32 : i32 to index
    %c0_124 = arith.constant 0 : index
    %c0_125 = arith.constant 0 : index
    %375 = vector.load %arg19[%374, %c0_124, %c0_125] : memref<8x1x128xf32, #tpu.memory_space<vmem>>, vector<1x1x128xf32>
    %376 = vector.shape_cast %375 : vector<1x1x128xf32> to vector<1x128xf32>
    %377 = arith.truncf %353 : vector<1x32xf32> to vector<1x32xbf16>
    %cst_126 = arith.constant dense<0.000000e+00> : vector<1x128xf32>
    %378 = tpu.matmul %377, %31, %cst_126 {dimension_numbers = #tpu.dot_dimension_numbers<[1], [0], [0], [1], [0, 0, 1, 1], [], []>} : vector<1x32xbf16>, vector<32x128xbf16>, vector<1x128xf32> -> vector<1x128xf32>
    %379 = arith.addf %376, %378 : vector<1x128xf32>
    %380 = arith.index_cast %373 : i32 to index
    %c0_127 = arith.constant 0 : index
    %c0_128 = arith.constant 0 : index
    %381 = vector.load %arg20[%380, %c0_127, %c0_128] : memref<8x1x128xf32, #tpu.memory_space<vmem>>, vector<1x1x128xf32>
    %382 = vector.shape_cast %381 : vector<1x1x128xf32> to vector<1x128xf32>
    %383 = arith.truncf %362 : vector<1x32xf32> to vector<1x32xbf16>
    %cst_129 = arith.constant dense<0.000000e+00> : vector<1x128xf32>
    %384 = tpu.matmul %383, %32, %cst_129 {dimension_numbers = #tpu.dot_dimension_numbers<[1], [0], [0], [1], [0, 0, 1, 1], [], []>} : vector<1x32xbf16>, vector<32x128xbf16>, vector<1x128xf32> -> vector<1x128xf32>
    %385 = arith.addf %382, %384 : vector<1x128xf32>
    %386 = math.tanh %379 : vector<1x128xf32>
    %387 = arith.negf %379 : vector<1x128xf32>
    %388 = math.exp %387 : vector<1x128xf32>
    %cst_130 = arith.constant 1.000000e+00 : f32
    %389 = vector.broadcast %cst_130 : f32 to vector<1x128xf32>
    %390 = arith.addf %389, %388 : vector<1x128xf32>
    %391 = arith.divf %389, %390 : vector<1x128xf32>
    %392 = arith.select %38, %386, %391 : vector<1x128xi1>, vector<1x128xf32>
    %393 = math.tanh %385 : vector<1x128xf32>
    %394 = arith.negf %385 : vector<1x128xf32>
    %395 = math.exp %394 : vector<1x128xf32>
    %cst_131 = arith.constant 1.000000e+00 : f32
    %396 = vector.broadcast %cst_131 : f32 to vector<1x128xf32>
    %397 = arith.addf %396, %395 : vector<1x128xf32>
    %398 = arith.divf %396, %397 : vector<1x128xf32>
    %399 = arith.select %38, %393, %398 : vector<1x128xi1>, vector<1x128xf32>
    %400 = vector.extract_strided_slice %392 {offsets = [0, 32], sizes = [1, 32], strides = [1, 1]} : vector<1x128xf32> to vector<1x32xf32>
    %401 = arith.mulf %400, %350 : vector<1x32xf32>
    %402 = vector.extract_strided_slice %392 {offsets = [0, 0], sizes = [1, 32], strides = [1, 1]} : vector<1x128xf32> to vector<1x32xf32>
    %403 = vector.extract_strided_slice %392 {offsets = [0, 64], sizes = [1, 32], strides = [1, 1]} : vector<1x128xf32> to vector<1x32xf32>
    %404 = arith.mulf %402, %403 : vector<1x32xf32>
    %405 = arith.addf %401, %404 : vector<1x32xf32>
    %406 = vector.extract_strided_slice %392 {offsets = [0, 96], sizes = [1, 32], strides = [1, 1]} : vector<1x128xf32> to vector<1x32xf32>
    %407 = math.tanh %405 : vector<1x32xf32>
    %408 = arith.mulf %406, %407 : vector<1x32xf32>
    %409 = vector.extract_strided_slice %399 {offsets = [0, 32], sizes = [1, 32], strides = [1, 1]} : vector<1x128xf32> to vector<1x32xf32>
    %410 = arith.mulf %409, %359 : vector<1x32xf32>
    %411 = vector.extract_strided_slice %399 {offsets = [0, 0], sizes = [1, 32], strides = [1, 1]} : vector<1x128xf32> to vector<1x32xf32>
    %412 = vector.extract_strided_slice %399 {offsets = [0, 64], sizes = [1, 32], strides = [1, 1]} : vector<1x128xf32> to vector<1x32xf32>
    %413 = arith.mulf %411, %412 : vector<1x32xf32>
    %414 = arith.addf %410, %413 : vector<1x32xf32>
    %415 = vector.extract_strided_slice %399 {offsets = [0, 96], sizes = [1, 32], strides = [1, 1]} : vector<1x128xf32> to vector<1x32xf32>
    %416 = math.tanh %414 : vector<1x32xf32>
    %417 = arith.mulf %415, %416 : vector<1x32xf32>
    %418 = arith.truncf %408 : vector<1x32xf32> to vector<1x32xbf16>
    %419 = arith.index_cast %c6_i32 : i32 to index
    %c0_132 = arith.constant 0 : index
    %c0_133 = arith.constant 0 : index
    %420 = vector.load %arg13[%419, %c0_132, %c0_133] : memref<8x1x32xbf16, #tpu.memory_space<vmem>>, vector<1x1x32xbf16>
    %421 = vector.shape_cast %420 : vector<1x1x32xbf16> to vector<1x32xbf16>
    %422 = vector.shape_cast %418 : vector<1x32xbf16> to vector<1x1x32xbf16>
    tpu.vector_store %arg13[%419, %c0_132, %c0_133], %422 {strides = array<i32>} : memref<8x1x32xbf16, #tpu.memory_space<vmem>>, vector<1x1x32xbf16>,
    %423 = arith.truncf %417 : vector<1x32xf32> to vector<1x32xbf16>
    %424 = arith.index_cast %373 : i32 to index
    %c0_134 = arith.constant 0 : index
    %c0_135 = arith.constant 0 : index
    %425 = vector.load %arg14[%424, %c0_134, %c0_135] : memref<8x1x32xbf16, #tpu.memory_space<vmem>>, vector<1x1x32xbf16>
    %426 = vector.shape_cast %425 : vector<1x1x32xbf16> to vector<1x32xbf16>
    %427 = vector.shape_cast %423 : vector<1x32xbf16> to vector<1x1x32xbf16>
    tpu.vector_store %arg14[%424, %c0_134, %c0_135], %427 {strides = array<i32>} : memref<8x1x32xbf16, #tpu.memory_space<vmem>>, vector<1x1x32xbf16>,
    %c7_i32_136 = arith.constant 7 : i32
    %c7_i32_137 = arith.constant 7 : i32
    %428 = arith.subi %c7_i32_137, %c7_i32_136 : i32
    %429 = arith.index_cast %c7_i32_136 : i32 to index
    %c0_138 = arith.constant 0 : index
    %c0_139 = arith.constant 0 : index
    %430 = vector.load %arg19[%429, %c0_138, %c0_139] : memref<8x1x128xf32, #tpu.memory_space<vmem>>, vector<1x1x128xf32>
    %431 = vector.shape_cast %430 : vector<1x1x128xf32> to vector<1x128xf32>
    %432 = arith.truncf %408 : vector<1x32xf32> to vector<1x32xbf16>
    %cst_140 = arith.constant dense<0.000000e+00> : vector<1x128xf32>
    %433 = tpu.matmul %432, %31, %cst_140 {dimension_numbers = #tpu.dot_dimension_numbers<[1], [0], [0], [1], [0, 0, 1, 1], [], []>} : vector<1x32xbf16>, vector<32x128xbf16>, vector<1x128xf32> -> vector<1x128xf32>
    %434 = arith.addf %431, %433 : vector<1x128xf32>
    %435 = arith.index_cast %428 : i32 to index
    %c0_141 = arith.constant 0 : index
    %c0_142 = arith.constant 0 : index
    %436 = vector.load %arg20[%435, %c0_141, %c0_142] : memref<8x1x128xf32, #tpu.memory_space<vmem>>, vector<1x1x128xf32>
    %437 = vector.shape_cast %436 : vector<1x1x128xf32> to vector<1x128xf32>
    %438 = arith.truncf %417 : vector<1x32xf32> to vector<1x32xbf16>
    %cst_143 = arith.constant dense<0.000000e+00> : vector<1x128xf32>
    %439 = tpu.matmul %438, %32, %cst_143 {dimension_numbers = #tpu.dot_dimension_numbers<[1], [0], [0], [1], [0, 0, 1, 1], [], []>} : vector<1x32xbf16>, vector<32x128xbf16>, vector<1x128xf32> -> vector<1x128xf32>
    %440 = arith.addf %437, %439 : vector<1x128xf32>
    %441 = math.tanh %434 : vector<1x128xf32>
    %442 = arith.negf %434 : vector<1x128xf32>
    %443 = math.exp %442 : vector<1x128xf32>
    %cst_144 = arith.constant 1.000000e+00 : f32
    %444 = vector.broadcast %cst_144 : f32 to vector<1x128xf32>
    %445 = arith.addf %444, %443 : vector<1x128xf32>
    %446 = arith.divf %444, %445 : vector<1x128xf32>
    %447 = arith.select %38, %441, %446 : vector<1x128xi1>, vector<1x128xf32>
    %448 = math.tanh %440 : vector<1x128xf32>
    %449 = arith.negf %440 : vector<1x128xf32>
    %450 = math.exp %449 : vector<1x128xf32>
    %cst_145 = arith.constant 1.000000e+00 : f32
    %451 = vector.broadcast %cst_145 : f32 to vector<1x128xf32>
    %452 = arith.addf %451, %450 : vector<1x128xf32>
    %453 = arith.divf %451, %452 : vector<1x128xf32>
    %454 = arith.select %38, %448, %453 : vector<1x128xi1>, vector<1x128xf32>
    %455 = vector.extract_strided_slice %447 {offsets = [0, 32], sizes = [1, 32], strides = [1, 1]} : vector<1x128xf32> to vector<1x32xf32>
    %456 = arith.mulf %455, %405 : vector<1x32xf32>
    %457 = vector.extract_strided_slice %447 {offsets = [0, 0], sizes = [1, 32], strides = [1, 1]} : vector<1x128xf32> to vector<1x32xf32>
    %458 = vector.extract_strided_slice %447 {offsets = [0, 64], sizes = [1, 32], strides = [1, 1]} : vector<1x128xf32> to vector<1x32xf32>
    %459 = arith.mulf %457, %458 : vector<1x32xf32>
    %460 = arith.addf %456, %459 : vector<1x32xf32>
    %461 = vector.extract_strided_slice %447 {offsets = [0, 96], sizes = [1, 32], strides = [1, 1]} : vector<1x128xf32> to vector<1x32xf32>
    %462 = math.tanh %460 : vector<1x32xf32>
    %463 = arith.mulf %461, %462 : vector<1x32xf32>
    %464 = vector.extract_strided_slice %454 {offsets = [0, 32], sizes = [1, 32], strides = [1, 1]} : vector<1x128xf32> to vector<1x32xf32>
    %465 = arith.mulf %464, %414 : vector<1x32xf32>
    %466 = vector.extract_strided_slice %454 {offsets = [0, 0], sizes = [1, 32], strides = [1, 1]} : vector<1x128xf32> to vector<1x32xf32>
    %467 = vector.extract_strided_slice %454 {offsets = [0, 64], sizes = [1, 32], strides = [1, 1]} : vector<1x128xf32> to vector<1x32xf32>
    %468 = arith.mulf %466, %467 : vector<1x32xf32>
    %469 = arith.addf %465, %468 : vector<1x32xf32>
    %470 = vector.extract_strided_slice %454 {offsets = [0, 96], sizes = [1, 32], strides = [1, 1]} : vector<1x128xf32> to vector<1x32xf32>
    %471 = math.tanh %469 : vector<1x32xf32>
    %472 = arith.mulf %470, %471 : vector<1x32xf32>
    %473 = arith.truncf %463 : vector<1x32xf32> to vector<1x32xbf16>
    %474 = arith.index_cast %c7_i32_136 : i32 to index
    %c0_146 = arith.constant 0 : index
    %c0_147 = arith.constant 0 : index
    %475 = vector.load %arg13[%474, %c0_146, %c0_147] : memref<8x1x32xbf16, #tpu.memory_space<vmem>>, vector<1x1x32xbf16>
    %476 = vector.shape_cast %475 : vector<1x1x32xbf16> to vector<1x32xbf16>
    %477 = vector.shape_cast %473 : vector<1x32xbf16> to vector<1x1x32xbf16>
    tpu.vector_store %arg13[%474, %c0_146, %c0_147], %477 {strides = array<i32>} : memref<8x1x32xbf16, #tpu.memory_space<vmem>>, vector<1x1x32xbf16>,
    %478 = arith.truncf %472 : vector<1x32xf32> to vector<1x32xbf16>
    %479 = arith.index_cast %428 : i32 to index
    %c0_148 = arith.constant 0 : index
    %c0_149 = arith.constant 0 : index
    %480 = vector.load %arg14[%479, %c0_148, %c0_149] : memref<8x1x32xbf16, #tpu.memory_space<vmem>>, vector<1x1x32xbf16>
    %481 = vector.shape_cast %480 : vector<1x1x32xbf16> to vector<1x32xbf16>
    %482 = vector.shape_cast %478 : vector<1x32xbf16> to vector<1x1x32xbf16>
    tpu.vector_store %arg14[%479, %c0_148, %c0_149], %482 {strides = array<i32>} : memref<8x1x32xbf16, #tpu.memory_space<vmem>>, vector<1x1x32xbf16>,
    %c8_i32 = arith.constant 8 : i32
    %c0_150 = arith.constant 0 : index
    %c0_151 = arith.constant 0 : index
    %483 = vector.load %arg15[%c0_150, %c0_151] : memref<1x32xf32, #tpu.memory_space<vmem>>, vector<1x32xf32>
    tpu.vector_store %arg15[%c0_150, %c0_151], %463 {strides = array<i32>} : memref<1x32xf32, #tpu.memory_space<vmem>>, vector<1x32xf32>,
    %c0_152 = arith.constant 0 : index
    %c0_153 = arith.constant 0 : index
    %484 = vector.load %arg16[%c0_152, %c0_153] : memref<1x32xf32, #tpu.memory_space<vmem>>, vector<1x32xf32>
    tpu.vector_store %arg16[%c0_152, %c0_153], %460 {strides = array<i32>} : memref<1x32xf32, #tpu.memory_space<vmem>>, vector<1x32xf32>,
    %c0_154 = arith.constant 0 : index
    %c0_155 = arith.constant 0 : index
    %485 = vector.load %arg17[%c0_154, %c0_155] : memref<1x32xf32, #tpu.memory_space<vmem>>, vector<1x32xf32>
    tpu.vector_store %arg17[%c0_154, %c0_155], %472 {strides = array<i32>} : memref<1x32xf32, #tpu.memory_space<vmem>>, vector<1x32xf32>,
    %c0_156 = arith.constant 0 : index
    %c0_157 = arith.constant 0 : index
    %486 = vector.load %arg18[%c0_156, %c0_157] : memref<1x32xf32, #tpu.memory_space<vmem>>, vector<1x32xf32>
    tpu.vector_store %arg18[%c0_156, %c0_157], %469 {strides = array<i32>} : memref<1x32xf32, #tpu.memory_space<vmem>>, vector<1x32xf32>,
    return
  }
  func.func @transform_0(%arg0: i32) -> (i32, i32, i32) {
    %c0_i32 = arith.constant 0 : i32
    %c0_i32_0 = arith.constant 0 : i32
    %c0_i32_1 = arith.constant 0 : i32
    return %arg0, %c0_i32, %c0_i32_0 : i32, i32, i32
  }
  func.func @transform_1(%arg0: i32) -> (i32, i32, i32) {
    %c0_i32 = arith.constant 0 : i32
    %0 = arith.subi %c0_i32, %arg0 : i32
    %c0_i32_0 = arith.constant 0 : i32
    %c0_i32_1 = arith.constant 0 : i32
    %c0_i32_2 = arith.constant 0 : i32
    return %0, %c0_i32_0, %c0_i32_1 : i32, i32, i32
  }
  func.func @transform_2(%arg0: i32) -> (i32, i32, i32) {
    %c0_i32 = arith.constant 0 : i32
    %c0_i32_0 = arith.constant 0 : i32
    %c0_i32_1 = arith.constant 0 : i32
    return %arg0, %c0_i32, %c0_i32_0 : i32, i32, i32
  }
  func.func @transform_3(%arg0: i32) -> (i32, i32, i32) {
    %c0_i32 = arith.constant 0 : i32
    %0 = arith.subi %c0_i32, %arg0 : i32
    %c0_i32_0 = arith.constant 0 : i32
    %c0_i32_1 = arith.constant 0 : i32
    %c0_i32_2 = arith.constant 0 : i32
    return %0, %c0_i32_0, %c0_i32_1 : i32, i32, i32
  }
  func.func @transform_4(%arg0: i32) -> (i32, i32) {
    %c0_i32 = arith.constant 0 : i32
    %c0_i32_0 = arith.constant 0 : i32
    %c0_i32_1 = arith.constant 0 : i32
    return %c0_i32, %c0_i32_0 : i32, i32
  }
  func.func @transform_5(%arg0: i32) -> (i32, i32) {
    %c0_i32 = arith.constant 0 : i32
    %c0_i32_0 = arith.constant 0 : i32
    %c0_i32_1 = arith.constant 0 : i32
    return %c0_i32, %c0_i32_0 : i32, i32
  }
  func.func @transform_6(%arg0: i32) -> (i32, i32) {
    %c0_i32 = arith.constant 0 : i32
    %c0_i32_0 = arith.constant 0 : i32
    %c0_i32_1 = arith.constant 0 : i32
    return %c0_i32, %c0_i32_0 : i32, i32
  }
  func.func @transform_7(%arg0: i32) -> (i32, i32) {
    %c0_i32 = arith.constant 0 : i32
    %c0_i32_0 = arith.constant 0 : i32
    %c0_i32_1 = arith.constant 0 : i32
    return %c0_i32, %c0_i32_0 : i32, i32
  }
  func.func @transform_8(%arg0: i32) -> (i32, i32) {
    %c0_i32 = arith.constant 0 : i32
    %c0_i32_0 = arith.constant 0 : i32
    %c0_i32_1 = arith.constant 0 : i32
    return %c0_i32, %c0_i32_0 : i32, i32
  }
  func.func @transform_9(%arg0: i32) -> (i32, i32) {
    %c0_i32 = arith.constant 0 : i32
    %c0_i32_0 = arith.constant 0 : i32
    %c0_i32_1 = arith.constant 0 : i32
    return %c0_i32, %c0_i32_0 : i32, i32
  }
  func.func @transform_10(%arg0: i32) -> (i32, i32) {
    %c0_i32 = arith.constant 0 : i32
    %c0_i32_0 = arith.constant 0 : i32
    %c0_i32_1 = arith.constant 0 : i32
    return %c0_i32, %c0_i32_0 : i32, i32
  }
  func.func @transform_11(%arg0: i32) -> (i32, i32) {
    %c0_i32 = arith.constant 0 : i32
    %c0_i32_0 = arith.constant 0 : i32
    %c0_i32_1 = arith.constant 0 : i32
    return %c0_i32, %c0_i32_0 : i32, i32
  }
  func.func @transform_12(%arg0: i32) -> (i32, i32, i32) {
    %c0_i32 = arith.constant 0 : i32
    %c0_i32_0 = arith.constant 0 : i32
    %c0_i32_1 = arith.constant 0 : i32
    return %arg0, %c0_i32, %c0_i32_0 : i32, i32, i32
  }
  func.func @transform_13(%arg0: i32) -> (i32, i32, i32) {
    %c0_i32 = arith.constant 0 : i32
    %0 = arith.subi %c0_i32, %arg0 : i32
    %c0_i32_0 = arith.constant 0 : i32
    %c0_i32_1 = arith.constant 0 : i32
    %c0_i32_2 = arith.constant 0 : i32
    return %0, %c0_i32_0, %c0_i32_1 : i32, i32, i32
  }
}

module attributes {stable_mosaic.version = 11 : i64} {
  func.func @kernel(%arg0: i32, %arg1: memref<8x1x16xbf16, #tpu.memory_space<vmem>>, %arg2: memref<8x1x16xbf16, #tpu.memory_space<vmem>>, %arg3: memref<16x128xbf16, #tpu.memory_space<vmem>>, %arg4: memref<16x128xbf16, #tpu.memory_space<vmem>>, %arg5: memref<32x128xbf16, #tpu.memory_space<vmem>>, %arg6: memref<32x128xbf16, #tpu.memory_space<vmem>>, %arg7: memref<1x128xf32, #tpu.memory_space<vmem>>, %arg8: memref<1x128xf32, #tpu.memory_space<vmem>>, %arg9: memref<8x1x32xbf16, #tpu.memory_space<vmem>>, %arg10: memref<8x1x32xbf16, #tpu.memory_space<vmem>>, %arg11: memref<1x32xf32, #tpu.memory_space<vmem>>, %arg12: memref<1x32xf32, #tpu.memory_space<vmem>>, %arg13: memref<1x32xf32, #tpu.memory_space<vmem>>, %arg14: memref<1x32xf32, #tpu.memory_space<vmem>>, %arg15: memref<8x1x128xf32, #tpu.memory_space<vmem>>, %arg16: memref<8x1x128xf32, #tpu.memory_space<vmem>>) attributes {dimension_semantics = [#tpu.dimension_semantics<arbitrary>], iteration_bounds = array<i64: 1>, scalar_prefetch = 0 : i64, scratch_operands = 6 : i64, tpu.core_type = #tpu.core_type<tc>, window_params = [{transform_indices = @transform_0, window_bounds = array<i64: 8, 1, 16>}, {transform_indices = @transform_1, window_bounds = array<i64: 8, 1, 16>}, {pipeline_mode = #tpu.pipeline_mode<synchronous>, transform_indices = @transform_2, window_bounds = array<i64: 16, 128>}, {pipeline_mode = #tpu.pipeline_mode<synchronous>, transform_indices = @transform_3, window_bounds = array<i64: 16, 128>}, {pipeline_mode = #tpu.pipeline_mode<synchronous>, transform_indices = @transform_4, window_bounds = array<i64: 32, 128>}, {pipeline_mode = #tpu.pipeline_mode<synchronous>, transform_indices = @transform_5, window_bounds = array<i64: 32, 128>}, {pipeline_mode = #tpu.pipeline_mode<synchronous>, transform_indices = @transform_6, window_bounds = array<i64: 1, 128>}, {pipeline_mode = #tpu.pipeline_mode<synchronous>, transform_indices = @transform_7, window_bounds = array<i64: 1, 128>}, {transform_indices = @transform_8, window_bounds = array<i64: 8, 1, 32>}, {transform_indices = @transform_9, window_bounds = array<i64: 8, 1, 32>}]} {
    %c0_i32 = arith.constant 0 : i32
    %0 = arith.cmpi eq, %arg0, %c0_i32 : i32
    %1 = arith.extui %0 : i1 to i32
    %c0_i32_0 = arith.constant 0 : i32
    %2 = arith.cmpi ne, %1, %c0_i32_0 : i32
    scf.if %2 {
      %cst_146 = arith.constant 0.000000e+00 : f32
      %477 = vector.broadcast %cst_146 : f32 to vector<1x32xf32>
      %c0_147 = arith.constant 0 : index
      %c0_148 = arith.constant 0 : index
      %478 = vector.load %arg11[%c0_147, %c0_148] : memref<1x32xf32, #tpu.memory_space<vmem>>, vector<1x32xf32>
      tpu.vector_store %arg11[%c0_147, %c0_148], %477 {strides = array<i32>} : memref<1x32xf32, #tpu.memory_space<vmem>>, vector<1x32xf32>,
      %cst_149 = arith.constant 0.000000e+00 : f32
      %479 = vector.broadcast %cst_149 : f32 to vector<1x32xf32>
      %c0_150 = arith.constant 0 : index
      %c0_151 = arith.constant 0 : index
      %480 = vector.load %arg12[%c0_150, %c0_151] : memref<1x32xf32, #tpu.memory_space<vmem>>, vector<1x32xf32>
      tpu.vector_store %arg12[%c0_150, %c0_151], %479 {strides = array<i32>} : memref<1x32xf32, #tpu.memory_space<vmem>>, vector<1x32xf32>,
      %cst_152 = arith.constant 0.000000e+00 : f32
      %481 = vector.broadcast %cst_152 : f32 to vector<1x32xf32>
      %c0_153 = arith.constant 0 : index
      %c0_154 = arith.constant 0 : index
      %482 = vector.load %arg13[%c0_153, %c0_154] : memref<1x32xf32, #tpu.memory_space<vmem>>, vector<1x32xf32>
      tpu.vector_store %arg13[%c0_153, %c0_154], %481 {strides = array<i32>} : memref<1x32xf32, #tpu.memory_space<vmem>>, vector<1x32xf32>,
      %cst_155 = arith.constant 0.000000e+00 : f32
      %483 = vector.broadcast %cst_155 : f32 to vector<1x32xf32>
      %c0_156 = arith.constant 0 : index
      %c0_157 = arith.constant 0 : index
      %484 = vector.load %arg14[%c0_156, %c0_157] : memref<1x32xf32, #tpu.memory_space<vmem>>, vector<1x32xf32>
      tpu.vector_store %arg14[%c0_156, %c0_157], %483 {strides = array<i32>} : memref<1x32xf32, #tpu.memory_space<vmem>>, vector<1x32xf32>,
    } else {
    }
    %c0 = arith.constant 0 : index
    %c0_1 = arith.constant 0 : index
    %3 = vector.load %arg7[%c0, %c0_1] : memref<1x128xf32, #tpu.memory_space<vmem>>, vector<1x128xf32>
    %c0_2 = arith.constant 0 : index
    %c0_3 = arith.constant 0 : index
    %4 = vector.load %arg8[%c0_2, %c0_3] : memref<1x128xf32, #tpu.memory_space<vmem>>, vector<1x128xf32>
    %c0_4 = arith.constant 0 : index
    %c0_5 = arith.constant 0 : index
    %c0_6 = arith.constant 0 : index
    %5 = vector.load %arg1[%c0_4, %c0_5, %c0_6] : memref<8x1x16xbf16, #tpu.memory_space<vmem>>, vector<8x1x16xbf16>
    %6 = vector.shape_cast %5 : vector<8x1x16xbf16> to vector<8x16xbf16>
    %c0_7 = arith.constant 0 : index
    %c0_8 = arith.constant 0 : index
    %c0_9 = arith.constant 0 : index
    %7 = vector.load %arg2[%c0_7, %c0_8, %c0_9] : memref<8x1x16xbf16, #tpu.memory_space<vmem>>, vector<8x1x16xbf16>
    %8 = vector.shape_cast %7 : vector<8x1x16xbf16> to vector<8x16xbf16>
    %c0_10 = arith.constant 0 : index
    %c0_11 = arith.constant 0 : index
    %9 = vector.load %arg3[%c0_10, %c0_11] : memref<16x128xbf16, #tpu.memory_space<vmem>>, vector<16x128xbf16>
    %cst = arith.constant dense<0.000000e+00> : vector<8x128xf32>
    %10 = tpu.matmul %6, %9, %cst {dimension_numbers = #tpu.dot_dimension_numbers<[1], [0], [0], [1], [0, 0, 1, 1], [], []>} : vector<8x16xbf16>, vector<16x128xbf16>, vector<8x128xf32> -> vector<8x128xf32>
    %11 = vector.broadcast %3 : vector<1x128xf32> to vector<8x128xf32>
    %12 = arith.addf %11, %10 : vector<8x128xf32>
    %c0_12 = arith.constant 0 : index
    %c0_13 = arith.constant 0 : index
    %13 = vector.load %arg4[%c0_12, %c0_13] : memref<16x128xbf16, #tpu.memory_space<vmem>>, vector<16x128xbf16>
    %cst_14 = arith.constant dense<0.000000e+00> : vector<8x128xf32>
    %14 = tpu.matmul %8, %13, %cst_14 {dimension_numbers = #tpu.dot_dimension_numbers<[1], [0], [0], [1], [0, 0, 1, 1], [], []>} : vector<8x16xbf16>, vector<16x128xbf16>, vector<8x128xf32> -> vector<8x128xf32>
    %15 = vector.broadcast %4 : vector<1x128xf32> to vector<8x128xf32>
    %16 = arith.addf %15, %14 : vector<8x128xf32>
    %17 = vector.shape_cast %12 : vector<8x128xf32> to vector<8x1x128xf32>
    %c0_15 = arith.constant 0 : index
    %c0_16 = arith.constant 0 : index
    %c0_17 = arith.constant 0 : index
    %18 = vector.load %arg15[%c0_15, %c0_16, %c0_17] : memref<8x1x128xf32, #tpu.memory_space<vmem>>, vector<8x1x128xf32>
    tpu.vector_store %arg15[%c0_15, %c0_16, %c0_17], %17 {strides = array<i32>} : memref<8x1x128xf32, #tpu.memory_space<vmem>>, vector<8x1x128xf32>,
    %19 = vector.shape_cast %16 : vector<8x128xf32> to vector<8x1x128xf32>
    %c0_18 = arith.constant 0 : index
    %c0_19 = arith.constant 0 : index
    %c0_20 = arith.constant 0 : index
    %20 = vector.load %arg16[%c0_18, %c0_19, %c0_20] : memref<8x1x128xf32, #tpu.memory_space<vmem>>, vector<8x1x128xf32>
    tpu.vector_store %arg16[%c0_18, %c0_19, %c0_20], %19 {strides = array<i32>} : memref<8x1x128xf32, #tpu.memory_space<vmem>>, vector<8x1x128xf32>,
    %c0_21 = arith.constant 0 : index
    %c0_22 = arith.constant 0 : index
    %21 = vector.load %arg5[%c0_21, %c0_22] : memref<32x128xbf16, #tpu.memory_space<vmem>>, vector<32x128xbf16>
    %c0_23 = arith.constant 0 : index
    %c0_24 = arith.constant 0 : index
    %22 = vector.load %arg6[%c0_23, %c0_24] : memref<32x128xbf16, #tpu.memory_space<vmem>>, vector<32x128xbf16>
    %23 = tpu.iota {dimensions = array<i32: 1>} : vector<1x128xi32>
    %c64_i32 = arith.constant 64 : i32
    %24 = vector.broadcast %c64_i32 : i32 to vector<1x128xi32>
    %25 = arith.cmpi sge, %23, %24 : vector<1x128xi32>
    %c96_i32 = arith.constant 96 : i32
    %26 = vector.broadcast %c96_i32 : i32 to vector<1x128xi32>
    %27 = arith.cmpi slt, %23, %26 : vector<1x128xi32>
    %28 = arith.andi %25, %27 : vector<1x128xi1>
    %c0_25 = arith.constant 0 : index
    %c0_26 = arith.constant 0 : index
    %29 = vector.load %arg11[%c0_25, %c0_26] : memref<1x32xf32, #tpu.memory_space<vmem>>, vector<1x32xf32>
    %c0_27 = arith.constant 0 : index
    %c0_28 = arith.constant 0 : index
    %30 = vector.load %arg12[%c0_27, %c0_28] : memref<1x32xf32, #tpu.memory_space<vmem>>, vector<1x32xf32>
    %c0_29 = arith.constant 0 : index
    %c0_30 = arith.constant 0 : index
    %31 = vector.load %arg13[%c0_29, %c0_30] : memref<1x32xf32, #tpu.memory_space<vmem>>, vector<1x32xf32>
    %c0_31 = arith.constant 0 : index
    %c0_32 = arith.constant 0 : index
    %32 = vector.load %arg14[%c0_31, %c0_32] : memref<1x32xf32, #tpu.memory_space<vmem>>, vector<1x32xf32>
    %c0_i32_33 = arith.constant 0 : i32
    %c7_i32 = arith.constant 7 : i32
    %33 = arith.subi %c7_i32, %c0_i32_33 : i32
    %34 = arith.index_cast %c0_i32_33 : i32 to index
    %c0_34 = arith.constant 0 : index
    %c0_35 = arith.constant 0 : index
    %35 = vector.load %arg15[%34, %c0_34, %c0_35] : memref<8x1x128xf32, #tpu.memory_space<vmem>>, vector<1x1x128xf32>
    %36 = vector.shape_cast %35 : vector<1x1x128xf32> to vector<1x128xf32>
    %37 = arith.truncf %29 : vector<1x32xf32> to vector<1x32xbf16>
    %cst_36 = arith.constant dense<0.000000e+00> : vector<1x128xf32>
    %38 = tpu.matmul %37, %21, %cst_36 {dimension_numbers = #tpu.dot_dimension_numbers<[1], [0], [0], [1], [0, 0, 1, 1], [], []>} : vector<1x32xbf16>, vector<32x128xbf16>, vector<1x128xf32> -> vector<1x128xf32>
    %39 = arith.addf %36, %38 : vector<1x128xf32>
    %40 = arith.index_cast %33 : i32 to index
    %c0_37 = arith.constant 0 : index
    %c0_38 = arith.constant 0 : index
    %41 = vector.load %arg16[%40, %c0_37, %c0_38] : memref<8x1x128xf32, #tpu.memory_space<vmem>>, vector<1x1x128xf32>
    %42 = vector.shape_cast %41 : vector<1x1x128xf32> to vector<1x128xf32>
    %43 = arith.truncf %31 : vector<1x32xf32> to vector<1x32xbf16>
    %cst_39 = arith.constant dense<0.000000e+00> : vector<1x128xf32>
    %44 = tpu.matmul %43, %22, %cst_39 {dimension_numbers = #tpu.dot_dimension_numbers<[1], [0], [0], [1], [0, 0, 1, 1], [], []>} : vector<1x32xbf16>, vector<32x128xbf16>, vector<1x128xf32> -> vector<1x128xf32>
    %45 = arith.addf %42, %44 : vector<1x128xf32>
    %46 = math.tanh %39 : vector<1x128xf32>
    %47 = arith.negf %39 : vector<1x128xf32>
    %48 = math.exp %47 : vector<1x128xf32>
    %cst_40 = arith.constant 1.000000e+00 : f32
    %49 = vector.broadcast %cst_40 : f32 to vector<1x128xf32>
    %50 = arith.addf %49, %48 : vector<1x128xf32>
    %51 = arith.divf %49, %50 : vector<1x128xf32>
    %52 = arith.select %28, %46, %51 : vector<1x128xi1>, vector<1x128xf32>
    %53 = math.tanh %45 : vector<1x128xf32>
    %54 = arith.negf %45 : vector<1x128xf32>
    %55 = math.exp %54 : vector<1x128xf32>
    %cst_41 = arith.constant 1.000000e+00 : f32
    %56 = vector.broadcast %cst_41 : f32 to vector<1x128xf32>
    %57 = arith.addf %56, %55 : vector<1x128xf32>
    %58 = arith.divf %56, %57 : vector<1x128xf32>
    %59 = arith.select %28, %53, %58 : vector<1x128xi1>, vector<1x128xf32>
    %60 = vector.extract_strided_slice %52 {offsets = [0, 32], sizes = [1, 32], strides = [1, 1]} : vector<1x128xf32> to vector<1x32xf32>
    %61 = arith.mulf %60, %30 : vector<1x32xf32>
    %62 = vector.extract_strided_slice %52 {offsets = [0, 0], sizes = [1, 32], strides = [1, 1]} : vector<1x128xf32> to vector<1x32xf32>
    %63 = vector.extract_strided_slice %52 {offsets = [0, 64], sizes = [1, 32], strides = [1, 1]} : vector<1x128xf32> to vector<1x32xf32>
    %64 = arith.mulf %62, %63 : vector<1x32xf32>
    %65 = arith.addf %61, %64 : vector<1x32xf32>
    %66 = vector.extract_strided_slice %52 {offsets = [0, 96], sizes = [1, 32], strides = [1, 1]} : vector<1x128xf32> to vector<1x32xf32>
    %67 = math.tanh %65 : vector<1x32xf32>
    %68 = arith.mulf %66, %67 : vector<1x32xf32>
    %69 = vector.extract_strided_slice %59 {offsets = [0, 32], sizes = [1, 32], strides = [1, 1]} : vector<1x128xf32> to vector<1x32xf32>
    %70 = arith.mulf %69, %32 : vector<1x32xf32>
    %71 = vector.extract_strided_slice %59 {offsets = [0, 0], sizes = [1, 32], strides = [1, 1]} : vector<1x128xf32> to vector<1x32xf32>
    %72 = vector.extract_strided_slice %59 {offsets = [0, 64], sizes = [1, 32], strides = [1, 1]} : vector<1x128xf32> to vector<1x32xf32>
    %73 = arith.mulf %71, %72 : vector<1x32xf32>
    %74 = arith.addf %70, %73 : vector<1x32xf32>
    %75 = vector.extract_strided_slice %59 {offsets = [0, 96], sizes = [1, 32], strides = [1, 1]} : vector<1x128xf32> to vector<1x32xf32>
    %76 = math.tanh %74 : vector<1x32xf32>
    %77 = arith.mulf %75, %76 : vector<1x32xf32>
    %78 = arith.truncf %68 : vector<1x32xf32> to vector<1x32xbf16>
    %79 = arith.index_cast %c0_i32_33 : i32 to index
    %c0_42 = arith.constant 0 : index
    %c0_43 = arith.constant 0 : index
    %80 = vector.load %arg9[%79, %c0_42, %c0_43] : memref<8x1x32xbf16, #tpu.memory_space<vmem>>, vector<1x1x32xbf16>
    %81 = vector.shape_cast %80 : vector<1x1x32xbf16> to vector<1x32xbf16>
    %82 = vector.shape_cast %78 : vector<1x32xbf16> to vector<1x1x32xbf16>
    tpu.vector_store %arg9[%79, %c0_42, %c0_43], %82 {strides = array<i32>} : memref<8x1x32xbf16, #tpu.memory_space<vmem>>, vector<1x1x32xbf16>,
    %83 = arith.truncf %77 : vector<1x32xf32> to vector<1x32xbf16>
    %84 = arith.index_cast %33 : i32 to index
    %c0_44 = arith.constant 0 : index
    %c0_45 = arith.constant 0 : index
    %85 = vector.load %arg10[%84, %c0_44, %c0_45] : memref<8x1x32xbf16, #tpu.memory_space<vmem>>, vector<1x1x32xbf16>
    %86 = vector.shape_cast %85 : vector<1x1x32xbf16> to vector<1x32xbf16>
    %87 = vector.shape_cast %83 : vector<1x32xbf16> to vector<1x1x32xbf16>
    tpu.vector_store %arg10[%84, %c0_44, %c0_45], %87 {strides = array<i32>} : memref<8x1x32xbf16, #tpu.memory_space<vmem>>, vector<1x1x32xbf16>,
    %c1_i32 = arith.constant 1 : i32
    %c7_i32_46 = arith.constant 7 : i32
    %88 = arith.subi %c7_i32_46, %c1_i32 : i32
    %89 = arith.index_cast %c1_i32 : i32 to index
    %c0_47 = arith.constant 0 : index
    %c0_48 = arith.constant 0 : index
    %90 = vector.load %arg15[%89, %c0_47, %c0_48] : memref<8x1x128xf32, #tpu.memory_space<vmem>>, vector<1x1x128xf32>
    %91 = vector.shape_cast %90 : vector<1x1x128xf32> to vector<1x128xf32>
    %92 = arith.truncf %68 : vector<1x32xf32> to vector<1x32xbf16>
    %cst_49 = arith.constant dense<0.000000e+00> : vector<1x128xf32>
    %93 = tpu.matmul %92, %21, %cst_49 {dimension_numbers = #tpu.dot_dimension_numbers<[1], [0], [0], [1], [0, 0, 1, 1], [], []>} : vector<1x32xbf16>, vector<32x128xbf16>, vector<1x128xf32> -> vector<1x128xf32>
    %94 = arith.addf %91, %93 : vector<1x128xf32>
    %95 = arith.index_cast %88 : i32 to index
    %c0_50 = arith.constant 0 : index
    %c0_51 = arith.constant 0 : index
    %96 = vector.load %arg16[%95, %c0_50, %c0_51] : memref<8x1x128xf32, #tpu.memory_space<vmem>>, vector<1x1x128xf32>
    %97 = vector.shape_cast %96 : vector<1x1x128xf32> to vector<1x128xf32>
    %98 = arith.truncf %77 : vector<1x32xf32> to vector<1x32xbf16>
    %cst_52 = arith.constant dense<0.000000e+00> : vector<1x128xf32>
    %99 = tpu.matmul %98, %22, %cst_52 {dimension_numbers = #tpu.dot_dimension_numbers<[1], [0], [0], [1], [0, 0, 1, 1], [], []>} : vector<1x32xbf16>, vector<32x128xbf16>, vector<1x128xf32> -> vector<1x128xf32>
    %100 = arith.addf %97, %99 : vector<1x128xf32>
    %101 = math.tanh %94 : vector<1x128xf32>
    %102 = arith.negf %94 : vector<1x128xf32>
    %103 = math.exp %102 : vector<1x128xf32>
    %cst_53 = arith.constant 1.000000e+00 : f32
    %104 = vector.broadcast %cst_53 : f32 to vector<1x128xf32>
    %105 = arith.addf %104, %103 : vector<1x128xf32>
    %106 = arith.divf %104, %105 : vector<1x128xf32>
    %107 = arith.select %28, %101, %106 : vector<1x128xi1>, vector<1x128xf32>
    %108 = math.tanh %100 : vector<1x128xf32>
    %109 = arith.negf %100 : vector<1x128xf32>
    %110 = math.exp %109 : vector<1x128xf32>
    %cst_54 = arith.constant 1.000000e+00 : f32
    %111 = vector.broadcast %cst_54 : f32 to vector<1x128xf32>
    %112 = arith.addf %111, %110 : vector<1x128xf32>
    %113 = arith.divf %111, %112 : vector<1x128xf32>
    %114 = arith.select %28, %108, %113 : vector<1x128xi1>, vector<1x128xf32>
    %115 = vector.extract_strided_slice %107 {offsets = [0, 32], sizes = [1, 32], strides = [1, 1]} : vector<1x128xf32> to vector<1x32xf32>
    %116 = arith.mulf %115, %65 : vector<1x32xf32>
    %117 = vector.extract_strided_slice %107 {offsets = [0, 0], sizes = [1, 32], strides = [1, 1]} : vector<1x128xf32> to vector<1x32xf32>
    %118 = vector.extract_strided_slice %107 {offsets = [0, 64], sizes = [1, 32], strides = [1, 1]} : vector<1x128xf32> to vector<1x32xf32>
    %119 = arith.mulf %117, %118 : vector<1x32xf32>
    %120 = arith.addf %116, %119 : vector<1x32xf32>
    %121 = vector.extract_strided_slice %107 {offsets = [0, 96], sizes = [1, 32], strides = [1, 1]} : vector<1x128xf32> to vector<1x32xf32>
    %122 = math.tanh %120 : vector<1x32xf32>
    %123 = arith.mulf %121, %122 : vector<1x32xf32>
    %124 = vector.extract_strided_slice %114 {offsets = [0, 32], sizes = [1, 32], strides = [1, 1]} : vector<1x128xf32> to vector<1x32xf32>
    %125 = arith.mulf %124, %74 : vector<1x32xf32>
    %126 = vector.extract_strided_slice %114 {offsets = [0, 0], sizes = [1, 32], strides = [1, 1]} : vector<1x128xf32> to vector<1x32xf32>
    %127 = vector.extract_strided_slice %114 {offsets = [0, 64], sizes = [1, 32], strides = [1, 1]} : vector<1x128xf32> to vector<1x32xf32>
    %128 = arith.mulf %126, %127 : vector<1x32xf32>
    %129 = arith.addf %125, %128 : vector<1x32xf32>
    %130 = vector.extract_strided_slice %114 {offsets = [0, 96], sizes = [1, 32], strides = [1, 1]} : vector<1x128xf32> to vector<1x32xf32>
    %131 = math.tanh %129 : vector<1x32xf32>
    %132 = arith.mulf %130, %131 : vector<1x32xf32>
    %133 = arith.truncf %123 : vector<1x32xf32> to vector<1x32xbf16>
    %134 = arith.index_cast %c1_i32 : i32 to index
    %c0_55 = arith.constant 0 : index
    %c0_56 = arith.constant 0 : index
    %135 = vector.load %arg9[%134, %c0_55, %c0_56] : memref<8x1x32xbf16, #tpu.memory_space<vmem>>, vector<1x1x32xbf16>
    %136 = vector.shape_cast %135 : vector<1x1x32xbf16> to vector<1x32xbf16>
    %137 = vector.shape_cast %133 : vector<1x32xbf16> to vector<1x1x32xbf16>
    tpu.vector_store %arg9[%134, %c0_55, %c0_56], %137 {strides = array<i32>} : memref<8x1x32xbf16, #tpu.memory_space<vmem>>, vector<1x1x32xbf16>,
    %138 = arith.truncf %132 : vector<1x32xf32> to vector<1x32xbf16>
    %139 = arith.index_cast %88 : i32 to index
    %c0_57 = arith.constant 0 : index
    %c0_58 = arith.constant 0 : index
    %140 = vector.load %arg10[%139, %c0_57, %c0_58] : memref<8x1x32xbf16, #tpu.memory_space<vmem>>, vector<1x1x32xbf16>
    %141 = vector.shape_cast %140 : vector<1x1x32xbf16> to vector<1x32xbf16>
    %142 = vector.shape_cast %138 : vector<1x32xbf16> to vector<1x1x32xbf16>
    tpu.vector_store %arg10[%139, %c0_57, %c0_58], %142 {strides = array<i32>} : memref<8x1x32xbf16, #tpu.memory_space<vmem>>, vector<1x1x32xbf16>,
    %c2_i32 = arith.constant 2 : i32
    %c7_i32_59 = arith.constant 7 : i32
    %143 = arith.subi %c7_i32_59, %c2_i32 : i32
    %144 = arith.index_cast %c2_i32 : i32 to index
    %c0_60 = arith.constant 0 : index
    %c0_61 = arith.constant 0 : index
    %145 = vector.load %arg15[%144, %c0_60, %c0_61] : memref<8x1x128xf32, #tpu.memory_space<vmem>>, vector<1x1x128xf32>
    %146 = vector.shape_cast %145 : vector<1x1x128xf32> to vector<1x128xf32>
    %147 = arith.truncf %123 : vector<1x32xf32> to vector<1x32xbf16>
    %cst_62 = arith.constant dense<0.000000e+00> : vector<1x128xf32>
    %148 = tpu.matmul %147, %21, %cst_62 {dimension_numbers = #tpu.dot_dimension_numbers<[1], [0], [0], [1], [0, 0, 1, 1], [], []>} : vector<1x32xbf16>, vector<32x128xbf16>, vector<1x128xf32> -> vector<1x128xf32>
    %149 = arith.addf %146, %148 : vector<1x128xf32>
    %150 = arith.index_cast %143 : i32 to index
    %c0_63 = arith.constant 0 : index
    %c0_64 = arith.constant 0 : index
    %151 = vector.load %arg16[%150, %c0_63, %c0_64] : memref<8x1x128xf32, #tpu.memory_space<vmem>>, vector<1x1x128xf32>
    %152 = vector.shape_cast %151 : vector<1x1x128xf32> to vector<1x128xf32>
    %153 = arith.truncf %132 : vector<1x32xf32> to vector<1x32xbf16>
    %cst_65 = arith.constant dense<0.000000e+00> : vector<1x128xf32>
    %154 = tpu.matmul %153, %22, %cst_65 {dimension_numbers = #tpu.dot_dimension_numbers<[1], [0], [0], [1], [0, 0, 1, 1], [], []>} : vector<1x32xbf16>, vector<32x128xbf16>, vector<1x128xf32> -> vector<1x128xf32>
    %155 = arith.addf %152, %154 : vector<1x128xf32>
    %156 = math.tanh %149 : vector<1x128xf32>
    %157 = arith.negf %149 : vector<1x128xf32>
    %158 = math.exp %157 : vector<1x128xf32>
    %cst_66 = arith.constant 1.000000e+00 : f32
    %159 = vector.broadcast %cst_66 : f32 to vector<1x128xf32>
    %160 = arith.addf %159, %158 : vector<1x128xf32>
    %161 = arith.divf %159, %160 : vector<1x128xf32>
    %162 = arith.select %28, %156, %161 : vector<1x128xi1>, vector<1x128xf32>
    %163 = math.tanh %155 : vector<1x128xf32>
    %164 = arith.negf %155 : vector<1x128xf32>
    %165 = math.exp %164 : vector<1x128xf32>
    %cst_67 = arith.constant 1.000000e+00 : f32
    %166 = vector.broadcast %cst_67 : f32 to vector<1x128xf32>
    %167 = arith.addf %166, %165 : vector<1x128xf32>
    %168 = arith.divf %166, %167 : vector<1x128xf32>
    %169 = arith.select %28, %163, %168 : vector<1x128xi1>, vector<1x128xf32>
    %170 = vector.extract_strided_slice %162 {offsets = [0, 32], sizes = [1, 32], strides = [1, 1]} : vector<1x128xf32> to vector<1x32xf32>
    %171 = arith.mulf %170, %120 : vector<1x32xf32>
    %172 = vector.extract_strided_slice %162 {offsets = [0, 0], sizes = [1, 32], strides = [1, 1]} : vector<1x128xf32> to vector<1x32xf32>
    %173 = vector.extract_strided_slice %162 {offsets = [0, 64], sizes = [1, 32], strides = [1, 1]} : vector<1x128xf32> to vector<1x32xf32>
    %174 = arith.mulf %172, %173 : vector<1x32xf32>
    %175 = arith.addf %171, %174 : vector<1x32xf32>
    %176 = vector.extract_strided_slice %162 {offsets = [0, 96], sizes = [1, 32], strides = [1, 1]} : vector<1x128xf32> to vector<1x32xf32>
    %177 = math.tanh %175 : vector<1x32xf32>
    %178 = arith.mulf %176, %177 : vector<1x32xf32>
    %179 = vector.extract_strided_slice %169 {offsets = [0, 32], sizes = [1, 32], strides = [1, 1]} : vector<1x128xf32> to vector<1x32xf32>
    %180 = arith.mulf %179, %129 : vector<1x32xf32>
    %181 = vector.extract_strided_slice %169 {offsets = [0, 0], sizes = [1, 32], strides = [1, 1]} : vector<1x128xf32> to vector<1x32xf32>
    %182 = vector.extract_strided_slice %169 {offsets = [0, 64], sizes = [1, 32], strides = [1, 1]} : vector<1x128xf32> to vector<1x32xf32>
    %183 = arith.mulf %181, %182 : vector<1x32xf32>
    %184 = arith.addf %180, %183 : vector<1x32xf32>
    %185 = vector.extract_strided_slice %169 {offsets = [0, 96], sizes = [1, 32], strides = [1, 1]} : vector<1x128xf32> to vector<1x32xf32>
    %186 = math.tanh %184 : vector<1x32xf32>
    %187 = arith.mulf %185, %186 : vector<1x32xf32>
    %188 = arith.truncf %178 : vector<1x32xf32> to vector<1x32xbf16>
    %189 = arith.index_cast %c2_i32 : i32 to index
    %c0_68 = arith.constant 0 : index
    %c0_69 = arith.constant 0 : index
    %190 = vector.load %arg9[%189, %c0_68, %c0_69] : memref<8x1x32xbf16, #tpu.memory_space<vmem>>, vector<1x1x32xbf16>
    %191 = vector.shape_cast %190 : vector<1x1x32xbf16> to vector<1x32xbf16>
    %192 = vector.shape_cast %188 : vector<1x32xbf16> to vector<1x1x32xbf16>
    tpu.vector_store %arg9[%189, %c0_68, %c0_69], %192 {strides = array<i32>} : memref<8x1x32xbf16, #tpu.memory_space<vmem>>, vector<1x1x32xbf16>,
    %193 = arith.truncf %187 : vector<1x32xf32> to vector<1x32xbf16>
    %194 = arith.index_cast %143 : i32 to index
    %c0_70 = arith.constant 0 : index
    %c0_71 = arith.constant 0 : index
    %195 = vector.load %arg10[%194, %c0_70, %c0_71] : memref<8x1x32xbf16, #tpu.memory_space<vmem>>, vector<1x1x32xbf16>
    %196 = vector.shape_cast %195 : vector<1x1x32xbf16> to vector<1x32xbf16>
    %197 = vector.shape_cast %193 : vector<1x32xbf16> to vector<1x1x32xbf16>
    tpu.vector_store %arg10[%194, %c0_70, %c0_71], %197 {strides = array<i32>} : memref<8x1x32xbf16, #tpu.memory_space<vmem>>, vector<1x1x32xbf16>,
    %c3_i32 = arith.constant 3 : i32
    %c7_i32_72 = arith.constant 7 : i32
    %198 = arith.subi %c7_i32_72, %c3_i32 : i32
    %199 = arith.index_cast %c3_i32 : i32 to index
    %c0_73 = arith.constant 0 : index
    %c0_74 = arith.constant 0 : index
    %200 = vector.load %arg15[%199, %c0_73, %c0_74] : memref<8x1x128xf32, #tpu.memory_space<vmem>>, vector<1x1x128xf32>
    %201 = vector.shape_cast %200 : vector<1x1x128xf32> to vector<1x128xf32>
    %202 = arith.truncf %178 : vector<1x32xf32> to vector<1x32xbf16>
    %cst_75 = arith.constant dense<0.000000e+00> : vector<1x128xf32>
    %203 = tpu.matmul %202, %21, %cst_75 {dimension_numbers = #tpu.dot_dimension_numbers<[1], [0], [0], [1], [0, 0, 1, 1], [], []>} : vector<1x32xbf16>, vector<32x128xbf16>, vector<1x128xf32> -> vector<1x128xf32>
    %204 = arith.addf %201, %203 : vector<1x128xf32>
    %205 = arith.index_cast %198 : i32 to index
    %c0_76 = arith.constant 0 : index
    %c0_77 = arith.constant 0 : index
    %206 = vector.load %arg16[%205, %c0_76, %c0_77] : memref<8x1x128xf32, #tpu.memory_space<vmem>>, vector<1x1x128xf32>
    %207 = vector.shape_cast %206 : vector<1x1x128xf32> to vector<1x128xf32>
    %208 = arith.truncf %187 : vector<1x32xf32> to vector<1x32xbf16>
    %cst_78 = arith.constant dense<0.000000e+00> : vector<1x128xf32>
    %209 = tpu.matmul %208, %22, %cst_78 {dimension_numbers = #tpu.dot_dimension_numbers<[1], [0], [0], [1], [0, 0, 1, 1], [], []>} : vector<1x32xbf16>, vector<32x128xbf16>, vector<1x128xf32> -> vector<1x128xf32>
    %210 = arith.addf %207, %209 : vector<1x128xf32>
    %211 = math.tanh %204 : vector<1x128xf32>
    %212 = arith.negf %204 : vector<1x128xf32>
    %213 = math.exp %212 : vector<1x128xf32>
    %cst_79 = arith.constant 1.000000e+00 : f32
    %214 = vector.broadcast %cst_79 : f32 to vector<1x128xf32>
    %215 = arith.addf %214, %213 : vector<1x128xf32>
    %216 = arith.divf %214, %215 : vector<1x128xf32>
    %217 = arith.select %28, %211, %216 : vector<1x128xi1>, vector<1x128xf32>
    %218 = math.tanh %210 : vector<1x128xf32>
    %219 = arith.negf %210 : vector<1x128xf32>
    %220 = math.exp %219 : vector<1x128xf32>
    %cst_80 = arith.constant 1.000000e+00 : f32
    %221 = vector.broadcast %cst_80 : f32 to vector<1x128xf32>
    %222 = arith.addf %221, %220 : vector<1x128xf32>
    %223 = arith.divf %221, %222 : vector<1x128xf32>
    %224 = arith.select %28, %218, %223 : vector<1x128xi1>, vector<1x128xf32>
    %225 = vector.extract_strided_slice %217 {offsets = [0, 32], sizes = [1, 32], strides = [1, 1]} : vector<1x128xf32> to vector<1x32xf32>
    %226 = arith.mulf %225, %175 : vector<1x32xf32>
    %227 = vector.extract_strided_slice %217 {offsets = [0, 0], sizes = [1, 32], strides = [1, 1]} : vector<1x128xf32> to vector<1x32xf32>
    %228 = vector.extract_strided_slice %217 {offsets = [0, 64], sizes = [1, 32], strides = [1, 1]} : vector<1x128xf32> to vector<1x32xf32>
    %229 = arith.mulf %227, %228 : vector<1x32xf32>
    %230 = arith.addf %226, %229 : vector<1x32xf32>
    %231 = vector.extract_strided_slice %217 {offsets = [0, 96], sizes = [1, 32], strides = [1, 1]} : vector<1x128xf32> to vector<1x32xf32>
    %232 = math.tanh %230 : vector<1x32xf32>
    %233 = arith.mulf %231, %232 : vector<1x32xf32>
    %234 = vector.extract_strided_slice %224 {offsets = [0, 32], sizes = [1, 32], strides = [1, 1]} : vector<1x128xf32> to vector<1x32xf32>
    %235 = arith.mulf %234, %184 : vector<1x32xf32>
    %236 = vector.extract_strided_slice %224 {offsets = [0, 0], sizes = [1, 32], strides = [1, 1]} : vector<1x128xf32> to vector<1x32xf32>
    %237 = vector.extract_strided_slice %224 {offsets = [0, 64], sizes = [1, 32], strides = [1, 1]} : vector<1x128xf32> to vector<1x32xf32>
    %238 = arith.mulf %236, %237 : vector<1x32xf32>
    %239 = arith.addf %235, %238 : vector<1x32xf32>
    %240 = vector.extract_strided_slice %224 {offsets = [0, 96], sizes = [1, 32], strides = [1, 1]} : vector<1x128xf32> to vector<1x32xf32>
    %241 = math.tanh %239 : vector<1x32xf32>
    %242 = arith.mulf %240, %241 : vector<1x32xf32>
    %243 = arith.truncf %233 : vector<1x32xf32> to vector<1x32xbf16>
    %244 = arith.index_cast %c3_i32 : i32 to index
    %c0_81 = arith.constant 0 : index
    %c0_82 = arith.constant 0 : index
    %245 = vector.load %arg9[%244, %c0_81, %c0_82] : memref<8x1x32xbf16, #tpu.memory_space<vmem>>, vector<1x1x32xbf16>
    %246 = vector.shape_cast %245 : vector<1x1x32xbf16> to vector<1x32xbf16>
    %247 = vector.shape_cast %243 : vector<1x32xbf16> to vector<1x1x32xbf16>
    tpu.vector_store %arg9[%244, %c0_81, %c0_82], %247 {strides = array<i32>} : memref<8x1x32xbf16, #tpu.memory_space<vmem>>, vector<1x1x32xbf16>,
    %248 = arith.truncf %242 : vector<1x32xf32> to vector<1x32xbf16>
    %249 = arith.index_cast %198 : i32 to index
    %c0_83 = arith.constant 0 : index
    %c0_84 = arith.constant 0 : index
    %250 = vector.load %arg10[%249, %c0_83, %c0_84] : memref<8x1x32xbf16, #tpu.memory_space<vmem>>, vector<1x1x32xbf16>
    %251 = vector.shape_cast %250 : vector<1x1x32xbf16> to vector<1x32xbf16>
    %252 = vector.shape_cast %248 : vector<1x32xbf16> to vector<1x1x32xbf16>
    tpu.vector_store %arg10[%249, %c0_83, %c0_84], %252 {strides = array<i32>} : memref<8x1x32xbf16, #tpu.memory_space<vmem>>, vector<1x1x32xbf16>,
    %c4_i32 = arith.constant 4 : i32
    %c7_i32_85 = arith.constant 7 : i32
    %253 = arith.subi %c7_i32_85, %c4_i32 : i32
    %254 = arith.index_cast %c4_i32 : i32 to index
    %c0_86 = arith.constant 0 : index
    %c0_87 = arith.constant 0 : index
    %255 = vector.load %arg15[%254, %c0_86, %c0_87] : memref<8x1x128xf32, #tpu.memory_space<vmem>>, vector<1x1x128xf32>
    %256 = vector.shape_cast %255 : vector<1x1x128xf32> to vector<1x128xf32>
    %257 = arith.truncf %233 : vector<1x32xf32> to vector<1x32xbf16>
    %cst_88 = arith.constant dense<0.000000e+00> : vector<1x128xf32>
    %258 = tpu.matmul %257, %21, %cst_88 {dimension_numbers = #tpu.dot_dimension_numbers<[1], [0], [0], [1], [0, 0, 1, 1], [], []>} : vector<1x32xbf16>, vector<32x128xbf16>, vector<1x128xf32> -> vector<1x128xf32>
    %259 = arith.addf %256, %258 : vector<1x128xf32>
    %260 = arith.index_cast %253 : i32 to index
    %c0_89 = arith.constant 0 : index
    %c0_90 = arith.constant 0 : index
    %261 = vector.load %arg16[%260, %c0_89, %c0_90] : memref<8x1x128xf32, #tpu.memory_space<vmem>>, vector<1x1x128xf32>
    %262 = vector.shape_cast %261 : vector<1x1x128xf32> to vector<1x128xf32>
    %263 = arith.truncf %242 : vector<1x32xf32> to vector<1x32xbf16>
    %cst_91 = arith.constant dense<0.000000e+00> : vector<1x128xf32>
    %264 = tpu.matmul %263, %22, %cst_91 {dimension_numbers = #tpu.dot_dimension_numbers<[1], [0], [0], [1], [0, 0, 1, 1], [], []>} : vector<1x32xbf16>, vector<32x128xbf16>, vector<1x128xf32> -> vector<1x128xf32>
    %265 = arith.addf %262, %264 : vector<1x128xf32>
    %266 = math.tanh %259 : vector<1x128xf32>
    %267 = arith.negf %259 : vector<1x128xf32>
    %268 = math.exp %267 : vector<1x128xf32>
    %cst_92 = arith.constant 1.000000e+00 : f32
    %269 = vector.broadcast %cst_92 : f32 to vector<1x128xf32>
    %270 = arith.addf %269, %268 : vector<1x128xf32>
    %271 = arith.divf %269, %270 : vector<1x128xf32>
    %272 = arith.select %28, %266, %271 : vector<1x128xi1>, vector<1x128xf32>
    %273 = math.tanh %265 : vector<1x128xf32>
    %274 = arith.negf %265 : vector<1x128xf32>
    %275 = math.exp %274 : vector<1x128xf32>
    %cst_93 = arith.constant 1.000000e+00 : f32
    %276 = vector.broadcast %cst_93 : f32 to vector<1x128xf32>
    %277 = arith.addf %276, %275 : vector<1x128xf32>
    %278 = arith.divf %276, %277 : vector<1x128xf32>
    %279 = arith.select %28, %273, %278 : vector<1x128xi1>, vector<1x128xf32>
    %280 = vector.extract_strided_slice %272 {offsets = [0, 32], sizes = [1, 32], strides = [1, 1]} : vector<1x128xf32> to vector<1x32xf32>
    %281 = arith.mulf %280, %230 : vector<1x32xf32>
    %282 = vector.extract_strided_slice %272 {offsets = [0, 0], sizes = [1, 32], strides = [1, 1]} : vector<1x128xf32> to vector<1x32xf32>
    %283 = vector.extract_strided_slice %272 {offsets = [0, 64], sizes = [1, 32], strides = [1, 1]} : vector<1x128xf32> to vector<1x32xf32>
    %284 = arith.mulf %282, %283 : vector<1x32xf32>
    %285 = arith.addf %281, %284 : vector<1x32xf32>
    %286 = vector.extract_strided_slice %272 {offsets = [0, 96], sizes = [1, 32], strides = [1, 1]} : vector<1x128xf32> to vector<1x32xf32>
    %287 = math.tanh %285 : vector<1x32xf32>
    %288 = arith.mulf %286, %287 : vector<1x32xf32>
    %289 = vector.extract_strided_slice %279 {offsets = [0, 32], sizes = [1, 32], strides = [1, 1]} : vector<1x128xf32> to vector<1x32xf32>
    %290 = arith.mulf %289, %239 : vector<1x32xf32>
    %291 = vector.extract_strided_slice %279 {offsets = [0, 0], sizes = [1, 32], strides = [1, 1]} : vector<1x128xf32> to vector<1x32xf32>
    %292 = vector.extract_strided_slice %279 {offsets = [0, 64], sizes = [1, 32], strides = [1, 1]} : vector<1x128xf32> to vector<1x32xf32>
    %293 = arith.mulf %291, %292 : vector<1x32xf32>
    %294 = arith.addf %290, %293 : vector<1x32xf32>
    %295 = vector.extract_strided_slice %279 {offsets = [0, 96], sizes = [1, 32], strides = [1, 1]} : vector<1x128xf32> to vector<1x32xf32>
    %296 = math.tanh %294 : vector<1x32xf32>
    %297 = arith.mulf %295, %296 : vector<1x32xf32>
    %298 = arith.truncf %288 : vector<1x32xf32> to vector<1x32xbf16>
    %299 = arith.index_cast %c4_i32 : i32 to index
    %c0_94 = arith.constant 0 : index
    %c0_95 = arith.constant 0 : index
    %300 = vector.load %arg9[%299, %c0_94, %c0_95] : memref<8x1x32xbf16, #tpu.memory_space<vmem>>, vector<1x1x32xbf16>
    %301 = vector.shape_cast %300 : vector<1x1x32xbf16> to vector<1x32xbf16>
    %302 = vector.shape_cast %298 : vector<1x32xbf16> to vector<1x1x32xbf16>
    tpu.vector_store %arg9[%299, %c0_94, %c0_95], %302 {strides = array<i32>} : memref<8x1x32xbf16, #tpu.memory_space<vmem>>, vector<1x1x32xbf16>,
    %303 = arith.truncf %297 : vector<1x32xf32> to vector<1x32xbf16>
    %304 = arith.index_cast %253 : i32 to index
    %c0_96 = arith.constant 0 : index
    %c0_97 = arith.constant 0 : index
    %305 = vector.load %arg10[%304, %c0_96, %c0_97] : memref<8x1x32xbf16, #tpu.memory_space<vmem>>, vector<1x1x32xbf16>
    %306 = vector.shape_cast %305 : vector<1x1x32xbf16> to vector<1x32xbf16>
    %307 = vector.shape_cast %303 : vector<1x32xbf16> to vector<1x1x32xbf16>
    tpu.vector_store %arg10[%304, %c0_96, %c0_97], %307 {strides = array<i32>} : memref<8x1x32xbf16, #tpu.memory_space<vmem>>, vector<1x1x32xbf16>,
    %c5_i32 = arith.constant 5 : i32
    %c7_i32_98 = arith.constant 7 : i32
    %308 = arith.subi %c7_i32_98, %c5_i32 : i32
    %309 = arith.index_cast %c5_i32 : i32 to index
    %c0_99 = arith.constant 0 : index
    %c0_100 = arith.constant 0 : index
    %310 = vector.load %arg15[%309, %c0_99, %c0_100] : memref<8x1x128xf32, #tpu.memory_space<vmem>>, vector<1x1x128xf32>
    %311 = vector.shape_cast %310 : vector<1x1x128xf32> to vector<1x128xf32>
    %312 = arith.truncf %288 : vector<1x32xf32> to vector<1x32xbf16>
    %cst_101 = arith.constant dense<0.000000e+00> : vector<1x128xf32>
    %313 = tpu.matmul %312, %21, %cst_101 {dimension_numbers = #tpu.dot_dimension_numbers<[1], [0], [0], [1], [0, 0, 1, 1], [], []>} : vector<1x32xbf16>, vector<32x128xbf16>, vector<1x128xf32> -> vector<1x128xf32>
    %314 = arith.addf %311, %313 : vector<1x128xf32>
    %315 = arith.index_cast %308 : i32 to index
    %c0_102 = arith.constant 0 : index
    %c0_103 = arith.constant 0 : index
    %316 = vector.load %arg16[%315, %c0_102, %c0_103] : memref<8x1x128xf32, #tpu.memory_space<vmem>>, vector<1x1x128xf32>
    %317 = vector.shape_cast %316 : vector<1x1x128xf32> to vector<1x128xf32>
    %318 = arith.truncf %297 : vector<1x32xf32> to vector<1x32xbf16>
    %cst_104 = arith.constant dense<0.000000e+00> : vector<1x128xf32>
    %319 = tpu.matmul %318, %22, %cst_104 {dimension_numbers = #tpu.dot_dimension_numbers<[1], [0], [0], [1], [0, 0, 1, 1], [], []>} : vector<1x32xbf16>, vector<32x128xbf16>, vector<1x128xf32> -> vector<1x128xf32>
    %320 = arith.addf %317, %319 : vector<1x128xf32>
    %321 = math.tanh %314 : vector<1x128xf32>
    %322 = arith.negf %314 : vector<1x128xf32>
    %323 = math.exp %322 : vector<1x128xf32>
    %cst_105 = arith.constant 1.000000e+00 : f32
    %324 = vector.broadcast %cst_105 : f32 to vector<1x128xf32>
    %325 = arith.addf %324, %323 : vector<1x128xf32>
    %326 = arith.divf %324, %325 : vector<1x128xf32>
    %327 = arith.select %28, %321, %326 : vector<1x128xi1>, vector<1x128xf32>
    %328 = math.tanh %320 : vector<1x128xf32>
    %329 = arith.negf %320 : vector<1x128xf32>
    %330 = math.exp %329 : vector<1x128xf32>
    %cst_106 = arith.constant 1.000000e+00 : f32
    %331 = vector.broadcast %cst_106 : f32 to vector<1x128xf32>
    %332 = arith.addf %331, %330 : vector<1x128xf32>
    %333 = arith.divf %331, %332 : vector<1x128xf32>
    %334 = arith.select %28, %328, %333 : vector<1x128xi1>, vector<1x128xf32>
    %335 = vector.extract_strided_slice %327 {offsets = [0, 32], sizes = [1, 32], strides = [1, 1]} : vector<1x128xf32> to vector<1x32xf32>
    %336 = arith.mulf %335, %285 : vector<1x32xf32>
    %337 = vector.extract_strided_slice %327 {offsets = [0, 0], sizes = [1, 32], strides = [1, 1]} : vector<1x128xf32> to vector<1x32xf32>
    %338 = vector.extract_strided_slice %327 {offsets = [0, 64], sizes = [1, 32], strides = [1, 1]} : vector<1x128xf32> to vector<1x32xf32>
    %339 = arith.mulf %337, %338 : vector<1x32xf32>
    %340 = arith.addf %336, %339 : vector<1x32xf32>
    %341 = vector.extract_strided_slice %327 {offsets = [0, 96], sizes = [1, 32], strides = [1, 1]} : vector<1x128xf32> to vector<1x32xf32>
    %342 = math.tanh %340 : vector<1x32xf32>
    %343 = arith.mulf %341, %342 : vector<1x32xf32>
    %344 = vector.extract_strided_slice %334 {offsets = [0, 32], sizes = [1, 32], strides = [1, 1]} : vector<1x128xf32> to vector<1x32xf32>
    %345 = arith.mulf %344, %294 : vector<1x32xf32>
    %346 = vector.extract_strided_slice %334 {offsets = [0, 0], sizes = [1, 32], strides = [1, 1]} : vector<1x128xf32> to vector<1x32xf32>
    %347 = vector.extract_strided_slice %334 {offsets = [0, 64], sizes = [1, 32], strides = [1, 1]} : vector<1x128xf32> to vector<1x32xf32>
    %348 = arith.mulf %346, %347 : vector<1x32xf32>
    %349 = arith.addf %345, %348 : vector<1x32xf32>
    %350 = vector.extract_strided_slice %334 {offsets = [0, 96], sizes = [1, 32], strides = [1, 1]} : vector<1x128xf32> to vector<1x32xf32>
    %351 = math.tanh %349 : vector<1x32xf32>
    %352 = arith.mulf %350, %351 : vector<1x32xf32>
    %353 = arith.truncf %343 : vector<1x32xf32> to vector<1x32xbf16>
    %354 = arith.index_cast %c5_i32 : i32 to index
    %c0_107 = arith.constant 0 : index
    %c0_108 = arith.constant 0 : index
    %355 = vector.load %arg9[%354, %c0_107, %c0_108] : memref<8x1x32xbf16, #tpu.memory_space<vmem>>, vector<1x1x32xbf16>
    %356 = vector.shape_cast %355 : vector<1x1x32xbf16> to vector<1x32xbf16>
    %357 = vector.shape_cast %353 : vector<1x32xbf16> to vector<1x1x32xbf16>
    tpu.vector_store %arg9[%354, %c0_107, %c0_108], %357 {strides = array<i32>} : memref<8x1x32xbf16, #tpu.memory_space<vmem>>, vector<1x1x32xbf16>,
    %358 = arith.truncf %352 : vector<1x32xf32> to vector<1x32xbf16>
    %359 = arith.index_cast %308 : i32 to index
    %c0_109 = arith.constant 0 : index
    %c0_110 = arith.constant 0 : index
    %360 = vector.load %arg10[%359, %c0_109, %c0_110] : memref<8x1x32xbf16, #tpu.memory_space<vmem>>, vector<1x1x32xbf16>
    %361 = vector.shape_cast %360 : vector<1x1x32xbf16> to vector<1x32xbf16>
    %362 = vector.shape_cast %358 : vector<1x32xbf16> to vector<1x1x32xbf16>
    tpu.vector_store %arg10[%359, %c0_109, %c0_110], %362 {strides = array<i32>} : memref<8x1x32xbf16, #tpu.memory_space<vmem>>, vector<1x1x32xbf16>,
    %c6_i32 = arith.constant 6 : i32
    %c7_i32_111 = arith.constant 7 : i32
    %363 = arith.subi %c7_i32_111, %c6_i32 : i32
    %364 = arith.index_cast %c6_i32 : i32 to index
    %c0_112 = arith.constant 0 : index
    %c0_113 = arith.constant 0 : index
    %365 = vector.load %arg15[%364, %c0_112, %c0_113] : memref<8x1x128xf32, #tpu.memory_space<vmem>>, vector<1x1x128xf32>
    %366 = vector.shape_cast %365 : vector<1x1x128xf32> to vector<1x128xf32>
    %367 = arith.truncf %343 : vector<1x32xf32> to vector<1x32xbf16>
    %cst_114 = arith.constant dense<0.000000e+00> : vector<1x128xf32>
    %368 = tpu.matmul %367, %21, %cst_114 {dimension_numbers = #tpu.dot_dimension_numbers<[1], [0], [0], [1], [0, 0, 1, 1], [], []>} : vector<1x32xbf16>, vector<32x128xbf16>, vector<1x128xf32> -> vector<1x128xf32>
    %369 = arith.addf %366, %368 : vector<1x128xf32>
    %370 = arith.index_cast %363 : i32 to index
    %c0_115 = arith.constant 0 : index
    %c0_116 = arith.constant 0 : index
    %371 = vector.load %arg16[%370, %c0_115, %c0_116] : memref<8x1x128xf32, #tpu.memory_space<vmem>>, vector<1x1x128xf32>
    %372 = vector.shape_cast %371 : vector<1x1x128xf32> to vector<1x128xf32>
    %373 = arith.truncf %352 : vector<1x32xf32> to vector<1x32xbf16>
    %cst_117 = arith.constant dense<0.000000e+00> : vector<1x128xf32>
    %374 = tpu.matmul %373, %22, %cst_117 {dimension_numbers = #tpu.dot_dimension_numbers<[1], [0], [0], [1], [0, 0, 1, 1], [], []>} : vector<1x32xbf16>, vector<32x128xbf16>, vector<1x128xf32> -> vector<1x128xf32>
    %375 = arith.addf %372, %374 : vector<1x128xf32>
    %376 = math.tanh %369 : vector<1x128xf32>
    %377 = arith.negf %369 : vector<1x128xf32>
    %378 = math.exp %377 : vector<1x128xf32>
    %cst_118 = arith.constant 1.000000e+00 : f32
    %379 = vector.broadcast %cst_118 : f32 to vector<1x128xf32>
    %380 = arith.addf %379, %378 : vector<1x128xf32>
    %381 = arith.divf %379, %380 : vector<1x128xf32>
    %382 = arith.select %28, %376, %381 : vector<1x128xi1>, vector<1x128xf32>
    %383 = math.tanh %375 : vector<1x128xf32>
    %384 = arith.negf %375 : vector<1x128xf32>
    %385 = math.exp %384 : vector<1x128xf32>
    %cst_119 = arith.constant 1.000000e+00 : f32
    %386 = vector.broadcast %cst_119 : f32 to vector<1x128xf32>
    %387 = arith.addf %386, %385 : vector<1x128xf32>
    %388 = arith.divf %386, %387 : vector<1x128xf32>
    %389 = arith.select %28, %383, %388 : vector<1x128xi1>, vector<1x128xf32>
    %390 = vector.extract_strided_slice %382 {offsets = [0, 32], sizes = [1, 32], strides = [1, 1]} : vector<1x128xf32> to vector<1x32xf32>
    %391 = arith.mulf %390, %340 : vector<1x32xf32>
    %392 = vector.extract_strided_slice %382 {offsets = [0, 0], sizes = [1, 32], strides = [1, 1]} : vector<1x128xf32> to vector<1x32xf32>
    %393 = vector.extract_strided_slice %382 {offsets = [0, 64], sizes = [1, 32], strides = [1, 1]} : vector<1x128xf32> to vector<1x32xf32>
    %394 = arith.mulf %392, %393 : vector<1x32xf32>
    %395 = arith.addf %391, %394 : vector<1x32xf32>
    %396 = vector.extract_strided_slice %382 {offsets = [0, 96], sizes = [1, 32], strides = [1, 1]} : vector<1x128xf32> to vector<1x32xf32>
    %397 = math.tanh %395 : vector<1x32xf32>
    %398 = arith.mulf %396, %397 : vector<1x32xf32>
    %399 = vector.extract_strided_slice %389 {offsets = [0, 32], sizes = [1, 32], strides = [1, 1]} : vector<1x128xf32> to vector<1x32xf32>
    %400 = arith.mulf %399, %349 : vector<1x32xf32>
    %401 = vector.extract_strided_slice %389 {offsets = [0, 0], sizes = [1, 32], strides = [1, 1]} : vector<1x128xf32> to vector<1x32xf32>
    %402 = vector.extract_strided_slice %389 {offsets = [0, 64], sizes = [1, 32], strides = [1, 1]} : vector<1x128xf32> to vector<1x32xf32>
    %403 = arith.mulf %401, %402 : vector<1x32xf32>
    %404 = arith.addf %400, %403 : vector<1x32xf32>
    %405 = vector.extract_strided_slice %389 {offsets = [0, 96], sizes = [1, 32], strides = [1, 1]} : vector<1x128xf32> to vector<1x32xf32>
    %406 = math.tanh %404 : vector<1x32xf32>
    %407 = arith.mulf %405, %406 : vector<1x32xf32>
    %408 = arith.truncf %398 : vector<1x32xf32> to vector<1x32xbf16>
    %409 = arith.index_cast %c6_i32 : i32 to index
    %c0_120 = arith.constant 0 : index
    %c0_121 = arith.constant 0 : index
    %410 = vector.load %arg9[%409, %c0_120, %c0_121] : memref<8x1x32xbf16, #tpu.memory_space<vmem>>, vector<1x1x32xbf16>
    %411 = vector.shape_cast %410 : vector<1x1x32xbf16> to vector<1x32xbf16>
    %412 = vector.shape_cast %408 : vector<1x32xbf16> to vector<1x1x32xbf16>
    tpu.vector_store %arg9[%409, %c0_120, %c0_121], %412 {strides = array<i32>} : memref<8x1x32xbf16, #tpu.memory_space<vmem>>, vector<1x1x32xbf16>,
    %413 = arith.truncf %407 : vector<1x32xf32> to vector<1x32xbf16>
    %414 = arith.index_cast %363 : i32 to index
    %c0_122 = arith.constant 0 : index
    %c0_123 = arith.constant 0 : index
    %415 = vector.load %arg10[%414, %c0_122, %c0_123] : memref<8x1x32xbf16, #tpu.memory_space<vmem>>, vector<1x1x32xbf16>
    %416 = vector.shape_cast %415 : vector<1x1x32xbf16> to vector<1x32xbf16>
    %417 = vector.shape_cast %413 : vector<1x32xbf16> to vector<1x1x32xbf16>
    tpu.vector_store %arg10[%414, %c0_122, %c0_123], %417 {strides = array<i32>} : memref<8x1x32xbf16, #tpu.memory_space<vmem>>, vector<1x1x32xbf16>,
    %c7_i32_124 = arith.constant 7 : i32
    %c7_i32_125 = arith.constant 7 : i32
    %418 = arith.subi %c7_i32_125, %c7_i32_124 : i32
    %419 = arith.index_cast %c7_i32_124 : i32 to index
    %c0_126 = arith.constant 0 : index
    %c0_127 = arith.constant 0 : index
    %420 = vector.load %arg15[%419, %c0_126, %c0_127] : memref<8x1x128xf32, #tpu.memory_space<vmem>>, vector<1x1x128xf32>
    %421 = vector.shape_cast %420 : vector<1x1x128xf32> to vector<1x128xf32>
    %422 = arith.truncf %398 : vector<1x32xf32> to vector<1x32xbf16>
    %cst_128 = arith.constant dense<0.000000e+00> : vector<1x128xf32>
    %423 = tpu.matmul %422, %21, %cst_128 {dimension_numbers = #tpu.dot_dimension_numbers<[1], [0], [0], [1], [0, 0, 1, 1], [], []>} : vector<1x32xbf16>, vector<32x128xbf16>, vector<1x128xf32> -> vector<1x128xf32>
    %424 = arith.addf %421, %423 : vector<1x128xf32>
    %425 = arith.index_cast %418 : i32 to index
    %c0_129 = arith.constant 0 : index
    %c0_130 = arith.constant 0 : index
    %426 = vector.load %arg16[%425, %c0_129, %c0_130] : memref<8x1x128xf32, #tpu.memory_space<vmem>>, vector<1x1x128xf32>
    %427 = vector.shape_cast %426 : vector<1x1x128xf32> to vector<1x128xf32>
    %428 = arith.truncf %407 : vector<1x32xf32> to vector<1x32xbf16>
    %cst_131 = arith.constant dense<0.000000e+00> : vector<1x128xf32>
    %429 = tpu.matmul %428, %22, %cst_131 {dimension_numbers = #tpu.dot_dimension_numbers<[1], [0], [0], [1], [0, 0, 1, 1], [], []>} : vector<1x32xbf16>, vector<32x128xbf16>, vector<1x128xf32> -> vector<1x128xf32>
    %430 = arith.addf %427, %429 : vector<1x128xf32>
    %431 = math.tanh %424 : vector<1x128xf32>
    %432 = arith.negf %424 : vector<1x128xf32>
    %433 = math.exp %432 : vector<1x128xf32>
    %cst_132 = arith.constant 1.000000e+00 : f32
    %434 = vector.broadcast %cst_132 : f32 to vector<1x128xf32>
    %435 = arith.addf %434, %433 : vector<1x128xf32>
    %436 = arith.divf %434, %435 : vector<1x128xf32>
    %437 = arith.select %28, %431, %436 : vector<1x128xi1>, vector<1x128xf32>
    %438 = math.tanh %430 : vector<1x128xf32>
    %439 = arith.negf %430 : vector<1x128xf32>
    %440 = math.exp %439 : vector<1x128xf32>
    %cst_133 = arith.constant 1.000000e+00 : f32
    %441 = vector.broadcast %cst_133 : f32 to vector<1x128xf32>
    %442 = arith.addf %441, %440 : vector<1x128xf32>
    %443 = arith.divf %441, %442 : vector<1x128xf32>
    %444 = arith.select %28, %438, %443 : vector<1x128xi1>, vector<1x128xf32>
    %445 = vector.extract_strided_slice %437 {offsets = [0, 32], sizes = [1, 32], strides = [1, 1]} : vector<1x128xf32> to vector<1x32xf32>
    %446 = arith.mulf %445, %395 : vector<1x32xf32>
    %447 = vector.extract_strided_slice %437 {offsets = [0, 0], sizes = [1, 32], strides = [1, 1]} : vector<1x128xf32> to vector<1x32xf32>
    %448 = vector.extract_strided_slice %437 {offsets = [0, 64], sizes = [1, 32], strides = [1, 1]} : vector<1x128xf32> to vector<1x32xf32>
    %449 = arith.mulf %447, %448 : vector<1x32xf32>
    %450 = arith.addf %446, %449 : vector<1x32xf32>
    %451 = vector.extract_strided_slice %437 {offsets = [0, 96], sizes = [1, 32], strides = [1, 1]} : vector<1x128xf32> to vector<1x32xf32>
    %452 = math.tanh %450 : vector<1x32xf32>
    %453 = arith.mulf %451, %452 : vector<1x32xf32>
    %454 = vector.extract_strided_slice %444 {offsets = [0, 32], sizes = [1, 32], strides = [1, 1]} : vector<1x128xf32> to vector<1x32xf32>
    %455 = arith.mulf %454, %404 : vector<1x32xf32>
    %456 = vector.extract_strided_slice %444 {offsets = [0, 0], sizes = [1, 32], strides = [1, 1]} : vector<1x128xf32> to vector<1x32xf32>
    %457 = vector.extract_strided_slice %444 {offsets = [0, 64], sizes = [1, 32], strides = [1, 1]} : vector<1x128xf32> to vector<1x32xf32>
    %458 = arith.mulf %456, %457 : vector<1x32xf32>
    %459 = arith.addf %455, %458 : vector<1x32xf32>
    %460 = vector.extract_strided_slice %444 {offsets = [0, 96], sizes = [1, 32], strides = [1, 1]} : vector<1x128xf32> to vector<1x32xf32>
    %461 = math.tanh %459 : vector<1x32xf32>
    %462 = arith.mulf %460, %461 : vector<1x32xf32>
    %463 = arith.truncf %453 : vector<1x32xf32> to vector<1x32xbf16>
    %464 = arith.index_cast %c7_i32_124 : i32 to index
    %c0_134 = arith.constant 0 : index
    %c0_135 = arith.constant 0 : index
    %465 = vector.load %arg9[%464, %c0_134, %c0_135] : memref<8x1x32xbf16, #tpu.memory_space<vmem>>, vector<1x1x32xbf16>
    %466 = vector.shape_cast %465 : vector<1x1x32xbf16> to vector<1x32xbf16>
    %467 = vector.shape_cast %463 : vector<1x32xbf16> to vector<1x1x32xbf16>
    tpu.vector_store %arg9[%464, %c0_134, %c0_135], %467 {strides = array<i32>} : memref<8x1x32xbf16, #tpu.memory_space<vmem>>, vector<1x1x32xbf16>,
    %468 = arith.truncf %462 : vector<1x32xf32> to vector<1x32xbf16>
    %469 = arith.index_cast %418 : i32 to index
    %c0_136 = arith.constant 0 : index
    %c0_137 = arith.constant 0 : index
    %470 = vector.load %arg10[%469, %c0_136, %c0_137] : memref<8x1x32xbf16, #tpu.memory_space<vmem>>, vector<1x1x32xbf16>
    %471 = vector.shape_cast %470 : vector<1x1x32xbf16> to vector<1x32xbf16>
    %472 = vector.shape_cast %468 : vector<1x32xbf16> to vector<1x1x32xbf16>
    tpu.vector_store %arg10[%469, %c0_136, %c0_137], %472 {strides = array<i32>} : memref<8x1x32xbf16, #tpu.memory_space<vmem>>, vector<1x1x32xbf16>,
    %c8_i32 = arith.constant 8 : i32
    %c0_138 = arith.constant 0 : index
    %c0_139 = arith.constant 0 : index
    %473 = vector.load %arg11[%c0_138, %c0_139] : memref<1x32xf32, #tpu.memory_space<vmem>>, vector<1x32xf32>
    tpu.vector_store %arg11[%c0_138, %c0_139], %453 {strides = array<i32>} : memref<1x32xf32, #tpu.memory_space<vmem>>, vector<1x32xf32>,
    %c0_140 = arith.constant 0 : index
    %c0_141 = arith.constant 0 : index
    %474 = vector.load %arg12[%c0_140, %c0_141] : memref<1x32xf32, #tpu.memory_space<vmem>>, vector<1x32xf32>
    tpu.vector_store %arg12[%c0_140, %c0_141], %450 {strides = array<i32>} : memref<1x32xf32, #tpu.memory_space<vmem>>, vector<1x32xf32>,
    %c0_142 = arith.constant 0 : index
    %c0_143 = arith.constant 0 : index
    %475 = vector.load %arg13[%c0_142, %c0_143] : memref<1x32xf32, #tpu.memory_space<vmem>>, vector<1x32xf32>
    tpu.vector_store %arg13[%c0_142, %c0_143], %462 {strides = array<i32>} : memref<1x32xf32, #tpu.memory_space<vmem>>, vector<1x32xf32>,
    %c0_144 = arith.constant 0 : index
    %c0_145 = arith.constant 0 : index
    %476 = vector.load %arg14[%c0_144, %c0_145] : memref<1x32xf32, #tpu.memory_space<vmem>>, vector<1x32xf32>
    tpu.vector_store %arg14[%c0_144, %c0_145], %459 {strides = array<i32>} : memref<1x32xf32, #tpu.memory_space<vmem>>, vector<1x32xf32>,
    return
  }
  func.func @transform_0(%arg0: i32) -> (i32, i32, i32) {
    %c0_i32 = arith.constant 0 : i32
    %c0_i32_0 = arith.constant 0 : i32
    %c0_i32_1 = arith.constant 0 : i32
    return %arg0, %c0_i32, %c0_i32_0 : i32, i32, i32
  }
  func.func @transform_1(%arg0: i32) -> (i32, i32, i32) {
    %c0_i32 = arith.constant 0 : i32
    %0 = arith.subi %c0_i32, %arg0 : i32
    %c0_i32_0 = arith.constant 0 : i32
    %c0_i32_1 = arith.constant 0 : i32
    %c0_i32_2 = arith.constant 0 : i32
    return %0, %c0_i32_0, %c0_i32_1 : i32, i32, i32
  }
  func.func @transform_2(%arg0: i32) -> (i32, i32) {
    %c0_i32 = arith.constant 0 : i32
    %c0_i32_0 = arith.constant 0 : i32
    %c0_i32_1 = arith.constant 0 : i32
    return %c0_i32, %c0_i32_0 : i32, i32
  }
  func.func @transform_3(%arg0: i32) -> (i32, i32) {
    %c0_i32 = arith.constant 0 : i32
    %c0_i32_0 = arith.constant 0 : i32
    %c0_i32_1 = arith.constant 0 : i32
    return %c0_i32, %c0_i32_0 : i32, i32
  }
  func.func @transform_4(%arg0: i32) -> (i32, i32) {
    %c0_i32 = arith.constant 0 : i32
    %c0_i32_0 = arith.constant 0 : i32
    %c0_i32_1 = arith.constant 0 : i32
    return %c0_i32, %c0_i32_0 : i32, i32
  }
  func.func @transform_5(%arg0: i32) -> (i32, i32) {
    %c0_i32 = arith.constant 0 : i32
    %c0_i32_0 = arith.constant 0 : i32
    %c0_i32_1 = arith.constant 0 : i32
    return %c0_i32, %c0_i32_0 : i32, i32
  }
  func.func @transform_6(%arg0: i32) -> (i32, i32) {
    %c0_i32 = arith.constant 0 : i32
    %c0_i32_0 = arith.constant 0 : i32
    %c0_i32_1 = arith.constant 0 : i32
    return %c0_i32, %c0_i32_0 : i32, i32
  }
  func.func @transform_7(%arg0: i32) -> (i32, i32) {
    %c0_i32 = arith.constant 0 : i32
    %c0_i32_0 = arith.constant 0 : i32
    %c0_i32_1 = arith.constant 0 : i32
    return %c0_i32, %c0_i32_0 : i32, i32
  }
  func.func @transform_8(%arg0: i32) -> (i32, i32, i32) {
    %c0_i32 = arith.constant 0 : i32
    %c0_i32_0 = arith.constant 0 : i32
    %c0_i32_1 = arith.constant 0 : i32
    return %arg0, %c0_i32, %c0_i32_0 : i32, i32, i32
  }
  func.func @transform_9(%arg0: i32) -> (i32, i32, i32) {
    %c0_i32 = arith.constant 0 : i32
    %0 = arith.subi %c0_i32, %arg0 : i32
    %c0_i32_0 = arith.constant 0 : i32
    %c0_i32_1 = arith.constant 0 : i32
    %c0_i32_2 = arith.constant 0 : i32
    return %0, %c0_i32_0, %c0_i32_1 : i32, i32, i32
  }
}

</mosaic_0001>

<llo_original>
// kernel: vocalnet_forward.2
$region0: #{vocalnet_forward.2}
  #allocation0 [shape = 'u32[]', space=smem, size = 0x4, offset = 0x4, fixed_abs, tag = 'smem constant byte address 0x4 - core index']
  #allocation1 [shape = 'u32[144,128]{1,0:T(1,128)}', space=vmem, size = 0x12000, scoped, tag = 'internal scratch']
  #allocation2 [shape = 'f32[1,32]{1,0:T(1,128)}', space=vmem, size = 0x200, scoped, tag = 'scratch operand']
  #allocation3 [shape = 'f32[1,32]{1,0:T(1,128)}', space=vmem, size = 0x200, scoped, tag = 'scratch operand']
  #allocation4 [shape = 'f32[1,32]{1,0:T(1,128)}', space=vmem, size = 0x200, scoped, tag = 'scratch operand']
  #allocation5 [shape = 'f32[1,32]{1,0:T(1,128)}', space=vmem, size = 0x200, scoped, tag = 'scratch operand']
  #allocation6 [shape = 'f32[8,1,128]{2,1,0:T(1,128)}', space=vmem, size = 0x1000, scoped, tag = 'scratch operand']
  #allocation7 [shape = 'f32[8,1,128]{2,1,0:T(1,128)}', space=vmem, size = 0x1000, scoped, tag = 'scratch operand']
  %s0 = inlined_call_operand.vmem [shape: bf16[8,1,16], index: 0, kind: input, shape index: {}, may-alias: {0,1}]
  %s1 = inlined_call_operand.vmem [shape: bf16[8,1,16], index: 1, kind: input, shape index: {}, may-alias: {0,1}]
  %s2 = inlined_call_operand.hbm [shape: bf16[16,128], index: 2, kind: input, shape index: {}]
  %s3 = inlined_call_operand.hbm [shape: bf16[16,128], index: 3, kind: input, shape index: {}]
  %s4 = inlined_call_operand.vmem [shape: bf16[32,128], index: 4, kind: input, shape index: {}]
  %s5 = inlined_call_operand.hbm [shape: bf16[32,128], index: 5, kind: input, shape index: {}]
  %s6 = inlined_call_operand.hbm [shape: f32[1,128], index: 6, kind: input, shape index: {}]
  %s7 = inlined_call_operand.hbm [shape: f32[1,128], index: 7, kind: input, shape index: {}]
  %s8 = inlined_call_operand.vmem [shape: bf16[8,1,32], index: 8, kind: output, shape index: {0}]
  %s9 = inlined_call_operand.vmem [shape: bf16[8,1,32], index: 9, kind: output, shape index: {1}]
  %10 = xla_tuple %s8, %s9
  %s11 = sld [smem:[#allocation0]]
  $region74: #{vocalnet_forward.2} parent=0
    _
  %s13 = ssub.s32 1, %s11
  %s14 = scalar_select 0, %s13, %s11
  $region1: #{vocalnet_forward.2} parent=0
    #allocation8 [shape = 'u8[4096]{0}', space=vmem, size = 0x1000, scoped, tag = 'input window, operand 2, single buffered']
    #allocation9 [shape = 's32[1]{0}', space=sflag, size = 0x4, scoped, tag = 'scoped memory for vocalnet_forward.2']
    #allocation10 [shape = 'u8[4096]{0}', space=vmem, size = 0x1000, scoped, tag = 'input window, operand 3, single buffered']
    #allocation11 [shape = 's32[1]{0}', space=sflag, size = 0x4, scoped, tag = 'scoped memory for vocalnet_forward.2']
    #allocation12 [shape = 'u8[8192]{0}', space=vmem, size = 0x2000, scoped, tag = 'input window, operand 5, single buffered']
    #allocation13 [shape = 'u8[512]{0}', space=vmem, size = 0x400, scoped, tag = 'input window, operand 6, single buffered']
    #allocation14 [shape = 's32[1]{0}', space=sflag, size = 0x4, scoped, tag = 'scoped memory for vocalnet_forward.2']
    #allocation15 [shape = 'u8[512]{0}', space=vmem, size = 0x400, scoped, tag = 'input window, operand 7, single buffered']
    %15 = vsyncpa [#allocation9], 0
    %16 = vsyncpa [#allocation11], 0
    %17 = vsyncpa [#allocation14], 0
    // Predicated region
    $region2: #{vocalnet_forward.2} parent=1 // pred_check
      _
    $region3: #{vocalnet_forward.2} parent=1 // pred_check_branch
      %19 = sbr.rel (0) target = $region5
    $region4: #{vocalnet_forward.2} parent=1 // pred_region
      _
    $region5: #{vocalnet_forward.2} parent=1 // pred_fallthru
      _
    // Predicated region
    $region6: #{vocalnet_forward.2} parent=1 // pred_check
      _
    $region7: #{vocalnet_forward.2} parent=1 // pred_check_branch
      %21 = sbr.rel (0) target = $region9
    $region8: #{vocalnet_forward.2} parent=1 // pred_region
      %s22 = ssub.s32 0, 0
      %s23 = smul.u32 8, %s22
      %p24 = scmp.lt.s32.totalorder %s23, 7
      %s25 = scalar_select %p24, %s23, 7
      %s26 = scalar_lea.vmem %s1, %s25
      %s27 = ssub.s32 0, 0
      %s28 = smul.u32 8, %s27
    $region9: #{vocalnet_forward.2} parent=1 // pred_fallthru
      _
    // Predicated region
    $region10: #{vocalnet_forward.2} parent=1 // pred_check
      _
    $region11: #{vocalnet_forward.2} parent=1 // pred_check_branch
      %30 = sbr.rel (0) target = $region13
    $region12: #{vocalnet_forward.2} parent=1 // pred_region
      %s32 = ssub.s32 128, 128
      %33 = vsyncadd [#allocation9], %s32
      %s34 = sshll.u32 [#allocation8], 4
      %s35 = int_to_ptr.vmem [resolvable:$true] %s34
      %40 = dma.hbm_to_vmem [thread:$0]  %s2, 128, %s35, [#allocation9], 64, 64, 4
    $region13: #{vocalnet_forward.2} parent=1 // pred_fallthru
      _
    // Predicated region
    $region14: #{vocalnet_forward.2} parent=1 // pred_check
      _
    $region15: #{vocalnet_forward.2} parent=1 // pred_check_branch
      %42 = sbr.rel (0) target = $region17
    $region16: #{vocalnet_forward.2} parent=1 // pred_region
      %s44 = ssub.s32 128, 128
      %45 = vsyncadd [#allocation11], %s44
      %s46 = sshll.u32 [#allocation10], 4
      %s47 = int_to_ptr.vmem [resolvable:$true] %s46
      %52 = dma.hbm_to_vmem [thread:$0]  %s3, 128, %s47, [#allocation11], 64, 64, 4
    $region17: #{vocalnet_forward.2} parent=1 // pred_fallthru
      _
    // Predicated region
    $region18: #{vocalnet_forward.2} parent=1 // pred_check
      _
    $region19: #{vocalnet_forward.2} parent=1 // pred_check_branch
      %54 = sbr.rel (0) target = $region21
    $region20: #{vocalnet_forward.2} parent=1 // pred_region
      _
    $region21: #{vocalnet_forward.2} parent=1 // pred_fallthru
      _
    // Predicated region
    $region22: #{vocalnet_forward.2} parent=1 // pred_check
      _
    $region23: #{vocalnet_forward.2} parent=1 // pred_check_branch
      %56 = sbr.rel (0) target = $region25
    $region24: #{vocalnet_forward.2} parent=1 // pred_region
      %s58 = ssub.s32 256, 256
      %59 = vsyncadd [#allocation11], %s58
      %s60 = sshll.u32 [#allocation12], 4
      %s61 = int_to_ptr.vmem [resolvable:$true] %s60
      %66 = dma.hbm_to_vmem [thread:$0]  %s5, 256, %s61, [#allocation11], 64, 64, 4
    $region25: #{vocalnet_forward.2} parent=1 // pred_fallthru
      _
    // Predicated region
    $region26: #{vocalnet_forward.2} parent=1 // pred_check
      _
    $region27: #{vocalnet_forward.2} parent=1 // pred_check_branch
      %68 = sbr.rel (0) target = $region29
    $region28: #{vocalnet_forward.2} parent=1 // pred_region
      %s70 = ssub.s32 16, 16
      %71 = vsyncadd [#allocation14], %s70
      %s73 = sshll.u32 [#allocation13], 4
      %s74 = int_to_ptr.vmem [resolvable:$true] %s73
      %76 = dma.hbm_to_vmem [thread:$0]  %s6, 16, %s74, [#allocation14]
    $region29: #{vocalnet_forward.2} parent=1 // pred_fallthru
      _
    // Predicated region
    $region30: #{vocalnet_forward.2} parent=1 // pred_check
      _
    $region31: #{vocalnet_forward.2} parent=1 // pred_check_branch
      %78 = sbr.rel (0) target = $region33
    $region32: #{vocalnet_forward.2} parent=1 // pred_region
      %s80 = ssub.s32 16, 16
      %81 = vsyncadd [#allocation14], %s80
      %s83 = sshll.u32 [#allocation15], 4
      %s84 = int_to_ptr.vmem [resolvable:$true] %s83
      %86 = dma.hbm_to_vmem [thread:$0]  %s7, 16, %s84, [#allocation14]
    $region33: #{vocalnet_forward.2} parent=1 // pred_fallthru
      _
    // Predicated region
    $region34: #{vocalnet_forward.2} parent=1 // pred_check
      _
    $region35: #{vocalnet_forward.2} parent=1 // pred_check_branch
      %88 = sbr.rel (0) target = $region37
    $region36: #{vocalnet_forward.2} parent=1 // pred_region
      %89 = dma.done [#allocation9], 128
    $region37: #{vocalnet_forward.2} parent=1 // pred_fallthru
      _
    // Predicated region
    $region38: #{vocalnet_forward.2} parent=1 // pred_check
      _
    $region39: #{vocalnet_forward.2} parent=1 // pred_check_branch
      %91 = sbr.rel (0) target = $region41
    $region40: #{vocalnet_forward.2} parent=1 // pred_region
      %92 = dma.done [#allocation11], 128
    $region41: #{vocalnet_forward.2} parent=1 // pred_fallthru
      _
    // Predicated region
    $region42: #{vocalnet_forward.2} parent=1 // pred_check
      _
    $region43: #{vocalnet_forward.2} parent=1 // pred_check_branch
      %94 = sbr.rel (0) target = $region45
    $region44: #{vocalnet_forward.2} parent=1 // pred_region
      %95 = dma.done [#allocation11], 256
    $region45: #{vocalnet_forward.2} parent=1 // pred_fallthru
      _
    // Predicated region
    $region46: #{vocalnet_forward.2} parent=1 // pred_check
      _
    $region47: #{vocalnet_forward.2} parent=1 // pred_check_branch
      %97 = sbr.rel (0) target = $region49
    $region48: #{vocalnet_forward.2} parent=1 // pred_region
      %98 = dma.done [#allocation14], 16
    $region49: #{vocalnet_forward.2} parent=1 // pred_fallthru
      _
    // Predicated region
    $region50: #{vocalnet_forward.2} parent=1 // pred_check
      _
    $region51: #{vocalnet_forward.2} parent=1 // pred_check_branch
      %100 = sbr.rel (0) target = $region53
    $region52: #{vocalnet_forward.2} parent=1 // pred_region
      %101 = dma.done [#allocation14], 16
    $region53: #{vocalnet_forward.2} parent=1 // pred_fallthru
      _
    %s102 = ssub.s32 0, 0
    %s103 = smul.u32 8, %s102
    %p104 = scmp.lt.s32.totalorder %s103, 7
    %s105 = scalar_select %p104, %s103, 7
    %s106 = scalar_lea.vmem %s1, %s105
    %s107 = ssub.s32 0, 0
    %s108 = smul.u32 8, %s107
    %p109 = scmp.lt.s32.totalorder %s108, 7
    %s110 = scalar_select %p109, %s108, 7
    %s111 = scalar_lea.vmem %s9, %s110
    %s112 = ssub.s32 0, 0
    %s113 = smul.u32 8, %s112
    %p114 = scmp.lt.s32.totalorder %s113, 7
    %s115 = scalar_select %p114, %s113, 7
    %s116 = scalar_lea.vmem %s1, %s115
    %s117 = ssub.s32 0, 0
    %s118 = smul.u32 8, %s117
    %s119 = ssub.s32 0, 0
    %s120 = smul.u32 8, %s119
    %p121 = scmp.lt.s32.totalorder %s120, 7
    %s122 = scalar_select %p121, %s120, 7
    %s123 = scalar_lea.vmem %s9, %s122
    %s124 = ssub.s32 0, 0
    %s125 = smul.u32 8, %s124
    %p127 = scmp.eq.s32.totalorder 0, 0
    // Predicated region
    $region54: #{vocalnet_forward.2} parent=1 // pred_check
      %p128 = pneg %p127
    $region55: #{vocalnet_forward.2} parent=1 // pred_check_branch
      %130 = sbr.rel (%p128) target = $region57
    $region56: #{vocalnet_forward.2} parent=1 // pred_region
      %vm131 = vcmask 253952
      %132 = vst.msk [vmem:[#allocation2] sm:$0x1] %vm131, 0.0
      %133 = vst.msk [vmem:[#allocation3] sm:$0x1] %vm131, 0.0
      %134 = vst.msk [vmem:[#allocation4] sm:$0x1] %vm131, 0.0
      %135 = vst.msk [vmem:[#allocation5] sm:$0x1] %vm131, 0.0
    $region57: #{vocalnet_forward.2} parent=1 // pred_fallthru
      _
    %v136 = vld [vmem:[#allocation13] sm:$0x1]
    %v137 = vld [vmem:[#allocation15] sm:$0x1]
    %v138 = vld [vmem:[%s0] sm:$0x1]
    %v139 = vld [vmem:[%s0 + $0x1] sm:$0x1]
    %v140 = vld [vmem:[%s0 + $0x2] sm:$0x1]
    %v141 = vld [vmem:[%s0 + $0x3] sm:$0x1]
    %v142 = vld [vmem:[%s0 + $0x4] sm:$0x1]
    %v143 = vld [vmem:[%s0 + $0x5] sm:$0x1]
    %v144 = vld [vmem:[%s0 + $0x6] sm:$0x1]
    %v145 = vld [vmem:[%s0 + $0x7] sm:$0x1]
    %v146 = vld [vmem:[%s116] sm:$0x1]
    %v147 = vld [vmem:[%s116 + $0x1] sm:$0x1]
    %v148 = vld [vmem:[%s116 + $0x2] sm:$0x1]
    %v149 = vld [vmem:[%s116 + $0x3] sm:$0x1]
    %v150 = vld [vmem:[%s116 + $0x4] sm:$0x1]
    %v151 = vld [vmem:[%s116 + $0x5] sm:$0x1]
    %v152 = vld [vmem:[%s116 + $0x6] sm:$0x1]
    %v153 = vld [vmem:[%s116 + $0x7] sm:$0x1]
    %v154 = vld [vmem:[#allocation8] sm:$0xf]
    %v155 = vld [vmem:[#allocation8 + $0x4] sm:$0xf]
    %v165 = vunpack.c.l.s4 1966171168
    %v166 = vunpack.c.0.s8 %v165
    %v167 = vlaneseq
    %v168 = vshrl.u32 %v167, 7
    %v169 = vsub.s32 %v166, %v168
    %v170 = vrot.slane %v138, %v169
    %v172 = vunpack.c.l.s4 1966171168
    %v173 = vunpack.c.0.s8 %v172
    %v174 = vlaneseq
    %v175 = vshrl.u32 %v174, 7
    %v176 = vsub.s32 %v173, %v175
    %v177 = vrot.slane %v170, %v176
    %v179 = vunpack.c.l.s4 1966171168
    %v180 = vunpack.c.0.s8 %v179
    %v181 = vlaneseq
    %v182 = vshrl.u32 %v181, 7
    %v183 = vsub.s32 %v180, %v182
    %v184 = vrot.slane %v139, %v183
    %v186 = vunpack.c.l.s4 1966171168
    %v187 = vunpack.c.0.s8 %v186
    %v188 = vlaneseq
    %v189 = vshrl.u32 %v188, 7
    %v190 = vsub.s32 %v187, %v189
    %v191 = vrot.slane %v184, %v190
    %v193 = vunpack.c.l.s4 1966171168
    %v194 = vunpack.c.0.s8 %v193
    %v195 = vlaneseq
    %v196 = vshrl.u32 %v195, 7
    %v197 = vsub.s32 %v194, %v196
    %v198 = vrot.slane %v140, %v197
    %v200 = vunpack.c.l.s4 1966171168
    %v201 = vunpack.c.0.s8 %v200
    %v202 = vlaneseq
    %v203 = vshrl.u32 %v202, 7
    %v204 = vsub.s32 %v201, %v203
    %v205 = vrot.slane %v198, %v204
    %v207 = vunpack.c.l.s4 1966171168
    %v208 = vunpack.c.0.s8 %v207
    %v209 = vlaneseq
    %v210 = vshrl.u32 %v209, 7
    %v211 = vsub.s32 %v208, %v210
    %v212 = vrot.slane %v141, %v211
    %v214 = vunpack.c.l.s4 1966171168
    %v215 = vunpack.c.0.s8 %v214
    %v216 = vlaneseq
    %v217 = vshrl.u32 %v216, 7
    %v218 = vsub.s32 %v215, %v217
    %v219 = vrot.slane %v212, %v218
    %v221 = vunpack.c.l.s4 1966171168
    %v222 = vunpack.c.0.s8 %v221
    %v223 = vlaneseq
    %v224 = vshrl.u32 %v223, 7
    %v225 = vsub.s32 %v222, %v224
    %v226 = vrot.slane %v142, %v225
    %v228 = vunpack.c.l.s4 1966171168
    %v229 = vunpack.c.0.s8 %v228
    %v230 = vlaneseq
    %v231 = vshrl.u32 %v230, 7
    %v232 = vsub.s32 %v229, %v231
    %v233 = vrot.slane %v226, %v232
    %v235 = vunpack.c.l.s4 1966171168
    %v236 = vunpack.c.0.s8 %v235
    %v237 = vlaneseq
    %v238 = vshrl.u32 %v237, 7
    %v239 = vsub.s32 %v236, %v238
    %v240 = vrot.slane %v143, %v239
    %v242 = vunpack.c.l.s4 1966171168
    %v243 = vunpack.c.0.s8 %v242
    %v244 = vlaneseq
    %v245 = vshrl.u32 %v244, 7
    %v246 = vsub.s32 %v243, %v245
    %v247 = vrot.slane %v240, %v246
    %v249 = vunpack.c.l.s4 1966171168
    %v250 = vunpack.c.0.s8 %v249
    %v251 = vlaneseq
    %v252 = vshrl.u32 %v251, 7
    %v253 = vsub.s32 %v250, %v252
    %v254 = vrot.slane %v144, %v253
    %v256 = vunpack.c.l.s4 1966171168
    %v257 = vunpack.c.0.s8 %v256
    %v258 = vlaneseq
    %v259 = vshrl.u32 %v258, 7
    %v260 = vsub.s32 %v257, %v259
    %v261 = vrot.slane %v254, %v260
    %v263 = vunpack.c.l.s4 1966171168
    %v264 = vunpack.c.0.s8 %v263
    %v265 = vlaneseq
    %v266 = vshrl.u32 %v265, 7
    %v267 = vsub.s32 %v264, %v266
    %v268 = vrot.slane %v145, %v267
    %v270 = vunpack.c.l.s4 1966171168
    %v271 = vunpack.c.0.s8 %v270
    %v272 = vlaneseq
    %v273 = vshrl.u32 %v272, 7
    %v274 = vsub.s32 %v271, %v273
    %v275 = vrot.slane %v268, %v274
    %v276 = vunpack.c.l.b16 %v177
    %v277 = vunpack.c.l.b16 %v191
    %v278 = vunpack.c.l.b16 %v205
    %v279 = vunpack.c.l.b16 %v219
    %v280 = vunpack.c.l.b16 %v233
    %v281 = vunpack.c.l.b16 %v247
    %v282 = vunpack.c.l.b16 %v261
    %v283 = vunpack.c.l.b16 %v275
    %v284 = vrot.slane %v277, 7
    %vm285 = vcmask 1041409
    %v286 = vsel %vm285, %v284, %v276
    %v287 = vrot.slane %v278, 6
    %vm288 = vcmask 1042434
    %v289 = vsel %vm288, %v287, %v286
    %v290 = vrot.slane %v279, 5
    %vm291 = vcmask 1043459
    %v292 = vsel %vm291, %v290, %v289
    %v293 = vrot.slane %v280, 4
    %vm294 = vcmask 1044484
    %v295 = vsel %vm294, %v293, %v292
    %v296 = vrot.slane %v281, 3
    %vm297 = vcmask 1045509
    %v298 = vsel %vm297, %v296, %v295
    %v299 = vrot.slane %v282, 2
    %vm300 = vcmask 1046534
    %v301 = vsel %vm300, %v299, %v298
    %v302 = vrot.slane %v283, 1
    %vm303 = vcmask 1047559
    %v304 = vsel %vm303, %v302, %v301
    %v305 = vpack.c.b16 %v304, %v304
    %v308 = vunpack.c.l.b16 %v154
    %v309 = vunpack.c.l.b16 %v155
    %v310 = vpack.c.b16 %v309, %v308
    %vm312 = vcmask 130048
    %v314 = vsel %vm312, %v305, 0
    %316 = vmatprep.subr.bf16.mxu0 0
    %317 = vmatpush1.bf16.msra.mxu0 %v310
    %318 = vmatprep.subr.bf16.mxu0 0
    %319 = vmatpush1.bf16.msra.mxu0 0
    %320 = vmatprep.subr.bf16.mxu0 0
    %321 = vmatpush1.bf16.msra.mxu0 0
    %322 = vmatprep.subr.bf16.mxu0 0
    %323 = vmatpush1.bf16.msra.mxu0 0
    %324 = vmatprep.subr.bf16.mxu0 0
    %325 = vmatpush1.bf16.msra.mxu0 0
    %326 = vmatprep.subr.bf16.mxu0 0
    %327 = vmatpush1.bf16.msra.mxu0 0
    %328 = vmatprep.subr.bf16.mxu0 0
    %329 = vmatpush1.bf16.msra.mxu0 0
    %330 = vmatprep.subr.bf16.mxu0 0
    %331 = vmatpush1.bf16.msra.mxu0 0
    %332 = vmatprep.subr.bf16.mxu0 0
    %333 = vmatpush1.bf16.msra.mxu0 0
    %334 = vmatprep.subr.bf16.mxu0 0
    %335 = vmatpush1.bf16.msra.mxu0 0
    %336 = vmatprep.subr.bf16.mxu0 0
    %337 = vmatpush1.bf16.msra.mxu0 0
    %338 = vmatprep.subr.bf16.mxu0 0
    %339 = vmatpush1.bf16.msra.mxu0 0
    %340 = vmatprep.subr.bf16.mxu0 0
    %341 = vmatpush1.bf16.msra.mxu0 0
    %342 = vmatprep.subr.bf16.mxu0 0
    %343 = vmatpush1.bf16.msra.mxu0 0
    %344 = vmatprep.subr.bf16.mxu0 0
    %345 = vmatpush1.bf16.msra.mxu0 0
    %346 = vmatprep.subr.bf16.mxu0 0
    %347 = vmatpush1.bf16.msra.mxu0 0
    %348 = vmatprep.mubr.bf16.mxu0 0
    %349 = vmatmul.mubr.bf16.gmra.mrb[0].mxu0 %v314
    %v350 = vpop.f32.mrb[0].mxu0
    %v351 = vadd.f32 0.0, %v350
    %v352 = vpop.f32.mrb[0].mxu0
    %v353 = vpop.f32.mrb[0].mxu0
    %v354 = vpop.f32.mrb[0].mxu0
    %355 = vdwg.mxu0
    %v357 = vlaneseq
    %v358 = vshrl.u32 %v357, 7
    %v359 = vsub.s32 0, %v358
    %v360 = vrot.slane %v136, %v359
    %v362 = vadd.f32 %v360, %v351
    %v363 = vld [vmem:[#allocation10] sm:$0xf]
    %v364 = vld [vmem:[#allocation10 + $0x4] sm:$0xf]
    %v374 = vunpack.c.l.s4 1966171168
    %v375 = vunpack.c.0.s8 %v374
    %v376 = vlaneseq
    %v377 = vshrl.u32 %v376, 7
    %v378 = vsub.s32 %v375, %v377
    %v379 = vrot.slane %v146, %v378
    %v381 = vunpack.c.l.s4 1966171168
    %v382 = vunpack.c.0.s8 %v381
    %v383 = vlaneseq
    %v384 = vshrl.u32 %v383, 7
    %v385 = vsub.s32 %v382, %v384
    %v386 = vrot.slane %v379, %v385
    %v388 = vunpack.c.l.s4 1966171168
    %v389 = vunpack.c.0.s8 %v388
    %v390 = vlaneseq
    %v391 = vshrl.u32 %v390, 7
    %v392 = vsub.s32 %v389, %v391
    %v393 = vrot.slane %v147, %v392
    %v395 = vunpack.c.l.s4 1966171168
    %v396 = vunpack.c.0.s8 %v395
    %v397 = vlaneseq
    %v398 = vshrl.u32 %v397, 7
    %v399 = vsub.s32 %v396, %v398
    %v400 = vrot.slane %v393, %v399
    %v402 = vunpack.c.l.s4 1966171168
    %v403 = vunpack.c.0.s8 %v402
    %v404 = vlaneseq
    %v405 = vshrl.u32 %v404, 7
    %v406 = vsub.s32 %v403, %v405
    %v407 = vrot.slane %v148, %v406
    %v409 = vunpack.c.l.s4 1966171168
    %v410 = vunpack.c.0.s8 %v409
    %v411 = vlaneseq
    %v412 = vshrl.u32 %v411, 7
    %v413 = vsub.s32 %v410, %v412
    %v414 = vrot.slane %v407, %v413
    %v416 = vunpack.c.l.s4 1966171168
    %v417 = vunpack.c.0.s8 %v416
    %v418 = vlaneseq
    %v419 = vshrl.u32 %v418, 7
    %v420 = vsub.s32 %v417, %v419
    %v421 = vrot.slane %v149, %v420
    %v423 = vunpack.c.l.s4 1966171168
    %v424 = vunpack.c.0.s8 %v423
    %v425 = vlaneseq
    %v426 = vshrl.u32 %v425, 7
    %v427 = vsub.s32 %v424, %v426
    %v428 = vrot.slane %v421, %v427
    %v430 = vunpack.c.l.s4 1966171168
    %v431 = vunpack.c.0.s8 %v430
    %v432 = vlaneseq
    %v433 = vshrl.u32 %v432, 7
    %v434 = vsub.s32 %v431, %v433
    %v435 = vrot.slane %v150, %v434
    %v437 = vunpack.c.l.s4 1966171168
    %v438 = vunpack.c.0.s8 %v437
    %v439 = vlaneseq
    %v440 = vshrl.u32 %v439, 7
    %v441 = vsub.s32 %v438, %v440
    %v442 = vrot.slane %v435, %v441
    %v444 = vunpack.c.l.s4 1966171168
    %v445 = vunpack.c.0.s8 %v444
    %v446 = vlaneseq
    %v447 = vshrl.u32 %v446, 7
    %v448 = vsub.s32 %v445, %v447
    %v449 = vrot.slane %v151, %v448
    %v451 = vunpack.c.l.s4 1966171168
    %v452 = vunpack.c.0.s8 %v451
    %v453 = vlaneseq
    %v454 = vshrl.u32 %v453, 7
    %v455 = vsub.s32 %v452, %v454
    %v456 = vrot.slane %v449, %v455
    %v458 = vunpack.c.l.s4 1966171168
    %v459 = vunpack.c.0.s8 %v458
    %v460 = vlaneseq
    %v461 = vshrl.u32 %v460, 7
    %v462 = vsub.s32 %v459, %v461
    %v463 = vrot.slane %v152, %v462
    %v465 = vunpack.c.l.s4 1966171168
    %v466 = vunpack.c.0.s8 %v465
    %v467 = vlaneseq
    %v468 = vshrl.u32 %v467, 7
    %v469 = vsub.s32 %v466, %v468
    %v470 = vrot.slane %v463, %v469
    %v472 = vunpack.c.l.s4 1966171168
    %v473 = vunpack.c.0.s8 %v472
    %v474 = vlaneseq
    %v475 = vshrl.u32 %v474, 7
    %v476 = vsub.s32 %v473, %v475
    %v477 = vrot.slane %v153, %v476
    %v479 = vunpack.c.l.s4 1966171168
    %v480 = vunpack.c.0.s8 %v479
    %v481 = vlaneseq
    %v482 = vshrl.u32 %v481, 7
    %v483 = vsub.s32 %v480, %v482
    %v484 = vrot.slane %v477, %v483
    %v485 = vunpack.c.l.b16 %v386
    %v486 = vunpack.c.l.b16 %v400
    %v487 = vunpack.c.l.b16 %v414
    %v488 = vunpack.c.l.b16 %v428
    %v489 = vunpack.c.l.b16 %v442
    %v490 = vunpack.c.l.b16 %v456
    %v491 = vunpack.c.l.b16 %v470
    %v492 = vunpack.c.l.b16 %v484
    %v493 = vrot.slane %v486, 7
    %v494 = vsel %vm285, %v493, %v485
    %v495 = vrot.slane %v487, 6
    %v496 = vsel %vm288, %v495, %v494
    %v497 = vrot.slane %v488, 5
    %v498 = vsel %vm291, %v497, %v496
    %v499 = vrot.slane %v489, 4
    %v500 = vsel %vm294, %v499, %v498
    %v501 = vrot.slane %v490, 3
    %v502 = vsel %vm297, %v501, %v500
    %v503 = vrot.slane %v491, 2
    %v504 = vsel %vm300, %v503, %v502
    %v505 = vrot.slane %v492, 1
    %v506 = vsel %vm303, %v505, %v504
    %v507 = vpack.c.b16 %v506, %v506
    %v510 = vunpack.c.l.b16 %v363
    %v511 = vunpack.c.l.b16 %v364
    %v512 = vpack.c.b16 %v511, %v510
    %v515 = vsel %vm312, %v507, 0
    %517 = vmatprep.subr.bf16.mxu0 0
    %518 = vmatpush1.bf16.msra.mxu0 %v512
    %519 = vmatprep.subr.bf16.mxu0 0
    %520 = vmatpush1.bf16.msra.mxu0 0
    %521 = vmatprep.subr.bf16.mxu0 0
    %522 = vmatpush1.bf16.msra.mxu0 0
    %523 = vmatprep.subr.bf16.mxu0 0
    %524 = vmatpush1.bf16.msra.mxu0 0
    %525 = vmatprep.subr.bf16.mxu0 0
    %526 = vmatpush1.bf16.msra.mxu0 0
    %527 = vmatprep.subr.bf16.mxu0 0
    %528 = vmatpush1.bf16.msra.mxu0 0
    %529 = vmatprep.subr.bf16.mxu0 0
    %530 = vmatpush1.bf16.msra.mxu0 0
    %531 = vmatprep.subr.bf16.mxu0 0
    %532 = vmatpush1.bf16.msra.mxu0 0
    %533 = vmatprep.subr.bf16.mxu0 0
    %534 = vmatpush1.bf16.msra.mxu0 0
    %535 = vmatprep.subr.bf16.mxu0 0
    %536 = vmatpush1.bf16.msra.mxu0 0
    %537 = vmatprep.subr.bf16.mxu0 0
    %538 = vmatpush1.bf16.msra.mxu0 0
    %539 = vmatprep.subr.bf16.mxu0 0
    %540 = vmatpush1.bf16.msra.mxu0 0
    %541 = vmatprep.subr.bf16.mxu0 0
    %542 = vmatpush1.bf16.msra.mxu0 0
    %543 = vmatprep.subr.bf16.mxu0 0
    %544 = vmatpush1.bf16.msra.mxu0 0
    %545 = vmatprep.subr.bf16.mxu0 0
    %546 = vmatpush1.bf16.msra.mxu0 0
    %547 = vmatprep.subr.bf16.mxu0 0
    %548 = vmatpush1.bf16.msra.mxu0 0
    %549 = vmatprep.mubr.bf16.mxu0 0
    %550 = vmatmul.mubr.bf16.gmra.mrb[0].mxu0 %v515
    %v551 = vpop.f32.mrb[0].mxu0
    %v552 = vadd.f32 0.0, %v551
    %v553 = vpop.f32.mrb[0].mxu0
    %v554 = vpop.f32.mrb[0].mxu0
    %v555 = vpop.f32.mrb[0].mxu0
    %556 = vdwg.mxu0
    %v558 = vlaneseq
    %v559 = vshrl.u32 %v558, 7
    %v560 = vsub.s32 0, %v559
    %v561 = vrot.slane %v137, %v560
    %v563 = vadd.f32 %v561, %v552
    %v565 = vcombine.high %v362, %v362
    %v567 = vunpack.c.l.s4 1966171168
    %v568 = vunpack.c.0.s8 %v567
    %v569 = vlaneseq
    %v570 = vshrl.u32 %v569, 7
    %v571 = vsub.s32 %v568, %v570
    %v572 = vrot.slane %v362, %v571
    %v574 = vunpack.c.l.s4 1966171168
    %v575 = vunpack.c.0.s8 %v574
    %v576 = vlaneseq
    %v577 = vshrl.u32 %v576, 7
    %v578 = vsub.s32 %v575, %v577
    %v579 = vrot.slane %v565, %v578
    %v580 = vcombine.high %v572, %v572
    %v581 = vcombine.high %v579, %v579
    %v583 = vunpack.c.l.s4 1966171168
    %v584 = vunpack.c.0.s8 %v583
    %v585 = vlaneseq
    %v586 = vshrl.u32 %v585, 7
    %v587 = vsub.s32 %v584, %v586
    %v588 = vrot.slane %v572, %v587
    %v590 = vunpack.c.l.s4 1966171168
    %v591 = vunpack.c.0.s8 %v590
    %v592 = vlaneseq
    %v593 = vshrl.u32 %v592, 7
    %v594 = vsub.s32 %v591, %v593
    %v595 = vrot.slane %v579, %v594
    %v597 = vunpack.c.l.s4 1966171168
    %v598 = vunpack.c.0.s8 %v597
    %v599 = vlaneseq
    %v600 = vshrl.u32 %v599, 7
    %v601 = vsub.s32 %v598, %v600
    %v602 = vrot.slane %v580, %v601
    %v604 = vunpack.c.l.s4 1966171168
    %v605 = vunpack.c.0.s8 %v604
    %v606 = vlaneseq
    %v607 = vshrl.u32 %v606, 7
    %v608 = vsub.s32 %v605, %v607
    %v609 = vrot.slane %v581, %v608
    %v610 = vcombine.high %v588, %v588
    %v611 = vcombine.high %v595, %v595
    %v612 = vcombine.high %v602, %v602
    %v613 = vcombine.high %v609, %v609
    %622 = vst [vmem:[#allocation6] sm:$0x1] %v588
    %623 = vst [vmem:[#allocation6 + $0x1] sm:$0x1] %v602
    %624 = vst [vmem:[#allocation6 + $0x2] sm:$0x1] %v610
    %625 = vst [vmem:[#allocation6 + $0x3] sm:$0x1] %v612
    %626 = vst [vmem:[#allocation6 + $0x4] sm:$0x1] %v595
    %627 = vst [vmem:[#allocation6 + $0x5] sm:$0x1] %v609
    %628 = vst [vmem:[#allocation6 + $0x6] sm:$0x1] %v611
    %629 = vst [vmem:[#allocation6 + $0x7] sm:$0x1] %v613
    %v631 = vcombine.high %v563, %v563
    %v633 = vunpack.c.l.s4 1966171168
    %v634 = vunpack.c.0.s8 %v633
    %v635 = vlaneseq
    %v636 = vshrl.u32 %v635, 7
    %v637 = vsub.s32 %v634, %v636
    %v638 = vrot.slane %v563, %v637
    %v640 = vunpack.c.l.s4 1966171168
    %v641 = vunpack.c.0.s8 %v640
    %v642 = vlaneseq
    %v643 = vshrl.u32 %v642, 7
    %v644 = vsub.s32 %v641, %v643
    %v645 = vrot.slane %v631, %v644
    %v646 = vcombine.high %v638, %v638
    %v647 = vcombine.high %v645, %v645
    %v649 = vunpack.c.l.s4 1966171168
    %v650 = vunpack.c.0.s8 %v649
    %v651 = vlaneseq
    %v652 = vshrl.u32 %v651, 7
    %v653 = vsub.s32 %v650, %v652
    %v654 = vrot.slane %v638, %v653
    %v656 = vunpack.c.l.s4 1966171168
    %v657 = vunpack.c.0.s8 %v656
    %v658 = vlaneseq
    %v659 = vshrl.u32 %v658, 7
    %v660 = vsub.s32 %v657, %v659
    %v661 = vrot.slane %v645, %v660
    %v663 = vunpack.c.l.s4 1966171168
    %v664 = vunpack.c.0.s8 %v663
    %v665 = vlaneseq
    %v666 = vshrl.u32 %v665, 7
    %v667 = vsub.s32 %v664, %v666
    %v668 = vrot.slane %v646, %v667
    %v670 = vunpack.c.l.s4 1966171168
    %v671 = vunpack.c.0.s8 %v670
    %v672 = vlaneseq
    %v673 = vshrl.u32 %v672, 7
    %v674 = vsub.s32 %v671, %v673
    %v675 = vrot.slane %v647, %v674
    %v676 = vcombine.high %v654, %v654
    %v677 = vcombine.high %v661, %v661
    %v678 = vcombine.high %v668, %v668
    %v679 = vcombine.high %v675, %v675
    %688 = vst [vmem:[#allocation7] sm:$0x1] %v654
    %689 = vst [vmem:[#allocation7 + $0x1] sm:$0x1] %v668
    %690 = vst [vmem:[#allocation7 + $0x2] sm:$0x1] %v676
    %691 = vst [vmem:[#allocation7 + $0x3] sm:$0x1] %v678
    %692 = vst [vmem:[#allocation7 + $0x4] sm:$0x1] %v661
    %693 = vst [vmem:[#allocation7 + $0x5] sm:$0x1] %v675
    %694 = vst [vmem:[#allocation7 + $0x6] sm:$0x1] %v677
    %695 = vst [vmem:[#allocation7 + $0x7] sm:$0x1] %v679
    %v696 = vld [vmem:[%s4] sm:$0xf]
    %v697 = vld [vmem:[%s4 + $0x4] sm:$0xf]
    %v698 = vld [vmem:[%s4 + $0x8] sm:$0xf]
    %v699 = vld [vmem:[%s4 + $0xc] sm:$0xf]
    %v700 = vld [vmem:[#allocation12] sm:$0xf]
    %v701 = vld [vmem:[#allocation12 + $0x4] sm:$0xf]
    %v702 = vld [vmem:[#allocation12 + $0x8] sm:$0xf]
    %v703 = vld [vmem:[#allocation12 + $0xc] sm:$0xf]
    %v704 = vlaneseq
    %v705 = vand.u32 %v704, 127
    %vm706 = vcmp.ge.s32.totalorder %v705, 64
    %vm707 = vcmp.lt.s32.totalorder %v705, 96
    %vm708 = vmand %vm706, %vm707
    %v709 = vld [vmem:[#allocation2] sm:$0x1]
    %v710 = vld [vmem:[#allocation3] sm:$0x1]
    %v711 = vld [vmem:[#allocation4] sm:$0x1]
    %v712 = vld [vmem:[#allocation5] sm:$0x1]
    %v713 = vld [vmem:[#allocation6] sm:$0x1]
    %v714 = vpack.c.bf16 %v709, %v709
    %v719 = vunpack.c.l.b16 %v696
    %v720 = vunpack.c.l.b16 %v697
    %v721 = vunpack.c.l.b16 %v698
    %v722 = vunpack.c.l.b16 %v699
    %v723 = vpack.c.b16 %v720, %v719
    %v724 = vpack.c.b16 %v722, %v721
    %vm727 = vcmask 261120
    %v729 = vsel %vm727, %v714, 0
    %731 = vmatprep.subr.bf16.mxu0 0
    %732 = vmatpush1.bf16.msra.mxu0 %v723
    %733 = vmatprep.subr.bf16.mxu0 0
    %734 = vmatpush1.bf16.msra.mxu0 %v724
    %735 = vmatprep.subr.bf16.mxu0 0
    %736 = vmatpush1.bf16.msra.mxu0 0
    %737 = vmatprep.subr.bf16.mxu0 0
    %738 = vmatpush1.bf16.msra.mxu0 0
    %739 = vmatprep.subr.bf16.mxu0 0
    %740 = vmatpush1.bf16.msra.mxu0 0
    %741 = vmatprep.subr.bf16.mxu0 0
    %742 = vmatpush1.bf16.msra.mxu0 0
    %743 = vmatprep.subr.bf16.mxu0 0
    %744 = vmatpush1.bf16.msra.mxu0 0
    %745 = vmatprep.subr.bf16.mxu0 0
    %746 = vmatpush1.bf16.msra.mxu0 0
    %747 = vmatprep.subr.bf16.mxu0 0
    %748 = vmatpush1.bf16.msra.mxu0 0
    %749 = vmatprep.subr.bf16.mxu0 0
    %750 = vmatpush1.bf16.msra.mxu0 0
    %751 = vmatprep.subr.bf16.mxu0 0
    %752 = vmatpush1.bf16.msra.mxu0 0
    %753 = vmatprep.subr.bf16.mxu0 0
    %754 = vmatpush1.bf16.msra.mxu0 0
    %755 = vmatprep.subr.bf16.mxu0 0
    %756 = vmatpush1.bf16.msra.mxu0 0
    %757 = vmatprep.subr.bf16.mxu0 0
    %758 = vmatpush1.bf16.msra.mxu0 0
    %759 = vmatprep.subr.bf16.mxu0 0
    %760 = vmatpush1.bf16.msra.mxu0 0
    %761 = vmatprep.subr.bf16.mxu0 0
    %762 = vmatpush1.bf16.msra.mxu0 0
    %763 = vmatprep.mubr.bf16.mxu0 0
    %764 = vmatmul.mubr.bf16.gmra.mrb[0].mxu0 %v729
    %v765 = vpop.f32.mrb[0].mxu0
    %v766 = vadd.f32 0.0, %v765
    %v767 = vpop.f32.mrb[0].mxu0
    %v768 = vpop.f32.mrb[0].mxu0
    %v769 = vpop.f32.mrb[0].mxu0
    %770 = vdwg.mxu0
    %v771 = vadd.f32 %v713, %v766
    %s772 = scalar_lea.vmem [#allocation7], 7
    %v773 = vld [vmem:[%s772] sm:$0x1]
    %v774 = vpack.c.bf16 %v711, %v711
    %v779 = vunpack.c.l.b16 %v700
    %v780 = vunpack.c.l.b16 %v701
    %v781 = vunpack.c.l.b16 %v702
    %v782 = vunpack.c.l.b16 %v703
    %v783 = vpack.c.b16 %v780, %v779
    %v784 = vpack.c.b16 %v782, %v781
    %v788 = vsel %vm727, %v774, 0
    %790 = vmatprep.subr.bf16.mxu0 0
    %791 = vmatpush1.bf16.msra.mxu0 %v783
    %792 = vmatprep.subr.bf16.mxu0 0
    %793 = vmatpush1.bf16.msra.mxu0 %v784
    %794 = vmatprep.subr.bf16.mxu0 0
    %795 = vmatpush1.bf16.msra.mxu0 0
    %796 = vmatprep.subr.bf16.mxu0 0
    %797 = vmatpush1.bf16.msra.mxu0 0
    %798 = vmatprep.subr.bf16.mxu0 0
    %799 = vmatpush1.bf16.msra.mxu0 0
    %800 = vmatprep.subr.bf16.mxu0 0
    %801 = vmatpush1.bf16.msra.mxu0 0
    %802 = vmatprep.subr.bf16.mxu0 0
    %803 = vmatpush1.bf16.msra.mxu0 0
    %804 = vmatprep.subr.bf16.mxu0 0
    %805 = vmatpush1.bf16.msra.mxu0 0
    %806 = vmatprep.subr.bf16.mxu0 0
    %807 = vmatpush1.bf16.msra.mxu0 0
    %808 = vmatprep.subr.bf16.mxu0 0
    %809 = vmatpush1.bf16.msra.mxu0 0
    %810 = vmatprep.subr.bf16.mxu0 0
    %811 = vmatpush1.bf16.msra.mxu0 0
    %812 = vmatprep.subr.bf16.mxu0 0
    %813 = vmatpush1.bf16.msra.mxu0 0
    %814 = vmatprep.subr.bf16.mxu0 0
    %815 = vmatpush1.bf16.msra.mxu0 0
    %816 = vmatprep.subr.bf16.mxu0 0
    %817 = vmatpush1.bf16.msra.mxu0 0
    %818 = vmatprep.subr.bf16.mxu0 0
    %819 = vmatpush1.bf16.msra.mxu0 0
    %820 = vmatprep.subr.bf16.mxu0 0
    %821 = vmatpush1.bf16.msra.mxu0 0
    %822 = vmatprep.mubr.bf16.mxu0 0
    %823 = vmatmul.mubr.bf16.gmra.mrb[0].mxu0 %v788
    %v824 = vpop.f32.mrb[0].mxu0
    %v825 = vadd.f32 0.0, %v824
    %v826 = vpop.f32.mrb[0].mxu0
    %v827 = vpop.f32.mrb[0].mxu0
    %v828 = vpop.f32.mrb[0].mxu0
    %829 = vdwg.mxu0
    %v830 = vadd.f32 %v773, %v825
    %v831 = vtanh.pop %v771
    %v832 = vxor.u32 %v771, 2147483648
    %v833 = vmul.f32 %v832, 1.442695
    %v834 = vpow.pop %v833
    %v835 = vadd.f32 %v834, 1.0
    %v836 = vrcp.pop %v835
    %v837 = vmul.f32 1.0, %v836
    %v838 = vsel %vm708, %v831, %v837
    %v839 = vtanh.pop %v830
    %v840 = vxor.u32 %v830, 2147483648
    %v841 = vmul.f32 %v840, 1.442695
    %v842 = vpow.pop %v841
    %v843 = vadd.f32 %v842, 1.0
    %v844 = vrcp.pop %v843
    %v845 = vmul.f32 1.0, %v844
    %v846 = vsel %vm708, %v839, %v845
    %v848 = vlaneseq
    %v849 = vshrl.u32 %v848, 7
    %v850 = vsub.s32 0, %v849
    %v851 = vrot.slane %v710, %v850
    %852 = vrot.lane.b32.xlu0 %v851, 32
    %v853 = vpop.permute.xlu0 %852
    %v855 = vmul.f32 %v838, %v853
    %857 = vrot.lane.b32.xlu0 %v838, 64
    %v858 = vpop.permute.xlu0 %857
    %v860 = vmul.f32 %v838, %v858
    %862 = vrot.lane.b32.xlu0 %v860, 32
    %v863 = vpop.permute.xlu0 %862
    %v865 = vadd.f32 %v855, %v863
    %v866 = vtanh.pop %v865
    %868 = vrot.lane.b32.xlu0 %v866, 64
    %v869 = vpop.permute.xlu0 %868
    %v871 = vmul.f32 %v838, %v869
    %v873 = vlaneseq
    %v874 = vshrl.u32 %v873, 7
    %v875 = vsub.s32 0, %v874
    %v876 = vrot.slane %v712, %v875
    %877 = vrot.lane.b32.xlu0 %v876, 32
    %v878 = vpop.permute.xlu0 %877
    %v880 = vmul.f32 %v846, %v878
    %882 = vrot.lane.b32.xlu0 %v846, 64
    %v883 = vpop.permute.xlu0 %882
    %v885 = vmul.f32 %v846, %v883
    %887 = vrot.lane.b32.xlu0 %v885, 32
    %v888 = vpop.permute.xlu0 %887
    %v890 = vadd.f32 %v880, %v888
    %v891 = vtanh.pop %v890
    %893 = vrot.lane.b32.xlu0 %v891, 64
    %v894 = vpop.permute.xlu0 %893
    %v896 = vmul.f32 %v846, %v894
    %v897 = vpack.c.bf16 %v871, %v871
    %v900 = vunpack.c.l.s4 1966171168
    %v901 = vunpack.c.0.s8 %v900
    %v902 = vlaneseq
    %v903 = vshrl.u32 %v902, 7
    %v904 = vsub.s32 %v901, %v903
    %v905 = vrot.slane %v897, %v904
    %v907 = vunpack.c.l.s4 1966171168
    %v908 = vunpack.c.0.s8 %v907
    %v909 = vlaneseq
    %v910 = vshrl.u32 %v909, 7
    %v911 = vsub.s32 %v908, %v910
    %v912 = vrot.slane %v905, %v911
    %913 = vrot.lane.b32.xlu0 %v912, 32
    %v914 = vpop.permute.xlu0 %913
    %vm916 = vcmask 253952
    %vm917 = vsmask.f32 256
    %vm918 = vmand %vm916, %vm917
    %v919 = vld [vmem:[%s8] sm:$0x1]
    %v920 = vsel %vm918, %v914, %v919
    %921 = vst [vmem:[%s8] sm:$0x1] %v920
    %v922 = vpack.c.bf16 %v896, %v896
    %v925 = vunpack.c.l.s4 1966171168
    %v926 = vunpack.c.0.s8 %v925
    %v927 = vlaneseq
    %v928 = vshrl.u32 %v927, 7
    %v929 = vsub.s32 %v926, %v928
    %v930 = vrot.slane %v922, %v929
    %v932 = vunpack.c.l.s4 1966171168
    %v933 = vunpack.c.0.s8 %v932
    %v934 = vlaneseq
    %v935 = vshrl.u32 %v934, 7
    %v936 = vsub.s32 %v933, %v935
    %v937 = vrot.slane %v930, %v936
    %938 = vrot.lane.b32.xlu0 %v937, 32
    %v939 = vpop.permute.xlu0 %938
    %s941 = scalar_lea.vmem %s123, 7
    %v942 = vld [vmem:[%s941] sm:$0x1]
    %v943 = vsel %vm918, %v939, %v942
    %944 = vst [vmem:[%s941] sm:$0x1] %v943
    %s945 = scalar_lea.vmem [#allocation6], 1
    %v946 = vld [vmem:[%s945] sm:$0x1]
    %947 = vrot.lane.b32.xlu0 %v897, 32
    %v948 = vpop.permute.xlu0 %947
    %v950 = vsel %vm727, %v948, 0
    %952 = vmatprep.subr.bf16.mxu0 0
    %953 = vmatpush1.bf16.msra.mxu0 %v723
    %954 = vmatprep.subr.bf16.mxu0 0
    %955 = vmatpush1.bf16.msra.mxu0 %v724
    %956 = vmatprep.subr.bf16.mxu0 0
    %957 = vmatpush1.bf16.msra.mxu0 0
    %958 = vmatprep.subr.bf16.mxu0 0
    %959 = vmatpush1.bf16.msra.mxu0 0
    %960 = vmatprep.subr.bf16.mxu0 0
    %961 = vmatpush1.bf16.msra.mxu0 0
    %962 = vmatprep.subr.bf16.mxu0 0
    %963 = vmatpush1.bf16.msra.mxu0 0
    %964 = vmatprep.subr.bf16.mxu0 0
    %965 = vmatpush1.bf16.msra.mxu0 0
    %966 = vmatprep.subr.bf16.mxu0 0
    %967 = vmatpush1.bf16.msra.mxu0 0
    %968 = vmatprep.subr.bf16.mxu0 0
    %969 = vmatpush1.bf16.msra.mxu0 0
    %970 = vmatprep.subr.bf16.mxu0 0
    %971 = vmatpush1.bf16.msra.mxu0 0
    %972 = vmatprep.subr.bf16.mxu0 0
    %973 = vmatpush1.bf16.msra.mxu0 0
    %974 = vmatprep.subr.bf16.mxu0 0
    %975 = vmatpush1.bf16.msra.mxu0 0
    %976 = vmatprep.subr.bf16.mxu0 0
    %977 = vmatpush1.bf16.msra.mxu0 0
    %978 = vmatprep.subr.bf16.mxu0 0
    %979 = vmatpush1.bf16.msra.mxu0 0
    %980 = vmatprep.subr.bf16.mxu0 0
    %981 = vmatpush1.bf16.msra.mxu0 0
    %982 = vmatprep.subr.bf16.mxu0 0
    %983 = vmatpush1.bf16.msra.mxu0 0
    %984 = vmatprep.mubr.bf16.mxu0 0
    %985 = vmatmul.mubr.bf16.gmra.mrb[0].mxu0 %v950
    %v986 = vpop.f32.mrb[0].mxu0
    %v987 = vadd.f32 0.0, %v986
    %v988 = vpop.f32.mrb[0].mxu0
    %v989 = vpop.f32.mrb[0].mxu0
    %v990 = vpop.f32.mrb[0].mxu0
    %991 = vdwg.mxu0
    %v992 = vadd.f32 %v946, %v987
    %s993 = scalar_lea.vmem [#allocation7], 6
    %v994 = vld [vmem:[%s993] sm:$0x1]
    %995 = vrot.lane.b32.xlu0 %v922, 32
    %v996 = vpop.permute.xlu0 %995
    %v998 = vsel %vm727, %v996, 0
    %1000 = vmatprep.subr.bf16.mxu0 0
    %1001 = vmatpush1.bf16.msra.mxu0 %v783
    %1002 = vmatprep.subr.bf16.mxu0 0
    %1003 = vmatpush1.bf16.msra.mxu0 %v784
    %1004 = vmatprep.subr.bf16.mxu0 0
    %1005 = vmatpush1.bf16.msra.mxu0 0
    %1006 = vmatprep.subr.bf16.mxu0 0
    %1007 = vmatpush1.bf16.msra.mxu0 0
    %1008 = vmatprep.subr.bf16.mxu0 0
    %1009 = vmatpush1.bf16.msra.mxu0 0
    %1010 = vmatprep.subr.bf16.mxu0 0
    %1011 = vmatpush1.bf16.msra.mxu0 0
    %1012 = vmatprep.subr.bf16.mxu0 0
    %1013 = vmatpush1.bf16.msra.mxu0 0
    %1014 = vmatprep.subr.bf16.mxu0 0
    %1015 = vmatpush1.bf16.msra.mxu0 0
    %1016 = vmatprep.subr.bf16.mxu0 0
    %1017 = vmatpush1.bf16.msra.mxu0 0
    %1018 = vmatprep.subr.bf16.mxu0 0
    %1019 = vmatpush1.bf16.msra.mxu0 0
    %1020 = vmatprep.subr.bf16.mxu0 0
    %1021 = vmatpush1.bf16.msra.mxu0 0
    %1022 = vmatprep.subr.bf16.mxu0 0
    %1023 = vmatpush1.bf16.msra.mxu0 0
    %1024 = vmatprep.subr.bf16.mxu0 0
    %1025 = vmatpush1.bf16.msra.mxu0 0
    %1026 = vmatprep.subr.bf16.mxu0 0
    %1027 = vmatpush1.bf16.msra.mxu0 0
    %1028 = vmatprep.subr.bf16.mxu0 0
    %1029 = vmatpush1.bf16.msra.mxu0 0
    %1030 = vmatprep.subr.bf16.mxu0 0
    %1031 = vmatpush1.bf16.msra.mxu0 0
    %1032 = vmatprep.mubr.bf16.mxu0 0
    %1033 = vmatmul.mubr.bf16.gmra.mrb[0].mxu0 %v998
    %v1034 = vpop.f32.mrb[0].mxu0
    %v1035 = vadd.f32 0.0, %v1034
    %v1036 = vpop.f32.mrb[0].mxu0
    %v1037 = vpop.f32.mrb[0].mxu0
    %v1038 = vpop.f32.mrb[0].mxu0
    %1039 = vdwg.mxu0
    %v1040 = vadd.f32 %v994, %v1035
    %v1041 = vtanh.pop %v992
    %v1042 = vxor.u32 %v992, 2147483648
    %v1043 = vmul.f32 %v1042, 1.442695
    %v1044 = vpow.pop %v1043
    %v1045 = vadd.f32 %v1044, 1.0
    %v1046 = vrcp.pop %v1045
    %v1047 = vmul.f32 1.0, %v1046
    %v1048 = vsel %vm708, %v1041, %v1047
    %v1049 = vtanh.pop %v1040
    %v1050 = vxor.u32 %v1040, 2147483648
    %v1051 = vmul.f32 %v1050, 1.442695
    %v1052 = vpow.pop %v1051
    %v1053 = vadd.f32 %v1052, 1.0
    %v1054 = vrcp.pop %v1053
    %v1055 = vmul.f32 1.0, %v1054
    %v1056 = vsel %vm708, %v1049, %v1055
    %v1057 = vmul.f32 %v1048, %v865
    %1059 = vrot.lane.b32.xlu0 %v1048, 64
    %v1060 = vpop.permute.xlu0 %1059
    %v1062 = vmul.f32 %v1048, %v1060
    %1064 = vrot.lane.b32.xlu0 %v1062, 32
    %v1065 = vpop.permute.xlu0 %1064
    %v1067 = vadd.f32 %v1057, %v1065
    %v1068 = vtanh.pop %v1067
    %1070 = vrot.lane.b32.xlu0 %v1068, 64
    %v1071 = vpop.permute.xlu0 %1070
    %v1073 = vmul.f32 %v1048, %v1071
    %v1074 = vmul.f32 %v1056, %v890
    %1076 = vrot.lane.b32.xlu0 %v1056, 64
    %v1077 = vpop.permute.xlu0 %1076
    %v1079 = vmul.f32 %v1056, %v1077
    %1081 = vrot.lane.b32.xlu0 %v1079, 32
    %v1082 = vpop.permute.xlu0 %1081
    %v1084 = vadd.f32 %v1074, %v1082
    %v1085 = vtanh.pop %v1084
    %1087 = vrot.lane.b32.xlu0 %v1085, 64
    %v1088 = vpop.permute.xlu0 %1087
    %v1090 = vmul.f32 %v1056, %v1088
    %v1091 = vpack.c.bf16 %v1073, %v1073
    %v1094 = vunpack.c.l.s4 1966171168
    %v1095 = vunpack.c.0.s8 %v1094
    %v1096 = vlaneseq
    %v1097 = vshrl.u32 %v1096, 7
    %v1098 = vsub.s32 %v1095, %v1097
    %v1099 = vrot.slane %v1091, %v1098
    %v1101 = vunpack.c.l.s4 1966171168
    %v1102 = vunpack.c.0.s8 %v1101
    %v1103 = vlaneseq
    %v1104 = vshrl.u32 %v1103, 7
    %v1105 = vsub.s32 %v1102, %v1104
    %v1106 = vrot.slane %v1099, %v1105
    %1107 = vrot.lane.b32.xlu0 %v1106, 32
    %v1108 = vpop.permute.xlu0 %1107
    %s1110 = scalar_lea.vmem %s8, 1
    %v1111 = vld [vmem:[%s1110] sm:$0x1]
    %v1112 = vsel %vm918, %v1108, %v1111
    %1113 = vst [vmem:[%s1110] sm:$0x1] %v1112
    %v1114 = vpack.c.bf16 %v1090, %v1090
    %v1117 = vunpack.c.l.s4 1966171168
    %v1118 = vunpack.c.0.s8 %v1117
    %v1119 = vlaneseq
    %v1120 = vshrl.u32 %v1119, 7
    %v1121 = vsub.s32 %v1118, %v1120
    %v1122 = vrot.slane %v1114, %v1121
    %v1124 = vunpack.c.l.s4 1966171168
    %v1125 = vunpack.c.0.s8 %v1124
    %v1126 = vlaneseq
    %v1127 = vshrl.u32 %v1126, 7
    %v1128 = vsub.s32 %v1125, %v1127
    %v1129 = vrot.slane %v1122, %v1128
    %1130 = vrot.lane.b32.xlu0 %v1129, 32
    %v1131 = vpop.permute.xlu0 %1130
    %s1133 = scalar_lea.vmem %s123, 6
    %v1134 = vld [vmem:[%s1133] sm:$0x1]
    %v1135 = vsel %vm918, %v1131, %v1134
    %1136 = vst [vmem:[%s1133] sm:$0x1] %v1135
    %s1137 = scalar_lea.vmem [#allocation6], 2
    %v1138 = vld [vmem:[%s1137] sm:$0x1]
    %1139 = vrot.lane.b32.xlu0 %v1091, 32
    %v1140 = vpop.permute.xlu0 %1139
    %v1142 = vsel %vm727, %v1140, 0
    %1144 = vmatprep.subr.bf16.mxu0 0
    %1145 = vmatpush1.bf16.msra.mxu0 %v723
    %1146 = vmatprep.subr.bf16.mxu0 0
    %1147 = vmatpush1.bf16.msra.mxu0 %v724
    %1148 = vmatprep.subr.bf16.mxu0 0
    %1149 = vmatpush1.bf16.msra.mxu0 0
    %1150 = vmatprep.subr.bf16.mxu0 0
    %1151 = vmatpush1.bf16.msra.mxu0 0
    %1152 = vmatprep.subr.bf16.mxu0 0
    %1153 = vmatpush1.bf16.msra.mxu0 0
    %1154 = vmatprep.subr.bf16.mxu0 0
    %1155 = vmatpush1.bf16.msra.mxu0 0
    %1156 = vmatprep.subr.bf16.mxu0 0
    %1157 = vmatpush1.bf16.msra.mxu0 0
    %1158 = vmatprep.subr.bf16.mxu0 0
    %1159 = vmatpush1.bf16.msra.mxu0 0
    %1160 = vmatprep.subr.bf16.mxu0 0
    %1161 = vmatpush1.bf16.msra.mxu0 0
    %1162 = vmatprep.subr.bf16.mxu0 0
    %1163 = vmatpush1.bf16.msra.mxu0 0
    %1164 = vmatprep.subr.bf16.mxu0 0
    %1165 = vmatpush1.bf16.msra.mxu0 0
    %1166 = vmatprep.subr.bf16.mxu0 0
    %1167 = vmatpush1.bf16.msra.mxu0 0
    %1168 = vmatprep.subr.bf16.mxu0 0
    %1169 = vmatpush1.bf16.msra.mxu0 0
    %1170 = vmatprep.subr.bf16.mxu0 0
    %1171 = vmatpush1.bf16.msra.mxu0 0
    %1172 = vmatprep.subr.bf16.mxu0 0
    %1173 = vmatpush1.bf16.msra.mxu0 0
    %1174 = vmatprep.subr.bf16.mxu0 0
    %1175 = vmatpush1.bf16.msra.mxu0 0
    %1176 = vmatprep.mubr.bf16.mxu0 0
    %1177 = vmatmul.mubr.bf16.gmra.mrb[0].mxu0 %v1142
    %v1178 = vpop.f32.mrb[0].mxu0
    %v1179 = vadd.f32 0.0, %v1178
    %v1180 = vpop.f32.mrb[0].mxu0
    %v1181 = vpop.f32.mrb[0].mxu0
    %v1182 = vpop.f32.mrb[0].mxu0
    %1183 = vdwg.mxu0
    %v1184 = vadd.f32 %v1138, %v1179
    %s1185 = scalar_lea.vmem [#allocation7], 5
    %v1186 = vld [vmem:[%s1185] sm:$0x1]
    %1187 = vrot.lane.b32.xlu0 %v1114, 32
    %v1188 = vpop.permute.xlu0 %1187
    %v1190 = vsel %vm727, %v1188, 0
    %1192 = vmatprep.subr.bf16.mxu0 0
    %1193 = vmatpush1.bf16.msra.mxu0 %v783
    %1194 = vmatprep.subr.bf16.mxu0 0
    %1195 = vmatpush1.bf16.msra.mxu0 %v784
    %1196 = vmatprep.subr.bf16.mxu0 0
    %1197 = vmatpush1.bf16.msra.mxu0 0
    %1198 = vmatprep.subr.bf16.mxu0 0
    %1199 = vmatpush1.bf16.msra.mxu0 0
    %1200 = vmatprep.subr.bf16.mxu0 0
    %1201 = vmatpush1.bf16.msra.mxu0 0
    %1202 = vmatprep.subr.bf16.mxu0 0
    %1203 = vmatpush1.bf16.msra.mxu0 0
    %1204 = vmatprep.subr.bf16.mxu0 0
    %1205 = vmatpush1.bf16.msra.mxu0 0
    %1206 = vmatprep.subr.bf16.mxu0 0
    %1207 = vmatpush1.bf16.msra.mxu0 0
    %1208 = vmatprep.subr.bf16.mxu0 0
    %1209 = vmatpush1.bf16.msra.mxu0 0
    %1210 = vmatprep.subr.bf16.mxu0 0
    %1211 = vmatpush1.bf16.msra.mxu0 0
    %1212 = vmatprep.subr.bf16.mxu0 0
    %1213 = vmatpush1.bf16.msra.mxu0 0
    %1214 = vmatprep.subr.bf16.mxu0 0
    %1215 = vmatpush1.bf16.msra.mxu0 0
    %1216 = vmatprep.subr.bf16.mxu0 0
    %1217 = vmatpush1.bf16.msra.mxu0 0
    %1218 = vmatprep.subr.bf16.mxu0 0
    %1219 = vmatpush1.bf16.msra.mxu0 0
    %1220 = vmatprep.subr.bf16.mxu0 0
    %1221 = vmatpush1.bf16.msra.mxu0 0
    %1222 = vmatprep.subr.bf16.mxu0 0
    %1223 = vmatpush1.bf16.msra.mxu0 0
    %1224 = vmatprep.mubr.bf16.mxu0 0
    %1225 = vmatmul.mubr.bf16.gmra.mrb[0].mxu0 %v1190
    %v1226 = vpop.f32.mrb[0].mxu0
    %v1227 = vadd.f32 0.0, %v1226
    %v1228 = vpop.f32.mrb[0].mxu0
    %v1229 = vpop.f32.mrb[0].mxu0
    %v1230 = vpop.f32.mrb[0].mxu0
    %1231 = vdwg.mxu0
    %v1232 = vadd.f32 %v1186, %v1227
    %v1233 = vtanh.pop %v1184
    %v1234 = vxor.u32 %v1184, 2147483648
    %v1235 = vmul.f32 %v1234, 1.442695
    %v1236 = vpow.pop %v1235
    %v1237 = vadd.f32 %v1236, 1.0
    %v1238 = vrcp.pop %v1237
    %v1239 = vmul.f32 1.0, %v1238
    %v1240 = vsel %vm708, %v1233, %v1239
    %v1241 = vtanh.pop %v1232
    %v1242 = vxor.u32 %v1232, 2147483648
    %v1243 = vmul.f32 %v1242, 1.442695
    %v1244 = vpow.pop %v1243
    %v1245 = vadd.f32 %v1244, 1.0
    %v1246 = vrcp.pop %v1245
    %v1247 = vmul.f32 1.0, %v1246
    %v1248 = vsel %vm708, %v1241, %v1247
    %v1249 = vmul.f32 %v1240, %v1067
    %1251 = vrot.lane.b32.xlu0 %v1240, 64
    %v1252 = vpop.permute.xlu0 %1251
    %v1254 = vmul.f32 %v1240, %v1252
    %1256 = vrot.lane.b32.xlu0 %v1254, 32
    %v1257 = vpop.permute.xlu0 %1256
    %v1259 = vadd.f32 %v1249, %v1257
    %v1260 = vtanh.pop %v1259
    %1262 = vrot.lane.b32.xlu0 %v1260, 64
    %v1263 = vpop.permute.xlu0 %1262
    %v1265 = vmul.f32 %v1240, %v1263
    %v1266 = vmul.f32 %v1248, %v1084
    %1268 = vrot.lane.b32.xlu0 %v1248, 64
    %v1269 = vpop.permute.xlu0 %1268
    %v1271 = vmul.f32 %v1248, %v1269
    %1273 = vrot.lane.b32.xlu0 %v1271, 32
    %v1274 = vpop.permute.xlu0 %1273
    %v1276 = vadd.f32 %v1266, %v1274
    %v1277 = vtanh.pop %v1276
    %1279 = vrot.lane.b32.xlu0 %v1277, 64
    %v1280 = vpop.permute.xlu0 %1279
    %v1282 = vmul.f32 %v1248, %v1280
    %v1283 = vpack.c.bf16 %v1265, %v1265
    %v1286 = vunpack.c.l.s4 1966171168
    %v1287 = vunpack.c.0.s8 %v1286
    %v1288 = vlaneseq
    %v1289 = vshrl.u32 %v1288, 7
    %v1290 = vsub.s32 %v1287, %v1289
    %v1291 = vrot.slane %v1283, %v1290
    %v1293 = vunpack.c.l.s4 1966171168
    %v1294 = vunpack.c.0.s8 %v1293
    %v1295 = vlaneseq
    %v1296 = vshrl.u32 %v1295, 7
    %v1297 = vsub.s32 %v1294, %v1296
    %v1298 = vrot.slane %v1291, %v1297
    %1299 = vrot.lane.b32.xlu0 %v1298, 32
    %v1300 = vpop.permute.xlu0 %1299
    %s1302 = scalar_lea.vmem %s8, 2
    %v1303 = vld [vmem:[%s1302] sm:$0x1]
    %v1304 = vsel %vm918, %v1300, %v1303
    %1305 = vst [vmem:[%s1302] sm:$0x1] %v1304
    %v1306 = vpack.c.bf16 %v1282, %v1282
    %v1309 = vunpack.c.l.s4 1966171168
    %v1310 = vunpack.c.0.s8 %v1309
    %v1311 = vlaneseq
    %v1312 = vshrl.u32 %v1311, 7
    %v1313 = vsub.s32 %v1310, %v1312
    %v1314 = vrot.slane %v1306, %v1313
    %v1316 = vunpack.c.l.s4 1966171168
    %v1317 = vunpack.c.0.s8 %v1316
    %v1318 = vlaneseq
    %v1319 = vshrl.u32 %v1318, 7
    %v1320 = vsub.s32 %v1317, %v1319
    %v1321 = vrot.slane %v1314, %v1320
    %1322 = vrot.lane.b32.xlu0 %v1321, 32
    %v1323 = vpop.permute.xlu0 %1322
    %s1325 = scalar_lea.vmem %s123, 5
    %v1326 = vld [vmem:[%s1325] sm:$0x1]
    %v1327 = vsel %vm918, %v1323, %v1326
    %1328 = vst [vmem:[%s1325] sm:$0x1] %v1327
    %s1329 = scalar_lea.vmem [#allocation6], 3
    %v1330 = vld [vmem:[%s1329] sm:$0x1]
    %1331 = vrot.lane.b32.xlu0 %v1283, 32
    %v1332 = vpop.permute.xlu0 %1331
    %v1334 = vsel %vm727, %v1332, 0
    %1336 = vmatprep.subr.bf16.mxu0 0
    %1337 = vmatpush1.bf16.msra.mxu0 %v723
    %1338 = vmatprep.subr.bf16.mxu0 0
    %1339 = vmatpush1.bf16.msra.mxu0 %v724
    %1340 = vmatprep.subr.bf16.mxu0 0
    %1341 = vmatpush1.bf16.msra.mxu0 0
    %1342 = vmatprep.subr.bf16.mxu0 0
    %1343 = vmatpush1.bf16.msra.mxu0 0
    %1344 = vmatprep.subr.bf16.mxu0 0
    %1345 = vmatpush1.bf16.msra.mxu0 0
    %1346 = vmatprep.subr.bf16.mxu0 0
    %1347 = vmatpush1.bf16.msra.mxu0 0
    %1348 = vmatprep.subr.bf16.mxu0 0
    %1349 = vmatpush1.bf16.msra.mxu0 0
    %1350 = vmatprep.subr.bf16.mxu0 0
    %1351 = vmatpush1.bf16.msra.mxu0 0
    %1352 = vmatprep.subr.bf16.mxu0 0
    %1353 = vmatpush1.bf16.msra.mxu0 0
    %1354 = vmatprep.subr.bf16.mxu0 0
    %1355 = vmatpush1.bf16.msra.mxu0 0
    %1356 = vmatprep.subr.bf16.mxu0 0
    %1357 = vmatpush1.bf16.msra.mxu0 0
    %1358 = vmatprep.subr.bf16.mxu0 0
    %1359 = vmatpush1.bf16.msra.mxu0 0
    %1360 = vmatprep.subr.bf16.mxu0 0
    %1361 = vmatpush1.bf16.msra.mxu0 0
    %1362 = vmatprep.subr.bf16.mxu0 0
    %1363 = vmatpush1.bf16.msra.mxu0 0
    %1364 = vmatprep.subr.bf16.mxu0 0
    %1365 = vmatpush1.bf16.msra.mxu0 0
    %1366 = vmatprep.subr.bf16.mxu0 0
    %1367 = vmatpush1.bf16.msra.mxu0 0
    %1368 = vmatprep.mubr.bf16.mxu0 0
    %1369 = vmatmul.mubr.bf16.gmra.mrb[0].mxu0 %v1334
    %v1370 = vpop.f32.mrb[0].mxu0
    %v1371 = vadd.f32 0.0, %v1370
    %v1372 = vpop.f32.mrb[0].mxu0
    %v1373 = vpop.f32.mrb[0].mxu0
    %v1374 = vpop.f32.mrb[0].mxu0
    %1375 = vdwg.mxu0
    %v1376 = vadd.f32 %v1330, %v1371
    %s1377 = scalar_lea.vmem [#allocation7], 4
    %v1378 = vld [vmem:[%s1377] sm:$0x1]
    %1379 = vrot.lane.b32.xlu0 %v1306, 32
    %v1380 = vpop.permute.xlu0 %1379
    %v1382 = vsel %vm727, %v1380, 0
    %1384 = vmatprep.subr.bf16.mxu0 0
    %1385 = vmatpush1.bf16.msra.mxu0 %v783
    %1386 = vmatprep.subr.bf16.mxu0 0
    %1387 = vmatpush1.bf16.msra.mxu0 %v784
    %1388 = vmatprep.subr.bf16.mxu0 0
    %1389 = vmatpush1.bf16.msra.mxu0 0
    %1390 = vmatprep.subr.bf16.mxu0 0
    %1391 = vmatpush1.bf16.msra.mxu0 0
    %1392 = vmatprep.subr.bf16.mxu0 0
    %1393 = vmatpush1.bf16.msra.mxu0 0
    %1394 = vmatprep.subr.bf16.mxu0 0
    %1395 = vmatpush1.bf16.msra.mxu0 0
    %1396 = vmatprep.subr.bf16.mxu0 0
    %1397 = vmatpush1.bf16.msra.mxu0 0
    %1398 = vmatprep.subr.bf16.mxu0 0
    %1399 = vmatpush1.bf16.msra.mxu0 0
    %1400 = vmatprep.subr.bf16.mxu0 0
    %1401 = vmatpush1.bf16.msra.mxu0 0
    %1402 = vmatprep.subr.bf16.mxu0 0
    %1403 = vmatpush1.bf16.msra.mxu0 0
    %1404 = vmatprep.subr.bf16.mxu0 0
    %1405 = vmatpush1.bf16.msra.mxu0 0
    %1406 = vmatprep.subr.bf16.mxu0 0
    %1407 = vmatpush1.bf16.msra.mxu0 0
    %1408 = vmatprep.subr.bf16.mxu0 0
    %1409 = vmatpush1.bf16.msra.mxu0 0
    %1410 = vmatprep.subr.bf16.mxu0 0
    %1411 = vmatpush1.bf16.msra.mxu0 0
    %1412 = vmatprep.subr.bf16.mxu0 0
    %1413 = vmatpush1.bf16.msra.mxu0 0
    %1414 = vmatprep.subr.bf16.mxu0 0
    %1415 = vmatpush1.bf16.msra.mxu0 0
    %1416 = vmatprep.mubr.bf16.mxu0 0
    %1417 = vmatmul.mubr.bf16.gmra.mrb[0].mxu0 %v1382
    %v1418 = vpop.f32.mrb[0].mxu0
    %v1419 = vadd.f32 0.0, %v1418
    %v1420 = vpop.f32.mrb[0].mxu0
    %v1421 = vpop.f32.mrb[0].mxu0
    %v1422 = vpop.f32.mrb[0].mxu0
    %1423 = vdwg.mxu0
    %v1424 = vadd.f32 %v1378, %v1419
    %v1425 = vtanh.pop %v1376
    %v1426 = vxor.u32 %v1376, 2147483648
    %v1427 = vmul.f32 %v1426, 1.442695
    %v1428 = vpow.pop %v1427
    %v1429 = vadd.f32 %v1428, 1.0
    %v1430 = vrcp.pop %v1429
    %v1431 = vmul.f32 1.0, %v1430
    %v1432 = vsel %vm708, %v1425, %v1431
    %v1433 = vtanh.pop %v1424
    %v1434 = vxor.u32 %v1424, 2147483648
    %v1435 = vmul.f32 %v1434, 1.442695
    %v1436 = vpow.pop %v1435
    %v1437 = vadd.f32 %v1436, 1.0
    %v1438 = vrcp.pop %v1437
    %v1439 = vmul.f32 1.0, %v1438
    %v1440 = vsel %vm708, %v1433, %v1439
    %v1441 = vmul.f32 %v1432, %v1259
    %1443 = vrot.lane.b32.xlu0 %v1432, 64
    %v1444 = vpop.permute.xlu0 %1443
    %v1446 = vmul.f32 %v1432, %v1444
    %1448 = vrot.lane.b32.xlu0 %v1446, 32
    %v1449 = vpop.permute.xlu0 %1448
    %v1451 = vadd.f32 %v1441, %v1449
    %v1452 = vtanh.pop %v1451
    %1454 = vrot.lane.b32.xlu0 %v1452, 64
    %v1455 = vpop.permute.xlu0 %1454
    %v1457 = vmul.f32 %v1432, %v1455
    %v1458 = vmul.f32 %v1440, %v1276
    %1460 = vrot.lane.b32.xlu0 %v1440, 64
    %v1461 = vpop.permute.xlu0 %1460
    %v1463 = vmul.f32 %v1440, %v1461
    %1465 = vrot.lane.b32.xlu0 %v1463, 32
    %v1466 = vpop.permute.xlu0 %1465
    %v1468 = vadd.f32 %v1458, %v1466
    %v1469 = vtanh.pop %v1468
    %1471 = vrot.lane.b32.xlu0 %v1469, 64
    %v1472 = vpop.permute.xlu0 %1471
    %v1474 = vmul.f32 %v1440, %v1472
    %v1475 = vpack.c.bf16 %v1457, %v1457
    %v1478 = vunpack.c.l.s4 1966171168
    %v1479 = vunpack.c.0.s8 %v1478
    %v1480 = vlaneseq
    %v1481 = vshrl.u32 %v1480, 7
    %v1482 = vsub.s32 %v1479, %v1481
    %v1483 = vrot.slane %v1475, %v1482
    %v1485 = vunpack.c.l.s4 1966171168
    %v1486 = vunpack.c.0.s8 %v1485
    %v1487 = vlaneseq
    %v1488 = vshrl.u32 %v1487, 7
    %v1489 = vsub.s32 %v1486, %v1488
    %v1490 = vrot.slane %v1483, %v1489
    %1491 = vrot.lane.b32.xlu0 %v1490, 32
    %v1492 = vpop.permute.xlu0 %1491
    %s1494 = scalar_lea.vmem %s8, 3
    %v1495 = vld [vmem:[%s1494] sm:$0x1]
    %v1496 = vsel %vm918, %v1492, %v1495
    %1497 = vst [vmem:[%s1494] sm:$0x1] %v1496
    %v1498 = vpack.c.bf16 %v1474, %v1474
    %v1501 = vunpack.c.l.s4 1966171168
    %v1502 = vunpack.c.0.s8 %v1501
    %v1503 = vlaneseq
    %v1504 = vshrl.u32 %v1503, 7
    %v1505 = vsub.s32 %v1502, %v1504
    %v1506 = vrot.slane %v1498, %v1505
    %v1508 = vunpack.c.l.s4 1966171168
    %v1509 = vunpack.c.0.s8 %v1508
    %v1510 = vlaneseq
    %v1511 = vshrl.u32 %v1510, 7
    %v1512 = vsub.s32 %v1509, %v1511
    %v1513 = vrot.slane %v1506, %v1512
    %1514 = vrot.lane.b32.xlu0 %v1513, 32
    %v1515 = vpop.permute.xlu0 %1514
    %s1517 = scalar_lea.vmem %s123, 4
    %v1518 = vld [vmem:[%s1517] sm:$0x1]
    %v1519 = vsel %vm918, %v1515, %v1518
    %1520 = vst [vmem:[%s1517] sm:$0x1] %v1519
    %s1521 = scalar_lea.vmem [#allocation6], 4
    %v1522 = vld [vmem:[%s1521] sm:$0x1]
    %1523 = vrot.lane.b32.xlu0 %v1475, 32
    %v1524 = vpop.permute.xlu0 %1523
    %v1526 = vsel %vm727, %v1524, 0
    %1528 = vmatprep.subr.bf16.mxu0 0
    %1529 = vmatpush1.bf16.msra.mxu0 %v723
    %1530 = vmatprep.subr.bf16.mxu0 0
    %1531 = vmatpush1.bf16.msra.mxu0 %v724
    %1532 = vmatprep.subr.bf16.mxu0 0
    %1533 = vmatpush1.bf16.msra.mxu0 0
    %1534 = vmatprep.subr.bf16.mxu0 0
    %1535 = vmatpush1.bf16.msra.mxu0 0
    %1536 = vmatprep.subr.bf16.mxu0 0
    %1537 = vmatpush1.bf16.msra.mxu0 0
    %1538 = vmatprep.subr.bf16.mxu0 0
    %1539 = vmatpush1.bf16.msra.mxu0 0
    %1540 = vmatprep.subr.bf16.mxu0 0
    %1541 = vmatpush1.bf16.msra.mxu0 0
    %1542 = vmatprep.subr.bf16.mxu0 0
    %1543 = vmatpush1.bf16.msra.mxu0 0
    %1544 = vmatprep.subr.bf16.mxu0 0
    %1545 = vmatpush1.bf16.msra.mxu0 0
    %1546 = vmatprep.subr.bf16.mxu0 0
    %1547 = vmatpush1.bf16.msra.mxu0 0
    %1548 = vmatprep.subr.bf16.mxu0 0
    %1549 = vmatpush1.bf16.msra.mxu0 0
    %1550 = vmatprep.subr.bf16.mxu0 0
    %1551 = vmatpush1.bf16.msra.mxu0 0
    %1552 = vmatprep.subr.bf16.mxu0 0
    %1553 = vmatpush1.bf16.msra.mxu0 0
    %1554 = vmatprep.subr.bf16.mxu0 0
    %1555 = vmatpush1.bf16.msra.mxu0 0
    %1556 = vmatprep.subr.bf16.mxu0 0
    %1557 = vmatpush1.bf16.msra.mxu0 0
    %1558 = vmatprep.subr.bf16.mxu0 0
    %1559 = vmatpush1.bf16.msra.mxu0 0
    %1560 = vmatprep.mubr.bf16.mxu0 0
    %1561 = vmatmul.mubr.bf16.gmra.mrb[0].mxu0 %v1526
    %v1562 = vpop.f32.mrb[0].mxu0
    %v1563 = vadd.f32 0.0, %v1562
    %v1564 = vpop.f32.mrb[0].mxu0
    %v1565 = vpop.f32.mrb[0].mxu0
    %v1566 = vpop.f32.mrb[0].mxu0
    %1567 = vdwg.mxu0
    %v1568 = vadd.f32 %v1522, %v1563
    %s1569 = scalar_lea.vmem [#allocation7], 3
    %v1570 = vld [vmem:[%s1569] sm:$0x1]
    %1571 = vrot.lane.b32.xlu0 %v1498, 32
    %v1572 = vpop.permute.xlu0 %1571
    %v1574 = vsel %vm727, %v1572, 0
    %1576 = vmatprep.subr.bf16.mxu0 0
    %1577 = vmatpush1.bf16.msra.mxu0 %v783
    %1578 = vmatprep.subr.bf16.mxu0 0
    %1579 = vmatpush1.bf16.msra.mxu0 %v784
    %1580 = vmatprep.subr.bf16.mxu0 0
    %1581 = vmatpush1.bf16.msra.mxu0 0
    %1582 = vmatprep.subr.bf16.mxu0 0
    %1583 = vmatpush1.bf16.msra.mxu0 0
    %1584 = vmatprep.subr.bf16.mxu0 0
    %1585 = vmatpush1.bf16.msra.mxu0 0
    %1586 = vmatprep.subr.bf16.mxu0 0
    %1587 = vmatpush1.bf16.msra.mxu0 0
    %1588 = vmatprep.subr.bf16.mxu0 0
    %1589 = vmatpush1.bf16.msra.mxu0 0
    %1590 = vmatprep.subr.bf16.mxu0 0
    %1591 = vmatpush1.bf16.msra.mxu0 0
    %1592 = vmatprep.subr.bf16.mxu0 0
    %1593 = vmatpush1.bf16.msra.mxu0 0
    %1594 = vmatprep.subr.bf16.mxu0 0
    %1595 = vmatpush1.bf16.msra.mxu0 0
    %1596 = vmatprep.subr.bf16.mxu0 0
    %1597 = vmatpush1.bf16.msra.mxu0 0
    %1598 = vmatprep.subr.bf16.mxu0 0
    %1599 = vmatpush1.bf16.msra.mxu0 0
    %1600 = vmatprep.subr.bf16.mxu0 0
    %1601 = vmatpush1.bf16.msra.mxu0 0
    %1602 = vmatprep.subr.bf16.mxu0 0
    %1603 = vmatpush1.bf16.msra.mxu0 0
    %1604 = vmatprep.subr.bf16.mxu0 0
    %1605 = vmatpush1.bf16.msra.mxu0 0
    %1606 = vmatprep.subr.bf16.mxu0 0
    %1607 = vmatpush1.bf16.msra.mxu0 0
    %1608 = vmatprep.mubr.bf16.mxu0 0
    %1609 = vmatmul.mubr.bf16.gmra.mrb[0].mxu0 %v1574
    %v1610 = vpop.f32.mrb[0].mxu0
    %v1611 = vadd.f32 0.0, %v1610
    %v1612 = vpop.f32.mrb[0].mxu0
    %v1613 = vpop.f32.mrb[0].mxu0
    %v1614 = vpop.f32.mrb[0].mxu0
    %1615 = vdwg.mxu0
    %v1616 = vadd.f32 %v1570, %v1611
    %v1617 = vtanh.pop %v1568
    %v1618 = vxor.u32 %v1568, 2147483648
    %v1619 = vmul.f32 %v1618, 1.442695
    %v1620 = vpow.pop %v1619
    %v1621 = vadd.f32 %v1620, 1.0
    %v1622 = vrcp.pop %v1621
    %v1623 = vmul.f32 1.0, %v1622
    %v1624 = vsel %vm708, %v1617, %v1623
    %v1625 = vtanh.pop %v1616
    %v1626 = vxor.u32 %v1616, 2147483648
    %v1627 = vmul.f32 %v1626, 1.442695
    %v1628 = vpow.pop %v1627
    %v1629 = vadd.f32 %v1628, 1.0
    %v1630 = vrcp.pop %v1629
    %v1631 = vmul.f32 1.0, %v1630
    %v1632 = vsel %vm708, %v1625, %v1631
    %v1633 = vmul.f32 %v1624, %v1451
    %1635 = vrot.lane.b32.xlu0 %v1624, 64
    %v1636 = vpop.permute.xlu0 %1635
    %v1638 = vmul.f32 %v1624, %v1636
    %1640 = vrot.lane.b32.xlu0 %v1638, 32
    %v1641 = vpop.permute.xlu0 %1640
    %v1643 = vadd.f32 %v1633, %v1641
    %v1644 = vtanh.pop %v1643
    %1646 = vrot.lane.b32.xlu0 %v1644, 64
    %v1647 = vpop.permute.xlu0 %1646
    %v1649 = vmul.f32 %v1624, %v1647
    %v1650 = vmul.f32 %v1632, %v1468
    %1652 = vrot.lane.b32.xlu0 %v1632, 64
    %v1653 = vpop.permute.xlu0 %1652
    %v1655 = vmul.f32 %v1632, %v1653
    %1657 = vrot.lane.b32.xlu0 %v1655, 32
    %v1658 = vpop.permute.xlu0 %1657
    %v1660 = vadd.f32 %v1650, %v1658
    %v1661 = vtanh.pop %v1660
    %1663 = vrot.lane.b32.xlu0 %v1661, 64
    %v1664 = vpop.permute.xlu0 %1663
    %v1666 = vmul.f32 %v1632, %v1664
    %v1667 = vpack.c.bf16 %v1649, %v1649
    %v1670 = vunpack.c.l.s4 1966171168
    %v1671 = vunpack.c.0.s8 %v1670
    %v1672 = vlaneseq
    %v1673 = vshrl.u32 %v1672, 7
    %v1674 = vsub.s32 %v1671, %v1673
    %v1675 = vrot.slane %v1667, %v1674
    %v1677 = vunpack.c.l.s4 1966171168
    %v1678 = vunpack.c.0.s8 %v1677
    %v1679 = vlaneseq
    %v1680 = vshrl.u32 %v1679, 7
    %v1681 = vsub.s32 %v1678, %v1680
    %v1682 = vrot.slane %v1675, %v1681
    %1683 = vrot.lane.b32.xlu0 %v1682, 32
    %v1684 = vpop.permute.xlu0 %1683
    %s1686 = scalar_lea.vmem %s8, 4
    %v1687 = vld [vmem:[%s1686] sm:$0x1]
    %v1688 = vsel %vm918, %v1684, %v1687
    %1689 = vst [vmem:[%s1686] sm:$0x1] %v1688
    %v1690 = vpack.c.bf16 %v1666, %v1666
    %v1693 = vunpack.c.l.s4 1966171168
    %v1694 = vunpack.c.0.s8 %v1693
    %v1695 = vlaneseq
    %v1696 = vshrl.u32 %v1695, 7
    %v1697 = vsub.s32 %v1694, %v1696
    %v1698 = vrot.slane %v1690, %v1697
    %v1700 = vunpack.c.l.s4 1966171168
    %v1701 = vunpack.c.0.s8 %v1700
    %v1702 = vlaneseq
    %v1703 = vshrl.u32 %v1702, 7
    %v1704 = vsub.s32 %v1701, %v1703
    %v1705 = vrot.slane %v1698, %v1704
    %1706 = vrot.lane.b32.xlu0 %v1705, 32
    %v1707 = vpop.permute.xlu0 %1706
    %s1709 = scalar_lea.vmem %s123, 3
    %v1710 = vld [vmem:[%s1709] sm:$0x1]
    %v1711 = vsel %vm918, %v1707, %v1710
    %1712 = vst [vmem:[%s1709] sm:$0x1] %v1711
    %s1713 = scalar_lea.vmem [#allocation6], 5
    %v1714 = vld [vmem:[%s1713] sm:$0x1]
    %1715 = vrot.lane.b32.xlu0 %v1667, 32
    %v1716 = vpop.permute.xlu0 %1715
    %v1718 = vsel %vm727, %v1716, 0
    %1720 = vmatprep.subr.bf16.mxu0 0
    %1721 = vmatpush1.bf16.msra.mxu0 %v723
    %1722 = vmatprep.subr.bf16.mxu0 0
    %1723 = vmatpush1.bf16.msra.mxu0 %v724
    %1724 = vmatprep.subr.bf16.mxu0 0
    %1725 = vmatpush1.bf16.msra.mxu0 0
    %1726 = vmatprep.subr.bf16.mxu0 0
    %1727 = vmatpush1.bf16.msra.mxu0 0
    %1728 = vmatprep.subr.bf16.mxu0 0
    %1729 = vmatpush1.bf16.msra.mxu0 0
    %1730 = vmatprep.subr.bf16.mxu0 0
    %1731 = vmatpush1.bf16.msra.mxu0 0
    %1732 = vmatprep.subr.bf16.mxu0 0
    %1733 = vmatpush1.bf16.msra.mxu0 0
    %1734 = vmatprep.subr.bf16.mxu0 0
    %1735 = vmatpush1.bf16.msra.mxu0 0
    %1736 = vmatprep.subr.bf16.mxu0 0
    %1737 = vmatpush1.bf16.msra.mxu0 0
    %1738 = vmatprep.subr.bf16.mxu0 0
    %1739 = vmatpush1.bf16.msra.mxu0 0
    %1740 = vmatprep.subr.bf16.mxu0 0
    %1741 = vmatpush1.bf16.msra.mxu0 0
    %1742 = vmatprep.subr.bf16.mxu0 0
    %1743 = vmatpush1.bf16.msra.mxu0 0
    %1744 = vmatprep.subr.bf16.mxu0 0
    %1745 = vmatpush1.bf16.msra.mxu0 0
    %1746 = vmatprep.subr.bf16.mxu0 0
    %1747 = vmatpush1.bf16.msra.mxu0 0
    %1748 = vmatprep.subr.bf16.mxu0 0
    %1749 = vmatpush1.bf16.msra.mxu0 0
    %1750 = vmatprep.subr.bf16.mxu0 0
    %1751 = vmatpush1.bf16.msra.mxu0 0
    %1752 = vmatprep.mubr.bf16.mxu0 0
    %1753 = vmatmul.mubr.bf16.gmra.mrb[0].mxu0 %v1718
    %v1754 = vpop.f32.mrb[0].mxu0
    %v1755 = vadd.f32 0.0, %v1754
    %v1756 = vpop.f32.mrb[0].mxu0
    %v1757 = vpop.f32.mrb[0].mxu0
    %v1758 = vpop.f32.mrb[0].mxu0
    %1759 = vdwg.mxu0
    %v1760 = vadd.f32 %v1714, %v1755
    %s1761 = scalar_lea.vmem [#allocation7], 2
    %v1762 = vld [vmem:[%s1761] sm:$0x1]
    %1763 = vrot.lane.b32.xlu0 %v1690, 32
    %v1764 = vpop.permute.xlu0 %1763
    %v1766 = vsel %vm727, %v1764, 0
    %1768 = vmatprep.subr.bf16.mxu0 0
    %1769 = vmatpush1.bf16.msra.mxu0 %v783
    %1770 = vmatprep.subr.bf16.mxu0 0
    %1771 = vmatpush1.bf16.msra.mxu0 %v784
    %1772 = vmatprep.subr.bf16.mxu0 0
    %1773 = vmatpush1.bf16.msra.mxu0 0
    %1774 = vmatprep.subr.bf16.mxu0 0
    %1775 = vmatpush1.bf16.msra.mxu0 0
    %1776 = vmatprep.subr.bf16.mxu0 0
    %1777 = vmatpush1.bf16.msra.mxu0 0
    %1778 = vmatprep.subr.bf16.mxu0 0
    %1779 = vmatpush1.bf16.msra.mxu0 0
    %1780 = vmatprep.subr.bf16.mxu0 0
    %1781 = vmatpush1.bf16.msra.mxu0 0
    %1782 = vmatprep.subr.bf16.mxu0 0
    %1783 = vmatpush1.bf16.msra.mxu0 0
    %1784 = vmatprep.subr.bf16.mxu0 0
    %1785 = vmatpush1.bf16.msra.mxu0 0
    %1786 = vmatprep.subr.bf16.mxu0 0
    %1787 = vmatpush1.bf16.msra.mxu0 0
    %1788 = vmatprep.subr.bf16.mxu0 0
    %1789 = vmatpush1.bf16.msra.mxu0 0
    %1790 = vmatprep.subr.bf16.mxu0 0
    %1791 = vmatpush1.bf16.msra.mxu0 0
    %1792 = vmatprep.subr.bf16.mxu0 0
    %1793 = vmatpush1.bf16.msra.mxu0 0
    %1794 = vmatprep.subr.bf16.mxu0 0
    %1795 = vmatpush1.bf16.msra.mxu0 0
    %1796 = vmatprep.subr.bf16.mxu0 0
    %1797 = vmatpush1.bf16.msra.mxu0 0
    %1798 = vmatprep.subr.bf16.mxu0 0
    %1799 = vmatpush1.bf16.msra.mxu0 0
    %1800 = vmatprep.mubr.bf16.mxu0 0
    %1801 = vmatmul.mubr.bf16.gmra.mrb[0].mxu0 %v1766
    %v1802 = vpop.f32.mrb[0].mxu0
    %v1803 = vadd.f32 0.0, %v1802
    %v1804 = vpop.f32.mrb[0].mxu0
    %v1805 = vpop.f32.mrb[0].mxu0
    %v1806 = vpop.f32.mrb[0].mxu0
    %1807 = vdwg.mxu0
    %v1808 = vadd.f32 %v1762, %v1803
    %v1809 = vtanh.pop %v1760
    %v1810 = vxor.u32 %v1760, 2147483648
    %v1811 = vmul.f32 %v1810, 1.442695
    %v1812 = vpow.pop %v1811
    %v1813 = vadd.f32 %v1812, 1.0
    %v1814 = vrcp.pop %v1813
    %v1815 = vmul.f32 1.0, %v1814
    %v1816 = vsel %vm708, %v1809, %v1815
    %v1817 = vtanh.pop %v1808
    %v1818 = vxor.u32 %v1808, 2147483648
    %v1819 = vmul.f32 %v1818, 1.442695
    %v1820 = vpow.pop %v1819
    %v1821 = vadd.f32 %v1820, 1.0
    %v1822 = vrcp.pop %v1821
    %v1823 = vmul.f32 1.0, %v1822
    %v1824 = vsel %vm708, %v1817, %v1823
    %v1825 = vmul.f32 %v1816, %v1643
    %1827 = vrot.lane.b32.xlu0 %v1816, 64
    %v1828 = vpop.permute.xlu0 %1827
    %v1830 = vmul.f32 %v1816, %v1828
    %1832 = vrot.lane.b32.xlu0 %v1830, 32
    %v1833 = vpop.permute.xlu0 %1832
    %v1835 = vadd.f32 %v1825, %v1833
    %v1836 = vtanh.pop %v1835
    %1838 = vrot.lane.b32.xlu0 %v1836, 64
    %v1839 = vpop.permute.xlu0 %1838
    %v1841 = vmul.f32 %v1816, %v1839
    %v1842 = vmul.f32 %v1824, %v1660
    %1844 = vrot.lane.b32.xlu0 %v1824, 64
    %v1845 = vpop.permute.xlu0 %1844
    %v1847 = vmul.f32 %v1824, %v1845
    %1849 = vrot.lane.b32.xlu0 %v1847, 32
    %v1850 = vpop.permute.xlu0 %1849
    %v1852 = vadd.f32 %v1842, %v1850
    %v1853 = vtanh.pop %v1852
    %1855 = vrot.lane.b32.xlu0 %v1853, 64
    %v1856 = vpop.permute.xlu0 %1855
    %v1858 = vmul.f32 %v1824, %v1856
    %v1859 = vpack.c.bf16 %v1841, %v1841
    %v1862 = vunpack.c.l.s4 1966171168
    %v1863 = vunpack.c.0.s8 %v1862
    %v1864 = vlaneseq
    %v1865 = vshrl.u32 %v1864, 7
    %v1866 = vsub.s32 %v1863, %v1865
    %v1867 = vrot.slane %v1859, %v1866
    %v1869 = vunpack.c.l.s4 1966171168
    %v1870 = vunpack.c.0.s8 %v1869
    %v1871 = vlaneseq
    %v1872 = vshrl.u32 %v1871, 7
    %v1873 = vsub.s32 %v1870, %v1872
    %v1874 = vrot.slane %v1867, %v1873
    %1875 = vrot.lane.b32.xlu0 %v1874, 32
    %v1876 = vpop.permute.xlu0 %1875
    %s1878 = scalar_lea.vmem %s8, 5
    %v1879 = vld [vmem:[%s1878] sm:$0x1]
    %v1880 = vsel %vm918, %v1876, %v1879
    %1881 = vst [vmem:[%s1878] sm:$0x1] %v1880
    %v1882 = vpack.c.bf16 %v1858, %v1858
    %v1885 = vunpack.c.l.s4 1966171168
    %v1886 = vunpack.c.0.s8 %v1885
    %v1887 = vlaneseq
    %v1888 = vshrl.u32 %v1887, 7
    %v1889 = vsub.s32 %v1886, %v1888
    %v1890 = vrot.slane %v1882, %v1889
    %v1892 = vunpack.c.l.s4 1966171168
    %v1893 = vunpack.c.0.s8 %v1892
    %v1894 = vlaneseq
    %v1895 = vshrl.u32 %v1894, 7
    %v1896 = vsub.s32 %v1893, %v1895
    %v1897 = vrot.slane %v1890, %v1896
    %1898 = vrot.lane.b32.xlu0 %v1897, 32
    %v1899 = vpop.permute.xlu0 %1898
    %s1901 = scalar_lea.vmem %s123, 2
    %v1902 = vld [vmem:[%s1901] sm:$0x1]
    %v1903 = vsel %vm918, %v1899, %v1902
    %1904 = vst [vmem:[%s1901] sm:$0x1] %v1903
    %s1905 = scalar_lea.vmem [#allocation6], 6
    %v1906 = vld [vmem:[%s1905] sm:$0x1]
    %1907 = vrot.lane.b32.xlu0 %v1859, 32
    %v1908 = vpop.permute.xlu0 %1907
    %v1910 = vsel %vm727, %v1908, 0
    %1912 = vmatprep.subr.bf16.mxu0 0
    %1913 = vmatpush1.bf16.msra.mxu0 %v723
    %1914 = vmatprep.subr.bf16.mxu0 0
    %1915 = vmatpush1.bf16.msra.mxu0 %v724
    %1916 = vmatprep.subr.bf16.mxu0 0
    %1917 = vmatpush1.bf16.msra.mxu0 0
    %1918 = vmatprep.subr.bf16.mxu0 0
    %1919 = vmatpush1.bf16.msra.mxu0 0
    %1920 = vmatprep.subr.bf16.mxu0 0
    %1921 = vmatpush1.bf16.msra.mxu0 0
    %1922 = vmatprep.subr.bf16.mxu0 0
    %1923 = vmatpush1.bf16.msra.mxu0 0
    %1924 = vmatprep.subr.bf16.mxu0 0
    %1925 = vmatpush1.bf16.msra.mxu0 0
    %1926 = vmatprep.subr.bf16.mxu0 0
    %1927 = vmatpush1.bf16.msra.mxu0 0
    %1928 = vmatprep.subr.bf16.mxu0 0
    %1929 = vmatpush1.bf16.msra.mxu0 0
    %1930 = vmatprep.subr.bf16.mxu0 0
    %1931 = vmatpush1.bf16.msra.mxu0 0
    %1932 = vmatprep.subr.bf16.mxu0 0
    %1933 = vmatpush1.bf16.msra.mxu0 0
    %1934 = vmatprep.subr.bf16.mxu0 0
    %1935 = vmatpush1.bf16.msra.mxu0 0
    %1936 = vmatprep.subr.bf16.mxu0 0
    %1937 = vmatpush1.bf16.msra.mxu0 0
    %1938 = vmatprep.subr.bf16.mxu0 0
    %1939 = vmatpush1.bf16.msra.mxu0 0
    %1940 = vmatprep.subr.bf16.mxu0 0
    %1941 = vmatpush1.bf16.msra.mxu0 0
    %1942 = vmatprep.subr.bf16.mxu0 0
    %1943 = vmatpush1.bf16.msra.mxu0 0
    %1944 = vmatprep.mubr.bf16.mxu0 0
    %1945 = vmatmul.mubr.bf16.gmra.mrb[0].mxu0 %v1910
    %v1946 = vpop.f32.mrb[0].mxu0
    %v1947 = vadd.f32 0.0, %v1946
    %v1948 = vpop.f32.mrb[0].mxu0
    %v1949 = vpop.f32.mrb[0].mxu0
    %v1950 = vpop.f32.mrb[0].mxu0
    %1951 = vdwg.mxu0
    %v1952 = vadd.f32 %v1906, %v1947
    %s1953 = scalar_lea.vmem [#allocation7], 1
    %v1954 = vld [vmem:[%s1953] sm:$0x1]
    %1955 = vrot.lane.b32.xlu0 %v1882, 32
    %v1956 = vpop.permute.xlu0 %1955
    %v1958 = vsel %vm727, %v1956, 0
    %1960 = vmatprep.subr.bf16.mxu0 0
    %1961 = vmatpush1.bf16.msra.mxu0 %v783
    %1962 = vmatprep.subr.bf16.mxu0 0
    %1963 = vmatpush1.bf16.msra.mxu0 %v784
    %1964 = vmatprep.subr.bf16.mxu0 0
    %1965 = vmatpush1.bf16.msra.mxu0 0
    %1966 = vmatprep.subr.bf16.mxu0 0
    %1967 = vmatpush1.bf16.msra.mxu0 0
    %1968 = vmatprep.subr.bf16.mxu0 0
    %1969 = vmatpush1.bf16.msra.mxu0 0
    %1970 = vmatprep.subr.bf16.mxu0 0
    %1971 = vmatpush1.bf16.msra.mxu0 0
    %1972 = vmatprep.subr.bf16.mxu0 0
    %1973 = vmatpush1.bf16.msra.mxu0 0
    %1974 = vmatprep.subr.bf16.mxu0 0
    %1975 = vmatpush1.bf16.msra.mxu0 0
    %1976 = vmatprep.subr.bf16.mxu0 0
    %1977 = vmatpush1.bf16.msra.mxu0 0
    %1978 = vmatprep.subr.bf16.mxu0 0
    %1979 = vmatpush1.bf16.msra.mxu0 0
    %1980 = vmatprep.subr.bf16.mxu0 0
    %1981 = vmatpush1.bf16.msra.mxu0 0
    %1982 = vmatprep.subr.bf16.mxu0 0
    %1983 = vmatpush1.bf16.msra.mxu0 0
    %1984 = vmatprep.subr.bf16.mxu0 0
    %1985 = vmatpush1.bf16.msra.mxu0 0
    %1986 = vmatprep.subr.bf16.mxu0 0
    %1987 = vmatpush1.bf16.msra.mxu0 0
    %1988 = vmatprep.subr.bf16.mxu0 0
    %1989 = vmatpush1.bf16.msra.mxu0 0
    %1990 = vmatprep.subr.bf16.mxu0 0
    %1991 = vmatpush1.bf16.msra.mxu0 0
    %1992 = vmatprep.mubr.bf16.mxu0 0
    %1993 = vmatmul.mubr.bf16.gmra.mrb[0].mxu0 %v1958
    %v1994 = vpop.f32.mrb[0].mxu0
    %v1995 = vadd.f32 0.0, %v1994
    %v1996 = vpop.f32.mrb[0].mxu0
    %v1997 = vpop.f32.mrb[0].mxu0
    %v1998 = vpop.f32.mrb[0].mxu0
    %1999 = vdwg.mxu0
    %v2000 = vadd.f32 %v1954, %v1995
    %v2001 = vtanh.pop %v1952
    %v2002 = vxor.u32 %v1952, 2147483648
    %v2003 = vmul.f32 %v2002, 1.442695
    %v2004 = vpow.pop %v2003
    %v2005 = vadd.f32 %v2004, 1.0
    %v2006 = vrcp.pop %v2005
    %v2007 = vmul.f32 1.0, %v2006
    %v2008 = vsel %vm708, %v2001, %v2007
    %v2009 = vtanh.pop %v2000
    %v2010 = vxor.u32 %v2000, 2147483648
    %v2011 = vmul.f32 %v2010, 1.442695
    %v2012 = vpow.pop %v2011
    %v2013 = vadd.f32 %v2012, 1.0
    %v2014 = vrcp.pop %v2013
    %v2015 = vmul.f32 1.0, %v2014
    %v2016 = vsel %vm708, %v2009, %v2015
    %v2017 = vmul.f32 %v2008, %v1835
    %2019 = vrot.lane.b32.xlu0 %v2008, 64
    %v2020 = vpop.permute.xlu0 %2019
    %v2022 = vmul.f32 %v2008, %v2020
    %2024 = vrot.lane.b32.xlu0 %v2022, 32
    %v2025 = vpop.permute.xlu0 %2024
    %v2027 = vadd.f32 %v2017, %v2025
    %v2028 = vtanh.pop %v2027
    %2030 = vrot.lane.b32.xlu0 %v2028, 64
    %v2031 = vpop.permute.xlu0 %2030
    %v2033 = vmul.f32 %v2008, %v2031
    %v2034 = vmul.f32 %v2016, %v1852
    %2036 = vrot.lane.b32.xlu0 %v2016, 64
    %v2037 = vpop.permute.xlu0 %2036
    %v2039 = vmul.f32 %v2016, %v2037
    %2041 = vrot.lane.b32.xlu0 %v2039, 32
    %v2042 = vpop.permute.xlu0 %2041
    %v2044 = vadd.f32 %v2034, %v2042
    %v2045 = vtanh.pop %v2044
    %2047 = vrot.lane.b32.xlu0 %v2045, 64
    %v2048 = vpop.permute.xlu0 %2047
    %v2050 = vmul.f32 %v2016, %v2048
    %v2051 = vpack.c.bf16 %v2033, %v2033
    %v2054 = vunpack.c.l.s4 1966171168
    %v2055 = vunpack.c.0.s8 %v2054
    %v2056 = vlaneseq
    %v2057 = vshrl.u32 %v2056, 7
    %v2058 = vsub.s32 %v2055, %v2057
    %v2059 = vrot.slane %v2051, %v2058
    %v2061 = vunpack.c.l.s4 1966171168
    %v2062 = vunpack.c.0.s8 %v2061
    %v2063 = vlaneseq
    %v2064 = vshrl.u32 %v2063, 7
    %v2065 = vsub.s32 %v2062, %v2064
    %v2066 = vrot.slane %v2059, %v2065
    %2067 = vrot.lane.b32.xlu0 %v2066, 32
    %v2068 = vpop.permute.xlu0 %2067
    %s2070 = scalar_lea.vmem %s8, 6
    %v2071 = vld [vmem:[%s2070] sm:$0x1]
    %v2072 = vsel %vm918, %v2068, %v2071
    %2073 = vst [vmem:[%s2070] sm:$0x1] %v2072
    %v2074 = vpack.c.bf16 %v2050, %v2050
    %v2077 = vunpack.c.l.s4 1966171168
    %v2078 = vunpack.c.0.s8 %v2077
    %v2079 = vlaneseq
    %v2080 = vshrl.u32 %v2079, 7
    %v2081 = vsub.s32 %v2078, %v2080
    %v2082 = vrot.slane %v2074, %v2081
    %v2084 = vunpack.c.l.s4 1966171168
    %v2085 = vunpack.c.0.s8 %v2084
    %v2086 = vlaneseq
    %v2087 = vshrl.u32 %v2086, 7
    %v2088 = vsub.s32 %v2085, %v2087
    %v2089 = vrot.slane %v2082, %v2088
    %2090 = vrot.lane.b32.xlu0 %v2089, 32
    %v2091 = vpop.permute.xlu0 %2090
    %s2093 = scalar_lea.vmem %s123, 1
    %v2094 = vld [vmem:[%s2093] sm:$0x1]
    %v2095 = vsel %vm918, %v2091, %v2094
    %2096 = vst [vmem:[%s2093] sm:$0x1] %v2095
    %s2097 = scalar_lea.vmem [#allocation6], 7
    %v2098 = vld [vmem:[%s2097] sm:$0x1]
    %2099 = vrot.lane.b32.xlu0 %v2051, 32
    %v2100 = vpop.permute.xlu0 %2099
    %v2102 = vsel %vm727, %v2100, 0
    %2104 = vmatprep.subr.bf16.mxu0 0
    %2105 = vmatpush1.bf16.msra.mxu0 %v723
    %2106 = vmatprep.subr.bf16.mxu0 0
    %2107 = vmatpush1.bf16.msra.mxu0 %v724
    %2108 = vmatprep.subr.bf16.mxu0 0
    %2109 = vmatpush1.bf16.msra.mxu0 0
    %2110 = vmatprep.subr.bf16.mxu0 0
    %2111 = vmatpush1.bf16.msra.mxu0 0
    %2112 = vmatprep.subr.bf16.mxu0 0
    %2113 = vmatpush1.bf16.msra.mxu0 0
    %2114 = vmatprep.subr.bf16.mxu0 0
    %2115 = vmatpush1.bf16.msra.mxu0 0
    %2116 = vmatprep.subr.bf16.mxu0 0
    %2117 = vmatpush1.bf16.msra.mxu0 0
    %2118 = vmatprep.subr.bf16.mxu0 0
    %2119 = vmatpush1.bf16.msra.mxu0 0
    %2120 = vmatprep.subr.bf16.mxu0 0
    %2121 = vmatpush1.bf16.msra.mxu0 0
    %2122 = vmatprep.subr.bf16.mxu0 0
    %2123 = vmatpush1.bf16.msra.mxu0 0
    %2124 = vmatprep.subr.bf16.mxu0 0
    %2125 = vmatpush1.bf16.msra.mxu0 0
    %2126 = vmatprep.subr.bf16.mxu0 0
    %2127 = vmatpush1.bf16.msra.mxu0 0
    %2128 = vmatprep.subr.bf16.mxu0 0
    %2129 = vmatpush1.bf16.msra.mxu0 0
    %2130 = vmatprep.subr.bf16.mxu0 0
    %2131 = vmatpush1.bf16.msra.mxu0 0
    %2132 = vmatprep.subr.bf16.mxu0 0
    %2133 = vmatpush1.bf16.msra.mxu0 0
    %2134 = vmatprep.subr.bf16.mxu0 0
    %2135 = vmatpush1.bf16.msra.mxu0 0
    %2136 = vmatprep.mubr.bf16.mxu0 0
    %2137 = vmatmul.mubr.bf16.gmra.mrb[0].mxu0 %v2102
    %v2138 = vpop.f32.mrb[0].mxu0
    %v2139 = vadd.f32 0.0, %v2138
    %v2140 = vpop.f32.mrb[0].mxu0
    %v2141 = vpop.f32.mrb[0].mxu0
    %v2142 = vpop.f32.mrb[0].mxu0
    %2143 = vdwg.mxu0
    %v2144 = vadd.f32 %v2098, %v2139
    %v2145 = vld [vmem:[#allocation7] sm:$0x1]
    %2146 = vrot.lane.b32.xlu0 %v2074, 32
    %v2147 = vpop.permute.xlu0 %2146
    %v2149 = vsel %vm727, %v2147, 0
    %2151 = vmatprep.subr.bf16.mxu0 0
    %2152 = vmatpush1.bf16.msra.mxu0 %v783
    %2153 = vmatprep.subr.bf16.mxu0 0
    %2154 = vmatpush1.bf16.msra.mxu0 %v784
    %2155 = vmatprep.subr.bf16.mxu0 0
    %2156 = vmatpush1.bf16.msra.mxu0 0
    %2157 = vmatprep.subr.bf16.mxu0 0
    %2158 = vmatpush1.bf16.msra.mxu0 0
    %2159 = vmatprep.subr.bf16.mxu0 0
    %2160 = vmatpush1.bf16.msra.mxu0 0
    %2161 = vmatprep.subr.bf16.mxu0 0
    %2162 = vmatpush1.bf16.msra.mxu0 0
    %2163 = vmatprep.subr.bf16.mxu0 0
    %2164 = vmatpush1.bf16.msra.mxu0 0
    %2165 = vmatprep.subr.bf16.mxu0 0
    %2166 = vmatpush1.bf16.msra.mxu0 0
    %2167 = vmatprep.subr.bf16.mxu0 0
    %2168 = vmatpush1.bf16.msra.mxu0 0
    %2169 = vmatprep.subr.bf16.mxu0 0
    %2170 = vmatpush1.bf16.msra.mxu0 0
    %2171 = vmatprep.subr.bf16.mxu0 0
    %2172 = vmatpush1.bf16.msra.mxu0 0
    %2173 = vmatprep.subr.bf16.mxu0 0
    %2174 = vmatpush1.bf16.msra.mxu0 0
    %2175 = vmatprep.subr.bf16.mxu0 0
    %2176 = vmatpush1.bf16.msra.mxu0 0
    %2177 = vmatprep.subr.bf16.mxu0 0
    %2178 = vmatpush1.bf16.msra.mxu0 0
    %2179 = vmatprep.subr.bf16.mxu0 0
    %2180 = vmatpush1.bf16.msra.mxu0 0
    %2181 = vmatprep.subr.bf16.mxu0 0
    %2182 = vmatpush1.bf16.msra.mxu0 0
    %2183 = vmatprep.mubr.bf16.mxu0 0
    %2184 = vmatmul.mubr.bf16.gmra.mrb[0].mxu0 %v2149
    %v2185 = vpop.f32.mrb[0].mxu0
    %v2186 = vadd.f32 0.0, %v2185
    %v2187 = vpop.f32.mrb[0].mxu0
    %v2188 = vpop.f32.mrb[0].mxu0
    %v2189 = vpop.f32.mrb[0].mxu0
    %2190 = vdwg.mxu0
    %v2191 = vadd.f32 %v2145, %v2186
    %v2192 = vtanh.pop %v2144
    %v2193 = vxor.u32 %v2144, 2147483648
    %v2194 = vmul.f32 %v2193, 1.442695
    %v2195 = vpow.pop %v2194
    %v2196 = vadd.f32 %v2195, 1.0
    %v2197 = vrcp.pop %v2196
    %v2198 = vmul.f32 1.0, %v2197
    %v2199 = vsel %vm708, %v2192, %v2198
    %v2200 = vtanh.pop %v2191
    %v2201 = vxor.u32 %v2191, 2147483648
    %v2202 = vmul.f32 %v2201, 1.442695
    %v2203 = vpow.pop %v2202
    %v2204 = vadd.f32 %v2203, 1.0
    %v2205 = vrcp.pop %v2204
    %v2206 = vmul.f32 1.0, %v2205
    %v2207 = vsel %vm708, %v2200, %v2206
    %v2208 = vmul.f32 %v2199, %v2027
    %2210 = vrot.lane.b32.xlu0 %v2199, 64
    %v2211 = vpop.permute.xlu0 %2210
    %v2213 = vmul.f32 %v2199, %v2211
    %2215 = vrot.lane.b32.xlu0 %v2213, 32
    %v2216 = vpop.permute.xlu0 %2215
    %v2218 = vadd.f32 %v2208, %v2216
    %v2219 = vtanh.pop %v2218
    %2221 = vrot.lane.b32.xlu0 %v2219, 64
    %v2222 = vpop.permute.xlu0 %2221
    %v2224 = vmul.f32 %v2199, %v2222
    %v2225 = vmul.f32 %v2207, %v2044
    %2227 = vrot.lane.b32.xlu0 %v2207, 64
    %v2228 = vpop.permute.xlu0 %2227
    %v2230 = vmul.f32 %v2207, %v2228
    %2232 = vrot.lane.b32.xlu0 %v2230, 32
    %v2233 = vpop.permute.xlu0 %2232
    %v2235 = vadd.f32 %v2225, %v2233
    %v2236 = vtanh.pop %v2235
    %2238 = vrot.lane.b32.xlu0 %v2236, 64
    %v2239 = vpop.permute.xlu0 %2238
    %v2241 = vmul.f32 %v2207, %v2239
    %v2242 = vpack.c.bf16 %v2224, %v2224
    %v2245 = vunpack.c.l.s4 1966171168
    %v2246 = vunpack.c.0.s8 %v2245
    %v2247 = vlaneseq
    %v2248 = vshrl.u32 %v2247, 7
    %v2249 = vsub.s32 %v2246, %v2248
    %v2250 = vrot.slane %v2242, %v2249
    %v2252 = vunpack.c.l.s4 1966171168
    %v2253 = vunpack.c.0.s8 %v2252
    %v2254 = vlaneseq
    %v2255 = vshrl.u32 %v2254, 7
    %v2256 = vsub.s32 %v2253, %v2255
    %v2257 = vrot.slane %v2250, %v2256
    %2258 = vrot.lane.b32.xlu0 %v2257, 32
    %v2259 = vpop.permute.xlu0 %2258
    %s2261 = scalar_lea.vmem %s8, 7
    %v2262 = vld [vmem:[%s2261] sm:$0x1]
    %v2263 = vsel %vm918, %v2259, %v2262
    %2264 = vst [vmem:[%s2261] sm:$0x1] %v2263
    %v2265 = vpack.c.bf16 %v2241, %v2241
    %v2268 = vunpack.c.l.s4 1966171168
    %v2269 = vunpack.c.0.s8 %v2268
    %v2270 = vlaneseq
    %v2271 = vshrl.u32 %v2270, 7
    %v2272 = vsub.s32 %v2269, %v2271
    %v2273 = vrot.slane %v2265, %v2272
    %v2275 = vunpack.c.l.s4 1966171168
    %v2276 = vunpack.c.0.s8 %v2275
    %v2277 = vlaneseq
    %v2278 = vshrl.u32 %v2277, 7
    %v2279 = vsub.s32 %v2276, %v2278
    %v2280 = vrot.slane %v2273, %v2279
    %2281 = vrot.lane.b32.xlu0 %v2280, 32
    %v2282 = vpop.permute.xlu0 %2281
    %v2284 = vld [vmem:[%s123] sm:$0x1]
    %v2285 = vsel %vm918, %v2282, %v2284
    %2286 = vst [vmem:[%s123] sm:$0x1] %v2285
    %2288 = vrot.lane.b32.xlu0 %v2224, 32
    %v2289 = vpop.permute.xlu0 %2288
    %vm2291 = vcmask 253952
    %2292 = vst.msk [vmem:[#allocation2] sm:$0x1] %vm2291, %v2289
    %2294 = vrot.lane.b32.xlu0 %v2218, 96
    %v2295 = vpop.permute.xlu0 %2294
    %2297 = vst.msk [vmem:[#allocation3] sm:$0x1] %vm2291, %v2295
    %2299 = vrot.lane.b32.xlu0 %v2241, 32
    %v2300 = vpop.permute.xlu0 %2299
    %2302 = vst.msk [vmem:[#allocation4] sm:$0x1] %vm2291, %v2300
    %2304 = vrot.lane.b32.xlu0 %v2235, 96
    %v2305 = vpop.permute.xlu0 %2304
    %2307 = vst.msk [vmem:[#allocation5] sm:$0x1] %vm2291, %v2305
    %s2308 = ssub.s32 0, 0
    %s2309 = smul.u32 8, %s2308
    %p2310 = scmp.lt.s32.totalorder %s2309, 7
    %s2311 = scalar_select %p2310, %s2309, 7
    %s2312 = scalar_lea.vmem %s9, %s2311
    // Predicated region
    $region58: #{vocalnet_forward.2} parent=1 // pred_check
      _
    $region59: #{vocalnet_forward.2} parent=1 // pred_check_branch
      %2314 = sbr.rel (0) target = $region61
    $region60: #{vocalnet_forward.2} parent=1 // pred_region
      _
    $region61: #{vocalnet_forward.2} parent=1 // pred_fallthru
      _
    // Predicated region
    $region62: #{vocalnet_forward.2} parent=1 // pred_check
      _
    $region63: #{vocalnet_forward.2} parent=1 // pred_check_branch
      %2316 = sbr.rel (0) target = $region65
    $region64: #{vocalnet_forward.2} parent=1 // pred_region
      %s2317 = ssub.s32 0, 0
      %s2318 = smul.u32 8, %s2317
    $region65: #{vocalnet_forward.2} parent=1 // pred_fallthru
      _
    // Predicated region
    $region66: #{vocalnet_forward.2} parent=1 // pred_check
      _
    $region67: #{vocalnet_forward.2} parent=1 // pred_check_branch
      %2320 = sbr.rel (0) target = $region69
    $region68: #{vocalnet_forward.2} parent=1 // pred_region
      _
    $region69: #{vocalnet_forward.2} parent=1 // pred_fallthru
      _
    // Predicated region
    $region70: #{vocalnet_forward.2} parent=1 // pred_check
      _
    $region71: #{vocalnet_forward.2} parent=1 // pred_check_branch
      %2322 = sbr.rel (0) target = $region73
    $region72: #{vocalnet_forward.2} parent=1 // pred_region
      %s2323 = ssub.s32 0, 0
      %s2324 = smul.u32 8, %s2323
      %p2325 = scmp.lt.s32.totalorder %s2324, 7
      %s2326 = scalar_select %p2325, %s2324, 7
      %s2327 = scalar_lea.vmem %s9, %s2326
    $region73: #{vocalnet_forward.2} parent=1 // pred_fallthru
      _
    %2328 = vsyncpa [#allocation9], 1
    %2329 = vsyncpa [#allocation11], 1
    %2330 = vsyncpa [#allocation14], 1

// kernel: vocalnet_forward.3
$region0: #{vocalnet_forward.3}
  #allocation0 [shape = 'u32[]', space=smem, size = 0x4, offset = 0x4, fixed_abs, tag = 'smem constant byte address 0x4 - core index']
  #allocation1 [shape = 'u32[144,128]{1,0:T(1,128)}', space=vmem, size = 0x12000, scoped, tag = 'internal scratch']
  #allocation2 [shape = 'f32[1,32]{1,0:T(1,128)}', space=vmem, size = 0x200, scoped, tag = 'scratch operand']
  #allocation3 [shape = 'f32[1,32]{1,0:T(1,128)}', space=vmem, size = 0x200, scoped, tag = 'scratch operand']
  #allocation4 [shape = 'f32[1,32]{1,0:T(1,128)}', space=vmem, size = 0x200, scoped, tag = 'scratch operand']
  #allocation5 [shape = 'f32[1,32]{1,0:T(1,128)}', space=vmem, size = 0x200, scoped, tag = 'scratch operand']
  #allocation6 [shape = 'f32[8,1,128]{2,1,0:T(1,128)}', space=vmem, size = 0x1000, scoped, tag = 'scratch operand']
  #allocation7 [shape = 'f32[8,1,128]{2,1,0:T(1,128)}', space=vmem, size = 0x1000, scoped, tag = 'scratch operand']
  %s0 = inlined_call_operand.vmem [shape: bf16[8,1,32], index: 0, kind: input, shape index: {}, may-alias: {0,1}]
  %s1 = inlined_call_operand.vmem [shape: bf16[8,1,32], index: 1, kind: input, shape index: {}, may-alias: {0,1}]
  %s2 = inlined_call_operand.vmem [shape: bf16[8,1,32], index: 2, kind: input, shape index: {}, may-alias: {2,3}]
  %s3 = inlined_call_operand.vmem [shape: bf16[8,1,32], index: 3, kind: input, shape index: {}, may-alias: {2,3}]
  %s4 = inlined_call_operand.vmem [shape: bf16[32,128], index: 4, kind: input, shape index: {}]
  %s5 = inlined_call_operand.vmem [shape: bf16[32,128], index: 5, kind: input, shape index: {}]
  %s6 = inlined_call_operand.vmem [shape: bf16[32,128], index: 6, kind: input, shape index: {}]
  %s7 = inlined_call_operand.vmem [shape: bf16[32,128], index: 7, kind: input, shape index: {}]
  %s8 = inlined_call_operand.vmem [shape: bf16[32,128], index: 8, kind: input, shape index: {}]
  %s9 = inlined_call_operand.vmem [shape: bf16[32,128], index: 9, kind: input, shape index: {}]
  %s10 = inlined_call_operand.vmem [shape: f32[1,128], index: 10, kind: input, shape index: {}]
  %s11 = inlined_call_operand.hbm [shape: f32[1,128], index: 11, kind: input, shape index: {}]
  %s12 = inlined_call_operand.vmem [shape: bf16[8,1,32], index: 12, kind: output, shape index: {0}]
  %s13 = inlined_call_operand.vmem [shape: bf16[8,1,32], index: 13, kind: output, shape index: {1}]
  %14 = xla_tuple %s12, %s13
  %s15 = sld [smem:[#allocation0]]
  $region74: #{vocalnet_forward.3} parent=0
    _
  %s17 = ssub.s32 1, %s15
  %s18 = scalar_select 0, %s17, %s15
  $region1: #{vocalnet_forward.3} parent=0
    #allocation8 [shape = 'u8[512]{0}', space=vmem, size = 0x400, scoped, tag = 'input window, operand 11, single buffered']
    #allocation9 [shape = 's32[1]{0}', space=sflag, size = 0x4, scoped, tag = 'scoped memory for vocalnet_forward.3']
    %19 = vsyncpa [#allocation9], 0
    // Predicated region
    $region2: #{vocalnet_forward.3} parent=1 // pred_check
      _
    $region3: #{vocalnet_forward.3} parent=1 // pred_check_branch
      %21 = sbr.rel (0) target = $region5
    $region4: #{vocalnet_forward.3} parent=1 // pred_region
      _
    $region5: #{vocalnet_forward.3} parent=1 // pred_fallthru
      _
    // Predicated region
    $region6: #{vocalnet_forward.3} parent=1 // pred_check
      _
    $region7: #{vocalnet_forward.3} parent=1 // pred_check_branch
      %23 = sbr.rel (0) target = $region9
    $region8: #{vocalnet_forward.3} parent=1 // pred_region
      %s24 = ssub.s32 0, 0
      %s25 = smul.u32 8, %s24
      %p26 = scmp.lt.s32.totalorder %s25, 7
      %s27 = scalar_select %p26, %s25, 7
      %s28 = scalar_lea.vmem %s1, %s27
      %s29 = ssub.s32 0, 0
      %s30 = smul.u32 8, %s29
    $region9: #{vocalnet_forward.3} parent=1 // pred_fallthru
      _
    // Predicated region
    $region10: #{vocalnet_forward.3} parent=1 // pred_check
      _
    $region11: #{vocalnet_forward.3} parent=1 // pred_check_branch
      %32 = sbr.rel (0) target = $region13
    $region12: #{vocalnet_forward.3} parent=1 // pred_region
      _
    $region13: #{vocalnet_forward.3} parent=1 // pred_fallthru
      _
    // Predicated region
    $region14: #{vocalnet_forward.3} parent=1 // pred_check
      _
    $region15: #{vocalnet_forward.3} parent=1 // pred_check_branch
      %34 = sbr.rel (0) target = $region17
    $region16: #{vocalnet_forward.3} parent=1 // pred_region
      %s35 = ssub.s32 0, 0
      %s36 = smul.u32 8, %s35
      %p37 = scmp.lt.s32.totalorder %s36, 7
      %s38 = scalar_select %p37, %s36, 7
      %s39 = scalar_lea.vmem %s3, %s38
      %s40 = ssub.s32 0, 0
      %s41 = smul.u32 8, %s40
    $region17: #{vocalnet_forward.3} parent=1 // pred_fallthru
      _
    // Predicated region
    $region18: #{vocalnet_forward.3} parent=1 // pred_check
      _
    $region19: #{vocalnet_forward.3} parent=1 // pred_check_branch
      %43 = sbr.rel (0) target = $region21
    $region20: #{vocalnet_forward.3} parent=1 // pred_region
      _
    $region21: #{vocalnet_forward.3} parent=1 // pred_fallthru
      _
    // Predicated region
    $region22: #{vocalnet_forward.3} parent=1 // pred_check
      _
    $region23: #{vocalnet_forward.3} parent=1 // pred_check_branch
      %45 = sbr.rel (0) target = $region25
    $region24: #{vocalnet_forward.3} parent=1 // pred_region
      _
    $region25: #{vocalnet_forward.3} parent=1 // pred_fallthru
      _
    // Predicated region
    $region26: #{vocalnet_forward.3} parent=1 // pred_check
      _
    $region27: #{vocalnet_forward.3} parent=1 // pred_check_branch
      %47 = sbr.rel (0) target = $region29
    $region28: #{vocalnet_forward.3} parent=1 // pred_region
      _
    $region29: #{vocalnet_forward.3} parent=1 // pred_fallthru
      _
    // Predicated region
    $region30: #{vocalnet_forward.3} parent=1 // pred_check
      _
    $region31: #{vocalnet_forward.3} parent=1 // pred_check_branch
      %49 = sbr.rel (0) target = $region33
    $region32: #{vocalnet_forward.3} parent=1 // pred_region
      _
    $region33: #{vocalnet_forward.3} parent=1 // pred_fallthru
      _
    // Predicated region
    $region34: #{vocalnet_forward.3} parent=1 // pred_check
      _
    $region35: #{vocalnet_forward.3} parent=1 // pred_check_branch
      %51 = sbr.rel (0) target = $region37
    $region36: #{vocalnet_forward.3} parent=1 // pred_region
      _
    $region37: #{vocalnet_forward.3} parent=1 // pred_fallthru
      _
    // Predicated region
    $region38: #{vocalnet_forward.3} parent=1 // pred_check
      _
    $region39: #{vocalnet_forward.3} parent=1 // pred_check_branch
      %53 = sbr.rel (0) target = $region41
    $region40: #{vocalnet_forward.3} parent=1 // pred_region
      _
    $region41: #{vocalnet_forward.3} parent=1 // pred_fallthru
      _
    // Predicated region
    $region42: #{vocalnet_forward.3} parent=1 // pred_check
      _
    $region43: #{vocalnet_forward.3} parent=1 // pred_check_branch
      %55 = sbr.rel (0) target = $region45
    $region44: #{vocalnet_forward.3} parent=1 // pred_region
      _
    $region45: #{vocalnet_forward.3} parent=1 // pred_fallthru
      _
    // Predicated region
    $region46: #{vocalnet_forward.3} parent=1 // pred_check
      _
    $region47: #{vocalnet_forward.3} parent=1 // pred_check_branch
      %57 = sbr.rel (0) target = $region49
    $region48: #{vocalnet_forward.3} parent=1 // pred_region
      %s59 = ssub.s32 16, 16
      %60 = vsyncadd [#allocation9], %s59
      %s62 = sshll.u32 [#allocation8], 4
      %s63 = int_to_ptr.vmem [resolvable:$true] %s62
      %65 = dma.hbm_to_vmem [thread:$0]  %s11, 16, %s63, [#allocation9]
    $region49: #{vocalnet_forward.3} parent=1 // pred_fallthru
      _
    // Predicated region
    $region50: #{vocalnet_forward.3} parent=1 // pred_check
      _
    $region51: #{vocalnet_forward.3} parent=1 // pred_check_branch
      %67 = sbr.rel (0) target = $region53
    $region52: #{vocalnet_forward.3} parent=1 // pred_region
      %68 = dma.done [#allocation9], 16
    $region53: #{vocalnet_forward.3} parent=1 // pred_fallthru
      _
    %s69 = ssub.s32 0, 0
    %s70 = smul.u32 8, %s69
    %p71 = scmp.lt.s32.totalorder %s70, 7
    %s72 = scalar_select %p71, %s70, 7
    %s73 = scalar_lea.vmem %s1, %s72
    %s74 = ssub.s32 0, 0
    %s75 = smul.u32 8, %s74
    %p76 = scmp.lt.s32.totalorder %s75, 7
    %s77 = scalar_select %p76, %s75, 7
    %s78 = scalar_lea.vmem %s3, %s77
    %s79 = ssub.s32 0, 0
    %s80 = smul.u32 8, %s79
    %p81 = scmp.lt.s32.totalorder %s80, 7
    %s82 = scalar_select %p81, %s80, 7
    %s83 = scalar_lea.vmem %s13, %s82
    %s84 = ssub.s32 0, 0
    %s85 = smul.u32 8, %s84
    %p86 = scmp.lt.s32.totalorder %s85, 7
    %s87 = scalar_select %p86, %s85, 7
    %s88 = scalar_lea.vmem %s1, %s87
    %s89 = ssub.s32 0, 0
    %s90 = smul.u32 8, %s89
    %s91 = ssub.s32 0, 0
    %s92 = smul.u32 8, %s91
    %p93 = scmp.lt.s32.totalorder %s92, 7
    %s94 = scalar_select %p93, %s92, 7
    %s95 = scalar_lea.vmem %s3, %s94
    %s96 = ssub.s32 0, 0
    %s97 = smul.u32 8, %s96
    %s98 = ssub.s32 0, 0
    %s99 = smul.u32 8, %s98
    %p100 = scmp.lt.s32.totalorder %s99, 7
    %s101 = scalar_select %p100, %s99, 7
    %s102 = scalar_lea.vmem %s13, %s101
    %s103 = ssub.s32 0, 0
    %s104 = smul.u32 8, %s103
    %p106 = scmp.eq.s32.totalorder 0, 0
    // Predicated region
    $region54: #{vocalnet_forward.3} parent=1 // pred_check
      %p107 = pneg %p106
    $region55: #{vocalnet_forward.3} parent=1 // pred_check_branch
      %109 = sbr.rel (%p107) target = $region57
    $region56: #{vocalnet_forward.3} parent=1 // pred_region
      %vm110 = vcmask 253952
      %111 = vst.msk [vmem:[#allocation2] sm:$0x1] %vm110, 0.0
      %112 = vst.msk [vmem:[#allocation3] sm:$0x1] %vm110, 0.0
      %113 = vst.msk [vmem:[#allocation4] sm:$0x1] %vm110, 0.0
      %114 = vst.msk [vmem:[#allocation5] sm:$0x1] %vm110, 0.0
    $region57: #{vocalnet_forward.3} parent=1 // pred_fallthru
      _
    %v115 = vld [vmem:[%s10] sm:$0x1]
    %v116 = vld [vmem:[#allocation8] sm:$0x1]
    %v117 = vld [vmem:[%s0] sm:$0x1]
    %v118 = vld [vmem:[%s0 + $0x1] sm:$0x1]
    %v119 = vld [vmem:[%s0 + $0x2] sm:$0x1]
    %v120 = vld [vmem:[%s0 + $0x3] sm:$0x1]
    %v121 = vld [vmem:[%s0 + $0x4] sm:$0x1]
    %v122 = vld [vmem:[%s0 + $0x5] sm:$0x1]
    %v123 = vld [vmem:[%s0 + $0x6] sm:$0x1]
    %v124 = vld [vmem:[%s0 + $0x7] sm:$0x1]
    %v125 = vld [vmem:[%s88] sm:$0x1]
    %v126 = vld [vmem:[%s88 + $0x1] sm:$0x1]
    %v127 = vld [vmem:[%s88 + $0x2] sm:$0x1]
    %v128 = vld [vmem:[%s88 + $0x3] sm:$0x1]
    %v129 = vld [vmem:[%s88 + $0x4] sm:$0x1]
    %v130 = vld [vmem:[%s88 + $0x5] sm:$0x1]
    %v131 = vld [vmem:[%s88 + $0x6] sm:$0x1]
    %v132 = vld [vmem:[%s88 + $0x7] sm:$0x1]
    %v133 = vld [vmem:[%s4] sm:$0xf]
    %v134 = vld [vmem:[%s4 + $0x4] sm:$0xf]
    %v135 = vld [vmem:[%s4 + $0x8] sm:$0xf]
    %v136 = vld [vmem:[%s4 + $0xc] sm:$0xf]
    %v146 = vunpack.c.l.s4 1966171168
    %v147 = vunpack.c.0.s8 %v146
    %v148 = vlaneseq
    %v149 = vshrl.u32 %v148, 7
    %v150 = vsub.s32 %v147, %v149
    %v151 = vrot.slane %v117, %v150
    %v153 = vunpack.c.l.s4 1966171168
    %v154 = vunpack.c.0.s8 %v153
    %v155 = vlaneseq
    %v156 = vshrl.u32 %v155, 7
    %v157 = vsub.s32 %v154, %v156
    %v158 = vrot.slane %v151, %v157
    %v160 = vunpack.c.l.s4 1966171168
    %v161 = vunpack.c.0.s8 %v160
    %v162 = vlaneseq
    %v163 = vshrl.u32 %v162, 7
    %v164 = vsub.s32 %v161, %v163
    %v165 = vrot.slane %v118, %v164
    %v167 = vunpack.c.l.s4 1966171168
    %v168 = vunpack.c.0.s8 %v167
    %v169 = vlaneseq
    %v170 = vshrl.u32 %v169, 7
    %v171 = vsub.s32 %v168, %v170
    %v172 = vrot.slane %v165, %v171
    %v174 = vunpack.c.l.s4 1966171168
    %v175 = vunpack.c.0.s8 %v174
    %v176 = vlaneseq
    %v177 = vshrl.u32 %v176, 7
    %v178 = vsub.s32 %v175, %v177
    %v179 = vrot.slane %v119, %v178
    %v181 = vunpack.c.l.s4 1966171168
    %v182 = vunpack.c.0.s8 %v181
    %v183 = vlaneseq
    %v184 = vshrl.u32 %v183, 7
    %v185 = vsub.s32 %v182, %v184
    %v186 = vrot.slane %v179, %v185
    %v188 = vunpack.c.l.s4 1966171168
    %v189 = vunpack.c.0.s8 %v188
    %v190 = vlaneseq
    %v191 = vshrl.u32 %v190, 7
    %v192 = vsub.s32 %v189, %v191
    %v193 = vrot.slane %v120, %v192
    %v195 = vunpack.c.l.s4 1966171168
    %v196 = vunpack.c.0.s8 %v195
    %v197 = vlaneseq
    %v198 = vshrl.u32 %v197, 7
    %v199 = vsub.s32 %v196, %v198
    %v200 = vrot.slane %v193, %v199
    %v202 = vunpack.c.l.s4 1966171168
    %v203 = vunpack.c.0.s8 %v202
    %v204 = vlaneseq
    %v205 = vshrl.u32 %v204, 7
    %v206 = vsub.s32 %v203, %v205
    %v207 = vrot.slane %v121, %v206
    %v209 = vunpack.c.l.s4 1966171168
    %v210 = vunpack.c.0.s8 %v209
    %v211 = vlaneseq
    %v212 = vshrl.u32 %v211, 7
    %v213 = vsub.s32 %v210, %v212
    %v214 = vrot.slane %v207, %v213
    %v216 = vunpack.c.l.s4 1966171168
    %v217 = vunpack.c.0.s8 %v216
    %v218 = vlaneseq
    %v219 = vshrl.u32 %v218, 7
    %v220 = vsub.s32 %v217, %v219
    %v221 = vrot.slane %v122, %v220
    %v223 = vunpack.c.l.s4 1966171168
    %v224 = vunpack.c.0.s8 %v223
    %v225 = vlaneseq
    %v226 = vshrl.u32 %v225, 7
    %v227 = vsub.s32 %v224, %v226
    %v228 = vrot.slane %v221, %v227
    %v230 = vunpack.c.l.s4 1966171168
    %v231 = vunpack.c.0.s8 %v230
    %v232 = vlaneseq
    %v233 = vshrl.u32 %v232, 7
    %v234 = vsub.s32 %v231, %v233
    %v235 = vrot.slane %v123, %v234
    %v237 = vunpack.c.l.s4 1966171168
    %v238 = vunpack.c.0.s8 %v237
    %v239 = vlaneseq
    %v240 = vshrl.u32 %v239, 7
    %v241 = vsub.s32 %v238, %v240
    %v242 = vrot.slane %v235, %v241
    %v244 = vunpack.c.l.s4 1966171168
    %v245 = vunpack.c.0.s8 %v244
    %v246 = vlaneseq
    %v247 = vshrl.u32 %v246, 7
    %v248 = vsub.s32 %v245, %v247
    %v249 = vrot.slane %v124, %v248
    %v251 = vunpack.c.l.s4 1966171168
    %v252 = vunpack.c.0.s8 %v251
    %v253 = vlaneseq
    %v254 = vshrl.u32 %v253, 7
    %v255 = vsub.s32 %v252, %v254
    %v256 = vrot.slane %v249, %v255
    %v257 = vunpack.c.l.b16 %v158
    %v258 = vunpack.c.l.b16 %v172
    %v259 = vunpack.c.l.b16 %v186
    %v260 = vunpack.c.l.b16 %v200
    %v261 = vunpack.c.l.b16 %v214
    %v262 = vunpack.c.l.b16 %v228
    %v263 = vunpack.c.l.b16 %v242
    %v264 = vunpack.c.l.b16 %v256
    %v265 = vrot.slane %v258, 7
    %vm266 = vcmask 1041409
    %v267 = vsel %vm266, %v265, %v257
    %v268 = vrot.slane %v259, 6
    %vm269 = vcmask 1042434
    %v270 = vsel %vm269, %v268, %v267
    %v271 = vrot.slane %v260, 5
    %vm272 = vcmask 1043459
    %v273 = vsel %vm272, %v271, %v270
    %v274 = vrot.slane %v261, 4
    %vm275 = vcmask 1044484
    %v276 = vsel %vm275, %v274, %v273
    %v277 = vrot.slane %v262, 3
    %vm278 = vcmask 1045509
    %v279 = vsel %vm278, %v277, %v276
    %v280 = vrot.slane %v263, 2
    %vm281 = vcmask 1046534
    %v282 = vsel %vm281, %v280, %v279
    %v283 = vrot.slane %v264, 1
    %vm284 = vcmask 1047559
    %v285 = vsel %vm284, %v283, %v282
    %v286 = vpack.c.b16 %v285, %v285
    %v291 = vunpack.c.l.b16 %v133
    %v292 = vunpack.c.l.b16 %v134
    %v293 = vunpack.c.l.b16 %v135
    %v294 = vunpack.c.l.b16 %v136
    %v295 = vpack.c.b16 %v292, %v291
    %v296 = vpack.c.b16 %v294, %v293
    %vm299 = vcmask 261120
    %v301 = vsel %vm299, %v286, 0
    %303 = vmatprep.subr.bf16.mxu0 0
    %304 = vmatpush1.bf16.msra.mxu0 %v295
    %305 = vmatprep.subr.bf16.mxu0 0
    %306 = vmatpush1.bf16.msra.mxu0 %v296
    %307 = vmatprep.subr.bf16.mxu0 0
    %308 = vmatpush1.bf16.msra.mxu0 0
    %309 = vmatprep.subr.bf16.mxu0 0
    %310 = vmatpush1.bf16.msra.mxu0 0
    %311 = vmatprep.subr.bf16.mxu0 0
    %312 = vmatpush1.bf16.msra.mxu0 0
    %313 = vmatprep.subr.bf16.mxu0 0
    %314 = vmatpush1.bf16.msra.mxu0 0
    %315 = vmatprep.subr.bf16.mxu0 0
    %316 = vmatpush1.bf16.msra.mxu0 0
    %317 = vmatprep.subr.bf16.mxu0 0
    %318 = vmatpush1.bf16.msra.mxu0 0
    %319 = vmatprep.subr.bf16.mxu0 0
    %320 = vmatpush1.bf16.msra.mxu0 0
    %321 = vmatprep.subr.bf16.mxu0 0
    %322 = vmatpush1.bf16.msra.mxu0 0
    %323 = vmatprep.subr.bf16.mxu0 0
    %324 = vmatpush1.bf16.msra.mxu0 0
    %325 = vmatprep.subr.bf16.mxu0 0
    %326 = vmatpush1.bf16.msra.mxu0 0
    %327 = vmatprep.subr.bf16.mxu0 0
    %328 = vmatpush1.bf16.msra.mxu0 0
    %329 = vmatprep.subr.bf16.mxu0 0
    %330 = vmatpush1.bf16.msra.mxu0 0
    %331 = vmatprep.subr.bf16.mxu0 0
    %332 = vmatpush1.bf16.msra.mxu0 0
    %333 = vmatprep.subr.bf16.mxu0 0
    %334 = vmatpush1.bf16.msra.mxu0 0
    %335 = vmatprep.mubr.bf16.mxu0 0
    %336 = vmatmul.mubr.bf16.gmra.mrb[0].mxu0 %v301
    %v337 = vpop.f32.mrb[0].mxu0
    %v338 = vadd.f32 0.0, %v337
    %v339 = vpop.f32.mrb[0].mxu0
    %v340 = vpop.f32.mrb[0].mxu0
    %v341 = vpop.f32.mrb[0].mxu0
    %342 = vdwg.mxu0
    %v344 = vlaneseq
    %v345 = vshrl.u32 %v344, 7
    %v346 = vsub.s32 0, %v345
    %v347 = vrot.slane %v115, %v346
    %v349 = vadd.f32 %v347, %v338
    %v350 = vld [vmem:[%s5] sm:$0xf]
    %v351 = vld [vmem:[%s5 + $0x4] sm:$0xf]
    %v352 = vld [vmem:[%s5 + $0x8] sm:$0xf]
    %v353 = vld [vmem:[%s5 + $0xc] sm:$0xf]
    %v363 = vunpack.c.l.s4 1966171168
    %v364 = vunpack.c.0.s8 %v363
    %v365 = vlaneseq
    %v366 = vshrl.u32 %v365, 7
    %v367 = vsub.s32 %v364, %v366
    %v368 = vrot.slane %v125, %v367
    %v370 = vunpack.c.l.s4 1966171168
    %v371 = vunpack.c.0.s8 %v370
    %v372 = vlaneseq
    %v373 = vshrl.u32 %v372, 7
    %v374 = vsub.s32 %v371, %v373
    %v375 = vrot.slane %v368, %v374
    %v377 = vunpack.c.l.s4 1966171168
    %v378 = vunpack.c.0.s8 %v377
    %v379 = vlaneseq
    %v380 = vshrl.u32 %v379, 7
    %v381 = vsub.s32 %v378, %v380
    %v382 = vrot.slane %v126, %v381
    %v384 = vunpack.c.l.s4 1966171168
    %v385 = vunpack.c.0.s8 %v384
    %v386 = vlaneseq
    %v387 = vshrl.u32 %v386, 7
    %v388 = vsub.s32 %v385, %v387
    %v389 = vrot.slane %v382, %v388
    %v391 = vunpack.c.l.s4 1966171168
    %v392 = vunpack.c.0.s8 %v391
    %v393 = vlaneseq
    %v394 = vshrl.u32 %v393, 7
    %v395 = vsub.s32 %v392, %v394
    %v396 = vrot.slane %v127, %v395
    %v398 = vunpack.c.l.s4 1966171168
    %v399 = vunpack.c.0.s8 %v398
    %v400 = vlaneseq
    %v401 = vshrl.u32 %v400, 7
    %v402 = vsub.s32 %v399, %v401
    %v403 = vrot.slane %v396, %v402
    %v405 = vunpack.c.l.s4 1966171168
    %v406 = vunpack.c.0.s8 %v405
    %v407 = vlaneseq
    %v408 = vshrl.u32 %v407, 7
    %v409 = vsub.s32 %v406, %v408
    %v410 = vrot.slane %v128, %v409
    %v412 = vunpack.c.l.s4 1966171168
    %v413 = vunpack.c.0.s8 %v412
    %v414 = vlaneseq
    %v415 = vshrl.u32 %v414, 7
    %v416 = vsub.s32 %v413, %v415
    %v417 = vrot.slane %v410, %v416
    %v419 = vunpack.c.l.s4 1966171168
    %v420 = vunpack.c.0.s8 %v419
    %v421 = vlaneseq
    %v422 = vshrl.u32 %v421, 7
    %v423 = vsub.s32 %v420, %v422
    %v424 = vrot.slane %v129, %v423
    %v426 = vunpack.c.l.s4 1966171168
    %v427 = vunpack.c.0.s8 %v426
    %v428 = vlaneseq
    %v429 = vshrl.u32 %v428, 7
    %v430 = vsub.s32 %v427, %v429
    %v431 = vrot.slane %v424, %v430
    %v433 = vunpack.c.l.s4 1966171168
    %v434 = vunpack.c.0.s8 %v433
    %v435 = vlaneseq
    %v436 = vshrl.u32 %v435, 7
    %v437 = vsub.s32 %v434, %v436
    %v438 = vrot.slane %v130, %v437
    %v440 = vunpack.c.l.s4 1966171168
    %v441 = vunpack.c.0.s8 %v440
    %v442 = vlaneseq
    %v443 = vshrl.u32 %v442, 7
    %v444 = vsub.s32 %v441, %v443
    %v445 = vrot.slane %v438, %v444
    %v447 = vunpack.c.l.s4 1966171168
    %v448 = vunpack.c.0.s8 %v447
    %v449 = vlaneseq
    %v450 = vshrl.u32 %v449, 7
    %v451 = vsub.s32 %v448, %v450
    %v452 = vrot.slane %v131, %v451
    %v454 = vunpack.c.l.s4 1966171168
    %v455 = vunpack.c.0.s8 %v454
    %v456 = vlaneseq
    %v457 = vshrl.u32 %v456, 7
    %v458 = vsub.s32 %v455, %v457
    %v459 = vrot.slane %v452, %v458
    %v461 = vunpack.c.l.s4 1966171168
    %v462 = vunpack.c.0.s8 %v461
    %v463 = vlaneseq
    %v464 = vshrl.u32 %v463, 7
    %v465 = vsub.s32 %v462, %v464
    %v466 = vrot.slane %v132, %v465
    %v468 = vunpack.c.l.s4 1966171168
    %v469 = vunpack.c.0.s8 %v468
    %v470 = vlaneseq
    %v471 = vshrl.u32 %v470, 7
    %v472 = vsub.s32 %v469, %v471
    %v473 = vrot.slane %v466, %v472
    %v474 = vunpack.c.l.b16 %v375
    %v475 = vunpack.c.l.b16 %v389
    %v476 = vunpack.c.l.b16 %v403
    %v477 = vunpack.c.l.b16 %v417
    %v478 = vunpack.c.l.b16 %v431
    %v479 = vunpack.c.l.b16 %v445
    %v480 = vunpack.c.l.b16 %v459
    %v481 = vunpack.c.l.b16 %v473
    %v482 = vrot.slane %v475, 7
    %v483 = vsel %vm266, %v482, %v474
    %v484 = vrot.slane %v476, 6
    %v485 = vsel %vm269, %v484, %v483
    %v486 = vrot.slane %v477, 5
    %v487 = vsel %vm272, %v486, %v485
    %v488 = vrot.slane %v478, 4
    %v489 = vsel %vm275, %v488, %v487
    %v490 = vrot.slane %v479, 3
    %v491 = vsel %vm278, %v490, %v489
    %v492 = vrot.slane %v480, 2
    %v493 = vsel %vm281, %v492, %v491
    %v494 = vrot.slane %v481, 1
    %v495 = vsel %vm284, %v494, %v493
    %v496 = vpack.c.b16 %v495, %v495
    %v501 = vunpack.c.l.b16 %v350
    %v502 = vunpack.c.l.b16 %v351
    %v503 = vunpack.c.l.b16 %v352
    %v504 = vunpack.c.l.b16 %v353
    %v505 = vpack.c.b16 %v502, %v501
    %v506 = vpack.c.b16 %v504, %v503
    %v510 = vsel %vm299, %v496, 0
    %512 = vmatprep.subr.bf16.mxu0 0
    %513 = vmatpush1.bf16.msra.mxu0 %v505
    %514 = vmatprep.subr.bf16.mxu0 0
    %515 = vmatpush1.bf16.msra.mxu0 %v506
    %516 = vmatprep.subr.bf16.mxu0 0
    %517 = vmatpush1.bf16.msra.mxu0 0
    %518 = vmatprep.subr.bf16.mxu0 0
    %519 = vmatpush1.bf16.msra.mxu0 0
    %520 = vmatprep.subr.bf16.mxu0 0
    %521 = vmatpush1.bf16.msra.mxu0 0
    %522 = vmatprep.subr.bf16.mxu0 0
    %523 = vmatpush1.bf16.msra.mxu0 0
    %524 = vmatprep.subr.bf16.mxu0 0
    %525 = vmatpush1.bf16.msra.mxu0 0
    %526 = vmatprep.subr.bf16.mxu0 0
    %527 = vmatpush1.bf16.msra.mxu0 0
    %528 = vmatprep.subr.bf16.mxu0 0
    %529 = vmatpush1.bf16.msra.mxu0 0
    %530 = vmatprep.subr.bf16.mxu0 0
    %531 = vmatpush1.bf16.msra.mxu0 0
    %532 = vmatprep.subr.bf16.mxu0 0
    %533 = vmatpush1.bf16.msra.mxu0 0
    %534 = vmatprep.subr.bf16.mxu0 0
    %535 = vmatpush1.bf16.msra.mxu0 0
    %536 = vmatprep.subr.bf16.mxu0 0
    %537 = vmatpush1.bf16.msra.mxu0 0
    %538 = vmatprep.subr.bf16.mxu0 0
    %539 = vmatpush1.bf16.msra.mxu0 0
    %540 = vmatprep.subr.bf16.mxu0 0
    %541 = vmatpush1.bf16.msra.mxu0 0
    %542 = vmatprep.subr.bf16.mxu0 0
    %543 = vmatpush1.bf16.msra.mxu0 0
    %544 = vmatprep.mubr.bf16.mxu0 0
    %545 = vmatmul.mubr.bf16.gmra.mrb[0].mxu0 %v510
    %v546 = vpop.f32.mrb[0].mxu0
    %v547 = vadd.f32 0.0, %v546
    %v548 = vpop.f32.mrb[0].mxu0
    %v549 = vpop.f32.mrb[0].mxu0
    %v550 = vpop.f32.mrb[0].mxu0
    %551 = vdwg.mxu0
    %v553 = vlaneseq
    %v554 = vshrl.u32 %v553, 7
    %v555 = vsub.s32 0, %v554
    %v556 = vrot.slane %v116, %v555
    %v558 = vadd.f32 %v556, %v547
    %v559 = vld [vmem:[%s2] sm:$0x1]
    %v560 = vld [vmem:[%s2 + $0x1] sm:$0x1]
    %v561 = vld [vmem:[%s2 + $0x2] sm:$0x1]
    %v562 = vld [vmem:[%s2 + $0x3] sm:$0x1]
    %v563 = vld [vmem:[%s2 + $0x4] sm:$0x1]
    %v564 = vld [vmem:[%s2 + $0x5] sm:$0x1]
    %v565 = vld [vmem:[%s2 + $0x6] sm:$0x1]
    %v566 = vld [vmem:[%s2 + $0x7] sm:$0x1]
    %v567 = vld [vmem:[%s95] sm:$0x1]
    %v568 = vld [vmem:[%s95 + $0x1] sm:$0x1]
    %v569 = vld [vmem:[%s95 + $0x2] sm:$0x1]
    %v570 = vld [vmem:[%s95 + $0x3] sm:$0x1]
    %v571 = vld [vmem:[%s95 + $0x4] sm:$0x1]
    %v572 = vld [vmem:[%s95 + $0x5] sm:$0x1]
    %v573 = vld [vmem:[%s95 + $0x6] sm:$0x1]
    %v574 = vld [vmem:[%s95 + $0x7] sm:$0x1]
    %v575 = vld [vmem:[%s6] sm:$0xf]
    %v576 = vld [vmem:[%s6 + $0x4] sm:$0xf]
    %v577 = vld [vmem:[%s6 + $0x8] sm:$0xf]
    %v578 = vld [vmem:[%s6 + $0xc] sm:$0xf]
    %v588 = vunpack.c.l.s4 1966171168
    %v589 = vunpack.c.0.s8 %v588
    %v590 = vlaneseq
    %v591 = vshrl.u32 %v590, 7
    %v592 = vsub.s32 %v589, %v591
    %v593 = vrot.slane %v559, %v592
    %v595 = vunpack.c.l.s4 1966171168
    %v596 = vunpack.c.0.s8 %v595
    %v597 = vlaneseq
    %v598 = vshrl.u32 %v597, 7
    %v599 = vsub.s32 %v596, %v598
    %v600 = vrot.slane %v593, %v599
    %v602 = vunpack.c.l.s4 1966171168
    %v603 = vunpack.c.0.s8 %v602
    %v604 = vlaneseq
    %v605 = vshrl.u32 %v604, 7
    %v606 = vsub.s32 %v603, %v605
    %v607 = vrot.slane %v560, %v606
    %v609 = vunpack.c.l.s4 1966171168
    %v610 = vunpack.c.0.s8 %v609
    %v611 = vlaneseq
    %v612 = vshrl.u32 %v611, 7
    %v613 = vsub.s32 %v610, %v612
    %v614 = vrot.slane %v607, %v613
    %v616 = vunpack.c.l.s4 1966171168
    %v617 = vunpack.c.0.s8 %v616
    %v618 = vlaneseq
    %v619 = vshrl.u32 %v618, 7
    %v620 = vsub.s32 %v617, %v619
    %v621 = vrot.slane %v561, %v620
    %v623 = vunpack.c.l.s4 1966171168
    %v624 = vunpack.c.0.s8 %v623
    %v625 = vlaneseq
    %v626 = vshrl.u32 %v625, 7
    %v627 = vsub.s32 %v624, %v626
    %v628 = vrot.slane %v621, %v627
    %v630 = vunpack.c.l.s4 1966171168
    %v631 = vunpack.c.0.s8 %v630
    %v632 = vlaneseq
    %v633 = vshrl.u32 %v632, 7
    %v634 = vsub.s32 %v631, %v633
    %v635 = vrot.slane %v562, %v634
    %v637 = vunpack.c.l.s4 1966171168
    %v638 = vunpack.c.0.s8 %v637
    %v639 = vlaneseq
    %v640 = vshrl.u32 %v639, 7
    %v641 = vsub.s32 %v638, %v640
    %v642 = vrot.slane %v635, %v641
    %v644 = vunpack.c.l.s4 1966171168
    %v645 = vunpack.c.0.s8 %v644
    %v646 = vlaneseq
    %v647 = vshrl.u32 %v646, 7
    %v648 = vsub.s32 %v645, %v647
    %v649 = vrot.slane %v563, %v648
    %v651 = vunpack.c.l.s4 1966171168
    %v652 = vunpack.c.0.s8 %v651
    %v653 = vlaneseq
    %v654 = vshrl.u32 %v653, 7
    %v655 = vsub.s32 %v652, %v654
    %v656 = vrot.slane %v649, %v655
    %v658 = vunpack.c.l.s4 1966171168
    %v659 = vunpack.c.0.s8 %v658
    %v660 = vlaneseq
    %v661 = vshrl.u32 %v660, 7
    %v662 = vsub.s32 %v659, %v661
    %v663 = vrot.slane %v564, %v662
    %v665 = vunpack.c.l.s4 1966171168
    %v666 = vunpack.c.0.s8 %v665
    %v667 = vlaneseq
    %v668 = vshrl.u32 %v667, 7
    %v669 = vsub.s32 %v666, %v668
    %v670 = vrot.slane %v663, %v669
    %v672 = vunpack.c.l.s4 1966171168
    %v673 = vunpack.c.0.s8 %v672
    %v674 = vlaneseq
    %v675 = vshrl.u32 %v674, 7
    %v676 = vsub.s32 %v673, %v675
    %v677 = vrot.slane %v565, %v676
    %v679 = vunpack.c.l.s4 1966171168
    %v680 = vunpack.c.0.s8 %v679
    %v681 = vlaneseq
    %v682 = vshrl.u32 %v681, 7
    %v683 = vsub.s32 %v680, %v682
    %v684 = vrot.slane %v677, %v683
    %v686 = vunpack.c.l.s4 1966171168
    %v687 = vunpack.c.0.s8 %v686
    %v688 = vlaneseq
    %v689 = vshrl.u32 %v688, 7
    %v690 = vsub.s32 %v687, %v689
    %v691 = vrot.slane %v566, %v690
    %v693 = vunpack.c.l.s4 1966171168
    %v694 = vunpack.c.0.s8 %v693
    %v695 = vlaneseq
    %v696 = vshrl.u32 %v695, 7
    %v697 = vsub.s32 %v694, %v696
    %v698 = vrot.slane %v691, %v697
    %v699 = vunpack.c.l.b16 %v600
    %v700 = vunpack.c.l.b16 %v614
    %v701 = vunpack.c.l.b16 %v628
    %v702 = vunpack.c.l.b16 %v642
    %v703 = vunpack.c.l.b16 %v656
    %v704 = vunpack.c.l.b16 %v670
    %v705 = vunpack.c.l.b16 %v684
    %v706 = vunpack.c.l.b16 %v698
    %v707 = vrot.slane %v700, 7
    %v708 = vsel %vm266, %v707, %v699
    %v709 = vrot.slane %v701, 6
    %v710 = vsel %vm269, %v709, %v708
    %v711 = vrot.slane %v702, 5
    %v712 = vsel %vm272, %v711, %v710
    %v713 = vrot.slane %v703, 4
    %v714 = vsel %vm275, %v713, %v712
    %v715 = vrot.slane %v704, 3
    %v716 = vsel %vm278, %v715, %v714
    %v717 = vrot.slane %v705, 2
    %v718 = vsel %vm281, %v717, %v716
    %v719 = vrot.slane %v706, 1
    %v720 = vsel %vm284, %v719, %v718
    %v721 = vpack.c.b16 %v720, %v720
    %v726 = vunpack.c.l.b16 %v575
    %v727 = vunpack.c.l.b16 %v576
    %v728 = vunpack.c.l.b16 %v577
    %v729 = vunpack.c.l.b16 %v578
    %v730 = vpack.c.b16 %v727, %v726
    %v731 = vpack.c.b16 %v729, %v728
    %v735 = vsel %vm299, %v721, 0
    %737 = vmatprep.subr.bf16.mxu0 0
    %738 = vmatpush1.bf16.msra.mxu0 %v730
    %739 = vmatprep.subr.bf16.mxu0 0
    %740 = vmatpush1.bf16.msra.mxu0 %v731
    %741 = vmatprep.subr.bf16.mxu0 0
    %742 = vmatpush1.bf16.msra.mxu0 0
    %743 = vmatprep.subr.bf16.mxu0 0
    %744 = vmatpush1.bf16.msra.mxu0 0
    %745 = vmatprep.subr.bf16.mxu0 0
    %746 = vmatpush1.bf16.msra.mxu0 0
    %747 = vmatprep.subr.bf16.mxu0 0
    %748 = vmatpush1.bf16.msra.mxu0 0
    %749 = vmatprep.subr.bf16.mxu0 0
    %750 = vmatpush1.bf16.msra.mxu0 0
    %751 = vmatprep.subr.bf16.mxu0 0
    %752 = vmatpush1.bf16.msra.mxu0 0
    %753 = vmatprep.subr.bf16.mxu0 0
    %754 = vmatpush1.bf16.msra.mxu0 0
    %755 = vmatprep.subr.bf16.mxu0 0
    %756 = vmatpush1.bf16.msra.mxu0 0
    %757 = vmatprep.subr.bf16.mxu0 0
    %758 = vmatpush1.bf16.msra.mxu0 0
    %759 = vmatprep.subr.bf16.mxu0 0
    %760 = vmatpush1.bf16.msra.mxu0 0
    %761 = vmatprep.subr.bf16.mxu0 0
    %762 = vmatpush1.bf16.msra.mxu0 0
    %763 = vmatprep.subr.bf16.mxu0 0
    %764 = vmatpush1.bf16.msra.mxu0 0
    %765 = vmatprep.subr.bf16.mxu0 0
    %766 = vmatpush1.bf16.msra.mxu0 0
    %767 = vmatprep.subr.bf16.mxu0 0
    %768 = vmatpush1.bf16.msra.mxu0 0
    %769 = vmatprep.mubr.bf16.mxu0 0
    %770 = vmatmul.mubr.bf16.gmra.mrb[0].mxu0 %v735
    %v771 = vpop.f32.mrb[0].mxu0
    %v772 = vadd.f32 0.0, %v771
    %v773 = vpop.f32.mrb[0].mxu0
    %v774 = vpop.f32.mrb[0].mxu0
    %v775 = vpop.f32.mrb[0].mxu0
    %776 = vdwg.mxu0
    %v777 = vadd.f32 %v349, %v772
    %v778 = vld [vmem:[%s7] sm:$0xf]
    %v779 = vld [vmem:[%s7 + $0x4] sm:$0xf]
    %v780 = vld [vmem:[%s7 + $0x8] sm:$0xf]
    %v781 = vld [vmem:[%s7 + $0xc] sm:$0xf]
    %v791 = vunpack.c.l.s4 1966171168
    %v792 = vunpack.c.0.s8 %v791
    %v793 = vlaneseq
    %v794 = vshrl.u32 %v793, 7
    %v795 = vsub.s32 %v792, %v794
    %v796 = vrot.slane %v567, %v795
    %v798 = vunpack.c.l.s4 1966171168
    %v799 = vunpack.c.0.s8 %v798
    %v800 = vlaneseq
    %v801 = vshrl.u32 %v800, 7
    %v802 = vsub.s32 %v799, %v801
    %v803 = vrot.slane %v796, %v802
    %v805 = vunpack.c.l.s4 1966171168
    %v806 = vunpack.c.0.s8 %v805
    %v807 = vlaneseq
    %v808 = vshrl.u32 %v807, 7
    %v809 = vsub.s32 %v806, %v808
    %v810 = vrot.slane %v568, %v809
    %v812 = vunpack.c.l.s4 1966171168
    %v813 = vunpack.c.0.s8 %v812
    %v814 = vlaneseq
    %v815 = vshrl.u32 %v814, 7
    %v816 = vsub.s32 %v813, %v815
    %v817 = vrot.slane %v810, %v816
    %v819 = vunpack.c.l.s4 1966171168
    %v820 = vunpack.c.0.s8 %v819
    %v821 = vlaneseq
    %v822 = vshrl.u32 %v821, 7
    %v823 = vsub.s32 %v820, %v822
    %v824 = vrot.slane %v569, %v823
    %v826 = vunpack.c.l.s4 1966171168
    %v827 = vunpack.c.0.s8 %v826
    %v828 = vlaneseq
    %v829 = vshrl.u32 %v828, 7
    %v830 = vsub.s32 %v827, %v829
    %v831 = vrot.slane %v824, %v830
    %v833 = vunpack.c.l.s4 1966171168
    %v834 = vunpack.c.0.s8 %v833
    %v835 = vlaneseq
    %v836 = vshrl.u32 %v835, 7
    %v837 = vsub.s32 %v834, %v836
    %v838 = vrot.slane %v570, %v837
    %v840 = vunpack.c.l.s4 1966171168
    %v841 = vunpack.c.0.s8 %v840
    %v842 = vlaneseq
    %v843 = vshrl.u32 %v842, 7
    %v844 = vsub.s32 %v841, %v843
    %v845 = vrot.slane %v838, %v844
    %v847 = vunpack.c.l.s4 1966171168
    %v848 = vunpack.c.0.s8 %v847
    %v849 = vlaneseq
    %v850 = vshrl.u32 %v849, 7
    %v851 = vsub.s32 %v848, %v850
    %v852 = vrot.slane %v571, %v851
    %v854 = vunpack.c.l.s4 1966171168
    %v855 = vunpack.c.0.s8 %v854
    %v856 = vlaneseq
    %v857 = vshrl.u32 %v856, 7
    %v858 = vsub.s32 %v855, %v857
    %v859 = vrot.slane %v852, %v858
    %v861 = vunpack.c.l.s4 1966171168
    %v862 = vunpack.c.0.s8 %v861
    %v863 = vlaneseq
    %v864 = vshrl.u32 %v863, 7
    %v865 = vsub.s32 %v862, %v864
    %v866 = vrot.slane %v572, %v865
    %v868 = vunpack.c.l.s4 1966171168
    %v869 = vunpack.c.0.s8 %v868
    %v870 = vlaneseq
    %v871 = vshrl.u32 %v870, 7
    %v872 = vsub.s32 %v869, %v871
    %v873 = vrot.slane %v866, %v872
    %v875 = vunpack.c.l.s4 1966171168
    %v876 = vunpack.c.0.s8 %v875
    %v877 = vlaneseq
    %v878 = vshrl.u32 %v877, 7
    %v879 = vsub.s32 %v876, %v878
    %v880 = vrot.slane %v573, %v879
    %v882 = vunpack.c.l.s4 1966171168
    %v883 = vunpack.c.0.s8 %v882
    %v884 = vlaneseq
    %v885 = vshrl.u32 %v884, 7
    %v886 = vsub.s32 %v883, %v885
    %v887 = vrot.slane %v880, %v886
    %v889 = vunpack.c.l.s4 1966171168
    %v890 = vunpack.c.0.s8 %v889
    %v891 = vlaneseq
    %v892 = vshrl.u32 %v891, 7
    %v893 = vsub.s32 %v890, %v892
    %v894 = vrot.slane %v574, %v893
    %v896 = vunpack.c.l.s4 1966171168
    %v897 = vunpack.c.0.s8 %v896
    %v898 = vlaneseq
    %v899 = vshrl.u32 %v898, 7
    %v900 = vsub.s32 %v897, %v899
    %v901 = vrot.slane %v894, %v900
    %v902 = vunpack.c.l.b16 %v803
    %v903 = vunpack.c.l.b16 %v817
    %v904 = vunpack.c.l.b16 %v831
    %v905 = vunpack.c.l.b16 %v845
    %v906 = vunpack.c.l.b16 %v859
    %v907 = vunpack.c.l.b16 %v873
    %v908 = vunpack.c.l.b16 %v887
    %v909 = vunpack.c.l.b16 %v901
    %v910 = vrot.slane %v903, 7
    %v911 = vsel %vm266, %v910, %v902
    %v912 = vrot.slane %v904, 6
    %v913 = vsel %vm269, %v912, %v911
    %v914 = vrot.slane %v905, 5
    %v915 = vsel %vm272, %v914, %v913
    %v916 = vrot.slane %v906, 4
    %v917 = vsel %vm275, %v916, %v915
    %v918 = vrot.slane %v907, 3
    %v919 = vsel %vm278, %v918, %v917
    %v920 = vrot.slane %v908, 2
    %v921 = vsel %vm281, %v920, %v919
    %v922 = vrot.slane %v909, 1
    %v923 = vsel %vm284, %v922, %v921
    %v924 = vpack.c.b16 %v923, %v923
    %v929 = vunpack.c.l.b16 %v778
    %v930 = vunpack.c.l.b16 %v779
    %v931 = vunpack.c.l.b16 %v780
    %v932 = vunpack.c.l.b16 %v781
    %v933 = vpack.c.b16 %v930, %v929
    %v934 = vpack.c.b16 %v932, %v931
    %v938 = vsel %vm299, %v924, 0
    %940 = vmatprep.subr.bf16.mxu0 0
    %941 = vmatpush1.bf16.msra.mxu0 %v933
    %942 = vmatprep.subr.bf16.mxu0 0
    %943 = vmatpush1.bf16.msra.mxu0 %v934
    %944 = vmatprep.subr.bf16.mxu0 0
    %945 = vmatpush1.bf16.msra.mxu0 0
    %946 = vmatprep.subr.bf16.mxu0 0
    %947 = vmatpush1.bf16.msra.mxu0 0
    %948 = vmatprep.subr.bf16.mxu0 0
    %949 = vmatpush1.bf16.msra.mxu0 0
    %950 = vmatprep.subr.bf16.mxu0 0
    %951 = vmatpush1.bf16.msra.mxu0 0
    %952 = vmatprep.subr.bf16.mxu0 0
    %953 = vmatpush1.bf16.msra.mxu0 0
    %954 = vmatprep.subr.bf16.mxu0 0
    %955 = vmatpush1.bf16.msra.mxu0 0
    %956 = vmatprep.subr.bf16.mxu0 0
    %957 = vmatpush1.bf16.msra.mxu0 0
    %958 = vmatprep.subr.bf16.mxu0 0
    %959 = vmatpush1.bf16.msra.mxu0 0
    %960 = vmatprep.subr.bf16.mxu0 0
    %961 = vmatpush1.bf16.msra.mxu0 0
    %962 = vmatprep.subr.bf16.mxu0 0
    %963 = vmatpush1.bf16.msra.mxu0 0
    %964 = vmatprep.subr.bf16.mxu0 0
    %965 = vmatpush1.bf16.msra.mxu0 0
    %966 = vmatprep.subr.bf16.mxu0 0
    %967 = vmatpush1.bf16.msra.mxu0 0
    %968 = vmatprep.subr.bf16.mxu0 0
    %969 = vmatpush1.bf16.msra.mxu0 0
    %970 = vmatprep.subr.bf16.mxu0 0
    %971 = vmatpush1.bf16.msra.mxu0 0
    %972 = vmatprep.mubr.bf16.mxu0 0
    %973 = vmatmul.mubr.bf16.gmra.mrb[0].mxu0 %v938
    %v974 = vpop.f32.mrb[0].mxu0
    %v975 = vadd.f32 0.0, %v974
    %v976 = vpop.f32.mrb[0].mxu0
    %v977 = vpop.f32.mrb[0].mxu0
    %v978 = vpop.f32.mrb[0].mxu0
    %979 = vdwg.mxu0
    %v980 = vadd.f32 %v558, %v975
    %v982 = vcombine.high %v777, %v777
    %v984 = vunpack.c.l.s4 1966171168
    %v985 = vunpack.c.0.s8 %v984
    %v986 = vlaneseq
    %v987 = vshrl.u32 %v986, 7
    %v988 = vsub.s32 %v985, %v987
    %v989 = vrot.slane %v777, %v988
    %v991 = vunpack.c.l.s4 1966171168
    %v992 = vunpack.c.0.s8 %v991
    %v993 = vlaneseq
    %v994 = vshrl.u32 %v993, 7
    %v995 = vsub.s32 %v992, %v994
    %v996 = vrot.slane %v982, %v995
    %v997 = vcombine.high %v989, %v989
    %v998 = vcombine.high %v996, %v996
    %v1000 = vunpack.c.l.s4 1966171168
    %v1001 = vunpack.c.0.s8 %v1000
    %v1002 = vlaneseq
    %v1003 = vshrl.u32 %v1002, 7
    %v1004 = vsub.s32 %v1001, %v1003
    %v1005 = vrot.slane %v989, %v1004
    %v1007 = vunpack.c.l.s4 1966171168
    %v1008 = vunpack.c.0.s8 %v1007
    %v1009 = vlaneseq
    %v1010 = vshrl.u32 %v1009, 7
    %v1011 = vsub.s32 %v1008, %v1010
    %v1012 = vrot.slane %v996, %v1011
    %v1014 = vunpack.c.l.s4 1966171168
    %v1015 = vunpack.c.0.s8 %v1014
    %v1016 = vlaneseq
    %v1017 = vshrl.u32 %v1016, 7
    %v1018 = vsub.s32 %v1015, %v1017
    %v1019 = vrot.slane %v997, %v1018
    %v1021 = vunpack.c.l.s4 1966171168
    %v1022 = vunpack.c.0.s8 %v1021
    %v1023 = vlaneseq
    %v1024 = vshrl.u32 %v1023, 7
    %v1025 = vsub.s32 %v1022, %v1024
    %v1026 = vrot.slane %v998, %v1025
    %v1027 = vcombine.high %v1005, %v1005
    %v1028 = vcombine.high %v1012, %v1012
    %v1029 = vcombine.high %v1019, %v1019
    %v1030 = vcombine.high %v1026, %v1026
    %1039 = vst [vmem:[#allocation6] sm:$0x1] %v1005
    %1040 = vst [vmem:[#allocation6 + $0x1] sm:$0x1] %v1019
    %1041 = vst [vmem:[#allocation6 + $0x2] sm:$0x1] %v1027
    %1042 = vst [vmem:[#allocation6 + $0x3] sm:$0x1] %v1029
    %1043 = vst [vmem:[#allocation6 + $0x4] sm:$0x1] %v1012
    %1044 = vst [vmem:[#allocation6 + $0x5] sm:$0x1] %v1026
    %1045 = vst [vmem:[#allocation6 + $0x6] sm:$0x1] %v1028
    %1046 = vst [vmem:[#allocation6 + $0x7] sm:$0x1] %v1030
    %v1048 = vcombine.high %v980, %v980
    %v1050 = vunpack.c.l.s4 1966171168
    %v1051 = vunpack.c.0.s8 %v1050
    %v1052 = vlaneseq
    %v1053 = vshrl.u32 %v1052, 7
    %v1054 = vsub.s32 %v1051, %v1053
    %v1055 = vrot.slane %v980, %v1054
    %v1057 = vunpack.c.l.s4 1966171168
    %v1058 = vunpack.c.0.s8 %v1057
    %v1059 = vlaneseq
    %v1060 = vshrl.u32 %v1059, 7
    %v1061 = vsub.s32 %v1058, %v1060
    %v1062 = vrot.slane %v1048, %v1061
    %v1063 = vcombine.high %v1055, %v1055
    %v1064 = vcombine.high %v1062, %v1062
    %v1066 = vunpack.c.l.s4 1966171168
    %v1067 = vunpack.c.0.s8 %v1066
    %v1068 = vlaneseq
    %v1069 = vshrl.u32 %v1068, 7
    %v1070 = vsub.s32 %v1067, %v1069
    %v1071 = vrot.slane %v1055, %v1070
    %v1073 = vunpack.c.l.s4 1966171168
    %v1074 = vunpack.c.0.s8 %v1073
    %v1075 = vlaneseq
    %v1076 = vshrl.u32 %v1075, 7
    %v1077 = vsub.s32 %v1074, %v1076
    %v1078 = vrot.slane %v1062, %v1077
    %v1080 = vunpack.c.l.s4 1966171168
    %v1081 = vunpack.c.0.s8 %v1080
    %v1082 = vlaneseq
    %v1083 = vshrl.u32 %v1082, 7
    %v1084 = vsub.s32 %v1081, %v1083
    %v1085 = vrot.slane %v1063, %v1084
    %v1087 = vunpack.c.l.s4 1966171168
    %v1088 = vunpack.c.0.s8 %v1087
    %v1089 = vlaneseq
    %v1090 = vshrl.u32 %v1089, 7
    %v1091 = vsub.s32 %v1088, %v1090
    %v1092 = vrot.slane %v1064, %v1091
    %v1093 = vcombine.high %v1071, %v1071
    %v1094 = vcombine.high %v1078, %v1078
    %v1095 = vcombine.high %v1085, %v1085
    %v1096 = vcombine.high %v1092, %v1092
    %1105 = vst [vmem:[#allocation7] sm:$0x1] %v1071
    %1106 = vst [vmem:[#allocation7 + $0x1] sm:$0x1] %v1085
    %1107 = vst [vmem:[#allocation7 + $0x2] sm:$0x1] %v1093
    %1108 = vst [vmem:[#allocation7 + $0x3] sm:$0x1] %v1095
    %1109 = vst [vmem:[#allocation7 + $0x4] sm:$0x1] %v1078
    %1110 = vst [vmem:[#allocation7 + $0x5] sm:$0x1] %v1092
    %1111 = vst [vmem:[#allocation7 + $0x6] sm:$0x1] %v1094
    %1112 = vst [vmem:[#allocation7 + $0x7] sm:$0x1] %v1096
    %v1113 = vld [vmem:[%s8] sm:$0xf]
    %v1114 = vld [vmem:[%s8 + $0x4] sm:$0xf]
    %v1115 = vld [vmem:[%s8 + $0x8] sm:$0xf]
    %v1116 = vld [vmem:[%s8 + $0xc] sm:$0xf]
    %v1117 = vld [vmem:[%s9] sm:$0xf]
    %v1118 = vld [vmem:[%s9 + $0x4] sm:$0xf]
    %v1119 = vld [vmem:[%s9 + $0x8] sm:$0xf]
    %v1120 = vld [vmem:[%s9 + $0xc] sm:$0xf]
    %v1121 = vlaneseq
    %v1122 = vand.u32 %v1121, 127
    %vm1123 = vcmp.ge.s32.totalorder %v1122, 64
    %vm1124 = vcmp.lt.s32.totalorder %v1122, 96
    %vm1125 = vmand %vm1123, %vm1124
    %v1126 = vld [vmem:[#allocation2] sm:$0x1]
    %v1127 = vld [vmem:[#allocation3] sm:$0x1]
    %v1128 = vld [vmem:[#allocation4] sm:$0x1]
    %v1129 = vld [vmem:[#allocation5] sm:$0x1]
    %v1130 = vld [vmem:[#allocation6] sm:$0x1]
    %v1131 = vpack.c.bf16 %v1126, %v1126
    %v1136 = vunpack.c.l.b16 %v1113
    %v1137 = vunpack.c.l.b16 %v1114
    %v1138 = vunpack.c.l.b16 %v1115
    %v1139 = vunpack.c.l.b16 %v1116
    %v1140 = vpack.c.b16 %v1137, %v1136
    %v1141 = vpack.c.b16 %v1139, %v1138
    %v1145 = vsel %vm299, %v1131, 0
    %1147 = vmatprep.subr.bf16.mxu0 0
    %1148 = vmatpush1.bf16.msra.mxu0 %v1140
    %1149 = vmatprep.subr.bf16.mxu0 0
    %1150 = vmatpush1.bf16.msra.mxu0 %v1141
    %1151 = vmatprep.subr.bf16.mxu0 0
    %1152 = vmatpush1.bf16.msra.mxu0 0
    %1153 = vmatprep.subr.bf16.mxu0 0
    %1154 = vmatpush1.bf16.msra.mxu0 0
    %1155 = vmatprep.subr.bf16.mxu0 0
    %1156 = vmatpush1.bf16.msra.mxu0 0
    %1157 = vmatprep.subr.bf16.mxu0 0
    %1158 = vmatpush1.bf16.msra.mxu0 0
    %1159 = vmatprep.subr.bf16.mxu0 0
    %1160 = vmatpush1.bf16.msra.mxu0 0
    %1161 = vmatprep.subr.bf16.mxu0 0
    %1162 = vmatpush1.bf16.msra.mxu0 0
    %1163 = vmatprep.subr.bf16.mxu0 0
    %1164 = vmatpush1.bf16.msra.mxu0 0
    %1165 = vmatprep.subr.bf16.mxu0 0
    %1166 = vmatpush1.bf16.msra.mxu0 0
    %1167 = vmatprep.subr.bf16.mxu0 0
    %1168 = vmatpush1.bf16.msra.mxu0 0
    %1169 = vmatprep.subr.bf16.mxu0 0
    %1170 = vmatpush1.bf16.msra.mxu0 0
    %1171 = vmatprep.subr.bf16.mxu0 0
    %1172 = vmatpush1.bf16.msra.mxu0 0
    %1173 = vmatprep.subr.bf16.mxu0 0
    %1174 = vmatpush1.bf16.msra.mxu0 0
    %1175 = vmatprep.subr.bf16.mxu0 0
    %1176 = vmatpush1.bf16.msra.mxu0 0
    %1177 = vmatprep.subr.bf16.mxu0 0
    %1178 = vmatpush1.bf16.msra.mxu0 0
    %1179 = vmatprep.mubr.bf16.mxu0 0
    %1180 = vmatmul.mubr.bf16.gmra.mrb[0].mxu0 %v1145
    %v1181 = vpop.f32.mrb[0].mxu0
    %v1182 = vadd.f32 0.0, %v1181
    %v1183 = vpop.f32.mrb[0].mxu0
    %v1184 = vpop.f32.mrb[0].mxu0
    %v1185 = vpop.f32.mrb[0].mxu0
    %1186 = vdwg.mxu0
    %v1187 = vadd.f32 %v1130, %v1182
    %s1188 = scalar_lea.vmem [#allocation7], 7
    %v1189 = vld [vmem:[%s1188] sm:$0x1]
    %v1190 = vpack.c.bf16 %v1128, %v1128
    %v1195 = vunpack.c.l.b16 %v1117
    %v1196 = vunpack.c.l.b16 %v1118
    %v1197 = vunpack.c.l.b16 %v1119
    %v1198 = vunpack.c.l.b16 %v1120
    %v1199 = vpack.c.b16 %v1196, %v1195
    %v1200 = vpack.c.b16 %v1198, %v1197
    %v1204 = vsel %vm299, %v1190, 0
    %1206 = vmatprep.subr.bf16.mxu0 0
    %1207 = vmatpush1.bf16.msra.mxu0 %v1199
    %1208 = vmatprep.subr.bf16.mxu0 0
    %1209 = vmatpush1.bf16.msra.mxu0 %v1200
    %1210 = vmatprep.subr.bf16.mxu0 0
    %1211 = vmatpush1.bf16.msra.mxu0 0
    %1212 = vmatprep.subr.bf16.mxu0 0
    %1213 = vmatpush1.bf16.msra.mxu0 0
    %1214 = vmatprep.subr.bf16.mxu0 0
    %1215 = vmatpush1.bf16.msra.mxu0 0
    %1216 = vmatprep.subr.bf16.mxu0 0
    %1217 = vmatpush1.bf16.msra.mxu0 0
    %1218 = vmatprep.subr.bf16.mxu0 0
    %1219 = vmatpush1.bf16.msra.mxu0 0
    %1220 = vmatprep.subr.bf16.mxu0 0
    %1221 = vmatpush1.bf16.msra.mxu0 0
    %1222 = vmatprep.subr.bf16.mxu0 0
    %1223 = vmatpush1.bf16.msra.mxu0 0
    %1224 = vmatprep.subr.bf16.mxu0 0
    %1225 = vmatpush1.bf16.msra.mxu0 0
    %1226 = vmatprep.subr.bf16.mxu0 0
    %1227 = vmatpush1.bf16.msra.mxu0 0
    %1228 = vmatprep.subr.bf16.mxu0 0
    %1229 = vmatpush1.bf16.msra.mxu0 0
    %1230 = vmatprep.subr.bf16.mxu0 0
    %1231 = vmatpush1.bf16.msra.mxu0 0
    %1232 = vmatprep.subr.bf16.mxu0 0
    %1233 = vmatpush1.bf16.msra.mxu0 0
    %1234 = vmatprep.subr.bf16.mxu0 0
    %1235 = vmatpush1.bf16.msra.mxu0 0
    %1236 = vmatprep.subr.bf16.mxu0 0
    %1237 = vmatpush1.bf16.msra.mxu0 0
    %1238 = vmatprep.mubr.bf16.mxu0 0
    %1239 = vmatmul.mubr.bf16.gmra.mrb[0].mxu0 %v1204
    %v1240 = vpop.f32.mrb[0].mxu0
    %v1241 = vadd.f32 0.0, %v1240
    %v1242 = vpop.f32.mrb[0].mxu0
    %v1243 = vpop.f32.mrb[0].mxu0
    %v1244 = vpop.f32.mrb[0].mxu0
    %1245 = vdwg.mxu0
    %v1246 = vadd.f32 %v1189, %v1241
    %v1247 = vtanh.pop %v1187
    %v1248 = vxor.u32 %v1187, 2147483648
    %v1249 = vmul.f32 %v1248, 1.442695
    %v1250 = vpow.pop %v1249
    %v1251 = vadd.f32 %v1250, 1.0
    %v1252 = vrcp.pop %v1251
    %v1253 = vmul.f32 1.0, %v1252
    %v1254 = vsel %vm1125, %v1247, %v1253
    %v1255 = vtanh.pop %v1246
    %v1256 = vxor.u32 %v1246, 2147483648
    %v1257 = vmul.f32 %v1256, 1.442695
    %v1258 = vpow.pop %v1257
    %v1259 = vadd.f32 %v1258, 1.0
    %v1260 = vrcp.pop %v1259
    %v1261 = vmul.f32 1.0, %v1260
    %v1262 = vsel %vm1125, %v1255, %v1261
    %v1264 = vlaneseq
    %v1265 = vshrl.u32 %v1264, 7
    %v1266 = vsub.s32 0, %v1265
    %v1267 = vrot.slane %v1127, %v1266
    %1268 = vrot.lane.b32.xlu0 %v1267, 32
    %v1269 = vpop.permute.xlu0 %1268
    %v1271 = vmul.f32 %v1254, %v1269
    %1273 = vrot.lane.b32.xlu0 %v1254, 64
    %v1274 = vpop.permute.xlu0 %1273
    %v1276 = vmul.f32 %v1254, %v1274
    %1278 = vrot.lane.b32.xlu0 %v1276, 32
    %v1279 = vpop.permute.xlu0 %1278
    %v1281 = vadd.f32 %v1271, %v1279
    %v1282 = vtanh.pop %v1281
    %1284 = vrot.lane.b32.xlu0 %v1282, 64
    %v1285 = vpop.permute.xlu0 %1284
    %v1287 = vmul.f32 %v1254, %v1285
    %v1289 = vlaneseq
    %v1290 = vshrl.u32 %v1289, 7
    %v1291 = vsub.s32 0, %v1290
    %v1292 = vrot.slane %v1129, %v1291
    %1293 = vrot.lane.b32.xlu0 %v1292, 32
    %v1294 = vpop.permute.xlu0 %1293
    %v1296 = vmul.f32 %v1262, %v1294
    %1298 = vrot.lane.b32.xlu0 %v1262, 64
    %v1299 = vpop.permute.xlu0 %1298
    %v1301 = vmul.f32 %v1262, %v1299
    %1303 = vrot.lane.b32.xlu0 %v1301, 32
    %v1304 = vpop.permute.xlu0 %1303
    %v1306 = vadd.f32 %v1296, %v1304
    %v1307 = vtanh.pop %v1306
    %1309 = vrot.lane.b32.xlu0 %v1307, 64
    %v1310 = vpop.permute.xlu0 %1309
    %v1312 = vmul.f32 %v1262, %v1310
    %v1313 = vpack.c.bf16 %v1287, %v1287
    %v1316 = vunpack.c.l.s4 1966171168
    %v1317 = vunpack.c.0.s8 %v1316
    %v1318 = vlaneseq
    %v1319 = vshrl.u32 %v1318, 7
    %v1320 = vsub.s32 %v1317, %v1319
    %v1321 = vrot.slane %v1313, %v1320
    %v1323 = vunpack.c.l.s4 1966171168
    %v1324 = vunpack.c.0.s8 %v1323
    %v1325 = vlaneseq
    %v1326 = vshrl.u32 %v1325, 7
    %v1327 = vsub.s32 %v1324, %v1326
    %v1328 = vrot.slane %v1321, %v1327
    %1329 = vrot.lane.b32.xlu0 %v1328, 32
    %v1330 = vpop.permute.xlu0 %1329
    %vm1332 = vcmask 253952
    %vm1333 = vsmask.f32 256
    %vm1334 = vmand %vm1332, %vm1333
    %v1335 = vld [vmem:[%s12] sm:$0x1]
    %v1336 = vsel %vm1334, %v1330, %v1335
    %1337 = vst [vmem:[%s12] sm:$0x1] %v1336
    %v1338 = vpack.c.bf16 %v1312, %v1312
    %v1341 = vunpack.c.l.s4 1966171168
    %v1342 = vunpack.c.0.s8 %v1341
    %v1343 = vlaneseq
    %v1344 = vshrl.u32 %v1343, 7
    %v1345 = vsub.s32 %v1342, %v1344
    %v1346 = vrot.slane %v1338, %v1345
    %v1348 = vunpack.c.l.s4 1966171168
    %v1349 = vunpack.c.0.s8 %v1348
    %v1350 = vlaneseq
    %v1351 = vshrl.u32 %v1350, 7
    %v1352 = vsub.s32 %v1349, %v1351
    %v1353 = vrot.slane %v1346, %v1352
    %1354 = vrot.lane.b32.xlu0 %v1353, 32
    %v1355 = vpop.permute.xlu0 %1354
    %s1357 = scalar_lea.vmem %s102, 7
    %v1358 = vld [vmem:[%s1357] sm:$0x1]
    %v1359 = vsel %vm1334, %v1355, %v1358
    %1360 = vst [vmem:[%s1357] sm:$0x1] %v1359
    %s1361 = scalar_lea.vmem [#allocation6], 1
    %v1362 = vld [vmem:[%s1361] sm:$0x1]
    %1363 = vrot.lane.b32.xlu0 %v1313, 32
    %v1364 = vpop.permute.xlu0 %1363
    %v1366 = vsel %vm299, %v1364, 0
    %1368 = vmatprep.subr.bf16.mxu0 0
    %1369 = vmatpush1.bf16.msra.mxu0 %v1140
    %1370 = vmatprep.subr.bf16.mxu0 0
    %1371 = vmatpush1.bf16.msra.mxu0 %v1141
    %1372 = vmatprep.subr.bf16.mxu0 0
    %1373 = vmatpush1.bf16.msra.mxu0 0
    %1374 = vmatprep.subr.bf16.mxu0 0
    %1375 = vmatpush1.bf16.msra.mxu0 0
    %1376 = vmatprep.subr.bf16.mxu0 0
    %1377 = vmatpush1.bf16.msra.mxu0 0
    %1378 = vmatprep.subr.bf16.mxu0 0
    %1379 = vmatpush1.bf16.msra.mxu0 0
    %1380 = vmatprep.subr.bf16.mxu0 0
    %1381 = vmatpush1.bf16.msra.mxu0 0
    %1382 = vmatprep.subr.bf16.mxu0 0
    %1383 = vmatpush1.bf16.msra.mxu0 0
    %1384 = vmatprep.subr.bf16.mxu0 0
    %1385 = vmatpush1.bf16.msra.mxu0 0
    %1386 = vmatprep.subr.bf16.mxu0 0
    %1387 = vmatpush1.bf16.msra.mxu0 0
    %1388 = vmatprep.subr.bf16.mxu0 0
    %1389 = vmatpush1.bf16.msra.mxu0 0
    %1390 = vmatprep.subr.bf16.mxu0 0
    %1391 = vmatpush1.bf16.msra.mxu0 0
    %1392 = vmatprep.subr.bf16.mxu0 0
    %1393 = vmatpush1.bf16.msra.mxu0 0
    %1394 = vmatprep.subr.bf16.mxu0 0
    %1395 = vmatpush1.bf16.msra.mxu0 0
    %1396 = vmatprep.subr.bf16.mxu0 0
    %1397 = vmatpush1.bf16.msra.mxu0 0
    %1398 = vmatprep.subr.bf16.mxu0 0
    %1399 = vmatpush1.bf16.msra.mxu0 0
    %1400 = vmatprep.mubr.bf16.mxu0 0
    %1401 = vmatmul.mubr.bf16.gmra.mrb[0].mxu0 %v1366
    %v1402 = vpop.f32.mrb[0].mxu0
    %v1403 = vadd.f32 0.0, %v1402
    %v1404 = vpop.f32.mrb[0].mxu0
    %v1405 = vpop.f32.mrb[0].mxu0
    %v1406 = vpop.f32.mrb[0].mxu0
    %1407 = vdwg.mxu0
    %v1408 = vadd.f32 %v1362, %v1403
    %s1409 = scalar_lea.vmem [#allocation7], 6
    %v1410 = vld [vmem:[%s1409] sm:$0x1]
    %1411 = vrot.lane.b32.xlu0 %v1338, 32
    %v1412 = vpop.permute.xlu0 %1411
    %v1414 = vsel %vm299, %v1412, 0
    %1416 = vmatprep.subr.bf16.mxu0 0
    %1417 = vmatpush1.bf16.msra.mxu0 %v1199
    %1418 = vmatprep.subr.bf16.mxu0 0
    %1419 = vmatpush1.bf16.msra.mxu0 %v1200
    %1420 = vmatprep.subr.bf16.mxu0 0
    %1421 = vmatpush1.bf16.msra.mxu0 0
    %1422 = vmatprep.subr.bf16.mxu0 0
    %1423 = vmatpush1.bf16.msra.mxu0 0
    %1424 = vmatprep.subr.bf16.mxu0 0
    %1425 = vmatpush1.bf16.msra.mxu0 0
    %1426 = vmatprep.subr.bf16.mxu0 0
    %1427 = vmatpush1.bf16.msra.mxu0 0
    %1428 = vmatprep.subr.bf16.mxu0 0
    %1429 = vmatpush1.bf16.msra.mxu0 0
    %1430 = vmatprep.subr.bf16.mxu0 0
    %1431 = vmatpush1.bf16.msra.mxu0 0
    %1432 = vmatprep.subr.bf16.mxu0 0
    %1433 = vmatpush1.bf16.msra.mxu0 0
    %1434 = vmatprep.subr.bf16.mxu0 0
    %1435 = vmatpush1.bf16.msra.mxu0 0
    %1436 = vmatprep.subr.bf16.mxu0 0
    %1437 = vmatpush1.bf16.msra.mxu0 0
    %1438 = vmatprep.subr.bf16.mxu0 0
    %1439 = vmatpush1.bf16.msra.mxu0 0
    %1440 = vmatprep.subr.bf16.mxu0 0
    %1441 = vmatpush1.bf16.msra.mxu0 0
    %1442 = vmatprep.subr.bf16.mxu0 0
    %1443 = vmatpush1.bf16.msra.mxu0 0
    %1444 = vmatprep.subr.bf16.mxu0 0
    %1445 = vmatpush1.bf16.msra.mxu0 0
    %1446 = vmatprep.subr.bf16.mxu0 0
    %1447 = vmatpush1.bf16.msra.mxu0 0
    %1448 = vmatprep.mubr.bf16.mxu0 0
    %1449 = vmatmul.mubr.bf16.gmra.mrb[0].mxu0 %v1414
    %v1450 = vpop.f32.mrb[0].mxu0
    %v1451 = vadd.f32 0.0, %v1450
    %v1452 = vpop.f32.mrb[0].mxu0
    %v1453 = vpop.f32.mrb[0].mxu0
    %v1454 = vpop.f32.mrb[0].mxu0
    %1455 = vdwg.mxu0
    %v1456 = vadd.f32 %v1410, %v1451
    %v1457 = vtanh.pop %v1408
    %v1458 = vxor.u32 %v1408, 2147483648
    %v1459 = vmul.f32 %v1458, 1.442695
    %v1460 = vpow.pop %v1459
    %v1461 = vadd.f32 %v1460, 1.0
    %v1462 = vrcp.pop %v1461
    %v1463 = vmul.f32 1.0, %v1462
    %v1464 = vsel %vm1125, %v1457, %v1463
    %v1465 = vtanh.pop %v1456
    %v1466 = vxor.u32 %v1456, 2147483648
    %v1467 = vmul.f32 %v1466, 1.442695
    %v1468 = vpow.pop %v1467
    %v1469 = vadd.f32 %v1468, 1.0
    %v1470 = vrcp.pop %v1469
    %v1471 = vmul.f32 1.0, %v1470
    %v1472 = vsel %vm1125, %v1465, %v1471
    %v1473 = vmul.f32 %v1464, %v1281
    %1475 = vrot.lane.b32.xlu0 %v1464, 64
    %v1476 = vpop.permute.xlu0 %1475
    %v1478 = vmul.f32 %v1464, %v1476
    %1480 = vrot.lane.b32.xlu0 %v1478, 32
    %v1481 = vpop.permute.xlu0 %1480
    %v1483 = vadd.f32 %v1473, %v1481
    %v1484 = vtanh.pop %v1483
    %1486 = vrot.lane.b32.xlu0 %v1484, 64
    %v1487 = vpop.permute.xlu0 %1486
    %v1489 = vmul.f32 %v1464, %v1487
    %v1490 = vmul.f32 %v1472, %v1306
    %1492 = vrot.lane.b32.xlu0 %v1472, 64
    %v1493 = vpop.permute.xlu0 %1492
    %v1495 = vmul.f32 %v1472, %v1493
    %1497 = vrot.lane.b32.xlu0 %v1495, 32
    %v1498 = vpop.permute.xlu0 %1497
    %v1500 = vadd.f32 %v1490, %v1498
    %v1501 = vtanh.pop %v1500
    %1503 = vrot.lane.b32.xlu0 %v1501, 64
    %v1504 = vpop.permute.xlu0 %1503
    %v1506 = vmul.f32 %v1472, %v1504
    %v1507 = vpack.c.bf16 %v1489, %v1489
    %v1510 = vunpack.c.l.s4 1966171168
    %v1511 = vunpack.c.0.s8 %v1510
    %v1512 = vlaneseq
    %v1513 = vshrl.u32 %v1512, 7
    %v1514 = vsub.s32 %v1511, %v1513
    %v1515 = vrot.slane %v1507, %v1514
    %v1517 = vunpack.c.l.s4 1966171168
    %v1518 = vunpack.c.0.s8 %v1517
    %v1519 = vlaneseq
    %v1520 = vshrl.u32 %v1519, 7
    %v1521 = vsub.s32 %v1518, %v1520
    %v1522 = vrot.slane %v1515, %v1521
    %1523 = vrot.lane.b32.xlu0 %v1522, 32
    %v1524 = vpop.permute.xlu0 %1523
    %s1526 = scalar_lea.vmem %s12, 1
    %v1527 = vld [vmem:[%s1526] sm:$0x1]
    %v1528 = vsel %vm1334, %v1524, %v1527
    %1529 = vst [vmem:[%s1526] sm:$0x1] %v1528
    %v1530 = vpack.c.bf16 %v1506, %v1506
    %v1533 = vunpack.c.l.s4 1966171168
    %v1534 = vunpack.c.0.s8 %v1533
    %v1535 = vlaneseq
    %v1536 = vshrl.u32 %v1535, 7
    %v1537 = vsub.s32 %v1534, %v1536
    %v1538 = vrot.slane %v1530, %v1537
    %v1540 = vunpack.c.l.s4 1966171168
    %v1541 = vunpack.c.0.s8 %v1540
    %v1542 = vlaneseq
    %v1543 = vshrl.u32 %v1542, 7
    %v1544 = vsub.s32 %v1541, %v1543
    %v1545 = vrot.slane %v1538, %v1544
    %1546 = vrot.lane.b32.xlu0 %v1545, 32
    %v1547 = vpop.permute.xlu0 %1546
    %s1549 = scalar_lea.vmem %s102, 6
    %v1550 = vld [vmem:[%s1549] sm:$0x1]
    %v1551 = vsel %vm1334, %v1547, %v1550
    %1552 = vst [vmem:[%s1549] sm:$0x1] %v1551
    %s1553 = scalar_lea.vmem [#allocation6], 2
    %v1554 = vld [vmem:[%s1553] sm:$0x1]
    %1555 = vrot.lane.b32.xlu0 %v1507, 32
    %v1556 = vpop.permute.xlu0 %1555
    %v1558 = vsel %vm299, %v1556, 0
    %1560 = vmatprep.subr.bf16.mxu0 0
    %1561 = vmatpush1.bf16.msra.mxu0 %v1140
    %1562 = vmatprep.subr.bf16.mxu0 0
    %1563 = vmatpush1.bf16.msra.mxu0 %v1141
    %1564 = vmatprep.subr.bf16.mxu0 0
    %1565 = vmatpush1.bf16.msra.mxu0 0
    %1566 = vmatprep.subr.bf16.mxu0 0
    %1567 = vmatpush1.bf16.msra.mxu0 0
    %1568 = vmatprep.subr.bf16.mxu0 0
    %1569 = vmatpush1.bf16.msra.mxu0 0
    %1570 = vmatprep.subr.bf16.mxu0 0
    %1571 = vmatpush1.bf16.msra.mxu0 0
    %1572 = vmatprep.subr.bf16.mxu0 0
    %1573 = vmatpush1.bf16.msra.mxu0 0
    %1574 = vmatprep.subr.bf16.mxu0 0
    %1575 = vmatpush1.bf16.msra.mxu0 0
    %1576 = vmatprep.subr.bf16.mxu0 0
    %1577 = vmatpush1.bf16.msra.mxu0 0
    %1578 = vmatprep.subr.bf16.mxu0 0
    %1579 = vmatpush1.bf16.msra.mxu0 0
    %1580 = vmatprep.subr.bf16.mxu0 0
    %1581 = vmatpush1.bf16.msra.mxu0 0
    %1582 = vmatprep.subr.bf16.mxu0 0
    %1583 = vmatpush1.bf16.msra.mxu0 0
    %1584 = vmatprep.subr.bf16.mxu0 0
    %1585 = vmatpush1.bf16.msra.mxu0 0
    %1586 = vmatprep.subr.bf16.mxu0 0
    %1587 = vmatpush1.bf16.msra.mxu0 0
    %1588 = vmatprep.subr.bf16.mxu0 0
    %1589 = vmatpush1.bf16.msra.mxu0 0
    %1590 = vmatprep.subr.bf16.mxu0 0
    %1591 = vmatpush1.bf16.msra.mxu0 0
    %1592 = vmatprep.mubr.bf16.mxu0 0
    %1593 = vmatmul.mubr.bf16.gmra.mrb[0].mxu0 %v1558
    %v1594 = vpop.f32.mrb[0].mxu0
    %v1595 = vadd.f32 0.0, %v1594
    %v1596 = vpop.f32.mrb[0].mxu0
    %v1597 = vpop.f32.mrb[0].mxu0
    %v1598 = vpop.f32.mrb[0].mxu0
    %1599 = vdwg.mxu0
    %v1600 = vadd.f32 %v1554, %v1595
    %s1601 = scalar_lea.vmem [#allocation7], 5
    %v1602 = vld [vmem:[%s1601] sm:$0x1]
    %1603 = vrot.lane.b32.xlu0 %v1530, 32
    %v1604 = vpop.permute.xlu0 %1603
    %v1606 = vsel %vm299, %v1604, 0
    %1608 = vmatprep.subr.bf16.mxu0 0
    %1609 = vmatpush1.bf16.msra.mxu0 %v1199
    %1610 = vmatprep.subr.bf16.mxu0 0
    %1611 = vmatpush1.bf16.msra.mxu0 %v1200
    %1612 = vmatprep.subr.bf16.mxu0 0
    %1613 = vmatpush1.bf16.msra.mxu0 0
    %1614 = vmatprep.subr.bf16.mxu0 0
    %1615 = vmatpush1.bf16.msra.mxu0 0
    %1616 = vmatprep.subr.bf16.mxu0 0
    %1617 = vmatpush1.bf16.msra.mxu0 0
    %1618 = vmatprep.subr.bf16.mxu0 0
    %1619 = vmatpush1.bf16.msra.mxu0 0
    %1620 = vmatprep.subr.bf16.mxu0 0
    %1621 = vmatpush1.bf16.msra.mxu0 0
    %1622 = vmatprep.subr.bf16.mxu0 0
    %1623 = vmatpush1.bf16.msra.mxu0 0
    %1624 = vmatprep.subr.bf16.mxu0 0
    %1625 = vmatpush1.bf16.msra.mxu0 0
    %1626 = vmatprep.subr.bf16.mxu0 0
    %1627 = vmatpush1.bf16.msra.mxu0 0
    %1628 = vmatprep.subr.bf16.mxu0 0
    %1629 = vmatpush1.bf16.msra.mxu0 0
    %1630 = vmatprep.subr.bf16.mxu0 0
    %1631 = vmatpush1.bf16.msra.mxu0 0
    %1632 = vmatprep.subr.bf16.mxu0 0
    %1633 = vmatpush1.bf16.msra.mxu0 0
    %1634 = vmatprep.subr.bf16.mxu0 0
    %1635 = vmatpush1.bf16.msra.mxu0 0
    %1636 = vmatprep.subr.bf16.mxu0 0
    %1637 = vmatpush1.bf16.msra.mxu0 0
    %1638 = vmatprep.subr.bf16.mxu0 0
    %1639 = vmatpush1.bf16.msra.mxu0 0
    %1640 = vmatprep.mubr.bf16.mxu0 0
    %1641 = vmatmul.mubr.bf16.gmra.mrb[0].mxu0 %v1606
    %v1642 = vpop.f32.mrb[0].mxu0
    %v1643 = vadd.f32 0.0, %v1642
    %v1644 = vpop.f32.mrb[0].mxu0
    %v1645 = vpop.f32.mrb[0].mxu0
    %v1646 = vpop.f32.mrb[0].mxu0
    %1647 = vdwg.mxu0
    %v1648 = vadd.f32 %v1602, %v1643
    %v1649 = vtanh.pop %v1600
    %v1650 = vxor.u32 %v1600, 2147483648
    %v1651 = vmul.f32 %v1650, 1.442695
    %v1652 = vpow.pop %v1651
    %v1653 = vadd.f32 %v1652, 1.0
    %v1654 = vrcp.pop %v1653
    %v1655 = vmul.f32 1.0, %v1654
    %v1656 = vsel %vm1125, %v1649, %v1655
    %v1657 = vtanh.pop %v1648
    %v1658 = vxor.u32 %v1648, 2147483648
    %v1659 = vmul.f32 %v1658, 1.442695
    %v1660 = vpow.pop %v1659
    %v1661 = vadd.f32 %v1660, 1.0
    %v1662 = vrcp.pop %v1661
    %v1663 = vmul.f32 1.0, %v1662
    %v1664 = vsel %vm1125, %v1657, %v1663
    %v1665 = vmul.f32 %v1656, %v1483
    %1667 = vrot.lane.b32.xlu0 %v1656, 64
    %v1668 = vpop.permute.xlu0 %1667
    %v1670 = vmul.f32 %v1656, %v1668
    %1672 = vrot.lane.b32.xlu0 %v1670, 32
    %v1673 = vpop.permute.xlu0 %1672
    %v1675 = vadd.f32 %v1665, %v1673
    %v1676 = vtanh.pop %v1675
    %1678 = vrot.lane.b32.xlu0 %v1676, 64
    %v1679 = vpop.permute.xlu0 %1678
    %v1681 = vmul.f32 %v1656, %v1679
    %v1682 = vmul.f32 %v1664, %v1500
    %1684 = vrot.lane.b32.xlu0 %v1664, 64
    %v1685 = vpop.permute.xlu0 %1684
    %v1687 = vmul.f32 %v1664, %v1685
    %1689 = vrot.lane.b32.xlu0 %v1687, 32
    %v1690 = vpop.permute.xlu0 %1689
    %v1692 = vadd.f32 %v1682, %v1690
    %v1693 = vtanh.pop %v1692
    %1695 = vrot.lane.b32.xlu0 %v1693, 64
    %v1696 = vpop.permute.xlu0 %1695
    %v1698 = vmul.f32 %v1664, %v1696
    %v1699 = vpack.c.bf16 %v1681, %v1681
    %v1702 = vunpack.c.l.s4 1966171168
    %v1703 = vunpack.c.0.s8 %v1702
    %v1704 = vlaneseq
    %v1705 = vshrl.u32 %v1704, 7
    %v1706 = vsub.s32 %v1703, %v1705
    %v1707 = vrot.slane %v1699, %v1706
    %v1709 = vunpack.c.l.s4 1966171168
    %v1710 = vunpack.c.0.s8 %v1709
    %v1711 = vlaneseq
    %v1712 = vshrl.u32 %v1711, 7
    %v1713 = vsub.s32 %v1710, %v1712
    %v1714 = vrot.slane %v1707, %v1713
    %1715 = vrot.lane.b32.xlu0 %v1714, 32
    %v1716 = vpop.permute.xlu0 %1715
    %s1718 = scalar_lea.vmem %s12, 2
    %v1719 = vld [vmem:[%s1718] sm:$0x1]
    %v1720 = vsel %vm1334, %v1716, %v1719
    %1721 = vst [vmem:[%s1718] sm:$0x1] %v1720
    %v1722 = vpack.c.bf16 %v1698, %v1698
    %v1725 = vunpack.c.l.s4 1966171168
    %v1726 = vunpack.c.0.s8 %v1725
    %v1727 = vlaneseq
    %v1728 = vshrl.u32 %v1727, 7
    %v1729 = vsub.s32 %v1726, %v1728
    %v1730 = vrot.slane %v1722, %v1729
    %v1732 = vunpack.c.l.s4 1966171168
    %v1733 = vunpack.c.0.s8 %v1732
    %v1734 = vlaneseq
    %v1735 = vshrl.u32 %v1734, 7
    %v1736 = vsub.s32 %v1733, %v1735
    %v1737 = vrot.slane %v1730, %v1736
    %1738 = vrot.lane.b32.xlu0 %v1737, 32
    %v1739 = vpop.permute.xlu0 %1738
    %s1741 = scalar_lea.vmem %s102, 5
    %v1742 = vld [vmem:[%s1741] sm:$0x1]
    %v1743 = vsel %vm1334, %v1739, %v1742
    %1744 = vst [vmem:[%s1741] sm:$0x1] %v1743
    %s1745 = scalar_lea.vmem [#allocation6], 3
    %v1746 = vld [vmem:[%s1745] sm:$0x1]
    %1747 = vrot.lane.b32.xlu0 %v1699, 32
    %v1748 = vpop.permute.xlu0 %1747
    %v1750 = vsel %vm299, %v1748, 0
    %1752 = vmatprep.subr.bf16.mxu0 0
    %1753 = vmatpush1.bf16.msra.mxu0 %v1140
    %1754 = vmatprep.subr.bf16.mxu0 0
    %1755 = vmatpush1.bf16.msra.mxu0 %v1141
    %1756 = vmatprep.subr.bf16.mxu0 0
    %1757 = vmatpush1.bf16.msra.mxu0 0
    %1758 = vmatprep.subr.bf16.mxu0 0
    %1759 = vmatpush1.bf16.msra.mxu0 0
    %1760 = vmatprep.subr.bf16.mxu0 0
    %1761 = vmatpush1.bf16.msra.mxu0 0
    %1762 = vmatprep.subr.bf16.mxu0 0
    %1763 = vmatpush1.bf16.msra.mxu0 0
    %1764 = vmatprep.subr.bf16.mxu0 0
    %1765 = vmatpush1.bf16.msra.mxu0 0
    %1766 = vmatprep.subr.bf16.mxu0 0
    %1767 = vmatpush1.bf16.msra.mxu0 0
    %1768 = vmatprep.subr.bf16.mxu0 0
    %1769 = vmatpush1.bf16.msra.mxu0 0
    %1770 = vmatprep.subr.bf16.mxu0 0
    %1771 = vmatpush1.bf16.msra.mxu0 0
    %1772 = vmatprep.subr.bf16.mxu0 0
    %1773 = vmatpush1.bf16.msra.mxu0 0
    %1774 = vmatprep.subr.bf16.mxu0 0
    %1775 = vmatpush1.bf16.msra.mxu0 0
    %1776 = vmatprep.subr.bf16.mxu0 0
    %1777 = vmatpush1.bf16.msra.mxu0 0
    %1778 = vmatprep.subr.bf16.mxu0 0
    %1779 = vmatpush1.bf16.msra.mxu0 0
    %1780 = vmatprep.subr.bf16.mxu0 0
    %1781 = vmatpush1.bf16.msra.mxu0 0
    %1782 = vmatprep.subr.bf16.mxu0 0
    %1783 = vmatpush1.bf16.msra.mxu0 0
    %1784 = vmatprep.mubr.bf16.mxu0 0
    %1785 = vmatmul.mubr.bf16.gmra.mrb[0].mxu0 %v1750
    %v1786 = vpop.f32.mrb[0].mxu0
    %v1787 = vadd.f32 0.0, %v1786
    %v1788 = vpop.f32.mrb[0].mxu0
    %v1789 = vpop.f32.mrb[0].mxu0
    %v1790 = vpop.f32.mrb[0].mxu0
    %1791 = vdwg.mxu0
    %v1792 = vadd.f32 %v1746, %v1787
    %s1793 = scalar_lea.vmem [#allocation7], 4
    %v1794 = vld [vmem:[%s1793] sm:$0x1]
    %1795 = vrot.lane.b32.xlu0 %v1722, 32
    %v1796 = vpop.permute.xlu0 %1795
    %v1798 = vsel %vm299, %v1796, 0
    %1800 = vmatprep.subr.bf16.mxu0 0
    %1801 = vmatpush1.bf16.msra.mxu0 %v1199
    %1802 = vmatprep.subr.bf16.mxu0 0
    %1803 = vmatpush1.bf16.msra.mxu0 %v1200
    %1804 = vmatprep.subr.bf16.mxu0 0
    %1805 = vmatpush1.bf16.msra.mxu0 0
    %1806 = vmatprep.subr.bf16.mxu0 0
    %1807 = vmatpush1.bf16.msra.mxu0 0
    %1808 = vmatprep.subr.bf16.mxu0 0
    %1809 = vmatpush1.bf16.msra.mxu0 0
    %1810 = vmatprep.subr.bf16.mxu0 0
    %1811 = vmatpush1.bf16.msra.mxu0 0
    %1812 = vmatprep.subr.bf16.mxu0 0
    %1813 = vmatpush1.bf16.msra.mxu0 0
    %1814 = vmatprep.subr.bf16.mxu0 0
    %1815 = vmatpush1.bf16.msra.mxu0 0
    %1816 = vmatprep.subr.bf16.mxu0 0
    %1817 = vmatpush1.bf16.msra.mxu0 0
    %1818 = vmatprep.subr.bf16.mxu0 0
    %1819 = vmatpush1.bf16.msra.mxu0 0
    %1820 = vmatprep.subr.bf16.mxu0 0
    %1821 = vmatpush1.bf16.msra.mxu0 0
    %1822 = vmatprep.subr.bf16.mxu0 0
    %1823 = vmatpush1.bf16.msra.mxu0 0
    %1824 = vmatprep.subr.bf16.mxu0 0
    %1825 = vmatpush1.bf16.msra.mxu0 0
    %1826 = vmatprep.subr.bf16.mxu0 0
    %1827 = vmatpush1.bf16.msra.mxu0 0
    %1828 = vmatprep.subr.bf16.mxu0 0
    %1829 = vmatpush1.bf16.msra.mxu0 0
    %1830 = vmatprep.subr.bf16.mxu0 0
    %1831 = vmatpush1.bf16.msra.mxu0 0
    %1832 = vmatprep.mubr.bf16.mxu0 0
    %1833 = vmatmul.mubr.bf16.gmra.mrb[0].mxu0 %v1798
    %v1834 = vpop.f32.mrb[0].mxu0
    %v1835 = vadd.f32 0.0, %v1834
    %v1836 = vpop.f32.mrb[0].mxu0
    %v1837 = vpop.f32.mrb[0].mxu0
    %v1838 = vpop.f32.mrb[0].mxu0
    %1839 = vdwg.mxu0
    %v1840 = vadd.f32 %v1794, %v1835
    %v1841 = vtanh.pop %v1792
    %v1842 = vxor.u32 %v1792, 2147483648
    %v1843 = vmul.f32 %v1842, 1.442695
    %v1844 = vpow.pop %v1843
    %v1845 = vadd.f32 %v1844, 1.0
    %v1846 = vrcp.pop %v1845
    %v1847 = vmul.f32 1.0, %v1846
    %v1848 = vsel %vm1125, %v1841, %v1847
    %v1849 = vtanh.pop %v1840
    %v1850 = vxor.u32 %v1840, 2147483648
    %v1851 = vmul.f32 %v1850, 1.442695
    %v1852 = vpow.pop %v1851
    %v1853 = vadd.f32 %v1852, 1.0
    %v1854 = vrcp.pop %v1853
    %v1855 = vmul.f32 1.0, %v1854
    %v1856 = vsel %vm1125, %v1849, %v1855
    %v1857 = vmul.f32 %v1848, %v1675
    %1859 = vrot.lane.b32.xlu0 %v1848, 64
    %v1860 = vpop.permute.xlu0 %1859
    %v1862 = vmul.f32 %v1848, %v1860
    %1864 = vrot.lane.b32.xlu0 %v1862, 32
    %v1865 = vpop.permute.xlu0 %1864
    %v1867 = vadd.f32 %v1857, %v1865
    %v1868 = vtanh.pop %v1867
    %1870 = vrot.lane.b32.xlu0 %v1868, 64
    %v1871 = vpop.permute.xlu0 %1870
    %v1873 = vmul.f32 %v1848, %v1871
    %v1874 = vmul.f32 %v1856, %v1692
    %1876 = vrot.lane.b32.xlu0 %v1856, 64
    %v1877 = vpop.permute.xlu0 %1876
    %v1879 = vmul.f32 %v1856, %v1877
    %1881 = vrot.lane.b32.xlu0 %v1879, 32
    %v1882 = vpop.permute.xlu0 %1881
    %v1884 = vadd.f32 %v1874, %v1882
    %v1885 = vtanh.pop %v1884
    %1887 = vrot.lane.b32.xlu0 %v1885, 64
    %v1888 = vpop.permute.xlu0 %1887
    %v1890 = vmul.f32 %v1856, %v1888
    %v1891 = vpack.c.bf16 %v1873, %v1873
    %v1894 = vunpack.c.l.s4 1966171168
    %v1895 = vunpack.c.0.s8 %v1894
    %v1896 = vlaneseq
    %v1897 = vshrl.u32 %v1896, 7
    %v1898 = vsub.s32 %v1895, %v1897
    %v1899 = vrot.slane %v1891, %v1898
    %v1901 = vunpack.c.l.s4 1966171168
    %v1902 = vunpack.c.0.s8 %v1901
    %v1903 = vlaneseq
    %v1904 = vshrl.u32 %v1903, 7
    %v1905 = vsub.s32 %v1902, %v1904
    %v1906 = vrot.slane %v1899, %v1905
    %1907 = vrot.lane.b32.xlu0 %v1906, 32
    %v1908 = vpop.permute.xlu0 %1907
    %s1910 = scalar_lea.vmem %s12, 3
    %v1911 = vld [vmem:[%s1910] sm:$0x1]
    %v1912 = vsel %vm1334, %v1908, %v1911
    %1913 = vst [vmem:[%s1910] sm:$0x1] %v1912
    %v1914 = vpack.c.bf16 %v1890, %v1890
    %v1917 = vunpack.c.l.s4 1966171168
    %v1918 = vunpack.c.0.s8 %v1917
    %v1919 = vlaneseq
    %v1920 = vshrl.u32 %v1919, 7
    %v1921 = vsub.s32 %v1918, %v1920
    %v1922 = vrot.slane %v1914, %v1921
    %v1924 = vunpack.c.l.s4 1966171168
    %v1925 = vunpack.c.0.s8 %v1924
    %v1926 = vlaneseq
    %v1927 = vshrl.u32 %v1926, 7
    %v1928 = vsub.s32 %v1925, %v1927
    %v1929 = vrot.slane %v1922, %v1928
    %1930 = vrot.lane.b32.xlu0 %v1929, 32
    %v1931 = vpop.permute.xlu0 %1930
    %s1933 = scalar_lea.vmem %s102, 4
    %v1934 = vld [vmem:[%s1933] sm:$0x1]
    %v1935 = vsel %vm1334, %v1931, %v1934
    %1936 = vst [vmem:[%s1933] sm:$0x1] %v1935
    %s1937 = scalar_lea.vmem [#allocation6], 4
    %v1938 = vld [vmem:[%s1937] sm:$0x1]
    %1939 = vrot.lane.b32.xlu0 %v1891, 32
    %v1940 = vpop.permute.xlu0 %1939
    %v1942 = vsel %vm299, %v1940, 0
    %1944 = vmatprep.subr.bf16.mxu0 0
    %1945 = vmatpush1.bf16.msra.mxu0 %v1140
    %1946 = vmatprep.subr.bf16.mxu0 0
    %1947 = vmatpush1.bf16.msra.mxu0 %v1141
    %1948 = vmatprep.subr.bf16.mxu0 0
    %1949 = vmatpush1.bf16.msra.mxu0 0
    %1950 = vmatprep.subr.bf16.mxu0 0
    %1951 = vmatpush1.bf16.msra.mxu0 0
    %1952 = vmatprep.subr.bf16.mxu0 0
    %1953 = vmatpush1.bf16.msra.mxu0 0
    %1954 = vmatprep.subr.bf16.mxu0 0
    %1955 = vmatpush1.bf16.msra.mxu0 0
    %1956 = vmatprep.subr.bf16.mxu0 0
    %1957 = vmatpush1.bf16.msra.mxu0 0
    %1958 = vmatprep.subr.bf16.mxu0 0
    %1959 = vmatpush1.bf16.msra.mxu0 0
    %1960 = vmatprep.subr.bf16.mxu0 0
    %1961 = vmatpush1.bf16.msra.mxu0 0
    %1962 = vmatprep.subr.bf16.mxu0 0
    %1963 = vmatpush1.bf16.msra.mxu0 0
    %1964 = vmatprep.subr.bf16.mxu0 0
    %1965 = vmatpush1.bf16.msra.mxu0 0
    %1966 = vmatprep.subr.bf16.mxu0 0
    %1967 = vmatpush1.bf16.msra.mxu0 0
    %1968 = vmatprep.subr.bf16.mxu0 0
    %1969 = vmatpush1.bf16.msra.mxu0 0
    %1970 = vmatprep.subr.bf16.mxu0 0
    %1971 = vmatpush1.bf16.msra.mxu0 0
    %1972 = vmatprep.subr.bf16.mxu0 0
    %1973 = vmatpush1.bf16.msra.mxu0 0
    %1974 = vmatprep.subr.bf16.mxu0 0
    %1975 = vmatpush1.bf16.msra.mxu0 0
    %1976 = vmatprep.mubr.bf16.mxu0 0
    %1977 = vmatmul.mubr.bf16.gmra.mrb[0].mxu0 %v1942
    %v1978 = vpop.f32.mrb[0].mxu0
    %v1979 = vadd.f32 0.0, %v1978
    %v1980 = vpop.f32.mrb[0].mxu0
    %v1981 = vpop.f32.mrb[0].mxu0
    %v1982 = vpop.f32.mrb[0].mxu0
    %1983 = vdwg.mxu0
    %v1984 = vadd.f32 %v1938, %v1979
    %s1985 = scalar_lea.vmem [#allocation7], 3
    %v1986 = vld [vmem:[%s1985] sm:$0x1]
    %1987 = vrot.lane.b32.xlu0 %v1914, 32
    %v1988 = vpop.permute.xlu0 %1987
    %v1990 = vsel %vm299, %v1988, 0
    %1992 = vmatprep.subr.bf16.mxu0 0
    %1993 = vmatpush1.bf16.msra.mxu0 %v1199
    %1994 = vmatprep.subr.bf16.mxu0 0
    %1995 = vmatpush1.bf16.msra.mxu0 %v1200
    %1996 = vmatprep.subr.bf16.mxu0 0
    %1997 = vmatpush1.bf16.msra.mxu0 0
    %1998 = vmatprep.subr.bf16.mxu0 0
    %1999 = vmatpush1.bf16.msra.mxu0 0
    %2000 = vmatprep.subr.bf16.mxu0 0
    %2001 = vmatpush1.bf16.msra.mxu0 0
    %2002 = vmatprep.subr.bf16.mxu0 0
    %2003 = vmatpush1.bf16.msra.mxu0 0
    %2004 = vmatprep.subr.bf16.mxu0 0
    %2005 = vmatpush1.bf16.msra.mxu0 0
    %2006 = vmatprep.subr.bf16.mxu0 0
    %2007 = vmatpush1.bf16.msra.mxu0 0
    %2008 = vmatprep.subr.bf16.mxu0 0
    %2009 = vmatpush1.bf16.msra.mxu0 0
    %2010 = vmatprep.subr.bf16.mxu0 0
    %2011 = vmatpush1.bf16.msra.mxu0 0
    %2012 = vmatprep.subr.bf16.mxu0 0
    %2013 = vmatpush1.bf16.msra.mxu0 0
    %2014 = vmatprep.subr.bf16.mxu0 0
    %2015 = vmatpush1.bf16.msra.mxu0 0
    %2016 = vmatprep.subr.bf16.mxu0 0
    %2017 = vmatpush1.bf16.msra.mxu0 0
    %2018 = vmatprep.subr.bf16.mxu0 0
    %2019 = vmatpush1.bf16.msra.mxu0 0
    %2020 = vmatprep.subr.bf16.mxu0 0
    %2021 = vmatpush1.bf16.msra.mxu0 0
    %2022 = vmatprep.subr.bf16.mxu0 0
    %2023 = vmatpush1.bf16.msra.mxu0 0
    %2024 = vmatprep.mubr.bf16.mxu0 0
    %2025 = vmatmul.mubr.bf16.gmra.mrb[0].mxu0 %v1990
    %v2026 = vpop.f32.mrb[0].mxu0
    %v2027 = vadd.f32 0.0, %v2026
    %v2028 = vpop.f32.mrb[0].mxu0
    %v2029 = vpop.f32.mrb[0].mxu0
    %v2030 = vpop.f32.mrb[0].mxu0
    %2031 = vdwg.mxu0
    %v2032 = vadd.f32 %v1986, %v2027
    %v2033 = vtanh.pop %v1984
    %v2034 = vxor.u32 %v1984, 2147483648
    %v2035 = vmul.f32 %v2034, 1.442695
    %v2036 = vpow.pop %v2035
    %v2037 = vadd.f32 %v2036, 1.0
    %v2038 = vrcp.pop %v2037
    %v2039 = vmul.f32 1.0, %v2038
    %v2040 = vsel %vm1125, %v2033, %v2039
    %v2041 = vtanh.pop %v2032
    %v2042 = vxor.u32 %v2032, 2147483648
    %v2043 = vmul.f32 %v2042, 1.442695
    %v2044 = vpow.pop %v2043
    %v2045 = vadd.f32 %v2044, 1.0
    %v2046 = vrcp.pop %v2045
    %v2047 = vmul.f32 1.0, %v2046
    %v2048 = vsel %vm1125, %v2041, %v2047
    %v2049 = vmul.f32 %v2040, %v1867
    %2051 = vrot.lane.b32.xlu0 %v2040, 64
    %v2052 = vpop.permute.xlu0 %2051
    %v2054 = vmul.f32 %v2040, %v2052
    %2056 = vrot.lane.b32.xlu0 %v2054, 32
    %v2057 = vpop.permute.xlu0 %2056
    %v2059 = vadd.f32 %v2049, %v2057
    %v2060 = vtanh.pop %v2059
    %2062 = vrot.lane.b32.xlu0 %v2060, 64
    %v2063 = vpop.permute.xlu0 %2062
    %v2065 = vmul.f32 %v2040, %v2063
    %v2066 = vmul.f32 %v2048, %v1884
    %2068 = vrot.lane.b32.xlu0 %v2048, 64
    %v2069 = vpop.permute.xlu0 %2068
    %v2071 = vmul.f32 %v2048, %v2069
    %2073 = vrot.lane.b32.xlu0 %v2071, 32
    %v2074 = vpop.permute.xlu0 %2073
    %v2076 = vadd.f32 %v2066, %v2074
    %v2077 = vtanh.pop %v2076
    %2079 = vrot.lane.b32.xlu0 %v2077, 64
    %v2080 = vpop.permute.xlu0 %2079
    %v2082 = vmul.f32 %v2048, %v2080
    %v2083 = vpack.c.bf16 %v2065, %v2065
    %v2086 = vunpack.c.l.s4 1966171168
    %v2087 = vunpack.c.0.s8 %v2086
    %v2088 = vlaneseq
    %v2089 = vshrl.u32 %v2088, 7
    %v2090 = vsub.s32 %v2087, %v2089
    %v2091 = vrot.slane %v2083, %v2090
    %v2093 = vunpack.c.l.s4 1966171168
    %v2094 = vunpack.c.0.s8 %v2093
    %v2095 = vlaneseq
    %v2096 = vshrl.u32 %v2095, 7
    %v2097 = vsub.s32 %v2094, %v2096
    %v2098 = vrot.slane %v2091, %v2097
    %2099 = vrot.lane.b32.xlu0 %v2098, 32
    %v2100 = vpop.permute.xlu0 %2099
    %s2102 = scalar_lea.vmem %s12, 4
    %v2103 = vld [vmem:[%s2102] sm:$0x1]
    %v2104 = vsel %vm1334, %v2100, %v2103
    %2105 = vst [vmem:[%s2102] sm:$0x1] %v2104
    %v2106 = vpack.c.bf16 %v2082, %v2082
    %v2109 = vunpack.c.l.s4 1966171168
    %v2110 = vunpack.c.0.s8 %v2109
    %v2111 = vlaneseq
    %v2112 = vshrl.u32 %v2111, 7
    %v2113 = vsub.s32 %v2110, %v2112
    %v2114 = vrot.slane %v2106, %v2113
    %v2116 = vunpack.c.l.s4 1966171168
    %v2117 = vunpack.c.0.s8 %v2116
    %v2118 = vlaneseq
    %v2119 = vshrl.u32 %v2118, 7
    %v2120 = vsub.s32 %v2117, %v2119
    %v2121 = vrot.slane %v2114, %v2120
    %2122 = vrot.lane.b32.xlu0 %v2121, 32
    %v2123 = vpop.permute.xlu0 %2122
    %s2125 = scalar_lea.vmem %s102, 3
    %v2126 = vld [vmem:[%s2125] sm:$0x1]
    %v2127 = vsel %vm1334, %v2123, %v2126
    %2128 = vst [vmem:[%s2125] sm:$0x1] %v2127
    %s2129 = scalar_lea.vmem [#allocation6], 5
    %v2130 = vld [vmem:[%s2129] sm:$0x1]
    %2131 = vrot.lane.b32.xlu0 %v2083, 32
    %v2132 = vpop.permute.xlu0 %2131
    %v2134 = vsel %vm299, %v2132, 0
    %2136 = vmatprep.subr.bf16.mxu0 0
    %2137 = vmatpush1.bf16.msra.mxu0 %v1140
    %2138 = vmatprep.subr.bf16.mxu0 0
    %2139 = vmatpush1.bf16.msra.mxu0 %v1141
    %2140 = vmatprep.subr.bf16.mxu0 0
    %2141 = vmatpush1.bf16.msra.mxu0 0
    %2142 = vmatprep.subr.bf16.mxu0 0
    %2143 = vmatpush1.bf16.msra.mxu0 0
    %2144 = vmatprep.subr.bf16.mxu0 0
    %2145 = vmatpush1.bf16.msra.mxu0 0
    %2146 = vmatprep.subr.bf16.mxu0 0
    %2147 = vmatpush1.bf16.msra.mxu0 0
    %2148 = vmatprep.subr.bf16.mxu0 0
    %2149 = vmatpush1.bf16.msra.mxu0 0
    %2150 = vmatprep.subr.bf16.mxu0 0
    %2151 = vmatpush1.bf16.msra.mxu0 0
    %2152 = vmatprep.subr.bf16.mxu0 0
    %2153 = vmatpush1.bf16.msra.mxu0 0
    %2154 = vmatprep.subr.bf16.mxu0 0
    %2155 = vmatpush1.bf16.msra.mxu0 0
    %2156 = vmatprep.subr.bf16.mxu0 0
    %2157 = vmatpush1.bf16.msra.mxu0 0
    %2158 = vmatprep.subr.bf16.mxu0 0
    %2159 = vmatpush1.bf16.msra.mxu0 0
    %2160 = vmatprep.subr.bf16.mxu0 0
    %2161 = vmatpush1.bf16.msra.mxu0 0
    %2162 = vmatprep.subr.bf16.mxu0 0
    %2163 = vmatpush1.bf16.msra.mxu0 0
    %2164 = vmatprep.subr.bf16.mxu0 0
    %2165 = vmatpush1.bf16.msra.mxu0 0
    %2166 = vmatprep.subr.bf16.mxu0 0
    %2167 = vmatpush1.bf16.msra.mxu0 0
    %2168 = vmatprep.mubr.bf16.mxu0 0
    %2169 = vmatmul.mubr.bf16.gmra.mrb[0].mxu0 %v2134
    %v2170 = vpop.f32.mrb[0].mxu0
    %v2171 = vadd.f32 0.0, %v2170
    %v2172 = vpop.f32.mrb[0].mxu0
    %v2173 = vpop.f32.mrb[0].mxu0
    %v2174 = vpop.f32.mrb[0].mxu0
    %2175 = vdwg.mxu0
    %v2176 = vadd.f32 %v2130, %v2171
    %s2177 = scalar_lea.vmem [#allocation7], 2
    %v2178 = vld [vmem:[%s2177] sm:$0x1]
    %2179 = vrot.lane.b32.xlu0 %v2106, 32
    %v2180 = vpop.permute.xlu0 %2179
    %v2182 = vsel %vm299, %v2180, 0
    %2184 = vmatprep.subr.bf16.mxu0 0
    %2185 = vmatpush1.bf16.msra.mxu0 %v1199
    %2186 = vmatprep.subr.bf16.mxu0 0
    %2187 = vmatpush1.bf16.msra.mxu0 %v1200
    %2188 = vmatprep.subr.bf16.mxu0 0
    %2189 = vmatpush1.bf16.msra.mxu0 0
    %2190 = vmatprep.subr.bf16.mxu0 0
    %2191 = vmatpush1.bf16.msra.mxu0 0
    %2192 = vmatprep.subr.bf16.mxu0 0
    %2193 = vmatpush1.bf16.msra.mxu0 0
    %2194 = vmatprep.subr.bf16.mxu0 0
    %2195 = vmatpush1.bf16.msra.mxu0 0
    %2196 = vmatprep.subr.bf16.mxu0 0
    %2197 = vmatpush1.bf16.msra.mxu0 0
    %2198 = vmatprep.subr.bf16.mxu0 0
    %2199 = vmatpush1.bf16.msra.mxu0 0
    %2200 = vmatprep.subr.bf16.mxu0 0
    %2201 = vmatpush1.bf16.msra.mxu0 0
    %2202 = vmatprep.subr.bf16.mxu0 0
    %2203 = vmatpush1.bf16.msra.mxu0 0
    %2204 = vmatprep.subr.bf16.mxu0 0
    %2205 = vmatpush1.bf16.msra.mxu0 0
    %2206 = vmatprep.subr.bf16.mxu0 0
    %2207 = vmatpush1.bf16.msra.mxu0 0
    %2208 = vmatprep.subr.bf16.mxu0 0
    %2209 = vmatpush1.bf16.msra.mxu0 0
    %2210 = vmatprep.subr.bf16.mxu0 0
    %2211 = vmatpush1.bf16.msra.mxu0 0
    %2212 = vmatprep.subr.bf16.mxu0 0
    %2213 = vmatpush1.bf16.msra.mxu0 0
    %2214 = vmatprep.subr.bf16.mxu0 0
    %2215 = vmatpush1.bf16.msra.mxu0 0
    %2216 = vmatprep.mubr.bf16.mxu0 0
    %2217 = vmatmul.mubr.bf16.gmra.mrb[0].mxu0 %v2182
    %v2218 = vpop.f32.mrb[0].mxu0
    %v2219 = vadd.f32 0.0, %v2218
    %v2220 = vpop.f32.mrb[0].mxu0
    %v2221 = vpop.f32.mrb[0].mxu0
    %v2222 = vpop.f32.mrb[0].mxu0
    %2223 = vdwg.mxu0
    %v2224 = vadd.f32 %v2178, %v2219
    %v2225 = vtanh.pop %v2176
    %v2226 = vxor.u32 %v2176, 2147483648
    %v2227 = vmul.f32 %v2226, 1.442695
    %v2228 = vpow.pop %v2227
    %v2229 = vadd.f32 %v2228, 1.0
    %v2230 = vrcp.pop %v2229
    %v2231 = vmul.f32 1.0, %v2230
    %v2232 = vsel %vm1125, %v2225, %v2231
    %v2233 = vtanh.pop %v2224
    %v2234 = vxor.u32 %v2224, 2147483648
    %v2235 = vmul.f32 %v2234, 1.442695
    %v2236 = vpow.pop %v2235
    %v2237 = vadd.f32 %v2236, 1.0
    %v2238 = vrcp.pop %v2237
    %v2239 = vmul.f32 1.0, %v2238
    %v2240 = vsel %vm1125, %v2233, %v2239
    %v2241 = vmul.f32 %v2232, %v2059
    %2243 = vrot.lane.b32.xlu0 %v2232, 64
    %v2244 = vpop.permute.xlu0 %2243
    %v2246 = vmul.f32 %v2232, %v2244
    %2248 = vrot.lane.b32.xlu0 %v2246, 32
    %v2249 = vpop.permute.xlu0 %2248
    %v2251 = vadd.f32 %v2241, %v2249
    %v2252 = vtanh.pop %v2251
    %2254 = vrot.lane.b32.xlu0 %v2252, 64
    %v2255 = vpop.permute.xlu0 %2254
    %v2257 = vmul.f32 %v2232, %v2255
    %v2258 = vmul.f32 %v2240, %v2076
    %2260 = vrot.lane.b32.xlu0 %v2240, 64
    %v2261 = vpop.permute.xlu0 %2260
    %v2263 = vmul.f32 %v2240, %v2261
    %2265 = vrot.lane.b32.xlu0 %v2263, 32
    %v2266 = vpop.permute.xlu0 %2265
    %v2268 = vadd.f32 %v2258, %v2266
    %v2269 = vtanh.pop %v2268
    %2271 = vrot.lane.b32.xlu0 %v2269, 64
    %v2272 = vpop.permute.xlu0 %2271
    %v2274 = vmul.f32 %v2240, %v2272
    %v2275 = vpack.c.bf16 %v2257, %v2257
    %v2278 = vunpack.c.l.s4 1966171168
    %v2279 = vunpack.c.0.s8 %v2278
    %v2280 = vlaneseq
    %v2281 = vshrl.u32 %v2280, 7
    %v2282 = vsub.s32 %v2279, %v2281
    %v2283 = vrot.slane %v2275, %v2282
    %v2285 = vunpack.c.l.s4 1966171168
    %v2286 = vunpack.c.0.s8 %v2285
    %v2287 = vlaneseq
    %v2288 = vshrl.u32 %v2287, 7
    %v2289 = vsub.s32 %v2286, %v2288
    %v2290 = vrot.slane %v2283, %v2289
    %2291 = vrot.lane.b32.xlu0 %v2290, 32
    %v2292 = vpop.permute.xlu0 %2291
    %s2294 = scalar_lea.vmem %s12, 5
    %v2295 = vld [vmem:[%s2294] sm:$0x1]
    %v2296 = vsel %vm1334, %v2292, %v2295
    %2297 = vst [vmem:[%s2294] sm:$0x1] %v2296
    %v2298 = vpack.c.bf16 %v2274, %v2274
    %v2301 = vunpack.c.l.s4 1966171168
    %v2302 = vunpack.c.0.s8 %v2301
    %v2303 = vlaneseq
    %v2304 = vshrl.u32 %v2303, 7
    %v2305 = vsub.s32 %v2302, %v2304
    %v2306 = vrot.slane %v2298, %v2305
    %v2308 = vunpack.c.l.s4 1966171168
    %v2309 = vunpack.c.0.s8 %v2308
    %v2310 = vlaneseq
    %v2311 = vshrl.u32 %v2310, 7
    %v2312 = vsub.s32 %v2309, %v2311
    %v2313 = vrot.slane %v2306, %v2312
    %2314 = vrot.lane.b32.xlu0 %v2313, 32
    %v2315 = vpop.permute.xlu0 %2314
    %s2317 = scalar_lea.vmem %s102, 2
    %v2318 = vld [vmem:[%s2317] sm:$0x1]
    %v2319 = vsel %vm1334, %v2315, %v2318
    %2320 = vst [vmem:[%s2317] sm:$0x1] %v2319
    %s2321 = scalar_lea.vmem [#allocation6], 6
    %v2322 = vld [vmem:[%s2321] sm:$0x1]
    %2323 = vrot.lane.b32.xlu0 %v2275, 32
    %v2324 = vpop.permute.xlu0 %2323
    %v2326 = vsel %vm299, %v2324, 0
    %2328 = vmatprep.subr.bf16.mxu0 0
    %2329 = vmatpush1.bf16.msra.mxu0 %v1140
    %2330 = vmatprep.subr.bf16.mxu0 0
    %2331 = vmatpush1.bf16.msra.mxu0 %v1141
    %2332 = vmatprep.subr.bf16.mxu0 0
    %2333 = vmatpush1.bf16.msra.mxu0 0
    %2334 = vmatprep.subr.bf16.mxu0 0
    %2335 = vmatpush1.bf16.msra.mxu0 0
    %2336 = vmatprep.subr.bf16.mxu0 0
    %2337 = vmatpush1.bf16.msra.mxu0 0
    %2338 = vmatprep.subr.bf16.mxu0 0
    %2339 = vmatpush1.bf16.msra.mxu0 0
    %2340 = vmatprep.subr.bf16.mxu0 0
    %2341 = vmatpush1.bf16.msra.mxu0 0
    %2342 = vmatprep.subr.bf16.mxu0 0
    %2343 = vmatpush1.bf16.msra.mxu0 0
    %2344 = vmatprep.subr.bf16.mxu0 0
    %2345 = vmatpush1.bf16.msra.mxu0 0
    %2346 = vmatprep.subr.bf16.mxu0 0
    %2347 = vmatpush1.bf16.msra.mxu0 0
    %2348 = vmatprep.subr.bf16.mxu0 0
    %2349 = vmatpush1.bf16.msra.mxu0 0
    %2350 = vmatprep.subr.bf16.mxu0 0
    %2351 = vmatpush1.bf16.msra.mxu0 0
    %2352 = vmatprep.subr.bf16.mxu0 0
    %2353 = vmatpush1.bf16.msra.mxu0 0
    %2354 = vmatprep.subr.bf16.mxu0 0
    %2355 = vmatpush1.bf16.msra.mxu0 0
    %2356 = vmatprep.subr.bf16.mxu0 0
    %2357 = vmatpush1.bf16.msra.mxu0 0
    %2358 = vmatprep.subr.bf16.mxu0 0
    %2359 = vmatpush1.bf16.msra.mxu0 0
    %2360 = vmatprep.mubr.bf16.mxu0 0
    %2361 = vmatmul.mubr.bf16.gmra.mrb[0].mxu0 %v2326
    %v2362 = vpop.f32.mrb[0].mxu0
    %v2363 = vadd.f32 0.0, %v2362
    %v2364 = vpop.f32.mrb[0].mxu0
    %v2365 = vpop.f32.mrb[0].mxu0
    %v2366 = vpop.f32.mrb[0].mxu0
    %2367 = vdwg.mxu0
    %v2368 = vadd.f32 %v2322, %v2363
    %s2369 = scalar_lea.vmem [#allocation7], 1
    %v2370 = vld [vmem:[%s2369] sm:$0x1]
    %2371 = vrot.lane.b32.xlu0 %v2298, 32
    %v2372 = vpop.permute.xlu0 %2371
    %v2374 = vsel %vm299, %v2372, 0
    %2376 = vmatprep.subr.bf16.mxu0 0
    %2377 = vmatpush1.bf16.msra.mxu0 %v1199
    %2378 = vmatprep.subr.bf16.mxu0 0
    %2379 = vmatpush1.bf16.msra.mxu0 %v1200
    %2380 = vmatprep.subr.bf16.mxu0 0
    %2381 = vmatpush1.bf16.msra.mxu0 0
    %2382 = vmatprep.subr.bf16.mxu0 0
    %2383 = vmatpush1.bf16.msra.mxu0 0
    %2384 = vmatprep.subr.bf16.mxu0 0
    %2385 = vmatpush1.bf16.msra.mxu0 0
    %2386 = vmatprep.subr.bf16.mxu0 0
    %2387 = vmatpush1.bf16.msra.mxu0 0
    %2388 = vmatprep.subr.bf16.mxu0 0
    %2389 = vmatpush1.bf16.msra.mxu0 0
    %2390 = vmatprep.subr.bf16.mxu0 0
    %2391 = vmatpush1.bf16.msra.mxu0 0
    %2392 = vmatprep.subr.bf16.mxu0 0
    %2393 = vmatpush1.bf16.msra.mxu0 0
    %2394 = vmatprep.subr.bf16.mxu0 0
    %2395 = vmatpush1.bf16.msra.mxu0 0
    %2396 = vmatprep.subr.bf16.mxu0 0
    %2397 = vmatpush1.bf16.msra.mxu0 0
    %2398 = vmatprep.subr.bf16.mxu0 0
    %2399 = vmatpush1.bf16.msra.mxu0 0
    %2400 = vmatprep.subr.bf16.mxu0 0
    %2401 = vmatpush1.bf16.msra.mxu0 0
    %2402 = vmatprep.subr.bf16.mxu0 0
    %2403 = vmatpush1.bf16.msra.mxu0 0
    %2404 = vmatprep.subr.bf16.mxu0 0
    %2405 = vmatpush1.bf16.msra.mxu0 0
    %2406 = vmatprep.subr.bf16.mxu0 0
    %2407 = vmatpush1.bf16.msra.mxu0 0
    %2408 = vmatprep.mubr.bf16.mxu0 0
    %2409 = vmatmul.mubr.bf16.gmra.mrb[0].mxu0 %v2374
    %v2410 = vpop.f32.mrb[0].mxu0
    %v2411 = vadd.f32 0.0, %v2410
    %v2412 = vpop.f32.mrb[0].mxu0
    %v2413 = vpop.f32.mrb[0].mxu0
    %v2414 = vpop.f32.mrb[0].mxu0
    %2415 = vdwg.mxu0
    %v2416 = vadd.f32 %v2370, %v2411
    %v2417 = vtanh.pop %v2368
    %v2418 = vxor.u32 %v2368, 2147483648
    %v2419 = vmul.f32 %v2418, 1.442695
    %v2420 = vpow.pop %v2419
    %v2421 = vadd.f32 %v2420, 1.0
    %v2422 = vrcp.pop %v2421
    %v2423 = vmul.f32 1.0, %v2422
    %v2424 = vsel %vm1125, %v2417, %v2423
    %v2425 = vtanh.pop %v2416
    %v2426 = vxor.u32 %v2416, 2147483648
    %v2427 = vmul.f32 %v2426, 1.442695
    %v2428 = vpow.pop %v2427
    %v2429 = vadd.f32 %v2428, 1.0
    %v2430 = vrcp.pop %v2429
    %v2431 = vmul.f32 1.0, %v2430
    %v2432 = vsel %vm1125, %v2425, %v2431
    %v2433 = vmul.f32 %v2424, %v2251
    %2435 = vrot.lane.b32.xlu0 %v2424, 64
    %v2436 = vpop.permute.xlu0 %2435
    %v2438 = vmul.f32 %v2424, %v2436
    %2440 = vrot.lane.b32.xlu0 %v2438, 32
    %v2441 = vpop.permute.xlu0 %2440
    %v2443 = vadd.f32 %v2433, %v2441
    %v2444 = vtanh.pop %v2443
    %2446 = vrot.lane.b32.xlu0 %v2444, 64
    %v2447 = vpop.permute.xlu0 %2446
    %v2449 = vmul.f32 %v2424, %v2447
    %v2450 = vmul.f32 %v2432, %v2268
    %2452 = vrot.lane.b32.xlu0 %v2432, 64
    %v2453 = vpop.permute.xlu0 %2452
    %v2455 = vmul.f32 %v2432, %v2453
    %2457 = vrot.lane.b32.xlu0 %v2455, 32
    %v2458 = vpop.permute.xlu0 %2457
    %v2460 = vadd.f32 %v2450, %v2458
    %v2461 = vtanh.pop %v2460
    %2463 = vrot.lane.b32.xlu0 %v2461, 64
    %v2464 = vpop.permute.xlu0 %2463
    %v2466 = vmul.f32 %v2432, %v2464
    %v2467 = vpack.c.bf16 %v2449, %v2449
    %v2470 = vunpack.c.l.s4 1966171168
    %v2471 = vunpack.c.0.s8 %v2470
    %v2472 = vlaneseq
    %v2473 = vshrl.u32 %v2472, 7
    %v2474 = vsub.s32 %v2471, %v2473
    %v2475 = vrot.slane %v2467, %v2474
    %v2477 = vunpack.c.l.s4 1966171168
    %v2478 = vunpack.c.0.s8 %v2477
    %v2479 = vlaneseq
    %v2480 = vshrl.u32 %v2479, 7
    %v2481 = vsub.s32 %v2478, %v2480
    %v2482 = vrot.slane %v2475, %v2481
    %2483 = vrot.lane.b32.xlu0 %v2482, 32
    %v2484 = vpop.permute.xlu0 %2483
    %s2486 = scalar_lea.vmem %s12, 6
    %v2487 = vld [vmem:[%s2486] sm:$0x1]
    %v2488 = vsel %vm1334, %v2484, %v2487
    %2489 = vst [vmem:[%s2486] sm:$0x1] %v2488
    %v2490 = vpack.c.bf16 %v2466, %v2466
    %v2493 = vunpack.c.l.s4 1966171168
    %v2494 = vunpack.c.0.s8 %v2493
    %v2495 = vlaneseq
    %v2496 = vshrl.u32 %v2495, 7
    %v2497 = vsub.s32 %v2494, %v2496
    %v2498 = vrot.slane %v2490, %v2497
    %v2500 = vunpack.c.l.s4 1966171168
    %v2501 = vunpack.c.0.s8 %v2500
    %v2502 = vlaneseq
    %v2503 = vshrl.u32 %v2502, 7
    %v2504 = vsub.s32 %v2501, %v2503
    %v2505 = vrot.slane %v2498, %v2504
    %2506 = vrot.lane.b32.xlu0 %v2505, 32
    %v2507 = vpop.permute.xlu0 %2506
    %s2509 = scalar_lea.vmem %s102, 1
    %v2510 = vld [vmem:[%s2509] sm:$0x1]
    %v2511 = vsel %vm1334, %v2507, %v2510
    %2512 = vst [vmem:[%s2509] sm:$0x1] %v2511
    %s2513 = scalar_lea.vmem [#allocation6], 7
    %v2514 = vld [vmem:[%s2513] sm:$0x1]
    %2515 = vrot.lane.b32.xlu0 %v2467, 32
    %v2516 = vpop.permute.xlu0 %2515
    %v2518 = vsel %vm299, %v2516, 0
    %2520 = vmatprep.subr.bf16.mxu0 0
    %2521 = vmatpush1.bf16.msra.mxu0 %v1140
    %2522 = vmatprep.subr.bf16.mxu0 0
    %2523 = vmatpush1.bf16.msra.mxu0 %v1141
    %2524 = vmatprep.subr.bf16.mxu0 0
    %2525 = vmatpush1.bf16.msra.mxu0 0
    %2526 = vmatprep.subr.bf16.mxu0 0
    %2527 = vmatpush1.bf16.msra.mxu0 0
    %2528 = vmatprep.subr.bf16.mxu0 0
    %2529 = vmatpush1.bf16.msra.mxu0 0
    %2530 = vmatprep.subr.bf16.mxu0 0
    %2531 = vmatpush1.bf16.msra.mxu0 0
    %2532 = vmatprep.subr.bf16.mxu0 0
    %2533 = vmatpush1.bf16.msra.mxu0 0
    %2534 = vmatprep.subr.bf16.mxu0 0
    %2535 = vmatpush1.bf16.msra.mxu0 0
    %2536 = vmatprep.subr.bf16.mxu0 0
    %2537 = vmatpush1.bf16.msra.mxu0 0
    %2538 = vmatprep.subr.bf16.mxu0 0
    %2539 = vmatpush1.bf16.msra.mxu0 0
    %2540 = vmatprep.subr.bf16.mxu0 0
    %2541 = vmatpush1.bf16.msra.mxu0 0
    %2542 = vmatprep.subr.bf16.mxu0 0
    %2543 = vmatpush1.bf16.msra.mxu0 0
    %2544 = vmatprep.subr.bf16.mxu0 0
    %2545 = vmatpush1.bf16.msra.mxu0 0
    %2546 = vmatprep.subr.bf16.mxu0 0
    %2547 = vmatpush1.bf16.msra.mxu0 0
    %2548 = vmatprep.subr.bf16.mxu0 0
    %2549 = vmatpush1.bf16.msra.mxu0 0
    %2550 = vmatprep.subr.bf16.mxu0 0
    %2551 = vmatpush1.bf16.msra.mxu0 0
    %2552 = vmatprep.mubr.bf16.mxu0 0
    %2553 = vmatmul.mubr.bf16.gmra.mrb[0].mxu0 %v2518
    %v2554 = vpop.f32.mrb[0].mxu0
    %v2555 = vadd.f32 0.0, %v2554
    %v2556 = vpop.f32.mrb[0].mxu0
    %v2557 = vpop.f32.mrb[0].mxu0
    %v2558 = vpop.f32.mrb[0].mxu0
    %2559 = vdwg.mxu0
    %v2560 = vadd.f32 %v2514, %v2555
    %v2561 = vld [vmem:[#allocation7] sm:$0x1]
    %2562 = vrot.lane.b32.xlu0 %v2490, 32
    %v2563 = vpop.permute.xlu0 %2562
    %v2565 = vsel %vm299, %v2563, 0
    %2567 = vmatprep.subr.bf16.mxu0 0
    %2568 = vmatpush1.bf16.msra.mxu0 %v1199
    %2569 = vmatprep.subr.bf16.mxu0 0
    %2570 = vmatpush1.bf16.msra.mxu0 %v1200
    %2571 = vmatprep.subr.bf16.mxu0 0
    %2572 = vmatpush1.bf16.msra.mxu0 0
    %2573 = vmatprep.subr.bf16.mxu0 0
    %2574 = vmatpush1.bf16.msra.mxu0 0
    %2575 = vmatprep.subr.bf16.mxu0 0
    %2576 = vmatpush1.bf16.msra.mxu0 0
    %2577 = vmatprep.subr.bf16.mxu0 0
    %2578 = vmatpush1.bf16.msra.mxu0 0
    %2579 = vmatprep.subr.bf16.mxu0 0
    %2580 = vmatpush1.bf16.msra.mxu0 0
    %2581 = vmatprep.subr.bf16.mxu0 0
    %2582 = vmatpush1.bf16.msra.mxu0 0
    %2583 = vmatprep.subr.bf16.mxu0 0
    %2584 = vmatpush1.bf16.msra.mxu0 0
    %2585 = vmatprep.subr.bf16.mxu0 0
    %2586 = vmatpush1.bf16.msra.mxu0 0
    %2587 = vmatprep.subr.bf16.mxu0 0
    %2588 = vmatpush1.bf16.msra.mxu0 0
    %2589 = vmatprep.subr.bf16.mxu0 0
    %2590 = vmatpush1.bf16.msra.mxu0 0
    %2591 = vmatprep.subr.bf16.mxu0 0
    %2592 = vmatpush1.bf16.msra.mxu0 0
    %2593 = vmatprep.subr.bf16.mxu0 0
    %2594 = vmatpush1.bf16.msra.mxu0 0
    %2595 = vmatprep.subr.bf16.mxu0 0
    %2596 = vmatpush1.bf16.msra.mxu0 0
    %2597 = vmatprep.subr.bf16.mxu0 0
    %2598 = vmatpush1.bf16.msra.mxu0 0
    %2599 = vmatprep.mubr.bf16.mxu0 0
    %2600 = vmatmul.mubr.bf16.gmra.mrb[0].mxu0 %v2565
    %v2601 = vpop.f32.mrb[0].mxu0
    %v2602 = vadd.f32 0.0, %v2601
    %v2603 = vpop.f32.mrb[0].mxu0
    %v2604 = vpop.f32.mrb[0].mxu0
    %v2605 = vpop.f32.mrb[0].mxu0
    %2606 = vdwg.mxu0
    %v2607 = vadd.f32 %v2561, %v2602
    %v2608 = vtanh.pop %v2560
    %v2609 = vxor.u32 %v2560, 2147483648
    %v2610 = vmul.f32 %v2609, 1.442695
    %v2611 = vpow.pop %v2610
    %v2612 = vadd.f32 %v2611, 1.0
    %v2613 = vrcp.pop %v2612
    %v2614 = vmul.f32 1.0, %v2613
    %v2615 = vsel %vm1125, %v2608, %v2614
    %v2616 = vtanh.pop %v2607
    %v2617 = vxor.u32 %v2607, 2147483648
    %v2618 = vmul.f32 %v2617, 1.442695
    %v2619 = vpow.pop %v2618
    %v2620 = vadd.f32 %v2619, 1.0
    %v2621 = vrcp.pop %v2620
    %v2622 = vmul.f32 1.0, %v2621
    %v2623 = vsel %vm1125, %v2616, %v2622
    %v2624 = vmul.f32 %v2615, %v2443
    %2626 = vrot.lane.b32.xlu0 %v2615, 64
    %v2627 = vpop.permute.xlu0 %2626
    %v2629 = vmul.f32 %v2615, %v2627
    %2631 = vrot.lane.b32.xlu0 %v2629, 32
    %v2632 = vpop.permute.xlu0 %2631
    %v2634 = vadd.f32 %v2624, %v2632
    %v2635 = vtanh.pop %v2634
    %2637 = vrot.lane.b32.xlu0 %v2635, 64
    %v2638 = vpop.permute.xlu0 %2637
    %v2640 = vmul.f32 %v2615, %v2638
    %v2641 = vmul.f32 %v2623, %v2460
    %2643 = vrot.lane.b32.xlu0 %v2623, 64
    %v2644 = vpop.permute.xlu0 %2643
    %v2646 = vmul.f32 %v2623, %v2644
    %2648 = vrot.lane.b32.xlu0 %v2646, 32
    %v2649 = vpop.permute.xlu0 %2648
    %v2651 = vadd.f32 %v2641, %v2649
    %v2652 = vtanh.pop %v2651
    %2654 = vrot.lane.b32.xlu0 %v2652, 64
    %v2655 = vpop.permute.xlu0 %2654
    %v2657 = vmul.f32 %v2623, %v2655
    %v2658 = vpack.c.bf16 %v2640, %v2640
    %v2661 = vunpack.c.l.s4 1966171168
    %v2662 = vunpack.c.0.s8 %v2661
    %v2663 = vlaneseq
    %v2664 = vshrl.u32 %v2663, 7
    %v2665 = vsub.s32 %v2662, %v2664
    %v2666 = vrot.slane %v2658, %v2665
    %v2668 = vunpack.c.l.s4 1966171168
    %v2669 = vunpack.c.0.s8 %v2668
    %v2670 = vlaneseq
    %v2671 = vshrl.u32 %v2670, 7
    %v2672 = vsub.s32 %v2669, %v2671
    %v2673 = vrot.slane %v2666, %v2672
    %2674 = vrot.lane.b32.xlu0 %v2673, 32
    %v2675 = vpop.permute.xlu0 %2674
    %s2677 = scalar_lea.vmem %s12, 7
    %v2678 = vld [vmem:[%s2677] sm:$0x1]
    %v2679 = vsel %vm1334, %v2675, %v2678
    %2680 = vst [vmem:[%s2677] sm:$0x1] %v2679
    %v2681 = vpack.c.bf16 %v2657, %v2657
    %v2684 = vunpack.c.l.s4 1966171168
    %v2685 = vunpack.c.0.s8 %v2684
    %v2686 = vlaneseq
    %v2687 = vshrl.u32 %v2686, 7
    %v2688 = vsub.s32 %v2685, %v2687
    %v2689 = vrot.slane %v2681, %v2688
    %v2691 = vunpack.c.l.s4 1966171168
    %v2692 = vunpack.c.0.s8 %v2691
    %v2693 = vlaneseq
    %v2694 = vshrl.u32 %v2693, 7
    %v2695 = vsub.s32 %v2692, %v2694
    %v2696 = vrot.slane %v2689, %v2695
    %2697 = vrot.lane.b32.xlu0 %v2696, 32
    %v2698 = vpop.permute.xlu0 %2697
    %v2700 = vld [vmem:[%s102] sm:$0x1]
    %v2701 = vsel %vm1334, %v2698, %v2700
    %2702 = vst [vmem:[%s102] sm:$0x1] %v2701
    %2704 = vrot.lane.b32.xlu0 %v2640, 32
    %v2705 = vpop.permute.xlu0 %2704
    %vm2707 = vcmask 253952
    %2708 = vst.msk [vmem:[#allocation2] sm:$0x1] %vm2707, %v2705
    %2710 = vrot.lane.b32.xlu0 %v2634, 96
    %v2711 = vpop.permute.xlu0 %2710
    %2713 = vst.msk [vmem:[#allocation3] sm:$0x1] %vm2707, %v2711
    %2715 = vrot.lane.b32.xlu0 %v2657, 32
    %v2716 = vpop.permute.xlu0 %2715
    %2718 = vst.msk [vmem:[#allocation4] sm:$0x1] %vm2707, %v2716
    %2720 = vrot.lane.b32.xlu0 %v2651, 96
    %v2721 = vpop.permute.xlu0 %2720
    %2723 = vst.msk [vmem:[#allocation5] sm:$0x1] %vm2707, %v2721
    %s2724 = ssub.s32 0, 0
    %s2725 = smul.u32 8, %s2724
    %p2726 = scmp.lt.s32.totalorder %s2725, 7
    %s2727 = scalar_select %p2726, %s2725, 7
    %s2728 = scalar_lea.vmem %s13, %s2727
    // Predicated region
    $region58: #{vocalnet_forward.3} parent=1 // pred_check
      _
    $region59: #{vocalnet_forward.3} parent=1 // pred_check_branch
      %2730 = sbr.rel (0) target = $region61
    $region60: #{vocalnet_forward.3} parent=1 // pred_region
      _
    $region61: #{vocalnet_forward.3} parent=1 // pred_fallthru
      _
    // Predicated region
    $region62: #{vocalnet_forward.3} parent=1 // pred_check
      _
    $region63: #{vocalnet_forward.3} parent=1 // pred_check_branch
      %2732 = sbr.rel (0) target = $region65
    $region64: #{vocalnet_forward.3} parent=1 // pred_region
      %s2733 = ssub.s32 0, 0
      %s2734 = smul.u32 8, %s2733
    $region65: #{vocalnet_forward.3} parent=1 // pred_fallthru
      _
    // Predicated region
    $region66: #{vocalnet_forward.3} parent=1 // pred_check
      _
    $region67: #{vocalnet_forward.3} parent=1 // pred_check_branch
      %2736 = sbr.rel (0) target = $region69
    $region68: #{vocalnet_forward.3} parent=1 // pred_region
      _
    $region69: #{vocalnet_forward.3} parent=1 // pred_fallthru
      _
    // Predicated region
    $region70: #{vocalnet_forward.3} parent=1 // pred_check
      _
    $region71: #{vocalnet_forward.3} parent=1 // pred_check_branch
      %2738 = sbr.rel (0) target = $region73
    $region72: #{vocalnet_forward.3} parent=1 // pred_region
      %s2739 = ssub.s32 0, 0
      %s2740 = smul.u32 8, %s2739
      %p2741 = scmp.lt.s32.totalorder %s2740, 7
      %s2742 = scalar_select %p2741, %s2740, 7
      %s2743 = scalar_lea.vmem %s13, %s2742
    $region73: #{vocalnet_forward.3} parent=1 // pred_fallthru
      _
    %2744 = vsyncpa [#allocation9], 1

</llo_original>
